<compile_context>
chip_gen: v7x
topology: tpu7x:2x2x1
jax: 0.10.0
libtpu: 0.0.40
codegen_flags: <defaults>
</compile_context>

<pallas_src>
import jax
import jax.numpy as jnp
import numpy as np
from jax.experimental import pallas as pl
from jax.experimental.pallas import tpu as pltpu

D = 768      # feature dim fixed by the module (T is 768x768)
K = 10       # FM factor dim (V has 10 columns)
CN = 256     # column chunk for the blocked x1 / xsq accumulation (D % CN == 0)


def ntfm_kernel(content_ref, tag_ref, tmat_ref, wvc_ref, wvt_ref, vsq_ref,
                w3_ref, b_ref, out_ref):
    c = content_ref[...]                                   # (TB, D) bf16
    t = tag_ref[...]                                       # (TB, D) bf16
    tb = c.shape[0]

    # Fused skinny matmul: columns 0..K-1 are x@V, column K is x@W.
    cwv = (jnp.dot(c, wvc_ref[...], preferred_element_type=jnp.float32)
           + jnp.dot(t, wvt_ref[...], preferred_element_type=jnp.float32))  # (TB, K+1)
    xv = cwv[:, :K]                                        # (TB, K)
    x2 = cwv[:, K:K + 1]                                   # (TB, 1)

    # x1 and the (x^2 . rowsum(V^2)) term, accumulated over 256-wide column
    # chunks of T / feature chunks.  No full (TB, D) f32 intermediate is ever
    # materialized; each chunk is consumed immediately (sequential accumulation
    # keeps live ranges to one chunk in the 3x unrolled loop).
    x1 = jnp.zeros((tb, 1), jnp.float32)
    xsq = jnp.zeros((tb, 1), jnp.float32)
    for j in range(D // CN):
        lo = j * CN
        ct = jnp.dot(c, tmat_ref[:, lo:lo + CN],
                     preferred_element_type=jnp.float32)           # (TB, CN) f32
        cc = c[:, lo:lo + CN].astype(jnp.float32)                  # (TB, CN) f32
        tc = t[:, lo:lo + CN].astype(jnp.float32)                  # (TB, CN) f32
        x1 = x1 + jnp.sum(ct * tc, axis=1, keepdims=True)
        xsq = xsq + jnp.sum(cc * cc * vsq_ref[0:1, lo:lo + CN]
                            + tc * tc * vsq_ref[1:2, lo:lo + CN],
                            axis=1, keepdims=True)

    pair = 0.5 * (jnp.sum(xv * xv, axis=1, keepdims=True) - xsq)   # (TB, 1)

    # y = [x1, x2, pair] @ weights ; out = relu(y + b)
    y = x1 * w3_ref[0] + x2 * w3_ref[1] + pair * w3_ref[2] + b_ref[0]
    out_ref[...] = jnp.maximum(y, 0.0)                     # (TB, 1) f32


def _pick_tb(B):
    # 256 fills the 256-row MXU tile on v6e/v7x and amortizes per-step
    # overhead; 128 for small batches keeps the "parallel" grid axis at >= 2
    # steps so v7x's two TensorCores both get work.
    return 256 if B > 256 else 128


def neural_tensor_fm(content, tag, T, W, V, weights, b):
    B = content.shape[0]
    assert content.shape[1] == D and tag.shape == content.shape

    TB = _pick_tb(B)
    # Pad batch to a multiple of TB (padded rows compute relu(b) and are dropped).
    B_pad = ((B + TB - 1) // TB) * TB
    if B_pad != B:
        pad = B_pad - B
        content = jnp.pad(content, ((0, pad), (0, 0)))
        tag = jnp.pad(tag, ((0, pad), (0, 0)))

    # Split concat-space params into content/tag halves; fuse [V | W] columns.
    # Round V/W to bf16 first and derive vsq from the *rounded* V so the two
    # halves of the cancellation-sensitive pair term see the same V.
    Vc_bf = V[:D].astype(jnp.bfloat16)                     # (D, K)
    Vt_bf = V[D:].astype(jnp.bfloat16)
    Wc_bf = W[:D].astype(jnp.bfloat16)                     # (D, 1)
    Wt_bf = W[D:].astype(jnp.bfloat16)
    WVc_bf = jnp.concatenate([Vc_bf, Wc_bf], axis=1)       # (D, K+1)
    WVt_bf = jnp.concatenate([Vt_bf, Wt_bf], axis=1)       # (D, K+1)
    Vc32 = Vc_bf.astype(jnp.float32)
    Vt32 = Vt_bf.astype(jnp.float32)
    vsq = jnp.stack([jnp.sum(Vc32 * Vc32, axis=1),
                     jnp.sum(Vt32 * Vt32, axis=1)], axis=0)         # (2, D) f32

    c_bf = content.astype(jnp.bfloat16)
    t_bf = tag.astype(jnp.bfloat16)
    T_bf = T.astype(jnp.bfloat16)

    grid = (B_pad // TB,)
    out = pl.pallas_call(
        ntfm_kernel,
        out_shape=jax.ShapeDtypeStruct((B_pad, 1), jnp.float32),
        grid_spec=pltpu.PrefetchScalarGridSpec(
            num_scalar_prefetch=0,
            grid=grid,
            in_specs=[
                pl.BlockSpec((TB, D), lambda i: (i, 0)),    # content tile (bf16)
                pl.BlockSpec((TB, D), lambda i: (i, 0)),    # tag tile (bf16)
                pl.BlockSpec((D, D), lambda i: (0, 0)),     # T (bf16)
                pl.BlockSpec((D, K + 1), lambda i: (0, 0)), # [Vc | Wc] (bf16)
                pl.BlockSpec((D, K + 1), lambda i: (0, 0)), # [Vt | Wt] (bf16)
                pl.BlockSpec((2, D), lambda i: (0, 0)),     # rowsum(V^2) halves (f32)
                pl.BlockSpec(memory_space=pltpu.SMEM),      # weights (3,)
                pl.BlockSpec(memory_space=pltpu.SMEM),      # b (1,)
            ],
            out_specs=pl.BlockSpec((TB, 1), lambda i: (i, 0)),
        ),
        compiler_params=pltpu.CompilerParams(
            dimension_semantics=("parallel",)),
    )(c_bf, t_bf, T_bf, WVc_bf, WVt_bf, vsq, weights, b)
    return jnp.squeeze(out, axis=1)[:B]                    # (B,)


def reference(content, tag, T, W, V, weights, b):
    x1 = jnp.sum(jnp.matmul(content, T) * tag, axis=1, keepdims=True)
    x = jnp.concatenate([content, tag], axis=1)
    x2 = jnp.matmul(x, W)
    pair = 0.5 * jnp.sum(jnp.matmul(x, V) ** 2
                         - jnp.matmul(x ** 2, V ** 2), axis=1, keepdims=True)
    y = jnp.matmul(jnp.concatenate([x1, x2, pair], axis=1), weights)
    return jnp.maximum(y + b[0], 0.0)


if __name__ == "__main__":
    key = jax.random.PRNGKey(0)
    k_c, k_t, k_T, k_W, k_V = jax.random.split(key, 5)

    # B=300 -> TB=256 (new MXU-filling tile), padded to 512, grid of 2 steps
    # (exercises padding and keeps the parallel axis shardable across 2 TCs).
    B = 300
    content = jax.random.normal(k_c, (B, D), jnp.float32) * 0.1
    tag = jax.random.normal(k_t, (B, D), jnp.float32) * 0.1

    # Deterministic xavier_normal_-style init: std = sqrt(2 / (fan_in + fan_out)).
    T = jax.random.normal(k_T, (D, D), jnp.float32) * np.sqrt(2.0 / (D + D))
    W = jax.random.normal(k_W, (2 * D, 1), jnp.float32) * np.sqrt(2.0 / (2 * D + 1))
    V = jax.random.normal(k_V, (2 * D, K), jnp.float32) * np.sqrt(2.0 / (2 * D + K))
    b = jnp.zeros((1,), jnp.float32)
    weights = jnp.ones((3,), jnp.float32)

    out = neural_tensor_fm(content, tag, T, W, V, weights, b)
    out = jax.block_until_ready(out)

    ref = reference(content, tag, T, W, V, weights, b)
    # bf16 MXU operands (f32 accumulation) -> loosened tolerance vs f32 reference.
    np.testing.assert_allclose(np.asarray(out), np.asarray(ref),
                               rtol=3e-2, atol=3e-2)
    print("KERNEL_OK")
</pallas_src>

<mosaic_0001>
module attributes {stable_mosaic.version = 11 : i64} {
  func.func @ntfm_kernel(%arg0: i32, %arg1: memref<256x768xbf16, #tpu.memory_space<vmem>>, %arg2: memref<256x768xbf16, #tpu.memory_space<vmem>>, %arg3: memref<768x768xbf16, #tpu.memory_space<vmem>>, %arg4: memref<768x11xbf16, #tpu.memory_space<vmem>>, %arg5: memref<768x11xbf16, #tpu.memory_space<vmem>>, %arg6: memref<2x768xf32, #tpu.memory_space<vmem>>, %arg7: memref<3xf32, #tpu.memory_space<smem>>, %arg8: memref<1xf32, #tpu.memory_space<smem>>, %arg9: memref<256x1xf32, #tpu.memory_space<vmem>>) attributes {dimension_semantics = [#tpu.dimension_semantics<parallel>], iteration_bounds = array<i64: 2>, scalar_prefetch = 0 : i64, scratch_operands = 0 : i64, tpu.core_type = #tpu.core_type<tc>, window_params = [{transform_indices = @transform_0, window_bounds = array<i64: 256, 768>}, {transform_indices = @transform_1, window_bounds = array<i64: 256, 768>}, {pipeline_mode = #tpu.pipeline_mode<synchronous>, transform_indices = @transform_2, window_bounds = array<i64: 768, 768>}, {pipeline_mode = #tpu.pipeline_mode<synchronous>, transform_indices = @transform_3, window_bounds = array<i64: 768, 11>}, {pipeline_mode = #tpu.pipeline_mode<synchronous>, transform_indices = @transform_4, window_bounds = array<i64: 768, 11>}, {pipeline_mode = #tpu.pipeline_mode<synchronous>, transform_indices = @transform_5, window_bounds = array<i64: 2, 768>}, {transform_indices = @transform_6, window_bounds = array<i64: 3>}, {transform_indices = @transform_7, window_bounds = array<i64: 1>}, {transform_indices = @transform_8, window_bounds = array<i64: 256, 1>}]} {
    %c0 = arith.constant 0 : index
    %c0_0 = arith.constant 0 : index
    %0 = vector.load %arg1[%c0, %c0_0] : memref<256x768xbf16, #tpu.memory_space<vmem>>, vector<256x768xbf16>
    %c0_1 = arith.constant 0 : index
    %c0_2 = arith.constant 0 : index
    %1 = vector.load %arg2[%c0_1, %c0_2] : memref<256x768xbf16, #tpu.memory_space<vmem>>, vector<256x768xbf16>
    %c0_3 = arith.constant 0 : index
    %c0_4 = arith.constant 0 : index
    %2 = vector.load %arg4[%c0_3, %c0_4] : memref<768x11xbf16, #tpu.memory_space<vmem>>, vector<768x11xbf16>
    %cst = arith.constant dense<0.000000e+00> : vector<256x11xf32>
    %3 = tpu.matmul %0, %2, %cst {dimension_numbers = #tpu.dot_dimension_numbers<[1], [0], [0], [1], [0, 0, 1, 1], [], []>} : vector<256x768xbf16>, vector<768x11xbf16>, vector<256x11xf32> -> vector<256x11xf32>
    %c0_5 = arith.constant 0 : index
    %c0_6 = arith.constant 0 : index
    %4 = vector.load %arg5[%c0_5, %c0_6] : memref<768x11xbf16, #tpu.memory_space<vmem>>, vector<768x11xbf16>
    %cst_7 = arith.constant dense<0.000000e+00> : vector<256x11xf32>
    %5 = tpu.matmul %1, %4, %cst_7 {dimension_numbers = #tpu.dot_dimension_numbers<[1], [0], [0], [1], [0, 0, 1, 1], [], []>} : vector<256x768xbf16>, vector<768x11xbf16>, vector<256x11xf32> -> vector<256x11xf32>
    %6 = arith.addf %3, %5 : vector<256x11xf32>
    %7 = vector.extract_strided_slice %6 {offsets = [0, 0], sizes = [256, 10], strides = [1, 1]} : vector<256x11xf32> to vector<256x10xf32>
    %8 = vector.extract_strided_slice %6 {offsets = [0, 10], sizes = [256, 1], strides = [1, 1]} : vector<256x11xf32> to vector<256x1xf32>
    %cst_8 = arith.constant 0.000000e+00 : f32
    %9 = vector.broadcast %cst_8 : f32 to vector<256x1xf32>
    %cst_9 = arith.constant 0.000000e+00 : f32
    %10 = vector.broadcast %cst_9 : f32 to vector<256x1xf32>
    %c0_10 = arith.constant 0 : index
    %c0_11 = arith.constant 0 : index
    %11 = vector.load %arg3[%c0_10, %c0_11] : memref<768x768xbf16, #tpu.memory_space<vmem>>, vector<768x256xbf16>
    %cst_12 = arith.constant dense<0.000000e+00> : vector<256x256xf32>
    %12 = tpu.matmul %0, %11, %cst_12 {dimension_numbers = #tpu.dot_dimension_numbers<[1], [0], [0], [1], [0, 0, 1, 1], [], []>} : vector<256x768xbf16>, vector<768x256xbf16>, vector<256x256xf32> -> vector<256x256xf32>
    %13 = vector.extract_strided_slice %0 {offsets = [0, 0], sizes = [256, 256], strides = [1, 1]} : vector<256x768xbf16> to vector<256x256xbf16>
    %14 = arith.extf %13 : vector<256x256xbf16> to vector<256x256xf32>
    %15 = vector.extract_strided_slice %1 {offsets = [0, 0], sizes = [256, 256], strides = [1, 1]} : vector<256x768xbf16> to vector<256x256xbf16>
    %16 = arith.extf %15 : vector<256x256xbf16> to vector<256x256xf32>
    %17 = arith.mulf %12, %16 : vector<256x256xf32>
    %cst_13 = arith.constant dense<0.000000e+00> : vector<256xf32>
    %18 = vector.multi_reduction <add>, %17, %cst_13 [1] : vector<256x256xf32> to vector<256xf32>
    %19 = vector.shape_cast %18 : vector<256xf32> to vector<256x1xf32>
    %20 = arith.addf %9, %19 : vector<256x1xf32>
    %21 = arith.mulf %14, %14 : vector<256x256xf32>
    %c0_14 = arith.constant 0 : index
    %c0_15 = arith.constant 0 : index
    %22 = vector.load %arg6[%c0_14, %c0_15] : memref<2x768xf32, #tpu.memory_space<vmem>>, vector<1x256xf32>
    %23 = vector.broadcast %22 : vector<1x256xf32> to vector<256x256xf32>
    %24 = arith.mulf %21, %23 : vector<256x256xf32>
    %25 = arith.mulf %16, %16 : vector<256x256xf32>
    %c1 = arith.constant 1 : index
    %c0_16 = arith.constant 0 : index
    %26 = vector.load %arg6[%c1, %c0_16] : memref<2x768xf32, #tpu.memory_space<vmem>>, vector<1x256xf32>
    %27 = vector.broadcast %26 : vector<1x256xf32> to vector<256x256xf32>
    %28 = arith.mulf %25, %27 : vector<256x256xf32>
    %29 = arith.addf %24, %28 : vector<256x256xf32>
    %cst_17 = arith.constant dense<0.000000e+00> : vector<256xf32>
    %30 = vector.multi_reduction <add>, %29, %cst_17 [1] : vector<256x256xf32> to vector<256xf32>
    %31 = vector.shape_cast %30 : vector<256xf32> to vector<256x1xf32>
    %32 = arith.addf %10, %31 : vector<256x1xf32>
    %c0_18 = arith.constant 0 : index
    %c256 = arith.constant 256 : index
    %33 = vector.load %arg3[%c0_18, %c256] : memref<768x768xbf16, #tpu.memory_space<vmem>>, vector<768x256xbf16>
    %cst_19 = arith.constant dense<0.000000e+00> : vector<256x256xf32>
    %34 = tpu.matmul %0, %33, %cst_19 {dimension_numbers = #tpu.dot_dimension_numbers<[1], [0], [0], [1], [0, 0, 1, 1], [], []>} : vector<256x768xbf16>, vector<768x256xbf16>, vector<256x256xf32> -> vector<256x256xf32>
    %35 = vector.extract_strided_slice %0 {offsets = [0, 256], sizes = [256, 256], strides = [1, 1]} : vector<256x768xbf16> to vector<256x256xbf16>
    %36 = arith.extf %35 : vector<256x256xbf16> to vector<256x256xf32>
    %37 = vector.extract_strided_slice %1 {offsets = [0, 256], sizes = [256, 256], strides = [1, 1]} : vector<256x768xbf16> to vector<256x256xbf16>
    %38 = arith.extf %37 : vector<256x256xbf16> to vector<256x256xf32>
    %39 = arith.mulf %34, %38 : vector<256x256xf32>
    %cst_20 = arith.constant dense<0.000000e+00> : vector<256xf32>
    %40 = vector.multi_reduction <add>, %39, %cst_20 [1] : vector<256x256xf32> to vector<256xf32>
    %41 = vector.shape_cast %40 : vector<256xf32> to vector<256x1xf32>
    %42 = arith.addf %20, %41 : vector<256x1xf32>
    %43 = arith.mulf %36, %36 : vector<256x256xf32>
    %c0_21 = arith.constant 0 : index
    %c256_22 = arith.constant 256 : index
    %44 = vector.load %arg6[%c0_21, %c256_22] : memref<2x768xf32, #tpu.memory_space<vmem>>, vector<1x256xf32>
    %45 = vector.broadcast %44 : vector<1x256xf32> to vector<256x256xf32>
    %46 = arith.mulf %43, %45 : vector<256x256xf32>
    %47 = arith.mulf %38, %38 : vector<256x256xf32>
    %c1_23 = arith.constant 1 : index
    %c256_24 = arith.constant 256 : index
    %48 = vector.load %arg6[%c1_23, %c256_24] : memref<2x768xf32, #tpu.memory_space<vmem>>, vector<1x256xf32>
    %49 = vector.broadcast %48 : vector<1x256xf32> to vector<256x256xf32>
    %50 = arith.mulf %47, %49 : vector<256x256xf32>
    %51 = arith.addf %46, %50 : vector<256x256xf32>
    %cst_25 = arith.constant dense<0.000000e+00> : vector<256xf32>
    %52 = vector.multi_reduction <add>, %51, %cst_25 [1] : vector<256x256xf32> to vector<256xf32>
    %53 = vector.shape_cast %52 : vector<256xf32> to vector<256x1xf32>
    %54 = arith.addf %32, %53 : vector<256x1xf32>
    %c0_26 = arith.constant 0 : index
    %c512 = arith.constant 512 : index
    %55 = vector.load %arg3[%c0_26, %c512] : memref<768x768xbf16, #tpu.memory_space<vmem>>, vector<768x256xbf16>
    %cst_27 = arith.constant dense<0.000000e+00> : vector<256x256xf32>
    %56 = tpu.matmul %0, %55, %cst_27 {dimension_numbers = #tpu.dot_dimension_numbers<[1], [0], [0], [1], [0, 0, 1, 1], [], []>} : vector<256x768xbf16>, vector<768x256xbf16>, vector<256x256xf32> -> vector<256x256xf32>
    %57 = vector.extract_strided_slice %0 {offsets = [0, 512], sizes = [256, 256], strides = [1, 1]} : vector<256x768xbf16> to vector<256x256xbf16>
    %58 = arith.extf %57 : vector<256x256xbf16> to vector<256x256xf32>
    %59 = vector.extract_strided_slice %1 {offsets = [0, 512], sizes = [256, 256], strides = [1, 1]} : vector<256x768xbf16> to vector<256x256xbf16>
    %60 = arith.extf %59 : vector<256x256xbf16> to vector<256x256xf32>
    %61 = arith.mulf %56, %60 : vector<256x256xf32>
    %cst_28 = arith.constant dense<0.000000e+00> : vector<256xf32>
    %62 = vector.multi_reduction <add>, %61, %cst_28 [1] : vector<256x256xf32> to vector<256xf32>
    %63 = vector.shape_cast %62 : vector<256xf32> to vector<256x1xf32>
    %64 = arith.addf %42, %63 : vector<256x1xf32>
    %65 = arith.mulf %58, %58 : vector<256x256xf32>
    %c0_29 = arith.constant 0 : index
    %c512_30 = arith.constant 512 : index
    %66 = vector.load %arg6[%c0_29, %c512_30] : memref<2x768xf32, #tpu.memory_space<vmem>>, vector<1x256xf32>
    %67 = vector.broadcast %66 : vector<1x256xf32> to vector<256x256xf32>
    %68 = arith.mulf %65, %67 : vector<256x256xf32>
    %69 = arith.mulf %60, %60 : vector<256x256xf32>
    %c1_31 = arith.constant 1 : index
    %c512_32 = arith.constant 512 : index
    %70 = vector.load %arg6[%c1_31, %c512_32] : memref<2x768xf32, #tpu.memory_space<vmem>>, vector<1x256xf32>
    %71 = vector.broadcast %70 : vector<1x256xf32> to vector<256x256xf32>
    %72 = arith.mulf %69, %71 : vector<256x256xf32>
    %73 = arith.addf %68, %72 : vector<256x256xf32>
    %cst_33 = arith.constant dense<0.000000e+00> : vector<256xf32>
    %74 = vector.multi_reduction <add>, %73, %cst_33 [1] : vector<256x256xf32> to vector<256xf32>
    %75 = vector.shape_cast %74 : vector<256xf32> to vector<256x1xf32>
    %76 = arith.addf %54, %75 : vector<256x1xf32>
    %77 = arith.mulf %7, %7 : vector<256x10xf32>
    %cst_34 = arith.constant dense<0.000000e+00> : vector<256xf32>
    %78 = vector.multi_reduction <add>, %77, %cst_34 [1] : vector<256x10xf32> to vector<256xf32>
    %79 = vector.shape_cast %78 : vector<256xf32> to vector<256x1xf32>
    %80 = arith.subf %79, %76 : vector<256x1xf32>
    %cst_35 = arith.constant 5.000000e-01 : f32
    %81 = vector.broadcast %cst_35 : f32 to vector<256x1xf32>
    %82 = arith.mulf %81, %80 : vector<256x1xf32>
    %c0_36 = arith.constant 0 : index
    %83 = memref.load %arg7[%c0_36] : memref<3xf32, #tpu.memory_space<smem>>
    %84 = vector.broadcast %83 : f32 to vector<256x1xf32>
    %85 = arith.mulf %64, %84 : vector<256x1xf32>
    %c1_37 = arith.constant 1 : index
    %86 = memref.load %arg7[%c1_37] : memref<3xf32, #tpu.memory_space<smem>>
    %87 = vector.broadcast %86 : f32 to vector<256x1xf32>
    %88 = arith.mulf %8, %87 : vector<256x1xf32>
    %89 = arith.addf %85, %88 : vector<256x1xf32>
    %c2 = arith.constant 2 : index
    %90 = memref.load %arg7[%c2] : memref<3xf32, #tpu.memory_space<smem>>
    %91 = vector.broadcast %90 : f32 to vector<256x1xf32>
    %92 = arith.mulf %82, %91 : vector<256x1xf32>
    %93 = arith.addf %89, %92 : vector<256x1xf32>
    %c0_38 = arith.constant 0 : index
    %94 = memref.load %arg8[%c0_38] : memref<1xf32, #tpu.memory_space<smem>>
    %95 = vector.broadcast %94 : f32 to vector<256x1xf32>
    %96 = arith.addf %93, %95 : vector<256x1xf32>
    %cst_39 = arith.constant 0.000000e+00 : f32
    %97 = vector.broadcast %cst_39 : f32 to vector<256x1xf32>
    %98 = arith.maximumf %96, %97 : vector<256x1xf32>
    %c0_40 = arith.constant 0 : index
    %c0_41 = arith.constant 0 : index
    %99 = vector.load %arg9[%c0_40, %c0_41] : memref<256x1xf32, #tpu.memory_space<vmem>>, vector<256x1xf32>
    tpu.vector_store %arg9[%c0_40, %c0_41], %98 {strides = array<i32>} : memref<256x1xf32, #tpu.memory_space<vmem>>, vector<256x1xf32>,
    return
  }
  func.func @transform_0(%arg0: i32) -> (i32, i32) {
    %c0_i32 = arith.constant 0 : i32
    %c0_i32_0 = arith.constant 0 : i32
    return %arg0, %c0_i32 : i32, i32
  }
  func.func @transform_1(%arg0: i32) -> (i32, i32) {
    %c0_i32 = arith.constant 0 : i32
    %c0_i32_0 = arith.constant 0 : i32
    return %arg0, %c0_i32 : i32, i32
  }
  func.func @transform_2(%arg0: i32) -> (i32, i32) {
    %c0_i32 = arith.constant 0 : i32
    %c0_i32_0 = arith.constant 0 : i32
    %c0_i32_1 = arith.constant 0 : i32
    return %c0_i32, %c0_i32_0 : i32, i32
  }
  func.func @transform_3(%arg0: i32) -> (i32, i32) {
    %c0_i32 = arith.constant 0 : i32
    %c0_i32_0 = arith.constant 0 : i32
    %c0_i32_1 = arith.constant 0 : i32
    return %c0_i32, %c0_i32_0 : i32, i32
  }
  func.func @transform_4(%arg0: i32) -> (i32, i32) {
    %c0_i32 = arith.constant 0 : i32
    %c0_i32_0 = arith.constant 0 : i32
    %c0_i32_1 = arith.constant 0 : i32
    return %c0_i32, %c0_i32_0 : i32, i32
  }
  func.func @transform_5(%arg0: i32) -> (i32, i32) {
    %c0_i32 = arith.constant 0 : i32
    %c0_i32_0 = arith.constant 0 : i32
    %c0_i32_1 = arith.constant 0 : i32
    return %c0_i32, %c0_i32_0 : i32, i32
  }
  func.func @transform_6(%arg0: i32) -> i32 {
    %c0_i32 = arith.constant 0 : i32
    %c0_i32_0 = arith.constant 0 : i32
    return %c0_i32 : i32
  }
  func.func @transform_7(%arg0: i32) -> i32 {
    %c0_i32 = arith.constant 0 : i32
    %c0_i32_0 = arith.constant 0 : i32
    return %c0_i32 : i32
  }
  func.func @transform_8(%arg0: i32) -> (i32, i32) {
    %c0_i32 = arith.constant 0 : i32
    %c0_i32_0 = arith.constant 0 : i32
    return %arg0, %c0_i32 : i32, i32
  }
}

</mosaic_0001>

<llo_original>
// kernel: tpu_custom_call.1
$region0: #{tpu_custom_call.1}
  #allocation0 [shape = 'u32[]', space=smem, size = 0x4, offset = 0x4, fixed_abs, tag = 'smem constant byte address 0x4 - core index']
  #allocation1 [shape = 'u32[144,128]{1,0:T(1,128)}', space=vmem, size = 0x12000, scoped, tag = 'internal scratch']
  #allocation2 [shape = 'f32[1]{0:T(128)S(6)}', space=smem, size = 0x200, scoped, tag = 'scoped memory for tpu_custom_call.1']
  %s0 = inlined_call_operand.hbm [shape: bf16[512,768], index: 0, kind: input, shape index: {}]
  %s1 = inlined_call_operand.hbm [shape: bf16[512,768], index: 1, kind: input, shape index: {}]
  %s2 = inlined_call_operand.hbm [shape: bf16[768,768], index: 2, kind: input, shape index: {}]
  %s3 = inlined_call_operand.vmem [shape: bf16[768,11], index: 3, kind: input, shape index: {}]
  %s4 = inlined_call_operand.vmem [shape: bf16[768,11], index: 4, kind: input, shape index: {}]
  %s5 = inlined_call_operand.hbm [shape: f32[2,768], index: 5, kind: input, shape index: {}]
  %s6 = inlined_call_operand.hbm [shape: f32[3], index: 6, kind: input, shape index: {}]
  %s7 = inlined_call_operand.<no memory space> [shape: f32[1], index: 7, kind: input, shape index: {}]
  %s8 = inlined_call_operand.vmem [shape: f32[512,1], index: 8, kind: output, shape index: {}]
  %s9 = sld [smem:[#allocation0]]
  $region85: #{tpu_custom_call.1} parent=0
    _
  %s11 = ssub.s32 1, %s9
  %s12 = scalar_select 0, %s11, %s9
  %13 = sst [smem:[#allocation2]] %s7
  $region1: #{tpu_custom_call.1} parent=0
    #allocation3 [shape = 'u8[786432]{0}', space=vmem, size = 0xc0000, scoped, tag = 'input window, operand 0']
    #allocation4 [shape = 's32[2]{0}', space=sflag, size = 0x8, scoped, tag = 'scoped memory for tpu_custom_call.1']
    #allocation5 [shape = 's32[2]{0}', space=sflag, size = 0x8, scoped, tag = 'scoped memory for tpu_custom_call.1']
    #allocation6 [shape = 'u8[786432]{0}', space=vmem, size = 0xc0000, scoped, tag = 'input window, operand 1']
    #allocation7 [shape = 's32[2]{0}', space=sflag, size = 0x8, scoped, tag = 'scoped memory for tpu_custom_call.1']
    #allocation8 [shape = 'u8[1179648]{0}', space=vmem, size = 0x120000, scoped, tag = 'input window, operand 2, single buffered']
    #allocation9 [shape = 'u8[6144]{0}', space=vmem, size = 0x1800, scoped, tag = 'input window, operand 5, single buffered']
    #allocation10 [shape = 's32[1]{0}', space=sflag, size = 0x4, scoped, tag = 'scoped memory for tpu_custom_call.1']
    #allocation11 [shape = 'u8[512]{0}', space=smem, size = 0x200, scoped, tag = 'input window, operand 6, single buffered']
    %14 = vsyncpa [#allocation4], 0
    %s15 = scalar_lea.sflag [#allocation4], 1
    %16 = vsyncpa %s15, 0
    %17 = vsyncpa [#allocation7], 0
    %s18 = scalar_lea.sflag [#allocation7], 1
    %19 = vsyncpa %s18, 0
    %20 = vsyncpa [#allocation10], 0
    %21 = vsyncpa [#allocation5], 0
    loop: start=0, step=1, limit=4
    $region2: #{tpu_custom_call.1} parent=1 // loop_pre_header
      _
    $region3: #{tpu_custom_call.1} parent=1 // loop_header
      %s23 = sphi 0, %s27
      %p24 = scmp.ge.s32.totalorder %s23, 4
      %s33 = sphi 0, %s35
      %s36 = sphi 0, %s33
      %s37 = sphi 0, %s36
      %s53 = sphi 0, %s37
      %s59 = sphi 0, %s61
      %s62 = sphi 0, %s59
      %s63 = sphi 0, %s62
      %s79 = sphi 0, %s63
      %s83 = sphi 0, %s83
      %s85 = sphi 0, %s83
      %s86 = sphi 0, %s85
      %s100 = sphi 0, %s86
      %s104 = sphi 0, %s104
      %s106 = sphi 0, %s104
      %s107 = sphi 0, %s106
      %s121 = sphi 0, %s107
      %s125 = sphi 0, %s125
      %s127 = sphi 0, %s125
      %s128 = sphi 0, %s127
      %s142 = sphi 0, %s128
      %s146 = sphi 0, %s146
      %s148 = sphi 0, %s146
      %s149 = sphi 0, %s148
      %s163 = sphi 0, %s149
      %s167 = sphi 0, %s167
      %s169 = sphi 0, %s167
      %s170 = sphi 0, %s169
      %s184 = sphi 0, %s170
      %s188 = sphi 0, %s188
      %s190 = sphi 0, %s188
      %s191 = sphi 0, %s190
      %s205 = sphi 0, %s191
      %s211 = sphi 0, %s213
      %s214 = sphi 0, %s211
      %s215 = sphi 0, %s214
      %s231 = sphi 0, %s215
    $region4: #{tpu_custom_call.1} parent=1 // loop_header_branch
      %26 = sbr.rel (%p24) target = $region8
    $region5: #{tpu_custom_call.1} parent=1 // loop_body
      %s28 = ssub.s32 %s23, 1
      %s29 = ssub.s32 %s23, 2
      %s30 = sadd.s32 %s23, 1
      %s31 = ssub.s32 %s23, %s30
      %p32 = scmp.eq.s32.totalorder %s31, 0
      %s34 = sadd.s32 %s33, 1
      %s35 = scalar_select %p32, %s33, %s34
      %p38 = pneg %p32
      %p39 = scmp.eq.s32.totalorder %s23, 1
      %p40 = por %p38, %p39
      %p41 = scmp.ne.s32.totalorder %s33, %s36
      %p42 = scmp.eq.s32.totalorder %s23, 0
      %p43 = por %p41, %p42
      %p44 = scmp.ne.s32.totalorder %s33, %s36
      %p45 = scmp.eq.s32.totalorder %s28, 1
      %p46 = por %p44, %p45
      %p47 = scmp.ne.s32.totalorder %s36, %s37
      %p48 = scmp.eq.s32.totalorder %s28, 0
      %p49 = por %p47, %p48
      %p50 = scmp.ne.s32.totalorder %s36, %s37
      %p51 = scmp.eq.s32.totalorder %s29, 1
      %p52 = por %p50, %p51
      %p54 = scmp.ne.s32.totalorder %s37, %s53
      %p55 = scmp.eq.s32.totalorder %s29, 0
      %p56 = por %p54, %p55
      %s57 = ssub.s32 %s23, %s30
      %p58 = scmp.eq.s32.totalorder %s57, 0
      %s60 = sadd.s32 %s59, 1
      %s61 = scalar_select %p58, %s59, %s60
      %p64 = pneg %p58
      %p65 = scmp.eq.s32.totalorder %s23, 1
      %p66 = por %p64, %p65
      %p67 = scmp.ne.s32.totalorder %s59, %s62
      %p68 = scmp.eq.s32.totalorder %s23, 0
      %p69 = por %p67, %p68
      %p70 = scmp.ne.s32.totalorder %s59, %s62
      %p71 = scmp.eq.s32.totalorder %s28, 1
      %p72 = por %p70, %p71
      %p73 = scmp.ne.s32.totalorder %s62, %s63
      %p74 = scmp.eq.s32.totalorder %s28, 0
      %p75 = por %p73, %p74
      %p76 = scmp.ne.s32.totalorder %s62, %s63
      %p77 = scmp.eq.s32.totalorder %s29, 1
      %p78 = por %p76, %p77
      %p80 = scmp.ne.s32.totalorder %s63, %s79
      %p81 = scmp.eq.s32.totalorder %s29, 0
      %p82 = por %p80, %p81
      %s84 = sadd.s32 %s83, 1
      %p87 = scmp.eq.s32.totalorder %s23, 1
      %p88 = scmp.ne.s32.totalorder %s83, %s85
      %p89 = scmp.eq.s32.totalorder %s23, 0
      %p90 = por %p88, %p89
      %p91 = scmp.ne.s32.totalorder %s83, %s85
      %p92 = scmp.eq.s32.totalorder %s28, 1
      %p93 = por %p91, %p92
      %p94 = scmp.ne.s32.totalorder %s85, %s86
      %p95 = scmp.eq.s32.totalorder %s28, 0
      %p96 = por %p94, %p95
      %p97 = scmp.ne.s32.totalorder %s85, %s86
      %p98 = scmp.eq.s32.totalorder %s29, 1
      %p99 = por %p97, %p98
      %p101 = scmp.ne.s32.totalorder %s86, %s100
      %p102 = scmp.eq.s32.totalorder %s29, 0
      %p103 = por %p101, %p102
      %s105 = sadd.s32 %s104, 1
      %p108 = scmp.eq.s32.totalorder %s23, 1
      %p109 = scmp.ne.s32.totalorder %s104, %s106
      %p110 = scmp.eq.s32.totalorder %s23, 0
      %p111 = por %p109, %p110
      %p112 = scmp.ne.s32.totalorder %s104, %s106
      %p113 = scmp.eq.s32.totalorder %s28, 1
      %p114 = por %p112, %p113
      %p115 = scmp.ne.s32.totalorder %s106, %s107
      %p116 = scmp.eq.s32.totalorder %s28, 0
      %p117 = por %p115, %p116
      %p118 = scmp.ne.s32.totalorder %s106, %s107
      %p119 = scmp.eq.s32.totalorder %s29, 1
      %p120 = por %p118, %p119
      %p122 = scmp.ne.s32.totalorder %s107, %s121
      %p123 = scmp.eq.s32.totalorder %s29, 0
      %p124 = por %p122, %p123
      %s126 = sadd.s32 %s125, 1
      %p129 = scmp.eq.s32.totalorder %s23, 1
      %p130 = scmp.ne.s32.totalorder %s125, %s127
      %p131 = scmp.eq.s32.totalorder %s23, 0
      %p132 = por %p130, %p131
      %p133 = scmp.ne.s32.totalorder %s125, %s127
      %p134 = scmp.eq.s32.totalorder %s28, 1
      %p135 = por %p133, %p134
      %p136 = scmp.ne.s32.totalorder %s127, %s128
      %p137 = scmp.eq.s32.totalorder %s28, 0
      %p138 = por %p136, %p137
      %p139 = scmp.ne.s32.totalorder %s127, %s128
      %p140 = scmp.eq.s32.totalorder %s29, 1
      %p141 = por %p139, %p140
      %p143 = scmp.ne.s32.totalorder %s128, %s142
      %p144 = scmp.eq.s32.totalorder %s29, 0
      %p145 = por %p143, %p144
      %s147 = sadd.s32 %s146, 1
      %p150 = scmp.eq.s32.totalorder %s23, 1
      %p151 = scmp.ne.s32.totalorder %s146, %s148
      %p152 = scmp.eq.s32.totalorder %s23, 0
      %p153 = por %p151, %p152
      %p154 = scmp.ne.s32.totalorder %s146, %s148
      %p155 = scmp.eq.s32.totalorder %s28, 1
      %p156 = por %p154, %p155
      %p157 = scmp.ne.s32.totalorder %s148, %s149
      %p158 = scmp.eq.s32.totalorder %s28, 0
      %p159 = por %p157, %p158
      %p160 = scmp.ne.s32.totalorder %s148, %s149
      %p161 = scmp.eq.s32.totalorder %s29, 1
      %p162 = por %p160, %p161
      %p164 = scmp.ne.s32.totalorder %s149, %s163
      %p165 = scmp.eq.s32.totalorder %s29, 0
      %p166 = por %p164, %p165
      %s168 = sadd.s32 %s167, 1
      %p171 = scmp.eq.s32.totalorder %s23, 1
      %p172 = scmp.ne.s32.totalorder %s167, %s169
      %p173 = scmp.eq.s32.totalorder %s23, 0
      %p174 = por %p172, %p173
      %p175 = scmp.ne.s32.totalorder %s167, %s169
      %p176 = scmp.eq.s32.totalorder %s28, 1
      %p177 = por %p175, %p176
      %p178 = scmp.ne.s32.totalorder %s169, %s170
      %p179 = scmp.eq.s32.totalorder %s28, 0
      %p180 = por %p178, %p179
      %p181 = scmp.ne.s32.totalorder %s169, %s170
      %p182 = scmp.eq.s32.totalorder %s29, 1
      %p183 = por %p181, %p182
      %p185 = scmp.ne.s32.totalorder %s170, %s184
      %p186 = scmp.eq.s32.totalorder %s29, 0
      %p187 = por %p185, %p186
      %s189 = sadd.s32 %s188, 1
      %p192 = scmp.eq.s32.totalorder %s23, 1
      %p193 = scmp.ne.s32.totalorder %s188, %s190
      %p194 = scmp.eq.s32.totalorder %s23, 0
      %p195 = por %p193, %p194
      %p196 = scmp.ne.s32.totalorder %s188, %s190
      %p197 = scmp.eq.s32.totalorder %s28, 1
      %p198 = por %p196, %p197
      %p199 = scmp.ne.s32.totalorder %s190, %s191
      %p200 = scmp.eq.s32.totalorder %s28, 0
      %p201 = por %p199, %p200
      %p202 = scmp.ne.s32.totalorder %s190, %s191
      %p203 = scmp.eq.s32.totalorder %s29, 1
      %p204 = por %p202, %p203
      %p206 = scmp.ne.s32.totalorder %s191, %s205
      %p207 = scmp.eq.s32.totalorder %s29, 0
      %p208 = por %p206, %p207
      %s209 = ssub.s32 %s23, %s30
      %p210 = scmp.eq.s32.totalorder %s209, 0
      %s212 = sadd.s32 %s211, 1
      %s213 = scalar_select %p210, %s211, %s212
      %p216 = pneg %p210
      %p217 = scmp.eq.s32.totalorder %s23, 1
      %p218 = por %p216, %p217
      %p219 = scmp.ne.s32.totalorder %s211, %s214
      %p220 = scmp.eq.s32.totalorder %s23, 0
      %p221 = por %p219, %p220
      %p222 = scmp.ne.s32.totalorder %s211, %s214
      %p223 = scmp.eq.s32.totalorder %s28, 1
      %p224 = por %p222, %p223
      %p225 = scmp.ne.s32.totalorder %s214, %s215
      %p226 = scmp.eq.s32.totalorder %s28, 0
      %p227 = por %p225, %p226
      %p228 = scmp.ne.s32.totalorder %s214, %s215
      %p229 = scmp.eq.s32.totalorder %s29, 1
      %p230 = por %p228, %p229
      %p232 = scmp.ne.s32.totalorder %s215, %s231
      %p233 = scmp.eq.s32.totalorder %s29, 0
      %p234 = por %p232, %p233
      %p235 = scmp.le.s32.totalorder 1, %s23
      %p236 = scmp.lt.s32.totalorder %s23, 3
      %p237 = pnand %p235, %p236
      %p238 = pneg %p237
      // Predicated region
      $region9: #{tpu_custom_call.1} parent=5 // pred_check
        _
      $region10: #{tpu_custom_call.1} parent=5 // pred_check_branch
        %240 = sbr.rel (%p237) target = $region12
      $region11: #{tpu_custom_call.1} parent=5 // pred_region
        %s241 = ssub.s32 %s23, 1
        // Predicated region
        $region13: #{tpu_custom_call.1} parent=11 // pred_check
          %p242 = pneg %p96
        $region14: #{tpu_custom_call.1} parent=11 // pred_check_branch
          %244 = sbr.rel (%p242) target = $region16
        $region15: #{tpu_custom_call.1} parent=11 // pred_region
          %s246 = ssub.s32 36864, 36864
          %247 = vsyncadd [#allocation7], %s246
          %s248 = sshll.u32 [#allocation8], 4
          %s249 = int_to_ptr.vmem [resolvable:$true] %s248
          %254 = dma.hbm_to_vmem [thread:$0]  %s2, 36864, %s249, [#allocation7], 384, 384, 24
        $region16: #{tpu_custom_call.1} parent=11 // pred_fallthru
          _
        // Predicated region
        $region17: #{tpu_custom_call.1} parent=11 // pred_check
          %p255 = pneg %p117
        $region18: #{tpu_custom_call.1} parent=11 // pred_check_branch
          %257 = sbr.rel (%p255) target = $region20
        $region19: #{tpu_custom_call.1} parent=11 // pred_region
          _
        $region20: #{tpu_custom_call.1} parent=11 // pred_fallthru
          _
        // Predicated region
        $region21: #{tpu_custom_call.1} parent=11 // pred_check
          %p258 = pneg %p138
        $region22: #{tpu_custom_call.1} parent=11 // pred_check_branch
          %260 = sbr.rel (%p258) target = $region24
        $region23: #{tpu_custom_call.1} parent=11 // pred_region
          _
        $region24: #{tpu_custom_call.1} parent=11 // pred_fallthru
          _
        // Predicated region
        $region25: #{tpu_custom_call.1} parent=11 // pred_check
          %p261 = pneg %p159
        $region26: #{tpu_custom_call.1} parent=11 // pred_check_branch
          %263 = sbr.rel (%p261) target = $region28
        $region27: #{tpu_custom_call.1} parent=11 // pred_region
          %s265 = ssub.s32 192, 192
          %266 = vsyncadd [#allocation10], %s265
          %s268 = sshll.u32 [#allocation9], 4
          %s269 = int_to_ptr.vmem [resolvable:$true] %s268
          %271 = dma.hbm_to_vmem [thread:$0]  %s5, 192, %s269, [#allocation10]
        $region28: #{tpu_custom_call.1} parent=11 // pred_fallthru
          _
        // Predicated region
        $region29: #{tpu_custom_call.1} parent=11 // pred_check
          %p272 = pneg %p180
        $region30: #{tpu_custom_call.1} parent=11 // pred_check_branch
          %274 = sbr.rel (%p272) target = $region32
        $region31: #{tpu_custom_call.1} parent=11 // pred_region
          %s276 = ssub.s32 16, 16
          %277 = vsyncadd [#allocation5], %s276
          %280 = dma.hbm_to_smem %s6, 16, [#allocation11], [#allocation5]
        $region32: #{tpu_custom_call.1} parent=11 // pred_fallthru
          _
        // Predicated region
        $region33: #{tpu_custom_call.1} parent=11 // pred_check
          %p281 = pneg %p201
        $region34: #{tpu_custom_call.1} parent=11 // pred_check_branch
          %283 = sbr.rel (%p281) target = $region36
        $region35: #{tpu_custom_call.1} parent=11 // pred_region
          _
        $region36: #{tpu_custom_call.1} parent=11 // pred_fallthru
          _
      $region12: #{tpu_custom_call.1} parent=5 // pred_fallthru
        _
      %p284 = scmp.lt.s32.totalorder %s23, 2
      // Predicated region
      $region37: #{tpu_custom_call.1} parent=5 // pred_check
        %p285 = pneg %p284
      $region38: #{tpu_custom_call.1} parent=5 // pred_check_branch
        %287 = sbr.rel (%p285) target = $region40
      $region39: #{tpu_custom_call.1} parent=5 // pred_region
        // Predicated region
        $region41: #{tpu_custom_call.1} parent=39 // pred_check
          %p288 = pneg %p43
        $region42: #{tpu_custom_call.1} parent=39 // pred_check_branch
          %290 = sbr.rel (%p288) target = $region44
        $region43: #{tpu_custom_call.1} parent=39 // pred_region
          %s291 = sand.u32 %s33, 1
          %s292 = scalar_lea.sflag [#allocation4], %s291
          %s293 = sand.u32 %s33, 1
          %s294 = smul.addr %s293, 768
          %s295 = scalar_lea.vmem [#allocation3], %s294
          %s296 = smul.u32 32, %s23
          %s298 = ssub.s32 12288, 12288
          %299 = vsyncadd %s292, %s298
          %s300 = smul.addr %s296, 6
          %s301 = smul.addr %s300, 64
          %s302 = scalar_lea.hbm %s0, %s301
          %s303 = sshll.u32 %s295, 4
          %s304 = int_to_ptr.vmem [resolvable:$true] %s303
          %309 = dma.hbm_to_vmem [thread:$0]  %s302, 12288, %s304, %s292, 384, 384, 24
        $region44: #{tpu_custom_call.1} parent=39 // pred_fallthru
          _
        // Predicated region
        $region45: #{tpu_custom_call.1} parent=39 // pred_check
          %p310 = pneg %p69
        $region46: #{tpu_custom_call.1} parent=39 // pred_check_branch
          %312 = sbr.rel (%p310) target = $region48
        $region47: #{tpu_custom_call.1} parent=39 // pred_region
          %s313 = sand.u32 %s23, 1
          %s314 = scalar_lea.sflag [#allocation7], %s313
          %s315 = sand.u32 %s59, 1
          %s316 = smul.addr %s315, 768
          %s317 = scalar_lea.vmem [#allocation6], %s316
          %s318 = smul.u32 32, %s23
          %s320 = ssub.s32 12288, 12288
          %321 = vsyncadd %s314, %s320
          %s322 = smul.addr %s318, 6
          %s323 = smul.addr %s322, 64
          %s324 = scalar_lea.hbm %s1, %s323
          %s325 = sshll.u32 %s317, 4
          %s326 = int_to_ptr.vmem [resolvable:$true] %s325
          %331 = dma.hbm_to_vmem [thread:$0]  %s324, 12288, %s326, %s314, 384, 384, 24
        $region48: #{tpu_custom_call.1} parent=39 // pred_fallthru
          _
      $region40: #{tpu_custom_call.1} parent=5 // pred_fallthru
        _
      %p332 = scmp.le.s32.totalorder 1, %s23
      %p333 = scmp.lt.s32.totalorder %s23, 3
      %p334 = pnand %p332, %p333
      %p335 = pneg %p334
      // Predicated region
      $region49: #{tpu_custom_call.1} parent=5 // pred_check
        _
      $region50: #{tpu_custom_call.1} parent=5 // pred_check_branch
        %337 = sbr.rel (%p334) target = $region52
      $region51: #{tpu_custom_call.1} parent=5 // pred_region
        %s338 = ssub.s32 %s23, 1
        %s339 = sand.u32 %s36, 1
        %s340 = scalar_lea.sflag [#allocation4], %s339
        %s341 = sand.u32 %s36, 1
        %s342 = smul.addr %s341, 768
        %s343 = scalar_lea.vmem [#allocation3], %s342
        // Predicated region
        $region53: #{tpu_custom_call.1} parent=51 // pred_check
          %p344 = pneg %p49
        $region54: #{tpu_custom_call.1} parent=51 // pred_check_branch
          %346 = sbr.rel (%p344) target = $region56
        $region55: #{tpu_custom_call.1} parent=51 // pred_region
          %347 = dma.done %s340, 12288
        $region56: #{tpu_custom_call.1} parent=51 // pred_fallthru
          _
        %s348 = sand.u32 %s28, 1
        %s349 = scalar_lea.sflag [#allocation7], %s348
        %s350 = sand.u32 %s62, 1
        %s351 = smul.addr %s350, 768
        %s352 = scalar_lea.vmem [#allocation6], %s351
        // Predicated region
        $region57: #{tpu_custom_call.1} parent=51 // pred_check
          %p353 = pneg %p75
        $region58: #{tpu_custom_call.1} parent=51 // pred_check_branch
          %355 = sbr.rel (%p353) target = $region60
        $region59: #{tpu_custom_call.1} parent=51 // pred_region
          %356 = dma.done %s349, 12288
        $region60: #{tpu_custom_call.1} parent=51 // pred_fallthru
          _
        // Predicated region
        $region61: #{tpu_custom_call.1} parent=51 // pred_check
          %p357 = pneg %p96
        $region62: #{tpu_custom_call.1} parent=51 // pred_check_branch
          %359 = sbr.rel (%p357) target = $region64
        $region63: #{tpu_custom_call.1} parent=51 // pred_region
          %360 = dma.done [#allocation7], 36864
        $region64: #{tpu_custom_call.1} parent=51 // pred_fallthru
          _
        // Predicated region
        $region65: #{tpu_custom_call.1} parent=51 // pred_check
          %p361 = pneg %p159
        $region66: #{tpu_custom_call.1} parent=51 // pred_check_branch
          %363 = sbr.rel (%p361) target = $region68
        $region67: #{tpu_custom_call.1} parent=51 // pred_region
          %364 = dma.done [#allocation10], 192
        $region68: #{tpu_custom_call.1} parent=51 // pred_fallthru
          _
        // Predicated region
        $region69: #{tpu_custom_call.1} parent=51 // pred_check
          %p365 = pneg %p180
        $region70: #{tpu_custom_call.1} parent=51 // pred_check_branch
          %367 = sbr.rel (%p365) target = $region72
        $region71: #{tpu_custom_call.1} parent=51 // pred_region
          %368 = dma.done [#allocation5], 16
        $region72: #{tpu_custom_call.1} parent=51 // pred_fallthru
          _
        %369 = sfence
        %s370 = sand.u32 %s36, 1
        %s371 = scalar_lea.sflag [#allocation4], %s370
        %s372 = sand.u32 %s36, 1
        %s373 = smul.addr %s372, 768
        %s374 = scalar_lea.vmem [#allocation3], %s373
        %p375 = pneg %p49
        %p376 = pneg %p46
        %s377 = sand.u32 %s28, 1
        %s378 = scalar_lea.sflag [#allocation7], %s377
        %s379 = sand.u32 %s62, 1
        %s380 = smul.addr %s379, 768
        %s381 = scalar_lea.vmem [#allocation6], %s380
        %p382 = pneg %p75
        %p383 = pneg %p72
        %p384 = pneg %p96
        %p385 = pneg %p93
        %p386 = pneg %p117
        %p387 = pneg %p114
        %p388 = pneg %p138
        %p389 = pneg %p135
        %p390 = pneg %p159
        %p391 = pneg %p156
        %p392 = pneg %p180
        %p393 = pneg %p177
        %p394 = pneg %p201
        %p395 = pneg %p198
        %p396 = pneg %p227
        %p397 = pneg %p224
        %s398 = smul.u32 32, %s28
        %p399 = scmp.lt.s32.totalorder %s398, 63
        %s400 = scalar_select %p399, %s398, 63
        %s401 = smul.addr %s400, 8
        %s402 = scalar_lea.vmem %s8, %s401
        %s403 = smul.u32 32, %s28
        %s404 = smul.u32 32, %s28
        %s405 = smul.u32 32, %s28
        %p406 = scmp.lt.s32.totalorder %s405, 63
        %s407 = scalar_select %p406, %s405, 63
        %s408 = smul.addr %s407, 8
        %s409 = scalar_lea.vmem %s8, %s408
        %s410 = smul.u32 32, %s28
        %v412 = vld [vmem:[%s343] sm:$0xff]
        %v413 = vld [vmem:[%s343 + $0x8] sm:$0xff]
        %v414 = vld [vmem:[%s343 + $0x10] sm:$0xff]
        %v415 = vld [vmem:[%s343 + $0x18] sm:$0xff]
        %v416 = vld [vmem:[%s343 + $0x20] sm:$0xff]
        %v417 = vld [vmem:[%s343 + $0x28] sm:$0xff]
        %v418 = vld [vmem:[%s343 + $0x30] sm:$0xff]
        %v419 = vld [vmem:[%s343 + $0x38] sm:$0xff]
        %v420 = vld [vmem:[%s343 + $0x40] sm:$0xff]
        %v421 = vld [vmem:[%s343 + $0x48] sm:$0xff]
        %v422 = vld [vmem:[%s343 + $0x50] sm:$0xff]
        %v423 = vld [vmem:[%s343 + $0x58] sm:$0xff]
        %v424 = vld [vmem:[%s343 + $0x60] sm:$0xff]
        %v425 = vld [vmem:[%s343 + $0x68] sm:$0xff]
        %v426 = vld [vmem:[%s343 + $0x70] sm:$0xff]
        %v427 = vld [vmem:[%s343 + $0x78] sm:$0xff]
        %v428 = vld [vmem:[%s343 + $0x80] sm:$0xff]
        %v429 = vld [vmem:[%s343 + $0x88] sm:$0xff]
        %v430 = vld [vmem:[%s343 + $0x90] sm:$0xff]
        %v431 = vld [vmem:[%s343 + $0x98] sm:$0xff]
        %v432 = vld [vmem:[%s343 + $0xa0] sm:$0xff]
        %v433 = vld [vmem:[%s343 + $0xa8] sm:$0xff]
        %v434 = vld [vmem:[%s343 + $0xb0] sm:$0xff]
        %v435 = vld [vmem:[%s343 + $0xb8] sm:$0xff]
        %v436 = vld [vmem:[%s343 + $0xc0] sm:$0xff]
        %v437 = vld [vmem:[%s343 + $0xc8] sm:$0xff]
        %v438 = vld [vmem:[%s343 + $0xd0] sm:$0xff]
        %v439 = vld [vmem:[%s343 + $0xd8] sm:$0xff]
        %v440 = vld [vmem:[%s343 + $0xe0] sm:$0xff]
        %v441 = vld [vmem:[%s343 + $0xe8] sm:$0xff]
        %v442 = vld [vmem:[%s343 + $0xf0] sm:$0xff]
        %v443 = vld [vmem:[%s343 + $0xf8] sm:$0xff]
        %v444 = vld [vmem:[%s343 + $0x100] sm:$0xff]
        %v445 = vld [vmem:[%s343 + $0x108] sm:$0xff]
        %v446 = vld [vmem:[%s343 + $0x110] sm:$0xff]
        %v447 = vld [vmem:[%s343 + $0x118] sm:$0xff]
        %v448 = vld [vmem:[%s343 + $0x120] sm:$0xff]
        %v449 = vld [vmem:[%s343 + $0x128] sm:$0xff]
        %v450 = vld [vmem:[%s343 + $0x130] sm:$0xff]
        %v451 = vld [vmem:[%s343 + $0x138] sm:$0xff]
        %v452 = vld [vmem:[%s343 + $0x140] sm:$0xff]
        %v453 = vld [vmem:[%s343 + $0x148] sm:$0xff]
        %v454 = vld [vmem:[%s343 + $0x150] sm:$0xff]
        %v455 = vld [vmem:[%s343 + $0x158] sm:$0xff]
        %v456 = vld [vmem:[%s343 + $0x160] sm:$0xff]
        %v457 = vld [vmem:[%s343 + $0x168] sm:$0xff]
        %v458 = vld [vmem:[%s343 + $0x170] sm:$0xff]
        %v459 = vld [vmem:[%s343 + $0x178] sm:$0xff]
        %v460 = vld [vmem:[%s343 + $0x180] sm:$0xff]
        %v461 = vld [vmem:[%s343 + $0x188] sm:$0xff]
        %v462 = vld [vmem:[%s343 + $0x190] sm:$0xff]
        %v463 = vld [vmem:[%s343 + $0x198] sm:$0xff]
        %v464 = vld [vmem:[%s343 + $0x1a0] sm:$0xff]
        %v465 = vld [vmem:[%s343 + $0x1a8] sm:$0xff]
        %v466 = vld [vmem:[%s343 + $0x1b0] sm:$0xff]
        %v467 = vld [vmem:[%s343 + $0x1b8] sm:$0xff]
        %v468 = vld [vmem:[%s343 + $0x1c0] sm:$0xff]
        %v469 = vld [vmem:[%s343 + $0x1c8] sm:$0xff]
        %v470 = vld [vmem:[%s343 + $0x1d0] sm:$0xff]
        %v471 = vld [vmem:[%s343 + $0x1d8] sm:$0xff]
        %v472 = vld [vmem:[%s343 + $0x1e0] sm:$0xff]
        %v473 = vld [vmem:[%s343 + $0x1e8] sm:$0xff]
        %v474 = vld [vmem:[%s343 + $0x1f0] sm:$0xff]
        %v475 = vld [vmem:[%s343 + $0x1f8] sm:$0xff]
        %v476 = vld [vmem:[%s343 + $0x200] sm:$0xff]
        %v477 = vld [vmem:[%s343 + $0x208] sm:$0xff]
        %v478 = vld [vmem:[%s343 + $0x210] sm:$0xff]
        %v479 = vld [vmem:[%s343 + $0x218] sm:$0xff]
        %v480 = vld [vmem:[%s343 + $0x220] sm:$0xff]
        %v481 = vld [vmem:[%s343 + $0x228] sm:$0xff]
        %v482 = vld [vmem:[%s343 + $0x230] sm:$0xff]
        %v483 = vld [vmem:[%s343 + $0x238] sm:$0xff]
        %v484 = vld [vmem:[%s343 + $0x240] sm:$0xff]
        %v485 = vld [vmem:[%s343 + $0x248] sm:$0xff]
        %v486 = vld [vmem:[%s343 + $0x250] sm:$0xff]
        %v487 = vld [vmem:[%s343 + $0x258] sm:$0xff]
        %v488 = vld [vmem:[%s343 + $0x260] sm:$0xff]
        %v489 = vld [vmem:[%s343 + $0x268] sm:$0xff]
        %v490 = vld [vmem:[%s343 + $0x270] sm:$0xff]
        %v491 = vld [vmem:[%s343 + $0x278] sm:$0xff]
        %v492 = vld [vmem:[%s343 + $0x280] sm:$0xff]
        %v493 = vld [vmem:[%s343 + $0x288] sm:$0xff]
        %v494 = vld [vmem:[%s343 + $0x290] sm:$0xff]
        %v495 = vld [vmem:[%s343 + $0x298] sm:$0xff]
        %v496 = vld [vmem:[%s343 + $0x2a0] sm:$0xff]
        %v497 = vld [vmem:[%s343 + $0x2a8] sm:$0xff]
        %v498 = vld [vmem:[%s343 + $0x2b0] sm:$0xff]
        %v499 = vld [vmem:[%s343 + $0x2b8] sm:$0xff]
        %v500 = vld [vmem:[%s343 + $0x2c0] sm:$0xff]
        %v501 = vld [vmem:[%s343 + $0x2c8] sm:$0xff]
        %v502 = vld [vmem:[%s343 + $0x2d0] sm:$0xff]
        %v503 = vld [vmem:[%s343 + $0x2d8] sm:$0xff]
        %v504 = vld [vmem:[%s343 + $0x2e0] sm:$0xff]
        %v505 = vld [vmem:[%s343 + $0x2e8] sm:$0xff]
        %v506 = vld [vmem:[%s343 + $0x2f0] sm:$0xff]
        %v507 = vld [vmem:[%s343 + $0x2f8] sm:$0xff]
        %v508 = vld [vmem:[%s352] sm:$0xff]
        %v509 = vld [vmem:[%s352 + $0x8] sm:$0xff]
        %v510 = vld [vmem:[%s352 + $0x10] sm:$0xff]
        %v511 = vld [vmem:[%s352 + $0x18] sm:$0xff]
        %v512 = vld [vmem:[%s352 + $0x20] sm:$0xff]
        %v513 = vld [vmem:[%s352 + $0x28] sm:$0xff]
        %v514 = vld [vmem:[%s352 + $0x30] sm:$0xff]
        %v515 = vld [vmem:[%s352 + $0x38] sm:$0xff]
        %v516 = vld [vmem:[%s352 + $0x40] sm:$0xff]
        %v517 = vld [vmem:[%s352 + $0x48] sm:$0xff]
        %v518 = vld [vmem:[%s352 + $0x50] sm:$0xff]
        %v519 = vld [vmem:[%s352 + $0x58] sm:$0xff]
        %v520 = vld [vmem:[%s352 + $0x60] sm:$0xff]
        %v521 = vld [vmem:[%s352 + $0x68] sm:$0xff]
        %v522 = vld [vmem:[%s352 + $0x70] sm:$0xff]
        %v523 = vld [vmem:[%s352 + $0x78] sm:$0xff]
        %v524 = vld [vmem:[%s352 + $0x80] sm:$0xff]
        %v525 = vld [vmem:[%s352 + $0x88] sm:$0xff]
        %v526 = vld [vmem:[%s352 + $0x90] sm:$0xff]
        %v527 = vld [vmem:[%s352 + $0x98] sm:$0xff]
        %v528 = vld [vmem:[%s352 + $0xa0] sm:$0xff]
        %v529 = vld [vmem:[%s352 + $0xa8] sm:$0xff]
        %v530 = vld [vmem:[%s352 + $0xb0] sm:$0xff]
        %v531 = vld [vmem:[%s352 + $0xb8] sm:$0xff]
        %v532 = vld [vmem:[%s352 + $0xc0] sm:$0xff]
        %v533 = vld [vmem:[%s352 + $0xc8] sm:$0xff]
        %v534 = vld [vmem:[%s352 + $0xd0] sm:$0xff]
        %v535 = vld [vmem:[%s352 + $0xd8] sm:$0xff]
        %v536 = vld [vmem:[%s352 + $0xe0] sm:$0xff]
        %v537 = vld [vmem:[%s352 + $0xe8] sm:$0xff]
        %v538 = vld [vmem:[%s352 + $0xf0] sm:$0xff]
        %v539 = vld [vmem:[%s352 + $0xf8] sm:$0xff]
        %v540 = vld [vmem:[%s352 + $0x100] sm:$0xff]
        %v541 = vld [vmem:[%s352 + $0x108] sm:$0xff]
        %v542 = vld [vmem:[%s352 + $0x110] sm:$0xff]
        %v543 = vld [vmem:[%s352 + $0x118] sm:$0xff]
        %v544 = vld [vmem:[%s352 + $0x120] sm:$0xff]
        %v545 = vld [vmem:[%s352 + $0x128] sm:$0xff]
        %v546 = vld [vmem:[%s352 + $0x130] sm:$0xff]
        %v547 = vld [vmem:[%s352 + $0x138] sm:$0xff]
        %v548 = vld [vmem:[%s352 + $0x140] sm:$0xff]
        %v549 = vld [vmem:[%s352 + $0x148] sm:$0xff]
        %v550 = vld [vmem:[%s352 + $0x150] sm:$0xff]
        %v551 = vld [vmem:[%s352 + $0x158] sm:$0xff]
        %v552 = vld [vmem:[%s352 + $0x160] sm:$0xff]
        %v553 = vld [vmem:[%s352 + $0x168] sm:$0xff]
        %v554 = vld [vmem:[%s352 + $0x170] sm:$0xff]
        %v555 = vld [vmem:[%s352 + $0x178] sm:$0xff]
        %v556 = vld [vmem:[%s352 + $0x180] sm:$0xff]
        %v557 = vld [vmem:[%s352 + $0x188] sm:$0xff]
        %v558 = vld [vmem:[%s352 + $0x190] sm:$0xff]
        %v559 = vld [vmem:[%s352 + $0x198] sm:$0xff]
        %v560 = vld [vmem:[%s352 + $0x1a0] sm:$0xff]
        %v561 = vld [vmem:[%s352 + $0x1a8] sm:$0xff]
        %v562 = vld [vmem:[%s352 + $0x1b0] sm:$0xff]
        %v563 = vld [vmem:[%s352 + $0x1b8] sm:$0xff]
        %v564 = vld [vmem:[%s352 + $0x1c0] sm:$0xff]
        %v565 = vld [vmem:[%s352 + $0x1c8] sm:$0xff]
        %v566 = vld [vmem:[%s352 + $0x1d0] sm:$0xff]
        %v567 = vld [vmem:[%s352 + $0x1d8] sm:$0xff]
        %v568 = vld [vmem:[%s352 + $0x1e0] sm:$0xff]
        %v569 = vld [vmem:[%s352 + $0x1e8] sm:$0xff]
        %v570 = vld [vmem:[%s352 + $0x1f0] sm:$0xff]
        %v571 = vld [vmem:[%s352 + $0x1f8] sm:$0xff]
        %v572 = vld [vmem:[%s352 + $0x200] sm:$0xff]
        %v573 = vld [vmem:[%s352 + $0x208] sm:$0xff]
        %v574 = vld [vmem:[%s352 + $0x210] sm:$0xff]
        %v575 = vld [vmem:[%s352 + $0x218] sm:$0xff]
        %v576 = vld [vmem:[%s352 + $0x220] sm:$0xff]
        %v577 = vld [vmem:[%s352 + $0x228] sm:$0xff]
        %v578 = vld [vmem:[%s352 + $0x230] sm:$0xff]
        %v579 = vld [vmem:[%s352 + $0x238] sm:$0xff]
        %v580 = vld [vmem:[%s352 + $0x240] sm:$0xff]
        %v581 = vld [vmem:[%s352 + $0x248] sm:$0xff]
        %v582 = vld [vmem:[%s352 + $0x250] sm:$0xff]
        %v583 = vld [vmem:[%s352 + $0x258] sm:$0xff]
        %v584 = vld [vmem:[%s352 + $0x260] sm:$0xff]
        %v585 = vld [vmem:[%s352 + $0x268] sm:$0xff]
        %v586 = vld [vmem:[%s352 + $0x270] sm:$0xff]
        %v587 = vld [vmem:[%s352 + $0x278] sm:$0xff]
        %v588 = vld [vmem:[%s352 + $0x280] sm:$0xff]
        %v589 = vld [vmem:[%s352 + $0x288] sm:$0xff]
        %v590 = vld [vmem:[%s352 + $0x290] sm:$0xff]
        %v591 = vld [vmem:[%s352 + $0x298] sm:$0xff]
        %v592 = vld [vmem:[%s352 + $0x2a0] sm:$0xff]
        %v593 = vld [vmem:[%s352 + $0x2a8] sm:$0xff]
        %v594 = vld [vmem:[%s352 + $0x2b0] sm:$0xff]
        %v595 = vld [vmem:[%s352 + $0x2b8] sm:$0xff]
        %v596 = vld [vmem:[%s352 + $0x2c0] sm:$0xff]
        %v597 = vld [vmem:[%s352 + $0x2c8] sm:$0xff]
        %v598 = vld [vmem:[%s352 + $0x2d0] sm:$0xff]
        %v599 = vld [vmem:[%s352 + $0x2d8] sm:$0xff]
        %v600 = vld [vmem:[%s352 + $0x2e0] sm:$0xff]
        %v601 = vld [vmem:[%s352 + $0x2e8] sm:$0xff]
        %v602 = vld [vmem:[%s352 + $0x2f0] sm:$0xff]
        %v603 = vld [vmem:[%s352 + $0x2f8] sm:$0xff]
        %v604 = vld [vmem:[%s3] sm:$0xf]
        %v605 = vld [vmem:[%s3 + $0x4] sm:$0xf]
        %v606 = vld [vmem:[%s3 + $0x8] sm:$0xf]
        %v607 = vld [vmem:[%s3 + $0xc] sm:$0xf]
        %v608 = vld [vmem:[%s3 + $0x10] sm:$0xf]
        %v609 = vld [vmem:[%s3 + $0x14] sm:$0xf]
        %v610 = vld [vmem:[%s3 + $0x18] sm:$0xf]
        %v611 = vld [vmem:[%s3 + $0x1c] sm:$0xf]
        %v612 = vld [vmem:[%s3 + $0x20] sm:$0xf]
        %v613 = vld [vmem:[%s3 + $0x24] sm:$0xf]
        %v614 = vld [vmem:[%s3 + $0x28] sm:$0xf]
        %v615 = vld [vmem:[%s3 + $0x2c] sm:$0xf]
        %v616 = vld [vmem:[%s3 + $0x30] sm:$0xf]
        %v617 = vld [vmem:[%s3 + $0x34] sm:$0xf]
        %v618 = vld [vmem:[%s3 + $0x38] sm:$0xf]
        %v619 = vld [vmem:[%s3 + $0x3c] sm:$0xf]
        %v620 = vld [vmem:[%s3 + $0x40] sm:$0xf]
        %v621 = vld [vmem:[%s3 + $0x44] sm:$0xf]
        %v622 = vld [vmem:[%s3 + $0x48] sm:$0xf]
        %v623 = vld [vmem:[%s3 + $0x4c] sm:$0xf]
        %v624 = vld [vmem:[%s3 + $0x50] sm:$0xf]
        %v625 = vld [vmem:[%s3 + $0x54] sm:$0xf]
        %v626 = vld [vmem:[%s3 + $0x58] sm:$0xf]
        %v627 = vld [vmem:[%s3 + $0x5c] sm:$0xf]
        %v628 = vld [vmem:[%s3 + $0x60] sm:$0xf]
        %v629 = vld [vmem:[%s3 + $0x64] sm:$0xf]
        %v630 = vld [vmem:[%s3 + $0x68] sm:$0xf]
        %v631 = vld [vmem:[%s3 + $0x6c] sm:$0xf]
        %v632 = vld [vmem:[%s3 + $0x70] sm:$0xf]
        %v633 = vld [vmem:[%s3 + $0x74] sm:$0xf]
        %v634 = vld [vmem:[%s3 + $0x78] sm:$0xf]
        %v635 = vld [vmem:[%s3 + $0x7c] sm:$0xf]
        %v636 = vld [vmem:[%s3 + $0x80] sm:$0xf]
        %v637 = vld [vmem:[%s3 + $0x84] sm:$0xf]
        %v638 = vld [vmem:[%s3 + $0x88] sm:$0xf]
        %v639 = vld [vmem:[%s3 + $0x8c] sm:$0xf]
        %v640 = vld [vmem:[%s3 + $0x90] sm:$0xf]
        %v641 = vld [vmem:[%s3 + $0x94] sm:$0xf]
        %v642 = vld [vmem:[%s3 + $0x98] sm:$0xf]
        %v643 = vld [vmem:[%s3 + $0x9c] sm:$0xf]
        %v644 = vld [vmem:[%s3 + $0xa0] sm:$0xf]
        %v645 = vld [vmem:[%s3 + $0xa4] sm:$0xf]
        %v646 = vld [vmem:[%s3 + $0xa8] sm:$0xf]
        %v647 = vld [vmem:[%s3 + $0xac] sm:$0xf]
        %v648 = vld [vmem:[%s3 + $0xb0] sm:$0xf]
        %v649 = vld [vmem:[%s3 + $0xb4] sm:$0xf]
        %v650 = vld [vmem:[%s3 + $0xb8] sm:$0xf]
        %v651 = vld [vmem:[%s3 + $0xbc] sm:$0xf]
        %v652 = vld [vmem:[%s3 + $0xc0] sm:$0xf]
        %v653 = vld [vmem:[%s3 + $0xc4] sm:$0xf]
        %v654 = vld [vmem:[%s3 + $0xc8] sm:$0xf]
        %v655 = vld [vmem:[%s3 + $0xcc] sm:$0xf]
        %v656 = vld [vmem:[%s3 + $0xd0] sm:$0xf]
        %v657 = vld [vmem:[%s3 + $0xd4] sm:$0xf]
        %v658 = vld [vmem:[%s3 + $0xd8] sm:$0xf]
        %v659 = vld [vmem:[%s3 + $0xdc] sm:$0xf]
        %v660 = vld [vmem:[%s3 + $0xe0] sm:$0xf]
        %v661 = vld [vmem:[%s3 + $0xe4] sm:$0xf]
        %v662 = vld [vmem:[%s3 + $0xe8] sm:$0xf]
        %v663 = vld [vmem:[%s3 + $0xec] sm:$0xf]
        %v664 = vld [vmem:[%s3 + $0xf0] sm:$0xf]
        %v665 = vld [vmem:[%s3 + $0xf4] sm:$0xf]
        %v666 = vld [vmem:[%s3 + $0xf8] sm:$0xf]
        %v667 = vld [vmem:[%s3 + $0xfc] sm:$0xf]
        %v668 = vld [vmem:[%s3 + $0x100] sm:$0xf]
        %v669 = vld [vmem:[%s3 + $0x104] sm:$0xf]
        %v670 = vld [vmem:[%s3 + $0x108] sm:$0xf]
        %v671 = vld [vmem:[%s3 + $0x10c] sm:$0xf]
        %v672 = vld [vmem:[%s3 + $0x110] sm:$0xf]
        %v673 = vld [vmem:[%s3 + $0x114] sm:$0xf]
        %v674 = vld [vmem:[%s3 + $0x118] sm:$0xf]
        %v675 = vld [vmem:[%s3 + $0x11c] sm:$0xf]
        %v676 = vld [vmem:[%s3 + $0x120] sm:$0xf]
        %v677 = vld [vmem:[%s3 + $0x124] sm:$0xf]
        %v678 = vld [vmem:[%s3 + $0x128] sm:$0xf]
        %v679 = vld [vmem:[%s3 + $0x12c] sm:$0xf]
        %v680 = vld [vmem:[%s3 + $0x130] sm:$0xf]
        %v681 = vld [vmem:[%s3 + $0x134] sm:$0xf]
        %v682 = vld [vmem:[%s3 + $0x138] sm:$0xf]
        %v683 = vld [vmem:[%s3 + $0x13c] sm:$0xf]
        %v684 = vld [vmem:[%s3 + $0x140] sm:$0xf]
        %v685 = vld [vmem:[%s3 + $0x144] sm:$0xf]
        %v686 = vld [vmem:[%s3 + $0x148] sm:$0xf]
        %v687 = vld [vmem:[%s3 + $0x14c] sm:$0xf]
        %v688 = vld [vmem:[%s3 + $0x150] sm:$0xf]
        %v689 = vld [vmem:[%s3 + $0x154] sm:$0xf]
        %v690 = vld [vmem:[%s3 + $0x158] sm:$0xf]
        %v691 = vld [vmem:[%s3 + $0x15c] sm:$0xf]
        %v692 = vld [vmem:[%s3 + $0x160] sm:$0xf]
        %v693 = vld [vmem:[%s3 + $0x164] sm:$0xf]
        %v694 = vld [vmem:[%s3 + $0x168] sm:$0xf]
        %v695 = vld [vmem:[%s3 + $0x16c] sm:$0xf]
        %v696 = vld [vmem:[%s3 + $0x170] sm:$0xf]
        %v697 = vld [vmem:[%s3 + $0x174] sm:$0xf]
        %v698 = vld [vmem:[%s3 + $0x178] sm:$0xf]
        %v699 = vld [vmem:[%s3 + $0x17c] sm:$0xf]
        %v700 = vld [vmem:[%s4] sm:$0xf]
        %v701 = vld [vmem:[%s4 + $0x4] sm:$0xf]
        %v702 = vld [vmem:[%s4 + $0x8] sm:$0xf]
        %v703 = vld [vmem:[%s4 + $0xc] sm:$0xf]
        %v704 = vld [vmem:[%s4 + $0x10] sm:$0xf]
        %v705 = vld [vmem:[%s4 + $0x14] sm:$0xf]
        %v706 = vld [vmem:[%s4 + $0x18] sm:$0xf]
        %v707 = vld [vmem:[%s4 + $0x1c] sm:$0xf]
        %v708 = vld [vmem:[%s4 + $0x20] sm:$0xf]
        %v709 = vld [vmem:[%s4 + $0x24] sm:$0xf]
        %v710 = vld [vmem:[%s4 + $0x28] sm:$0xf]
        %v711 = vld [vmem:[%s4 + $0x2c] sm:$0xf]
        %v712 = vld [vmem:[%s4 + $0x30] sm:$0xf]
        %v713 = vld [vmem:[%s4 + $0x34] sm:$0xf]
        %v714 = vld [vmem:[%s4 + $0x38] sm:$0xf]
        %v715 = vld [vmem:[%s4 + $0x3c] sm:$0xf]
        %v716 = vld [vmem:[%s4 + $0x40] sm:$0xf]
        %v717 = vld [vmem:[%s4 + $0x44] sm:$0xf]
        %v718 = vld [vmem:[%s4 + $0x48] sm:$0xf]
        %v719 = vld [vmem:[%s4 + $0x4c] sm:$0xf]
        %v720 = vld [vmem:[%s4 + $0x50] sm:$0xf]
        %v721 = vld [vmem:[%s4 + $0x54] sm:$0xf]
        %v722 = vld [vmem:[%s4 + $0x58] sm:$0xf]
        %v723 = vld [vmem:[%s4 + $0x5c] sm:$0xf]
        %v724 = vld [vmem:[%s4 + $0x60] sm:$0xf]
        %v725 = vld [vmem:[%s4 + $0x64] sm:$0xf]
        %v726 = vld [vmem:[%s4 + $0x68] sm:$0xf]
        %v727 = vld [vmem:[%s4 + $0x6c] sm:$0xf]
        %v728 = vld [vmem:[%s4 + $0x70] sm:$0xf]
        %v729 = vld [vmem:[%s4 + $0x74] sm:$0xf]
        %v730 = vld [vmem:[%s4 + $0x78] sm:$0xf]
        %v731 = vld [vmem:[%s4 + $0x7c] sm:$0xf]
        %v732 = vld [vmem:[%s4 + $0x80] sm:$0xf]
        %v733 = vld [vmem:[%s4 + $0x84] sm:$0xf]
        %v734 = vld [vmem:[%s4 + $0x88] sm:$0xf]
        %v735 = vld [vmem:[%s4 + $0x8c] sm:$0xf]
        %v736 = vld [vmem:[%s4 + $0x90] sm:$0xf]
        %v737 = vld [vmem:[%s4 + $0x94] sm:$0xf]
        %v738 = vld [vmem:[%s4 + $0x98] sm:$0xf]
        %v739 = vld [vmem:[%s4 + $0x9c] sm:$0xf]
        %v740 = vld [vmem:[%s4 + $0xa0] sm:$0xf]
        %v741 = vld [vmem:[%s4 + $0xa4] sm:$0xf]
        %v742 = vld [vmem:[%s4 + $0xa8] sm:$0xf]
        %v743 = vld [vmem:[%s4 + $0xac] sm:$0xf]
        %v744 = vld [vmem:[%s4 + $0xb0] sm:$0xf]
        %v745 = vld [vmem:[%s4 + $0xb4] sm:$0xf]
        %v746 = vld [vmem:[%s4 + $0xb8] sm:$0xf]
        %v747 = vld [vmem:[%s4 + $0xbc] sm:$0xf]
        %v748 = vld [vmem:[%s4 + $0xc0] sm:$0xf]
        %v749 = vld [vmem:[%s4 + $0xc4] sm:$0xf]
        %v750 = vld [vmem:[%s4 + $0xc8] sm:$0xf]
        %v751 = vld [vmem:[%s4 + $0xcc] sm:$0xf]
        %v752 = vld [vmem:[%s4 + $0xd0] sm:$0xf]
        %v753 = vld [vmem:[%s4 + $0xd4] sm:$0xf]
        %v754 = vld [vmem:[%s4 + $0xd8] sm:$0xf]
        %v755 = vld [vmem:[%s4 + $0xdc] sm:$0xf]
        %v756 = vld [vmem:[%s4 + $0xe0] sm:$0xf]
        %v757 = vld [vmem:[%s4 + $0xe4] sm:$0xf]
        %v758 = vld [vmem:[%s4 + $0xe8] sm:$0xf]
        %v759 = vld [vmem:[%s4 + $0xec] sm:$0xf]
        %v760 = vld [vmem:[%s4 + $0xf0] sm:$0xf]
        %v761 = vld [vmem:[%s4 + $0xf4] sm:$0xf]
        %v762 = vld [vmem:[%s4 + $0xf8] sm:$0xf]
        %v763 = vld [vmem:[%s4 + $0xfc] sm:$0xf]
        %v764 = vld [vmem:[%s4 + $0x100] sm:$0xf]
        %v765 = vld [vmem:[%s4 + $0x104] sm:$0xf]
        %v766 = vld [vmem:[%s4 + $0x108] sm:$0xf]
        %v767 = vld [vmem:[%s4 + $0x10c] sm:$0xf]
        %v768 = vld [vmem:[%s4 + $0x110] sm:$0xf]
        %v769 = vld [vmem:[%s4 + $0x114] sm:$0xf]
        %v770 = vld [vmem:[%s4 + $0x118] sm:$0xf]
        %v771 = vld [vmem:[%s4 + $0x11c] sm:$0xf]
        %v772 = vld [vmem:[%s4 + $0x120] sm:$0xf]
        %v773 = vld [vmem:[%s4 + $0x124] sm:$0xf]
        %v774 = vld [vmem:[%s4 + $0x128] sm:$0xf]
        %v775 = vld [vmem:[%s4 + $0x12c] sm:$0xf]
        %v776 = vld [vmem:[%s4 + $0x130] sm:$0xf]
        %v777 = vld [vmem:[%s4 + $0x134] sm:$0xf]
        %v778 = vld [vmem:[%s4 + $0x138] sm:$0xf]
        %v779 = vld [vmem:[%s4 + $0x13c] sm:$0xf]
        %v780 = vld [vmem:[%s4 + $0x140] sm:$0xf]
        %v781 = vld [vmem:[%s4 + $0x144] sm:$0xf]
        %v782 = vld [vmem:[%s4 + $0x148] sm:$0xf]
        %v783 = vld [vmem:[%s4 + $0x14c] sm:$0xf]
        %v784 = vld [vmem:[%s4 + $0x150] sm:$0xf]
        %v785 = vld [vmem:[%s4 + $0x154] sm:$0xf]
        %v786 = vld [vmem:[%s4 + $0x158] sm:$0xf]
        %v787 = vld [vmem:[%s4 + $0x15c] sm:$0xf]
        %v788 = vld [vmem:[%s4 + $0x160] sm:$0xf]
        %v789 = vld [vmem:[%s4 + $0x164] sm:$0xf]
        %v790 = vld [vmem:[%s4 + $0x168] sm:$0xf]
        %v791 = vld [vmem:[%s4 + $0x16c] sm:$0xf]
        %v792 = vld [vmem:[%s4 + $0x170] sm:$0xf]
        %v793 = vld [vmem:[%s4 + $0x174] sm:$0xf]
        %v794 = vld [vmem:[%s4 + $0x178] sm:$0xf]
        %v795 = vld [vmem:[%s4 + $0x17c] sm:$0xf]
        %v892 = vunpack.c.l.b16 %v508
        %v893 = vunpack.c.h.b16 %v508
        %v894 = vunpack.c.l.b16 %v509
        %v895 = vunpack.c.h.b16 %v509
        %v896 = vunpack.c.l.b16 %v510
        %v897 = vunpack.c.h.b16 %v510
        %v898 = vunpack.c.l.b16 %v511
        %v899 = vunpack.c.h.b16 %v511
        %v900 = vunpack.c.l.b16 %v512
        %v901 = vunpack.c.h.b16 %v512
        %v902 = vunpack.c.l.b16 %v513
        %v903 = vunpack.c.h.b16 %v513
        %v904 = vunpack.c.l.b16 %v514
        %v905 = vunpack.c.h.b16 %v514
        %v906 = vunpack.c.l.b16 %v515
        %v907 = vunpack.c.h.b16 %v515
        %v908 = vunpack.c.l.b16 %v516
        %v909 = vunpack.c.h.b16 %v516
        %v910 = vunpack.c.l.b16 %v517
        %v911 = vunpack.c.h.b16 %v517
        %v912 = vunpack.c.l.b16 %v518
        %v913 = vunpack.c.h.b16 %v518
        %v914 = vunpack.c.l.b16 %v519
        %v915 = vunpack.c.h.b16 %v519
        %v916 = vunpack.c.l.b16 %v520
        %v917 = vunpack.c.h.b16 %v520
        %v918 = vunpack.c.l.b16 %v521
        %v919 = vunpack.c.h.b16 %v521
        %v920 = vunpack.c.l.b16 %v522
        %v921 = vunpack.c.h.b16 %v522
        %v922 = vunpack.c.l.b16 %v523
        %v923 = vunpack.c.h.b16 %v523
        %v924 = vunpack.c.l.b16 %v524
        %v925 = vunpack.c.h.b16 %v524
        %v926 = vunpack.c.l.b16 %v525
        %v927 = vunpack.c.h.b16 %v525
        %v928 = vunpack.c.l.b16 %v526
        %v929 = vunpack.c.h.b16 %v526
        %v930 = vunpack.c.l.b16 %v527
        %v931 = vunpack.c.h.b16 %v527
        %v932 = vunpack.c.l.b16 %v528
        %v933 = vunpack.c.h.b16 %v528
        %v934 = vunpack.c.l.b16 %v529
        %v935 = vunpack.c.h.b16 %v529
        %v936 = vunpack.c.l.b16 %v530
        %v937 = vunpack.c.h.b16 %v530
        %v938 = vunpack.c.l.b16 %v531
        %v939 = vunpack.c.h.b16 %v531
        %v940 = vunpack.c.l.b16 %v532
        %v941 = vunpack.c.h.b16 %v532
        %v942 = vunpack.c.l.b16 %v533
        %v943 = vunpack.c.h.b16 %v533
        %v944 = vunpack.c.l.b16 %v534
        %v945 = vunpack.c.h.b16 %v534
        %v946 = vunpack.c.l.b16 %v535
        %v947 = vunpack.c.h.b16 %v535
        %v948 = vunpack.c.l.b16 %v536
        %v949 = vunpack.c.h.b16 %v536
        %v950 = vunpack.c.l.b16 %v537
        %v951 = vunpack.c.h.b16 %v537
        %v952 = vunpack.c.l.b16 %v538
        %v953 = vunpack.c.h.b16 %v538
        %v954 = vunpack.c.l.b16 %v539
        %v955 = vunpack.c.h.b16 %v539
        %v956 = vunpack.c.l.b16 %v540
        %v957 = vunpack.c.h.b16 %v540
        %v958 = vunpack.c.l.b16 %v541
        %v959 = vunpack.c.h.b16 %v541
        %v960 = vunpack.c.l.b16 %v542
        %v961 = vunpack.c.h.b16 %v542
        %v962 = vunpack.c.l.b16 %v543
        %v963 = vunpack.c.h.b16 %v543
        %v964 = vunpack.c.l.b16 %v544
        %v965 = vunpack.c.h.b16 %v544
        %v966 = vunpack.c.l.b16 %v545
        %v967 = vunpack.c.h.b16 %v545
        %v968 = vunpack.c.l.b16 %v546
        %v969 = vunpack.c.h.b16 %v546
        %v970 = vunpack.c.l.b16 %v547
        %v971 = vunpack.c.h.b16 %v547
        %v972 = vunpack.c.l.b16 %v548
        %v973 = vunpack.c.h.b16 %v548
        %v974 = vunpack.c.l.b16 %v549
        %v975 = vunpack.c.h.b16 %v549
        %v976 = vunpack.c.l.b16 %v550
        %v977 = vunpack.c.h.b16 %v550
        %v978 = vunpack.c.l.b16 %v551
        %v979 = vunpack.c.h.b16 %v551
        %v980 = vunpack.c.l.b16 %v552
        %v981 = vunpack.c.h.b16 %v552
        %v982 = vunpack.c.l.b16 %v553
        %v983 = vunpack.c.h.b16 %v553
        %v984 = vunpack.c.l.b16 %v554
        %v985 = vunpack.c.h.b16 %v554
        %v986 = vunpack.c.l.b16 %v555
        %v987 = vunpack.c.h.b16 %v555
        %v988 = vunpack.c.l.b16 %v556
        %v989 = vunpack.c.h.b16 %v556
        %v990 = vunpack.c.l.b16 %v557
        %v991 = vunpack.c.h.b16 %v557
        %v992 = vunpack.c.l.b16 %v558
        %v993 = vunpack.c.h.b16 %v558
        %v994 = vunpack.c.l.b16 %v559
        %v995 = vunpack.c.h.b16 %v559
        %v996 = vunpack.c.l.b16 %v560
        %v997 = vunpack.c.h.b16 %v560
        %v998 = vunpack.c.l.b16 %v561
        %v999 = vunpack.c.h.b16 %v561
        %v1000 = vunpack.c.l.b16 %v562
        %v1001 = vunpack.c.h.b16 %v562
        %v1002 = vunpack.c.l.b16 %v563
        %v1003 = vunpack.c.h.b16 %v563
        %v1004 = vunpack.c.l.b16 %v564
        %v1005 = vunpack.c.h.b16 %v564
        %v1006 = vunpack.c.l.b16 %v565
        %v1007 = vunpack.c.h.b16 %v565
        %v1008 = vunpack.c.l.b16 %v566
        %v1009 = vunpack.c.h.b16 %v566
        %v1010 = vunpack.c.l.b16 %v567
        %v1011 = vunpack.c.h.b16 %v567
        %v1012 = vunpack.c.l.b16 %v568
        %v1013 = vunpack.c.h.b16 %v568
        %v1014 = vunpack.c.l.b16 %v569
        %v1015 = vunpack.c.h.b16 %v569
        %v1016 = vunpack.c.l.b16 %v570
        %v1017 = vunpack.c.h.b16 %v570
        %v1018 = vunpack.c.l.b16 %v571
        %v1019 = vunpack.c.h.b16 %v571
        %v1020 = vunpack.c.l.b16 %v572
        %v1021 = vunpack.c.h.b16 %v572
        %v1022 = vunpack.c.l.b16 %v573
        %v1023 = vunpack.c.h.b16 %v573
        %v1024 = vunpack.c.l.b16 %v574
        %v1025 = vunpack.c.h.b16 %v574
        %v1026 = vunpack.c.l.b16 %v575
        %v1027 = vunpack.c.h.b16 %v575
        %v1028 = vunpack.c.l.b16 %v576
        %v1029 = vunpack.c.h.b16 %v576
        %v1030 = vunpack.c.l.b16 %v577
        %v1031 = vunpack.c.h.b16 %v577
        %v1032 = vunpack.c.l.b16 %v578
        %v1033 = vunpack.c.h.b16 %v578
        %v1034 = vunpack.c.l.b16 %v579
        %v1035 = vunpack.c.h.b16 %v579
        %v1036 = vunpack.c.l.b16 %v580
        %v1037 = vunpack.c.h.b16 %v580
        %v1038 = vunpack.c.l.b16 %v581
        %v1039 = vunpack.c.h.b16 %v581
        %v1040 = vunpack.c.l.b16 %v582
        %v1041 = vunpack.c.h.b16 %v582
        %v1042 = vunpack.c.l.b16 %v583
        %v1043 = vunpack.c.h.b16 %v583
        %v1044 = vunpack.c.l.b16 %v584
        %v1045 = vunpack.c.h.b16 %v584
        %v1046 = vunpack.c.l.b16 %v585
        %v1047 = vunpack.c.h.b16 %v585
        %v1048 = vunpack.c.l.b16 %v586
        %v1049 = vunpack.c.h.b16 %v586
        %v1050 = vunpack.c.l.b16 %v587
        %v1051 = vunpack.c.h.b16 %v587
        %v1052 = vunpack.c.l.b16 %v588
        %v1053 = vunpack.c.h.b16 %v588
        %v1054 = vunpack.c.l.b16 %v589
        %v1055 = vunpack.c.h.b16 %v589
        %v1056 = vunpack.c.l.b16 %v590
        %v1057 = vunpack.c.h.b16 %v590
        %v1058 = vunpack.c.l.b16 %v591
        %v1059 = vunpack.c.h.b16 %v591
        %v1060 = vunpack.c.l.b16 %v592
        %v1061 = vunpack.c.h.b16 %v592
        %v1062 = vunpack.c.l.b16 %v593
        %v1063 = vunpack.c.h.b16 %v593
        %v1064 = vunpack.c.l.b16 %v594
        %v1065 = vunpack.c.h.b16 %v594
        %v1066 = vunpack.c.l.b16 %v595
        %v1067 = vunpack.c.h.b16 %v595
        %v1068 = vunpack.c.l.b16 %v596
        %v1069 = vunpack.c.h.b16 %v596
        %v1070 = vunpack.c.l.b16 %v597
        %v1071 = vunpack.c.h.b16 %v597
        %v1072 = vunpack.c.l.b16 %v598
        %v1073 = vunpack.c.h.b16 %v598
        %v1074 = vunpack.c.l.b16 %v599
        %v1075 = vunpack.c.h.b16 %v599
        %v1076 = vunpack.c.l.b16 %v600
        %v1077 = vunpack.c.h.b16 %v600
        %v1078 = vunpack.c.l.b16 %v601
        %v1079 = vunpack.c.h.b16 %v601
        %v1080 = vunpack.c.l.b16 %v602
        %v1081 = vunpack.c.h.b16 %v602
        %v1082 = vunpack.c.l.b16 %v603
        %v1083 = vunpack.c.h.b16 %v603
        %v1084 = vpack.c.b16 %v898, %v892
        %v1085 = vpack.c.b16 %v899, %v893
        %v1086 = vpack.c.b16 %v900, %v894
        %v1087 = vpack.c.b16 %v901, %v895
        %v1088 = vpack.c.b16 %v902, %v896
        %v1089 = vpack.c.b16 %v903, %v897
        %v1090 = vpack.c.b16 %v910, %v904
        %v1091 = vpack.c.b16 %v911, %v905
        %v1092 = vpack.c.b16 %v912, %v906
        %v1093 = vpack.c.b16 %v913, %v907
        %v1094 = vpack.c.b16 %v914, %v908
        %v1095 = vpack.c.b16 %v915, %v909
        %v1096 = vpack.c.b16 %v922, %v916
        %v1097 = vpack.c.b16 %v923, %v917
        %v1098 = vpack.c.b16 %v924, %v918
        %v1099 = vpack.c.b16 %v925, %v919
        %v1100 = vpack.c.b16 %v926, %v920
        %v1101 = vpack.c.b16 %v927, %v921
        %v1102 = vpack.c.b16 %v934, %v928
        %v1103 = vpack.c.b16 %v935, %v929
        %v1104 = vpack.c.b16 %v936, %v930
        %v1105 = vpack.c.b16 %v937, %v931
        %v1106 = vpack.c.b16 %v938, %v932
        %v1107 = vpack.c.b16 %v939, %v933
        %v1108 = vpack.c.b16 %v946, %v940
        %v1109 = vpack.c.b16 %v947, %v941
        %v1110 = vpack.c.b16 %v948, %v942
        %v1111 = vpack.c.b16 %v949, %v943
        %v1112 = vpack.c.b16 %v950, %v944
        %v1113 = vpack.c.b16 %v951, %v945
        %v1114 = vpack.c.b16 %v958, %v952
        %v1115 = vpack.c.b16 %v959, %v953
        %v1116 = vpack.c.b16 %v960, %v954
        %v1117 = vpack.c.b16 %v961, %v955
        %v1118 = vpack.c.b16 %v962, %v956
        %v1119 = vpack.c.b16 %v963, %v957
        %v1120 = vpack.c.b16 %v970, %v964
        %v1121 = vpack.c.b16 %v971, %v965
        %v1122 = vpack.c.b16 %v972, %v966
        %v1123 = vpack.c.b16 %v973, %v967
        %v1124 = vpack.c.b16 %v974, %v968
        %v1125 = vpack.c.b16 %v975, %v969
        %v1126 = vpack.c.b16 %v982, %v976
        %v1127 = vpack.c.b16 %v983, %v977
        %v1128 = vpack.c.b16 %v984, %v978
        %v1129 = vpack.c.b16 %v985, %v979
        %v1130 = vpack.c.b16 %v986, %v980
        %v1131 = vpack.c.b16 %v987, %v981
        %v1132 = vpack.c.b16 %v994, %v988
        %v1133 = vpack.c.b16 %v995, %v989
        %v1134 = vpack.c.b16 %v996, %v990
        %v1135 = vpack.c.b16 %v997, %v991
        %v1136 = vpack.c.b16 %v998, %v992
        %v1137 = vpack.c.b16 %v999, %v993
        %v1138 = vpack.c.b16 %v1006, %v1000
        %v1139 = vpack.c.b16 %v1007, %v1001
        %v1140 = vpack.c.b16 %v1008, %v1002
        %v1141 = vpack.c.b16 %v1009, %v1003
        %v1142 = vpack.c.b16 %v1010, %v1004
        %v1143 = vpack.c.b16 %v1011, %v1005
        %v1144 = vpack.c.b16 %v1018, %v1012
        %v1145 = vpack.c.b16 %v1019, %v1013
        %v1146 = vpack.c.b16 %v1020, %v1014
        %v1147 = vpack.c.b16 %v1021, %v1015
        %v1148 = vpack.c.b16 %v1022, %v1016
        %v1149 = vpack.c.b16 %v1023, %v1017
        %v1150 = vpack.c.b16 %v1030, %v1024
        %v1151 = vpack.c.b16 %v1031, %v1025
        %v1152 = vpack.c.b16 %v1032, %v1026
        %v1153 = vpack.c.b16 %v1033, %v1027
        %v1154 = vpack.c.b16 %v1034, %v1028
        %v1155 = vpack.c.b16 %v1035, %v1029
        %v1156 = vpack.c.b16 %v1042, %v1036
        %v1157 = vpack.c.b16 %v1043, %v1037
        %v1158 = vpack.c.b16 %v1044, %v1038
        %v1159 = vpack.c.b16 %v1045, %v1039
        %v1160 = vpack.c.b16 %v1046, %v1040
        %v1161 = vpack.c.b16 %v1047, %v1041
        %v1162 = vpack.c.b16 %v1054, %v1048
        %v1163 = vpack.c.b16 %v1055, %v1049
        %v1164 = vpack.c.b16 %v1056, %v1050
        %v1165 = vpack.c.b16 %v1057, %v1051
        %v1166 = vpack.c.b16 %v1058, %v1052
        %v1167 = vpack.c.b16 %v1059, %v1053
        %v1168 = vpack.c.b16 %v1066, %v1060
        %v1169 = vpack.c.b16 %v1067, %v1061
        %v1170 = vpack.c.b16 %v1068, %v1062
        %v1171 = vpack.c.b16 %v1069, %v1063
        %v1172 = vpack.c.b16 %v1070, %v1064
        %v1173 = vpack.c.b16 %v1071, %v1065
        %v1174 = vpack.c.b16 %v1078, %v1072
        %v1175 = vpack.c.b16 %v1079, %v1073
        %v1176 = vpack.c.b16 %v1080, %v1074
        %v1177 = vpack.c.b16 %v1081, %v1075
        %v1178 = vpack.c.b16 %v1082, %v1076
        %v1179 = vpack.c.b16 %v1083, %v1077
        %v1372 = vunpack.c.l.b16 %v700
        %v1373 = vunpack.c.l.b16 %v701
        %v1374 = vunpack.c.l.b16 %v702
        %v1375 = vunpack.c.l.b16 %v703
        %v1376 = vunpack.c.l.b16 %v704
        %v1377 = vunpack.c.l.b16 %v705
        %v1378 = vunpack.c.l.b16 %v706
        %v1379 = vunpack.c.l.b16 %v707
        %v1380 = vunpack.c.l.b16 %v708
        %v1381 = vunpack.c.l.b16 %v709
        %v1382 = vunpack.c.l.b16 %v710
        %v1383 = vunpack.c.l.b16 %v711
        %v1384 = vunpack.c.l.b16 %v712
        %v1385 = vunpack.c.l.b16 %v713
        %v1386 = vunpack.c.l.b16 %v714
        %v1387 = vunpack.c.l.b16 %v715
        %v1388 = vunpack.c.l.b16 %v716
        %v1389 = vunpack.c.l.b16 %v717
        %v1390 = vunpack.c.l.b16 %v718
        %v1391 = vunpack.c.l.b16 %v719
        %v1392 = vunpack.c.l.b16 %v720
        %v1393 = vunpack.c.l.b16 %v721
        %v1394 = vunpack.c.l.b16 %v722
        %v1395 = vunpack.c.l.b16 %v723
        %v1396 = vunpack.c.l.b16 %v724
        %v1397 = vunpack.c.l.b16 %v725
        %v1398 = vunpack.c.l.b16 %v726
        %v1399 = vunpack.c.l.b16 %v727
        %v1400 = vunpack.c.l.b16 %v728
        %v1401 = vunpack.c.l.b16 %v729
        %v1402 = vunpack.c.l.b16 %v730
        %v1403 = vunpack.c.l.b16 %v731
        %v1404 = vunpack.c.l.b16 %v732
        %v1405 = vunpack.c.l.b16 %v733
        %v1406 = vunpack.c.l.b16 %v734
        %v1407 = vunpack.c.l.b16 %v735
        %v1408 = vunpack.c.l.b16 %v736
        %v1409 = vunpack.c.l.b16 %v737
        %v1410 = vunpack.c.l.b16 %v738
        %v1411 = vunpack.c.l.b16 %v739
        %v1412 = vunpack.c.l.b16 %v740
        %v1413 = vunpack.c.l.b16 %v741
        %v1414 = vunpack.c.l.b16 %v742
        %v1415 = vunpack.c.l.b16 %v743
        %v1416 = vunpack.c.l.b16 %v744
        %v1417 = vunpack.c.l.b16 %v745
        %v1418 = vunpack.c.l.b16 %v746
        %v1419 = vunpack.c.l.b16 %v747
        %v1420 = vunpack.c.l.b16 %v748
        %v1421 = vunpack.c.l.b16 %v749
        %v1422 = vunpack.c.l.b16 %v750
        %v1423 = vunpack.c.l.b16 %v751
        %v1424 = vunpack.c.l.b16 %v752
        %v1425 = vunpack.c.l.b16 %v753
        %v1426 = vunpack.c.l.b16 %v754
        %v1427 = vunpack.c.l.b16 %v755
        %v1428 = vunpack.c.l.b16 %v756
        %v1429 = vunpack.c.l.b16 %v757
        %v1430 = vunpack.c.l.b16 %v758
        %v1431 = vunpack.c.l.b16 %v759
        %v1432 = vunpack.c.l.b16 %v760
        %v1433 = vunpack.c.l.b16 %v761
        %v1434 = vunpack.c.l.b16 %v762
        %v1435 = vunpack.c.l.b16 %v763
        %v1436 = vunpack.c.l.b16 %v764
        %v1437 = vunpack.c.l.b16 %v765
        %v1438 = vunpack.c.l.b16 %v766
        %v1439 = vunpack.c.l.b16 %v767
        %v1440 = vunpack.c.l.b16 %v768
        %v1441 = vunpack.c.l.b16 %v769
        %v1442 = vunpack.c.l.b16 %v770
        %v1443 = vunpack.c.l.b16 %v771
        %v1444 = vunpack.c.l.b16 %v772
        %v1445 = vunpack.c.l.b16 %v773
        %v1446 = vunpack.c.l.b16 %v774
        %v1447 = vunpack.c.l.b16 %v775
        %v1448 = vunpack.c.l.b16 %v776
        %v1449 = vunpack.c.l.b16 %v777
        %v1450 = vunpack.c.l.b16 %v778
        %v1451 = vunpack.c.l.b16 %v779
        %v1452 = vunpack.c.l.b16 %v780
        %v1453 = vunpack.c.l.b16 %v781
        %v1454 = vunpack.c.l.b16 %v782
        %v1455 = vunpack.c.l.b16 %v783
        %v1456 = vunpack.c.l.b16 %v784
        %v1457 = vunpack.c.l.b16 %v785
        %v1458 = vunpack.c.l.b16 %v786
        %v1459 = vunpack.c.l.b16 %v787
        %v1460 = vunpack.c.l.b16 %v788
        %v1461 = vunpack.c.l.b16 %v789
        %v1462 = vunpack.c.l.b16 %v790
        %v1463 = vunpack.c.l.b16 %v791
        %v1464 = vunpack.c.l.b16 %v792
        %v1465 = vunpack.c.l.b16 %v793
        %v1466 = vunpack.c.l.b16 %v794
        %v1467 = vunpack.c.l.b16 %v795
        %v1468 = vpack.c.b16 %v1373, %v1372
        %v1469 = vpack.c.b16 %v1375, %v1374
        %v1470 = vpack.c.b16 %v1377, %v1376
        %v1471 = vpack.c.b16 %v1379, %v1378
        %v1472 = vpack.c.b16 %v1381, %v1380
        %v1473 = vpack.c.b16 %v1383, %v1382
        %v1474 = vpack.c.b16 %v1385, %v1384
        %v1475 = vpack.c.b16 %v1387, %v1386
        %v1476 = vpack.c.b16 %v1389, %v1388
        %v1477 = vpack.c.b16 %v1391, %v1390
        %v1478 = vpack.c.b16 %v1393, %v1392
        %v1479 = vpack.c.b16 %v1395, %v1394
        %v1480 = vpack.c.b16 %v1397, %v1396
        %v1481 = vpack.c.b16 %v1399, %v1398
        %v1482 = vpack.c.b16 %v1401, %v1400
        %v1483 = vpack.c.b16 %v1403, %v1402
        %v1484 = vpack.c.b16 %v1405, %v1404
        %v1485 = vpack.c.b16 %v1407, %v1406
        %v1486 = vpack.c.b16 %v1409, %v1408
        %v1487 = vpack.c.b16 %v1411, %v1410
        %v1488 = vpack.c.b16 %v1413, %v1412
        %v1489 = vpack.c.b16 %v1415, %v1414
        %v1490 = vpack.c.b16 %v1417, %v1416
        %v1491 = vpack.c.b16 %v1419, %v1418
        %v1492 = vpack.c.b16 %v1421, %v1420
        %v1493 = vpack.c.b16 %v1423, %v1422
        %v1494 = vpack.c.b16 %v1425, %v1424
        %v1495 = vpack.c.b16 %v1427, %v1426
        %v1496 = vpack.c.b16 %v1429, %v1428
        %v1497 = vpack.c.b16 %v1431, %v1430
        %v1498 = vpack.c.b16 %v1433, %v1432
        %v1499 = vpack.c.b16 %v1435, %v1434
        %v1500 = vpack.c.b16 %v1437, %v1436
        %v1501 = vpack.c.b16 %v1439, %v1438
        %v1502 = vpack.c.b16 %v1441, %v1440
        %v1503 = vpack.c.b16 %v1443, %v1442
        %v1504 = vpack.c.b16 %v1445, %v1444
        %v1505 = vpack.c.b16 %v1447, %v1446
        %v1506 = vpack.c.b16 %v1449, %v1448
        %v1507 = vpack.c.b16 %v1451, %v1450
        %v1508 = vpack.c.b16 %v1453, %v1452
        %v1509 = vpack.c.b16 %v1455, %v1454
        %v1510 = vpack.c.b16 %v1457, %v1456
        %v1511 = vpack.c.b16 %v1459, %v1458
        %v1512 = vpack.c.b16 %v1461, %v1460
        %v1513 = vpack.c.b16 %v1463, %v1462
        %v1514 = vpack.c.b16 %v1465, %v1464
        %v1515 = vpack.c.b16 %v1467, %v1466
        %1564 = vmatprep.subr.bf16.mxu0 0
        %1565 = vmatpush1.bf16.msra.mxu0 %v1468
        %1566 = vmatprep.subr.bf16.mxu0 0
        %1567 = vmatpush1.bf16.msra.mxu0 %v1469
        %1568 = vmatprep.subr.bf16.mxu0 0
        %1569 = vmatpush1.bf16.msra.mxu0 %v1470
        %1570 = vmatprep.subr.bf16.mxu0 0
        %1571 = vmatpush1.bf16.msra.mxu0 %v1471
        %1572 = vmatprep.subr.bf16.mxu0 0
        %1573 = vmatpush1.bf16.msra.mxu0 %v1472
        %1574 = vmatprep.subr.bf16.mxu0 0
        %1575 = vmatpush1.bf16.msra.mxu0 %v1473
        %1576 = vmatprep.subr.bf16.mxu0 0
        %1577 = vmatpush1.bf16.msra.mxu0 %v1474
        %1578 = vmatprep.subr.bf16.mxu0 0
        %1579 = vmatpush1.bf16.msra.mxu0 %v1475
        %1580 = vmatprep.subr.bf16.mxu0 0
        %1581 = vmatpush1.bf16.msra.mxu0 %v1476
        %1582 = vmatprep.subr.bf16.mxu0 0
        %1583 = vmatpush1.bf16.msra.mxu0 %v1477
        %1584 = vmatprep.subr.bf16.mxu0 0
        %1585 = vmatpush1.bf16.msra.mxu0 %v1478
        %1586 = vmatprep.subr.bf16.mxu0 0
        %1587 = vmatpush1.bf16.msra.mxu0 %v1479
        %1588 = vmatprep.subr.bf16.mxu0 0
        %1589 = vmatpush1.bf16.msra.mxu0 %v1480
        %1590 = vmatprep.subr.bf16.mxu0 0
        %1591 = vmatpush1.bf16.msra.mxu0 %v1481
        %1592 = vmatprep.subr.bf16.mxu0 0
        %1593 = vmatpush1.bf16.msra.mxu0 %v1482
        %1594 = vmatprep.subr.bf16.mxu0 0
        %1595 = vmatpush1.bf16.msra.mxu0 %v1483
        %1596 = vmatprep.mubr.bf16.mxu0 %v1085
        %1597 = vmatmul.mubr.bf16.gmra.mrb[0].mxu0 %v1084
        %v1598 = vpop.f32.mrb[0].mxu0
        %v1599 = vadd.f32 0.0, %v1598
        %v1600 = vpop.f32.mrb[0].mxu0
        %v1601 = vpop.f32.mrb[0].mxu0
        %v1602 = vadd.f32 0.0, %v1601
        %v1603 = vpop.f32.mrb[0].mxu0
        %1604 = vmatprep.mubr.bf16.mxu0 %v1091
        %1605 = vmatmul.mubr.bf16.gmra.mrb[0].mxu0 %v1090
        %v1606 = vpop.f32.mrb[0].mxu0
        %v1607 = vadd.f32 0.0, %v1606
        %v1608 = vpop.f32.mrb[0].mxu0
        %v1609 = vpop.f32.mrb[0].mxu0
        %v1610 = vadd.f32 0.0, %v1609
        %v1611 = vpop.f32.mrb[0].mxu0
        %1612 = vmatprep.mubr.bf16.mxu0 %v1097
        %1613 = vmatmul.mubr.bf16.gmra.mrb[0].mxu0 %v1096
        %v1614 = vpop.f32.mrb[0].mxu0
        %v1615 = vadd.f32 0.0, %v1614
        %v1616 = vpop.f32.mrb[0].mxu0
        %v1617 = vpop.f32.mrb[0].mxu0
        %v1618 = vadd.f32 0.0, %v1617
        %v1619 = vpop.f32.mrb[0].mxu0
        %1620 = vmatprep.mubr.bf16.mxu0 %v1103
        %1621 = vmatmul.mubr.bf16.gmra.mrb[0].mxu0 %v1102
        %v1622 = vpop.f32.mrb[0].mxu0
        %v1623 = vadd.f32 0.0, %v1622
        %v1624 = vpop.f32.mrb[0].mxu0
        %v1625 = vpop.f32.mrb[0].mxu0
        %v1626 = vadd.f32 0.0, %v1625
        %v1627 = vpop.f32.mrb[0].mxu0
        %1628 = vmatprep.mubr.bf16.mxu0 %v1109
        %1629 = vmatmul.mubr.bf16.gmra.mrb[0].mxu0 %v1108
        %v1630 = vpop.f32.mrb[0].mxu0
        %v1631 = vadd.f32 0.0, %v1630
        %v1632 = vpop.f32.mrb[0].mxu0
        %v1633 = vpop.f32.mrb[0].mxu0
        %v1634 = vadd.f32 0.0, %v1633
        %v1635 = vpop.f32.mrb[0].mxu0
        %1636 = vmatprep.mubr.bf16.mxu0 %v1115
        %1637 = vmatmul.mubr.bf16.gmra.mrb[0].mxu0 %v1114
        %v1638 = vpop.f32.mrb[0].mxu0
        %v1639 = vadd.f32 0.0, %v1638
        %v1640 = vpop.f32.mrb[0].mxu0
        %v1641 = vpop.f32.mrb[0].mxu0
        %v1642 = vadd.f32 0.0, %v1641
        %v1643 = vpop.f32.mrb[0].mxu0
        %1644 = vmatprep.mubr.bf16.mxu0 %v1121
        %1645 = vmatmul.mubr.bf16.gmra.mrb[0].mxu0 %v1120
        %v1646 = vpop.f32.mrb[0].mxu0
        %v1647 = vadd.f32 0.0, %v1646
        %v1648 = vpop.f32.mrb[0].mxu0
        %v1649 = vpop.f32.mrb[0].mxu0
        %v1650 = vadd.f32 0.0, %v1649
        %v1651 = vpop.f32.mrb[0].mxu0
        %1652 = vmatprep.mubr.bf16.mxu0 %v1127
        %1653 = vmatmul.mubr.bf16.gmra.mrb[0].mxu0 %v1126
        %v1654 = vpop.f32.mrb[0].mxu0
        %v1655 = vadd.f32 0.0, %v1654
        %v1656 = vpop.f32.mrb[0].mxu0
        %v1657 = vpop.f32.mrb[0].mxu0
        %v1658 = vadd.f32 0.0, %v1657
        %v1659 = vpop.f32.mrb[0].mxu0
        %1660 = vmatprep.mubr.bf16.mxu0 %v1133
        %1661 = vmatmul.mubr.bf16.gmra.mrb[0].mxu0 %v1132
        %v1662 = vpop.f32.mrb[0].mxu0
        %v1663 = vadd.f32 0.0, %v1662
        %v1664 = vpop.f32.mrb[0].mxu0
        %v1665 = vpop.f32.mrb[0].mxu0
        %v1666 = vadd.f32 0.0, %v1665
        %v1667 = vpop.f32.mrb[0].mxu0
        %1668 = vmatprep.mubr.bf16.mxu0 %v1139
        %1669 = vmatmul.mubr.bf16.gmra.mrb[0].mxu0 %v1138
        %v1670 = vpop.f32.mrb[0].mxu0
        %v1671 = vadd.f32 0.0, %v1670
        %v1672 = vpop.f32.mrb[0].mxu0
        %v1673 = vpop.f32.mrb[0].mxu0
        %v1674 = vadd.f32 0.0, %v1673
        %v1675 = vpop.f32.mrb[0].mxu0
        %1676 = vmatprep.mubr.bf16.mxu0 %v1145
        %1677 = vmatmul.mubr.bf16.gmra.mrb[0].mxu0 %v1144
        %v1678 = vpop.f32.mrb[0].mxu0
        %v1679 = vadd.f32 0.0, %v1678
        %v1680 = vpop.f32.mrb[0].mxu0
        %v1681 = vpop.f32.mrb[0].mxu0
        %v1682 = vadd.f32 0.0, %v1681
        %v1683 = vpop.f32.mrb[0].mxu0
        %1684 = vmatprep.mubr.bf16.mxu0 %v1151
        %1685 = vmatmul.mubr.bf16.gmra.mrb[0].mxu0 %v1150
        %v1686 = vpop.f32.mrb[0].mxu0
        %v1687 = vadd.f32 0.0, %v1686
        %v1688 = vpop.f32.mrb[0].mxu0
        %v1689 = vpop.f32.mrb[0].mxu0
        %v1690 = vadd.f32 0.0, %v1689
        %v1691 = vpop.f32.mrb[0].mxu0
        %1692 = vmatprep.mubr.bf16.mxu0 %v1157
        %1693 = vmatmul.mubr.bf16.gmra.mrb[0].mxu0 %v1156
        %v1694 = vpop.f32.mrb[0].mxu0
        %v1695 = vadd.f32 0.0, %v1694
        %v1696 = vpop.f32.mrb[0].mxu0
        %v1697 = vpop.f32.mrb[0].mxu0
        %v1698 = vadd.f32 0.0, %v1697
        %v1699 = vpop.f32.mrb[0].mxu0
        %1700 = vmatprep.mubr.bf16.mxu0 %v1163
        %1701 = vmatmul.mubr.bf16.gmra.mrb[0].mxu0 %v1162
        %v1702 = vpop.f32.mrb[0].mxu0
        %v1703 = vadd.f32 0.0, %v1702
        %v1704 = vpop.f32.mrb[0].mxu0
        %v1705 = vpop.f32.mrb[0].mxu0
        %v1706 = vadd.f32 0.0, %v1705
        %v1707 = vpop.f32.mrb[0].mxu0
        %1708 = vmatprep.mubr.bf16.mxu0 %v1169
        %1709 = vmatmul.mubr.bf16.gmra.mrb[0].mxu0 %v1168
        %v1710 = vpop.f32.mrb[0].mxu0
        %v1711 = vadd.f32 0.0, %v1710
        %v1712 = vpop.f32.mrb[0].mxu0
        %v1713 = vpop.f32.mrb[0].mxu0
        %v1714 = vadd.f32 0.0, %v1713
        %v1715 = vpop.f32.mrb[0].mxu0
        %1716 = vmatprep.mubr.bf16.mxu0 %v1175
        %1717 = vmatmul.mubr.bf16.gmra.mrb[0].mxu0 %v1174
        %v1718 = vpop.f32.mrb[0].mxu0
        %v1719 = vadd.f32 0.0, %v1718
        %v1720 = vpop.f32.mrb[0].mxu0
        %v1721 = vpop.f32.mrb[0].mxu0
        %v1722 = vadd.f32 0.0, %v1721
        %v1723 = vpop.f32.mrb[0].mxu0
        %1724 = vdwg.mxu0
        %1725 = vmatprep.subr.bf16.mxu0 0
        %1726 = vmatpush1.bf16.msra.mxu0 %v1484
        %1727 = vmatprep.subr.bf16.mxu0 0
        %1728 = vmatpush1.bf16.msra.mxu0 %v1485
        %1729 = vmatprep.subr.bf16.mxu0 0
        %1730 = vmatpush1.bf16.msra.mxu0 %v1486
        %1731 = vmatprep.subr.bf16.mxu0 0
        %1732 = vmatpush1.bf16.msra.mxu0 %v1487
        %1733 = vmatprep.subr.bf16.mxu0 0
        %1734 = vmatpush1.bf16.msra.mxu0 %v1488
        %1735 = vmatprep.subr.bf16.mxu0 0
        %1736 = vmatpush1.bf16.msra.mxu0 %v1489
        %1737 = vmatprep.subr.bf16.mxu0 0
        %1738 = vmatpush1.bf16.msra.mxu0 %v1490
        %1739 = vmatprep.subr.bf16.mxu0 0
        %1740 = vmatpush1.bf16.msra.mxu0 %v1491
        %1741 = vmatprep.subr.bf16.mxu0 0
        %1742 = vmatpush1.bf16.msra.mxu0 %v1492
        %1743 = vmatprep.subr.bf16.mxu0 0
        %1744 = vmatpush1.bf16.msra.mxu0 %v1493
        %1745 = vmatprep.subr.bf16.mxu0 0
        %1746 = vmatpush1.bf16.msra.mxu0 %v1494
        %1747 = vmatprep.subr.bf16.mxu0 0
        %1748 = vmatpush1.bf16.msra.mxu0 %v1495
        %1749 = vmatprep.subr.bf16.mxu0 0
        %1750 = vmatpush1.bf16.msra.mxu0 %v1496
        %1751 = vmatprep.subr.bf16.mxu0 0
        %1752 = vmatpush1.bf16.msra.mxu0 %v1497
        %1753 = vmatprep.subr.bf16.mxu0 0
        %1754 = vmatpush1.bf16.msra.mxu0 %v1498
        %1755 = vmatprep.subr.bf16.mxu0 0
        %1756 = vmatpush1.bf16.msra.mxu0 %v1499
        %1757 = vmatprep.mubr.bf16.mxu0 %v1087
        %1758 = vmatmul.mubr.bf16.gmra.mrb[0].mxu0 %v1086
        %v1759 = vpop.f32.mrb[0].mxu0
        %v1760 = vadd.f32 %v1599, %v1759
        %v1761 = vpop.f32.mrb[0].mxu0
        %v1762 = vpop.f32.mrb[0].mxu0
        %v1763 = vadd.f32 %v1602, %v1762
        %v1764 = vpop.f32.mrb[0].mxu0
        %1765 = vmatprep.mubr.bf16.mxu0 %v1093
        %1766 = vmatmul.mubr.bf16.gmra.mrb[0].mxu0 %v1092
        %v1767 = vpop.f32.mrb[0].mxu0
        %v1768 = vadd.f32 %v1607, %v1767
        %v1769 = vpop.f32.mrb[0].mxu0
        %v1770 = vpop.f32.mrb[0].mxu0
        %v1771 = vadd.f32 %v1610, %v1770
        %v1772 = vpop.f32.mrb[0].mxu0
        %1773 = vmatprep.mubr.bf16.mxu0 %v1099
        %1774 = vmatmul.mubr.bf16.gmra.mrb[0].mxu0 %v1098
        %v1775 = vpop.f32.mrb[0].mxu0
        %v1776 = vadd.f32 %v1615, %v1775
        %v1777 = vpop.f32.mrb[0].mxu0
        %v1778 = vpop.f32.mrb[0].mxu0
        %v1779 = vadd.f32 %v1618, %v1778
        %v1780 = vpop.f32.mrb[0].mxu0
        %1781 = vmatprep.mubr.bf16.mxu0 %v1105
        %1782 = vmatmul.mubr.bf16.gmra.mrb[0].mxu0 %v1104
        %v1783 = vpop.f32.mrb[0].mxu0
        %v1784 = vadd.f32 %v1623, %v1783
        %v1785 = vpop.f32.mrb[0].mxu0
        %v1786 = vpop.f32.mrb[0].mxu0
        %v1787 = vadd.f32 %v1626, %v1786
        %v1788 = vpop.f32.mrb[0].mxu0
        %1789 = vmatprep.mubr.bf16.mxu0 %v1111
        %1790 = vmatmul.mubr.bf16.gmra.mrb[0].mxu0 %v1110
        %v1791 = vpop.f32.mrb[0].mxu0
        %v1792 = vadd.f32 %v1631, %v1791
        %v1793 = vpop.f32.mrb[0].mxu0
        %v1794 = vpop.f32.mrb[0].mxu0
        %v1795 = vadd.f32 %v1634, %v1794
        %v1796 = vpop.f32.mrb[0].mxu0
        %1797 = vmatprep.mubr.bf16.mxu0 %v1117
        %1798 = vmatmul.mubr.bf16.gmra.mrb[0].mxu0 %v1116
        %v1799 = vpop.f32.mrb[0].mxu0
        %v1800 = vadd.f32 %v1639, %v1799
        %v1801 = vpop.f32.mrb[0].mxu0
        %v1802 = vpop.f32.mrb[0].mxu0
        %v1803 = vadd.f32 %v1642, %v1802
        %v1804 = vpop.f32.mrb[0].mxu0
        %1805 = vmatprep.mubr.bf16.mxu0 %v1123
        %1806 = vmatmul.mubr.bf16.gmra.mrb[0].mxu0 %v1122
        %v1807 = vpop.f32.mrb[0].mxu0
        %v1808 = vadd.f32 %v1647, %v1807
        %v1809 = vpop.f32.mrb[0].mxu0
        %v1810 = vpop.f32.mrb[0].mxu0
        %v1811 = vadd.f32 %v1650, %v1810
        %v1812 = vpop.f32.mrb[0].mxu0
        %1813 = vmatprep.mubr.bf16.mxu0 %v1129
        %1814 = vmatmul.mubr.bf16.gmra.mrb[0].mxu0 %v1128
        %v1815 = vpop.f32.mrb[0].mxu0
        %v1816 = vadd.f32 %v1655, %v1815
        %v1817 = vpop.f32.mrb[0].mxu0
        %v1818 = vpop.f32.mrb[0].mxu0
        %v1819 = vadd.f32 %v1658, %v1818
        %v1820 = vpop.f32.mrb[0].mxu0
        %1821 = vmatprep.mubr.bf16.mxu0 %v1135
        %1822 = vmatmul.mubr.bf16.gmra.mrb[0].mxu0 %v1134
        %v1823 = vpop.f32.mrb[0].mxu0
        %v1824 = vadd.f32 %v1663, %v1823
        %v1825 = vpop.f32.mrb[0].mxu0
        %v1826 = vpop.f32.mrb[0].mxu0
        %v1827 = vadd.f32 %v1666, %v1826
        %v1828 = vpop.f32.mrb[0].mxu0
        %1829 = vmatprep.mubr.bf16.mxu0 %v1141
        %1830 = vmatmul.mubr.bf16.gmra.mrb[0].mxu0 %v1140
        %v1831 = vpop.f32.mrb[0].mxu0
        %v1832 = vadd.f32 %v1671, %v1831
        %v1833 = vpop.f32.mrb[0].mxu0
        %v1834 = vpop.f32.mrb[0].mxu0
        %v1835 = vadd.f32 %v1674, %v1834
        %v1836 = vpop.f32.mrb[0].mxu0
        %1837 = vmatprep.mubr.bf16.mxu0 %v1147
        %1838 = vmatmul.mubr.bf16.gmra.mrb[0].mxu0 %v1146
        %v1839 = vpop.f32.mrb[0].mxu0
        %v1840 = vadd.f32 %v1679, %v1839
        %v1841 = vpop.f32.mrb[0].mxu0
        %v1842 = vpop.f32.mrb[0].mxu0
        %v1843 = vadd.f32 %v1682, %v1842
        %v1844 = vpop.f32.mrb[0].mxu0
        %1845 = vmatprep.mubr.bf16.mxu0 %v1153
        %1846 = vmatmul.mubr.bf16.gmra.mrb[0].mxu0 %v1152
        %v1847 = vpop.f32.mrb[0].mxu0
        %v1848 = vadd.f32 %v1687, %v1847
        %v1849 = vpop.f32.mrb[0].mxu0
        %v1850 = vpop.f32.mrb[0].mxu0
        %v1851 = vadd.f32 %v1690, %v1850
        %v1852 = vpop.f32.mrb[0].mxu0
        %1853 = vmatprep.mubr.bf16.mxu0 %v1159
        %1854 = vmatmul.mubr.bf16.gmra.mrb[0].mxu0 %v1158
        %v1855 = vpop.f32.mrb[0].mxu0
        %v1856 = vadd.f32 %v1695, %v1855
        %v1857 = vpop.f32.mrb[0].mxu0
        %v1858 = vpop.f32.mrb[0].mxu0
        %v1859 = vadd.f32 %v1698, %v1858
        %v1860 = vpop.f32.mrb[0].mxu0
        %1861 = vmatprep.mubr.bf16.mxu0 %v1165
        %1862 = vmatmul.mubr.bf16.gmra.mrb[0].mxu0 %v1164
        %v1863 = vpop.f32.mrb[0].mxu0
        %v1864 = vadd.f32 %v1703, %v1863
        %v1865 = vpop.f32.mrb[0].mxu0
        %v1866 = vpop.f32.mrb[0].mxu0
        %v1867 = vadd.f32 %v1706, %v1866
        %v1868 = vpop.f32.mrb[0].mxu0
        %1869 = vmatprep.mubr.bf16.mxu0 %v1171
        %1870 = vmatmul.mubr.bf16.gmra.mrb[0].mxu0 %v1170
        %v1871 = vpop.f32.mrb[0].mxu0
        %v1872 = vadd.f32 %v1711, %v1871
        %v1873 = vpop.f32.mrb[0].mxu0
        %v1874 = vpop.f32.mrb[0].mxu0
        %v1875 = vadd.f32 %v1714, %v1874
        %v1876 = vpop.f32.mrb[0].mxu0
        %1877 = vmatprep.mubr.bf16.mxu0 %v1177
        %1878 = vmatmul.mubr.bf16.gmra.mrb[0].mxu0 %v1176
        %v1879 = vpop.f32.mrb[0].mxu0
        %v1880 = vadd.f32 %v1719, %v1879
        %v1881 = vpop.f32.mrb[0].mxu0
        %v1882 = vpop.f32.mrb[0].mxu0
        %v1883 = vadd.f32 %v1722, %v1882
        %v1884 = vpop.f32.mrb[0].mxu0
        %1885 = vdwg.mxu0
        %1886 = vmatprep.subr.bf16.mxu0 0
        %1887 = vmatpush1.bf16.msra.mxu0 %v1500
        %1888 = vmatprep.subr.bf16.mxu0 0
        %1889 = vmatpush1.bf16.msra.mxu0 %v1501
        %1890 = vmatprep.subr.bf16.mxu0 0
        %1891 = vmatpush1.bf16.msra.mxu0 %v1502
        %1892 = vmatprep.subr.bf16.mxu0 0
        %1893 = vmatpush1.bf16.msra.mxu0 %v1503
        %1894 = vmatprep.subr.bf16.mxu0 0
        %1895 = vmatpush1.bf16.msra.mxu0 %v1504
        %1896 = vmatprep.subr.bf16.mxu0 0
        %1897 = vmatpush1.bf16.msra.mxu0 %v1505
        %1898 = vmatprep.subr.bf16.mxu0 0
        %1899 = vmatpush1.bf16.msra.mxu0 %v1506
        %1900 = vmatprep.subr.bf16.mxu0 0
        %1901 = vmatpush1.bf16.msra.mxu0 %v1507
        %1902 = vmatprep.subr.bf16.mxu0 0
        %1903 = vmatpush1.bf16.msra.mxu0 %v1508
        %1904 = vmatprep.subr.bf16.mxu0 0
        %1905 = vmatpush1.bf16.msra.mxu0 %v1509
        %1906 = vmatprep.subr.bf16.mxu0 0
        %1907 = vmatpush1.bf16.msra.mxu0 %v1510
        %1908 = vmatprep.subr.bf16.mxu0 0
        %1909 = vmatpush1.bf16.msra.mxu0 %v1511
        %1910 = vmatprep.subr.bf16.mxu0 0
        %1911 = vmatpush1.bf16.msra.mxu0 %v1512
        %1912 = vmatprep.subr.bf16.mxu0 0
        %1913 = vmatpush1.bf16.msra.mxu0 %v1513
        %1914 = vmatprep.subr.bf16.mxu0 0
        %1915 = vmatpush1.bf16.msra.mxu0 %v1514
        %1916 = vmatprep.subr.bf16.mxu0 0
        %1917 = vmatpush1.bf16.msra.mxu0 %v1515
        %1918 = vmatprep.mubr.bf16.mxu0 %v1089
        %1919 = vmatmul.mubr.bf16.gmra.mrb[0].mxu0 %v1088
        %v1920 = vpop.f32.mrb[0].mxu0
        %v1921 = vadd.f32 %v1760, %v1920
        %v1922 = vpop.f32.mrb[0].mxu0
        %v1923 = vpop.f32.mrb[0].mxu0
        %v1924 = vadd.f32 %v1763, %v1923
        %v1925 = vpop.f32.mrb[0].mxu0
        %1926 = vmatprep.mubr.bf16.mxu0 %v1095
        %1927 = vmatmul.mubr.bf16.gmra.mrb[0].mxu0 %v1094
        %v1928 = vpop.f32.mrb[0].mxu0
        %v1929 = vadd.f32 %v1768, %v1928
        %v1930 = vpop.f32.mrb[0].mxu0
        %v1931 = vpop.f32.mrb[0].mxu0
        %v1932 = vadd.f32 %v1771, %v1931
        %v1933 = vpop.f32.mrb[0].mxu0
        %1934 = vmatprep.mubr.bf16.mxu0 %v1101
        %1935 = vmatmul.mubr.bf16.gmra.mrb[0].mxu0 %v1100
        %v1936 = vpop.f32.mrb[0].mxu0
        %v1937 = vadd.f32 %v1776, %v1936
        %v1938 = vpop.f32.mrb[0].mxu0
        %v1939 = vpop.f32.mrb[0].mxu0
        %v1940 = vadd.f32 %v1779, %v1939
        %v1941 = vpop.f32.mrb[0].mxu0
        %1942 = vmatprep.mubr.bf16.mxu0 %v1107
        %1943 = vmatmul.mubr.bf16.gmra.mrb[0].mxu0 %v1106
        %v1944 = vpop.f32.mrb[0].mxu0
        %v1945 = vadd.f32 %v1784, %v1944
        %v1946 = vpop.f32.mrb[0].mxu0
        %v1947 = vpop.f32.mrb[0].mxu0
        %v1948 = vadd.f32 %v1787, %v1947
        %v1949 = vpop.f32.mrb[0].mxu0
        %1950 = vmatprep.mubr.bf16.mxu0 %v1113
        %1951 = vmatmul.mubr.bf16.gmra.mrb[0].mxu0 %v1112
        %v1952 = vpop.f32.mrb[0].mxu0
        %v1953 = vadd.f32 %v1792, %v1952
        %v1954 = vpop.f32.mrb[0].mxu0
        %v1955 = vpop.f32.mrb[0].mxu0
        %v1956 = vadd.f32 %v1795, %v1955
        %v1957 = vpop.f32.mrb[0].mxu0
        %1958 = vmatprep.mubr.bf16.mxu0 %v1119
        %1959 = vmatmul.mubr.bf16.gmra.mrb[0].mxu0 %v1118
        %v1960 = vpop.f32.mrb[0].mxu0
        %v1961 = vadd.f32 %v1800, %v1960
        %v1962 = vpop.f32.mrb[0].mxu0
        %v1963 = vpop.f32.mrb[0].mxu0
        %v1964 = vadd.f32 %v1803, %v1963
        %v1965 = vpop.f32.mrb[0].mxu0
        %1966 = vmatprep.mubr.bf16.mxu0 %v1125
        %1967 = vmatmul.mubr.bf16.gmra.mrb[0].mxu0 %v1124
        %v1968 = vpop.f32.mrb[0].mxu0
        %v1969 = vadd.f32 %v1808, %v1968
        %v1970 = vpop.f32.mrb[0].mxu0
        %v1971 = vpop.f32.mrb[0].mxu0
        %v1972 = vadd.f32 %v1811, %v1971
        %v1973 = vpop.f32.mrb[0].mxu0
        %1974 = vmatprep.mubr.bf16.mxu0 %v1131
        %1975 = vmatmul.mubr.bf16.gmra.mrb[0].mxu0 %v1130
        %v1976 = vpop.f32.mrb[0].mxu0
        %v1977 = vadd.f32 %v1816, %v1976
        %v1978 = vpop.f32.mrb[0].mxu0
        %v1979 = vpop.f32.mrb[0].mxu0
        %v1980 = vadd.f32 %v1819, %v1979
        %v1981 = vpop.f32.mrb[0].mxu0
        %1982 = vmatprep.mubr.bf16.mxu0 %v1137
        %1983 = vmatmul.mubr.bf16.gmra.mrb[0].mxu0 %v1136
        %v1984 = vpop.f32.mrb[0].mxu0
        %v1985 = vadd.f32 %v1824, %v1984
        %v1986 = vpop.f32.mrb[0].mxu0
        %v1987 = vpop.f32.mrb[0].mxu0
        %v1988 = vadd.f32 %v1827, %v1987
        %v1989 = vpop.f32.mrb[0].mxu0
        %1990 = vmatprep.mubr.bf16.mxu0 %v1143
        %1991 = vmatmul.mubr.bf16.gmra.mrb[0].mxu0 %v1142
        %v1992 = vpop.f32.mrb[0].mxu0
        %v1993 = vadd.f32 %v1832, %v1992
        %v1994 = vpop.f32.mrb[0].mxu0
        %v1995 = vpop.f32.mrb[0].mxu0
        %v1996 = vadd.f32 %v1835, %v1995
        %v1997 = vpop.f32.mrb[0].mxu0
        %1998 = vmatprep.mubr.bf16.mxu0 %v1149
        %1999 = vmatmul.mubr.bf16.gmra.mrb[0].mxu0 %v1148
        %v2000 = vpop.f32.mrb[0].mxu0
        %v2001 = vadd.f32 %v1840, %v2000
        %v2002 = vpop.f32.mrb[0].mxu0
        %v2003 = vpop.f32.mrb[0].mxu0
        %v2004 = vadd.f32 %v1843, %v2003
        %v2005 = vpop.f32.mrb[0].mxu0
        %2006 = vmatprep.mubr.bf16.mxu0 %v1155
        %2007 = vmatmul.mubr.bf16.gmra.mrb[0].mxu0 %v1154
        %v2008 = vpop.f32.mrb[0].mxu0
        %v2009 = vadd.f32 %v1848, %v2008
        %v2010 = vpop.f32.mrb[0].mxu0
        %v2011 = vpop.f32.mrb[0].mxu0
        %v2012 = vadd.f32 %v1851, %v2011
        %v2013 = vpop.f32.mrb[0].mxu0
        %2014 = vmatprep.mubr.bf16.mxu0 %v1161
        %2015 = vmatmul.mubr.bf16.gmra.mrb[0].mxu0 %v1160
        %v2016 = vpop.f32.mrb[0].mxu0
        %v2017 = vadd.f32 %v1856, %v2016
        %v2018 = vpop.f32.mrb[0].mxu0
        %v2019 = vpop.f32.mrb[0].mxu0
        %v2020 = vadd.f32 %v1859, %v2019
        %v2021 = vpop.f32.mrb[0].mxu0
        %2022 = vmatprep.mubr.bf16.mxu0 %v1167
        %2023 = vmatmul.mubr.bf16.gmra.mrb[0].mxu0 %v1166
        %v2024 = vpop.f32.mrb[0].mxu0
        %v2025 = vadd.f32 %v1864, %v2024
        %v2026 = vpop.f32.mrb[0].mxu0
        %v2027 = vpop.f32.mrb[0].mxu0
        %v2028 = vadd.f32 %v1867, %v2027
        %v2029 = vpop.f32.mrb[0].mxu0
        %2030 = vmatprep.mubr.bf16.mxu0 %v1173
        %2031 = vmatmul.mubr.bf16.gmra.mrb[0].mxu0 %v1172
        %v2032 = vpop.f32.mrb[0].mxu0
        %v2033 = vadd.f32 %v1872, %v2032
        %v2034 = vpop.f32.mrb[0].mxu0
        %v2035 = vpop.f32.mrb[0].mxu0
        %v2036 = vadd.f32 %v1875, %v2035
        %v2037 = vpop.f32.mrb[0].mxu0
        %2038 = vmatprep.mubr.bf16.mxu0 %v1179
        %2039 = vmatmul.mubr.bf16.gmra.mrb[0].mxu0 %v1178
        %v2040 = vpop.f32.mrb[0].mxu0
        %v2041 = vadd.f32 %v1880, %v2040
        %v2042 = vpop.f32.mrb[0].mxu0
        %v2043 = vpop.f32.mrb[0].mxu0
        %v2044 = vadd.f32 %v1883, %v2043
        %v2045 = vpop.f32.mrb[0].mxu0
        %2046 = vdwg.mxu0
        %v2143 = vunpack.c.l.b16 %v412
        %v2144 = vunpack.c.h.b16 %v412
        %v2145 = vunpack.c.l.b16 %v413
        %v2146 = vunpack.c.h.b16 %v413
        %v2147 = vunpack.c.l.b16 %v414
        %v2148 = vunpack.c.h.b16 %v414
        %v2149 = vunpack.c.l.b16 %v415
        %v2150 = vunpack.c.h.b16 %v415
        %v2151 = vunpack.c.l.b16 %v416
        %v2152 = vunpack.c.h.b16 %v416
        %v2153 = vunpack.c.l.b16 %v417
        %v2154 = vunpack.c.h.b16 %v417
        %v2155 = vunpack.c.l.b16 %v418
        %v2156 = vunpack.c.h.b16 %v418
        %v2157 = vunpack.c.l.b16 %v419
        %v2158 = vunpack.c.h.b16 %v419
        %v2159 = vunpack.c.l.b16 %v420
        %v2160 = vunpack.c.h.b16 %v420
        %v2161 = vunpack.c.l.b16 %v421
        %v2162 = vunpack.c.h.b16 %v421
        %v2163 = vunpack.c.l.b16 %v422
        %v2164 = vunpack.c.h.b16 %v422
        %v2165 = vunpack.c.l.b16 %v423
        %v2166 = vunpack.c.h.b16 %v423
        %v2167 = vunpack.c.l.b16 %v424
        %v2168 = vunpack.c.h.b16 %v424
        %v2169 = vunpack.c.l.b16 %v425
        %v2170 = vunpack.c.h.b16 %v425
        %v2171 = vunpack.c.l.b16 %v426
        %v2172 = vunpack.c.h.b16 %v426
        %v2173 = vunpack.c.l.b16 %v427
        %v2174 = vunpack.c.h.b16 %v427
        %v2175 = vunpack.c.l.b16 %v428
        %v2176 = vunpack.c.h.b16 %v428
        %v2177 = vunpack.c.l.b16 %v429
        %v2178 = vunpack.c.h.b16 %v429
        %v2179 = vunpack.c.l.b16 %v430
        %v2180 = vunpack.c.h.b16 %v430
        %v2181 = vunpack.c.l.b16 %v431
        %v2182 = vunpack.c.h.b16 %v431
        %v2183 = vunpack.c.l.b16 %v432
        %v2184 = vunpack.c.h.b16 %v432
        %v2185 = vunpack.c.l.b16 %v433
        %v2186 = vunpack.c.h.b16 %v433
        %v2187 = vunpack.c.l.b16 %v434
        %v2188 = vunpack.c.h.b16 %v434
        %v2189 = vunpack.c.l.b16 %v435
        %v2190 = vunpack.c.h.b16 %v435
        %v2191 = vunpack.c.l.b16 %v436
        %v2192 = vunpack.c.h.b16 %v436
        %v2193 = vunpack.c.l.b16 %v437
        %v2194 = vunpack.c.h.b16 %v437
        %v2195 = vunpack.c.l.b16 %v438
        %v2196 = vunpack.c.h.b16 %v438
        %v2197 = vunpack.c.l.b16 %v439
        %v2198 = vunpack.c.h.b16 %v439
        %v2199 = vunpack.c.l.b16 %v440
        %v2200 = vunpack.c.h.b16 %v440
        %v2201 = vunpack.c.l.b16 %v441
        %v2202 = vunpack.c.h.b16 %v441
        %v2203 = vunpack.c.l.b16 %v442
        %v2204 = vunpack.c.h.b16 %v442
        %v2205 = vunpack.c.l.b16 %v443
        %v2206 = vunpack.c.h.b16 %v443
        %v2207 = vunpack.c.l.b16 %v444
        %v2208 = vunpack.c.h.b16 %v444
        %v2209 = vunpack.c.l.b16 %v445
        %v2210 = vunpack.c.h.b16 %v445
        %v2211 = vunpack.c.l.b16 %v446
        %v2212 = vunpack.c.h.b16 %v446
        %v2213 = vunpack.c.l.b16 %v447
        %v2214 = vunpack.c.h.b16 %v447
        %v2215 = vunpack.c.l.b16 %v448
        %v2216 = vunpack.c.h.b16 %v448
        %v2217 = vunpack.c.l.b16 %v449
        %v2218 = vunpack.c.h.b16 %v449
        %v2219 = vunpack.c.l.b16 %v450
        %v2220 = vunpack.c.h.b16 %v450
        %v2221 = vunpack.c.l.b16 %v451
        %v2222 = vunpack.c.h.b16 %v451
        %v2223 = vunpack.c.l.b16 %v452
        %v2224 = vunpack.c.h.b16 %v452
        %v2225 = vunpack.c.l.b16 %v453
        %v2226 = vunpack.c.h.b16 %v453
        %v2227 = vunpack.c.l.b16 %v454
        %v2228 = vunpack.c.h.b16 %v454
        %v2229 = vunpack.c.l.b16 %v455
        %v2230 = vunpack.c.h.b16 %v455
        %v2231 = vunpack.c.l.b16 %v456
        %v2232 = vunpack.c.h.b16 %v456
        %v2233 = vunpack.c.l.b16 %v457
        %v2234 = vunpack.c.h.b16 %v457
        %v2235 = vunpack.c.l.b16 %v458
        %v2236 = vunpack.c.h.b16 %v458
        %v2237 = vunpack.c.l.b16 %v459
        %v2238 = vunpack.c.h.b16 %v459
        %v2239 = vunpack.c.l.b16 %v460
        %v2240 = vunpack.c.h.b16 %v460
        %v2241 = vunpack.c.l.b16 %v461
        %v2242 = vunpack.c.h.b16 %v461
        %v2243 = vunpack.c.l.b16 %v462
        %v2244 = vunpack.c.h.b16 %v462
        %v2245 = vunpack.c.l.b16 %v463
        %v2246 = vunpack.c.h.b16 %v463
        %v2247 = vunpack.c.l.b16 %v464
        %v2248 = vunpack.c.h.b16 %v464
        %v2249 = vunpack.c.l.b16 %v465
        %v2250 = vunpack.c.h.b16 %v465
        %v2251 = vunpack.c.l.b16 %v466
        %v2252 = vunpack.c.h.b16 %v466
        %v2253 = vunpack.c.l.b16 %v467
        %v2254 = vunpack.c.h.b16 %v467
        %v2255 = vunpack.c.l.b16 %v468
        %v2256 = vunpack.c.h.b16 %v468
        %v2257 = vunpack.c.l.b16 %v469
        %v2258 = vunpack.c.h.b16 %v469
        %v2259 = vunpack.c.l.b16 %v470
        %v2260 = vunpack.c.h.b16 %v470
        %v2261 = vunpack.c.l.b16 %v471
        %v2262 = vunpack.c.h.b16 %v471
        %v2263 = vunpack.c.l.b16 %v472
        %v2264 = vunpack.c.h.b16 %v472
        %v2265 = vunpack.c.l.b16 %v473
        %v2266 = vunpack.c.h.b16 %v473
        %v2267 = vunpack.c.l.b16 %v474
        %v2268 = vunpack.c.h.b16 %v474
        %v2269 = vunpack.c.l.b16 %v475
        %v2270 = vunpack.c.h.b16 %v475
        %v2271 = vunpack.c.l.b16 %v476
        %v2272 = vunpack.c.h.b16 %v476
        %v2273 = vunpack.c.l.b16 %v477
        %v2274 = vunpack.c.h.b16 %v477
        %v2275 = vunpack.c.l.b16 %v478
        %v2276 = vunpack.c.h.b16 %v478
        %v2277 = vunpack.c.l.b16 %v479
        %v2278 = vunpack.c.h.b16 %v479
        %v2279 = vunpack.c.l.b16 %v480
        %v2280 = vunpack.c.h.b16 %v480
        %v2281 = vunpack.c.l.b16 %v481
        %v2282 = vunpack.c.h.b16 %v481
        %v2283 = vunpack.c.l.b16 %v482
        %v2284 = vunpack.c.h.b16 %v482
        %v2285 = vunpack.c.l.b16 %v483
        %v2286 = vunpack.c.h.b16 %v483
        %v2287 = vunpack.c.l.b16 %v484
        %v2288 = vunpack.c.h.b16 %v484
        %v2289 = vunpack.c.l.b16 %v485
        %v2290 = vunpack.c.h.b16 %v485
        %v2291 = vunpack.c.l.b16 %v486
        %v2292 = vunpack.c.h.b16 %v486
        %v2293 = vunpack.c.l.b16 %v487
        %v2294 = vunpack.c.h.b16 %v487
        %v2295 = vunpack.c.l.b16 %v488
        %v2296 = vunpack.c.h.b16 %v488
        %v2297 = vunpack.c.l.b16 %v489
        %v2298 = vunpack.c.h.b16 %v489
        %v2299 = vunpack.c.l.b16 %v490
        %v2300 = vunpack.c.h.b16 %v490
        %v2301 = vunpack.c.l.b16 %v491
        %v2302 = vunpack.c.h.b16 %v491
        %v2303 = vunpack.c.l.b16 %v492
        %v2304 = vunpack.c.h.b16 %v492
        %v2305 = vunpack.c.l.b16 %v493
        %v2306 = vunpack.c.h.b16 %v493
        %v2307 = vunpack.c.l.b16 %v494
        %v2308 = vunpack.c.h.b16 %v494
        %v2309 = vunpack.c.l.b16 %v495
        %v2310 = vunpack.c.h.b16 %v495
        %v2311 = vunpack.c.l.b16 %v496
        %v2312 = vunpack.c.h.b16 %v496
        %v2313 = vunpack.c.l.b16 %v497
        %v2314 = vunpack.c.h.b16 %v497
        %v2315 = vunpack.c.l.b16 %v498
        %v2316 = vunpack.c.h.b16 %v498
        %v2317 = vunpack.c.l.b16 %v499
        %v2318 = vunpack.c.h.b16 %v499
        %v2319 = vunpack.c.l.b16 %v500
        %v2320 = vunpack.c.h.b16 %v500
        %v2321 = vunpack.c.l.b16 %v501
        %v2322 = vunpack.c.h.b16 %v501
        %v2323 = vunpack.c.l.b16 %v502
        %v2324 = vunpack.c.h.b16 %v502
        %v2325 = vunpack.c.l.b16 %v503
        %v2326 = vunpack.c.h.b16 %v503
        %v2327 = vunpack.c.l.b16 %v504
        %v2328 = vunpack.c.h.b16 %v504
        %v2329 = vunpack.c.l.b16 %v505
        %v2330 = vunpack.c.h.b16 %v505
        %v2331 = vunpack.c.l.b16 %v506
        %v2332 = vunpack.c.h.b16 %v506
        %v2333 = vunpack.c.l.b16 %v507
        %v2334 = vunpack.c.h.b16 %v507
        %v2335 = vpack.c.b16 %v2149, %v2143
        %v2336 = vpack.c.b16 %v2150, %v2144
        %v2337 = vpack.c.b16 %v2151, %v2145
        %v2338 = vpack.c.b16 %v2152, %v2146
        %v2339 = vpack.c.b16 %v2153, %v2147
        %v2340 = vpack.c.b16 %v2154, %v2148
        %v2341 = vpack.c.b16 %v2161, %v2155
        %v2342 = vpack.c.b16 %v2162, %v2156
        %v2343 = vpack.c.b16 %v2163, %v2157
        %v2344 = vpack.c.b16 %v2164, %v2158
        %v2345 = vpack.c.b16 %v2165, %v2159
        %v2346 = vpack.c.b16 %v2166, %v2160
        %v2347 = vpack.c.b16 %v2173, %v2167
        %v2348 = vpack.c.b16 %v2174, %v2168
        %v2349 = vpack.c.b16 %v2175, %v2169
        %v2350 = vpack.c.b16 %v2176, %v2170
        %v2351 = vpack.c.b16 %v2177, %v2171
        %v2352 = vpack.c.b16 %v2178, %v2172
        %v2353 = vpack.c.b16 %v2185, %v2179
        %v2354 = vpack.c.b16 %v2186, %v2180
        %v2355 = vpack.c.b16 %v2187, %v2181
        %v2356 = vpack.c.b16 %v2188, %v2182
        %v2357 = vpack.c.b16 %v2189, %v2183
        %v2358 = vpack.c.b16 %v2190, %v2184
        %v2359 = vpack.c.b16 %v2197, %v2191
        %v2360 = vpack.c.b16 %v2198, %v2192
        %v2361 = vpack.c.b16 %v2199, %v2193
        %v2362 = vpack.c.b16 %v2200, %v2194
        %v2363 = vpack.c.b16 %v2201, %v2195
        %v2364 = vpack.c.b16 %v2202, %v2196
        %v2365 = vpack.c.b16 %v2209, %v2203
        %v2366 = vpack.c.b16 %v2210, %v2204
        %v2367 = vpack.c.b16 %v2211, %v2205
        %v2368 = vpack.c.b16 %v2212, %v2206
        %v2369 = vpack.c.b16 %v2213, %v2207
        %v2370 = vpack.c.b16 %v2214, %v2208
        %v2371 = vpack.c.b16 %v2221, %v2215
        %v2372 = vpack.c.b16 %v2222, %v2216
        %v2373 = vpack.c.b16 %v2223, %v2217
        %v2374 = vpack.c.b16 %v2224, %v2218
        %v2375 = vpack.c.b16 %v2225, %v2219
        %v2376 = vpack.c.b16 %v2226, %v2220
        %v2377 = vpack.c.b16 %v2233, %v2227
        %v2378 = vpack.c.b16 %v2234, %v2228
        %v2379 = vpack.c.b16 %v2235, %v2229
        %v2380 = vpack.c.b16 %v2236, %v2230
        %v2381 = vpack.c.b16 %v2237, %v2231
        %v2382 = vpack.c.b16 %v2238, %v2232
        %v2383 = vpack.c.b16 %v2245, %v2239
        %v2384 = vpack.c.b16 %v2246, %v2240
        %v2385 = vpack.c.b16 %v2247, %v2241
        %v2386 = vpack.c.b16 %v2248, %v2242
        %v2387 = vpack.c.b16 %v2249, %v2243
        %v2388 = vpack.c.b16 %v2250, %v2244
        %v2389 = vpack.c.b16 %v2257, %v2251
        %v2390 = vpack.c.b16 %v2258, %v2252
        %v2391 = vpack.c.b16 %v2259, %v2253
        %v2392 = vpack.c.b16 %v2260, %v2254
        %v2393 = vpack.c.b16 %v2261, %v2255
        %v2394 = vpack.c.b16 %v2262, %v2256
        %v2395 = vpack.c.b16 %v2269, %v2263
        %v2396 = vpack.c.b16 %v2270, %v2264
        %v2397 = vpack.c.b16 %v2271, %v2265
        %v2398 = vpack.c.b16 %v2272, %v2266
        %v2399 = vpack.c.b16 %v2273, %v2267
        %v2400 = vpack.c.b16 %v2274, %v2268
        %v2401 = vpack.c.b16 %v2281, %v2275
        %v2402 = vpack.c.b16 %v2282, %v2276
        %v2403 = vpack.c.b16 %v2283, %v2277
        %v2404 = vpack.c.b16 %v2284, %v2278
        %v2405 = vpack.c.b16 %v2285, %v2279
        %v2406 = vpack.c.b16 %v2286, %v2280
        %v2407 = vpack.c.b16 %v2293, %v2287
        %v2408 = vpack.c.b16 %v2294, %v2288
        %v2409 = vpack.c.b16 %v2295, %v2289
        %v2410 = vpack.c.b16 %v2296, %v2290
        %v2411 = vpack.c.b16 %v2297, %v2291
        %v2412 = vpack.c.b16 %v2298, %v2292
        %v2413 = vpack.c.b16 %v2305, %v2299
        %v2414 = vpack.c.b16 %v2306, %v2300
        %v2415 = vpack.c.b16 %v2307, %v2301
        %v2416 = vpack.c.b16 %v2308, %v2302
        %v2417 = vpack.c.b16 %v2309, %v2303
        %v2418 = vpack.c.b16 %v2310, %v2304
        %v2419 = vpack.c.b16 %v2317, %v2311
        %v2420 = vpack.c.b16 %v2318, %v2312
        %v2421 = vpack.c.b16 %v2319, %v2313
        %v2422 = vpack.c.b16 %v2320, %v2314
        %v2423 = vpack.c.b16 %v2321, %v2315
        %v2424 = vpack.c.b16 %v2322, %v2316
        %v2425 = vpack.c.b16 %v2329, %v2323
        %v2426 = vpack.c.b16 %v2330, %v2324
        %v2427 = vpack.c.b16 %v2331, %v2325
        %v2428 = vpack.c.b16 %v2332, %v2326
        %v2429 = vpack.c.b16 %v2333, %v2327
        %v2430 = vpack.c.b16 %v2334, %v2328
        %v2623 = vunpack.c.l.b16 %v604
        %v2624 = vunpack.c.l.b16 %v605
        %v2625 = vunpack.c.l.b16 %v606
        %v2626 = vunpack.c.l.b16 %v607
        %v2627 = vunpack.c.l.b16 %v608
        %v2628 = vunpack.c.l.b16 %v609
        %v2629 = vunpack.c.l.b16 %v610
        %v2630 = vunpack.c.l.b16 %v611
        %v2631 = vunpack.c.l.b16 %v612
        %v2632 = vunpack.c.l.b16 %v613
        %v2633 = vunpack.c.l.b16 %v614
        %v2634 = vunpack.c.l.b16 %v615
        %v2635 = vunpack.c.l.b16 %v616
        %v2636 = vunpack.c.l.b16 %v617
        %v2637 = vunpack.c.l.b16 %v618
        %v2638 = vunpack.c.l.b16 %v619
        %v2639 = vunpack.c.l.b16 %v620
        %v2640 = vunpack.c.l.b16 %v621
        %v2641 = vunpack.c.l.b16 %v622
        %v2642 = vunpack.c.l.b16 %v623
        %v2643 = vunpack.c.l.b16 %v624
        %v2644 = vunpack.c.l.b16 %v625
        %v2645 = vunpack.c.l.b16 %v626
        %v2646 = vunpack.c.l.b16 %v627
        %v2647 = vunpack.c.l.b16 %v628
        %v2648 = vunpack.c.l.b16 %v629
        %v2649 = vunpack.c.l.b16 %v630
        %v2650 = vunpack.c.l.b16 %v631
        %v2651 = vunpack.c.l.b16 %v632
        %v2652 = vunpack.c.l.b16 %v633
        %v2653 = vunpack.c.l.b16 %v634
        %v2654 = vunpack.c.l.b16 %v635
        %v2655 = vunpack.c.l.b16 %v636
        %v2656 = vunpack.c.l.b16 %v637
        %v2657 = vunpack.c.l.b16 %v638
        %v2658 = vunpack.c.l.b16 %v639
        %v2659 = vunpack.c.l.b16 %v640
        %v2660 = vunpack.c.l.b16 %v641
        %v2661 = vunpack.c.l.b16 %v642
        %v2662 = vunpack.c.l.b16 %v643
        %v2663 = vunpack.c.l.b16 %v644
        %v2664 = vunpack.c.l.b16 %v645
        %v2665 = vunpack.c.l.b16 %v646
        %v2666 = vunpack.c.l.b16 %v647
        %v2667 = vunpack.c.l.b16 %v648
        %v2668 = vunpack.c.l.b16 %v649
        %v2669 = vunpack.c.l.b16 %v650
        %v2670 = vunpack.c.l.b16 %v651
        %v2671 = vunpack.c.l.b16 %v652
        %v2672 = vunpack.c.l.b16 %v653
        %v2673 = vunpack.c.l.b16 %v654
        %v2674 = vunpack.c.l.b16 %v655
        %v2675 = vunpack.c.l.b16 %v656
        %v2676 = vunpack.c.l.b16 %v657
        %v2677 = vunpack.c.l.b16 %v658
        %v2678 = vunpack.c.l.b16 %v659
        %v2679 = vunpack.c.l.b16 %v660
        %v2680 = vunpack.c.l.b16 %v661
        %v2681 = vunpack.c.l.b16 %v662
        %v2682 = vunpack.c.l.b16 %v663
        %v2683 = vunpack.c.l.b16 %v664
        %v2684 = vunpack.c.l.b16 %v665
        %v2685 = vunpack.c.l.b16 %v666
        %v2686 = vunpack.c.l.b16 %v667
        %v2687 = vunpack.c.l.b16 %v668
        %v2688 = vunpack.c.l.b16 %v669
        %v2689 = vunpack.c.l.b16 %v670
        %v2690 = vunpack.c.l.b16 %v671
        %v2691 = vunpack.c.l.b16 %v672
        %v2692 = vunpack.c.l.b16 %v673
        %v2693 = vunpack.c.l.b16 %v674
        %v2694 = vunpack.c.l.b16 %v675
        %v2695 = vunpack.c.l.b16 %v676
        %v2696 = vunpack.c.l.b16 %v677
        %v2697 = vunpack.c.l.b16 %v678
        %v2698 = vunpack.c.l.b16 %v679
        %v2699 = vunpack.c.l.b16 %v680
        %v2700 = vunpack.c.l.b16 %v681
        %v2701 = vunpack.c.l.b16 %v682
        %v2702 = vunpack.c.l.b16 %v683
        %v2703 = vunpack.c.l.b16 %v684
        %v2704 = vunpack.c.l.b16 %v685
        %v2705 = vunpack.c.l.b16 %v686
        %v2706 = vunpack.c.l.b16 %v687
        %v2707 = vunpack.c.l.b16 %v688
        %v2708 = vunpack.c.l.b16 %v689
        %v2709 = vunpack.c.l.b16 %v690
        %v2710 = vunpack.c.l.b16 %v691
        %v2711 = vunpack.c.l.b16 %v692
        %v2712 = vunpack.c.l.b16 %v693
        %v2713 = vunpack.c.l.b16 %v694
        %v2714 = vunpack.c.l.b16 %v695
        %v2715 = vunpack.c.l.b16 %v696
        %v2716 = vunpack.c.l.b16 %v697
        %v2717 = vunpack.c.l.b16 %v698
        %v2718 = vunpack.c.l.b16 %v699
        %v2719 = vpack.c.b16 %v2624, %v2623
        %v2720 = vpack.c.b16 %v2626, %v2625
        %v2721 = vpack.c.b16 %v2628, %v2627
        %v2722 = vpack.c.b16 %v2630, %v2629
        %v2723 = vpack.c.b16 %v2632, %v2631
        %v2724 = vpack.c.b16 %v2634, %v2633
        %v2725 = vpack.c.b16 %v2636, %v2635
        %v2726 = vpack.c.b16 %v2638, %v2637
        %v2727 = vpack.c.b16 %v2640, %v2639
        %v2728 = vpack.c.b16 %v2642, %v2641
        %v2729 = vpack.c.b16 %v2644, %v2643
        %v2730 = vpack.c.b16 %v2646, %v2645
        %v2731 = vpack.c.b16 %v2648, %v2647
        %v2732 = vpack.c.b16 %v2650, %v2649
        %v2733 = vpack.c.b16 %v2652, %v2651
        %v2734 = vpack.c.b16 %v2654, %v2653
        %v2735 = vpack.c.b16 %v2656, %v2655
        %v2736 = vpack.c.b16 %v2658, %v2657
        %v2737 = vpack.c.b16 %v2660, %v2659
        %v2738 = vpack.c.b16 %v2662, %v2661
        %v2739 = vpack.c.b16 %v2664, %v2663
        %v2740 = vpack.c.b16 %v2666, %v2665
        %v2741 = vpack.c.b16 %v2668, %v2667
        %v2742 = vpack.c.b16 %v2670, %v2669
        %v2743 = vpack.c.b16 %v2672, %v2671
        %v2744 = vpack.c.b16 %v2674, %v2673
        %v2745 = vpack.c.b16 %v2676, %v2675
        %v2746 = vpack.c.b16 %v2678, %v2677
        %v2747 = vpack.c.b16 %v2680, %v2679
        %v2748 = vpack.c.b16 %v2682, %v2681
        %v2749 = vpack.c.b16 %v2684, %v2683
        %v2750 = vpack.c.b16 %v2686, %v2685
        %v2751 = vpack.c.b16 %v2688, %v2687
        %v2752 = vpack.c.b16 %v2690, %v2689
        %v2753 = vpack.c.b16 %v2692, %v2691
        %v2754 = vpack.c.b16 %v2694, %v2693
        %v2755 = vpack.c.b16 %v2696, %v2695
        %v2756 = vpack.c.b16 %v2698, %v2697
        %v2757 = vpack.c.b16 %v2700, %v2699
        %v2758 = vpack.c.b16 %v2702, %v2701
        %v2759 = vpack.c.b16 %v2704, %v2703
        %v2760 = vpack.c.b16 %v2706, %v2705
        %v2761 = vpack.c.b16 %v2708, %v2707
        %v2762 = vpack.c.b16 %v2710, %v2709
        %v2763 = vpack.c.b16 %v2712, %v2711
        %v2764 = vpack.c.b16 %v2714, %v2713
        %v2765 = vpack.c.b16 %v2716, %v2715
        %v2766 = vpack.c.b16 %v2718, %v2717
        %2815 = vmatprep.subr.bf16.mxu0 0
        %2816 = vmatpush1.bf16.msra.mxu0 %v2719
        %2817 = vmatprep.subr.bf16.mxu0 0
        %2818 = vmatpush1.bf16.msra.mxu0 %v2720
        %2819 = vmatprep.subr.bf16.mxu0 0
        %2820 = vmatpush1.bf16.msra.mxu0 %v2721
        %2821 = vmatprep.subr.bf16.mxu0 0
        %2822 = vmatpush1.bf16.msra.mxu0 %v2722
        %2823 = vmatprep.subr.bf16.mxu0 0
        %2824 = vmatpush1.bf16.msra.mxu0 %v2723
        %2825 = vmatprep.subr.bf16.mxu0 0
        %2826 = vmatpush1.bf16.msra.mxu0 %v2724
        %2827 = vmatprep.subr.bf16.mxu0 0
        %2828 = vmatpush1.bf16.msra.mxu0 %v2725
        %2829 = vmatprep.subr.bf16.mxu0 0
        %2830 = vmatpush1.bf16.msra.mxu0 %v2726
        %2831 = vmatprep.subr.bf16.mxu0 0
        %2832 = vmatpush1.bf16.msra.mxu0 %v2727
        %2833 = vmatprep.subr.bf16.mxu0 0
        %2834 = vmatpush1.bf16.msra.mxu0 %v2728
        %2835 = vmatprep.subr.bf16.mxu0 0
        %2836 = vmatpush1.bf16.msra.mxu0 %v2729
        %2837 = vmatprep.subr.bf16.mxu0 0
        %2838 = vmatpush1.bf16.msra.mxu0 %v2730
        %2839 = vmatprep.subr.bf16.mxu0 0
        %2840 = vmatpush1.bf16.msra.mxu0 %v2731
        %2841 = vmatprep.subr.bf16.mxu0 0
        %2842 = vmatpush1.bf16.msra.mxu0 %v2732
        %2843 = vmatprep.subr.bf16.mxu0 0
        %2844 = vmatpush1.bf16.msra.mxu0 %v2733
        %2845 = vmatprep.subr.bf16.mxu0 0
        %2846 = vmatpush1.bf16.msra.mxu0 %v2734
        %2847 = vmatprep.mubr.bf16.mxu0 %v2336
        %2848 = vmatmul.mubr.bf16.gmra.mrb[0].mxu0 %v2335
        %v2849 = vpop.f32.mrb[0].mxu0
        %v2850 = vadd.f32 %v1921, %v2849
        %v2851 = vpop.f32.mrb[0].mxu0
        %v2852 = vpop.f32.mrb[0].mxu0
        %v2853 = vadd.f32 %v1924, %v2852
        %v2854 = vpop.f32.mrb[0].mxu0
        %2855 = vmatprep.mubr.bf16.mxu0 %v2342
        %2856 = vmatmul.mubr.bf16.gmra.mrb[0].mxu0 %v2341
        %v2857 = vpop.f32.mrb[0].mxu0
        %v2858 = vadd.f32 %v1929, %v2857
        %v2859 = vpop.f32.mrb[0].mxu0
        %v2860 = vpop.f32.mrb[0].mxu0
        %v2861 = vadd.f32 %v1932, %v2860
        %v2862 = vpop.f32.mrb[0].mxu0
        %2863 = vmatprep.mubr.bf16.mxu0 %v2348
        %2864 = vmatmul.mubr.bf16.gmra.mrb[0].mxu0 %v2347
        %v2865 = vpop.f32.mrb[0].mxu0
        %v2866 = vadd.f32 %v1937, %v2865
        %v2867 = vpop.f32.mrb[0].mxu0
        %v2868 = vpop.f32.mrb[0].mxu0
        %v2869 = vadd.f32 %v1940, %v2868
        %v2870 = vpop.f32.mrb[0].mxu0
        %2871 = vmatprep.mubr.bf16.mxu0 %v2354
        %2872 = vmatmul.mubr.bf16.gmra.mrb[0].mxu0 %v2353
        %v2873 = vpop.f32.mrb[0].mxu0
        %v2874 = vadd.f32 %v1945, %v2873
        %v2875 = vpop.f32.mrb[0].mxu0
        %v2876 = vpop.f32.mrb[0].mxu0
        %v2877 = vadd.f32 %v1948, %v2876
        %v2878 = vpop.f32.mrb[0].mxu0
        %2879 = vmatprep.mubr.bf16.mxu0 %v2360
        %2880 = vmatmul.mubr.bf16.gmra.mrb[0].mxu0 %v2359
        %v2881 = vpop.f32.mrb[0].mxu0
        %v2882 = vadd.f32 %v1953, %v2881
        %v2883 = vpop.f32.mrb[0].mxu0
        %v2884 = vpop.f32.mrb[0].mxu0
        %v2885 = vadd.f32 %v1956, %v2884
        %v2886 = vpop.f32.mrb[0].mxu0
        %2887 = vmatprep.mubr.bf16.mxu0 %v2366
        %2888 = vmatmul.mubr.bf16.gmra.mrb[0].mxu0 %v2365
        %v2889 = vpop.f32.mrb[0].mxu0
        %v2890 = vadd.f32 %v1961, %v2889
        %v2891 = vpop.f32.mrb[0].mxu0
        %v2892 = vpop.f32.mrb[0].mxu0
        %v2893 = vadd.f32 %v1964, %v2892
        %v2894 = vpop.f32.mrb[0].mxu0
        %2895 = vmatprep.mubr.bf16.mxu0 %v2372
        %2896 = vmatmul.mubr.bf16.gmra.mrb[0].mxu0 %v2371
        %v2897 = vpop.f32.mrb[0].mxu0
        %v2898 = vadd.f32 %v1969, %v2897
        %v2899 = vpop.f32.mrb[0].mxu0
        %v2900 = vpop.f32.mrb[0].mxu0
        %v2901 = vadd.f32 %v1972, %v2900
        %v2902 = vpop.f32.mrb[0].mxu0
        %2903 = vmatprep.mubr.bf16.mxu0 %v2378
        %2904 = vmatmul.mubr.bf16.gmra.mrb[0].mxu0 %v2377
        %v2905 = vpop.f32.mrb[0].mxu0
        %v2906 = vadd.f32 %v1977, %v2905
        %v2907 = vpop.f32.mrb[0].mxu0
        %v2908 = vpop.f32.mrb[0].mxu0
        %v2909 = vadd.f32 %v1980, %v2908
        %v2910 = vpop.f32.mrb[0].mxu0
        %2911 = vmatprep.mubr.bf16.mxu0 %v2384
        %2912 = vmatmul.mubr.bf16.gmra.mrb[0].mxu0 %v2383
        %v2913 = vpop.f32.mrb[0].mxu0
        %v2914 = vadd.f32 %v1985, %v2913
        %v2915 = vpop.f32.mrb[0].mxu0
        %v2916 = vpop.f32.mrb[0].mxu0
        %v2917 = vadd.f32 %v1988, %v2916
        %v2918 = vpop.f32.mrb[0].mxu0
        %2919 = vmatprep.mubr.bf16.mxu0 %v2390
        %2920 = vmatmul.mubr.bf16.gmra.mrb[0].mxu0 %v2389
        %v2921 = vpop.f32.mrb[0].mxu0
        %v2922 = vadd.f32 %v1993, %v2921
        %v2923 = vpop.f32.mrb[0].mxu0
        %v2924 = vpop.f32.mrb[0].mxu0
        %v2925 = vadd.f32 %v1996, %v2924
        %v2926 = vpop.f32.mrb[0].mxu0
        %2927 = vmatprep.mubr.bf16.mxu0 %v2396
        %2928 = vmatmul.mubr.bf16.gmra.mrb[0].mxu0 %v2395
        %v2929 = vpop.f32.mrb[0].mxu0
        %v2930 = vadd.f32 %v2001, %v2929
        %v2931 = vpop.f32.mrb[0].mxu0
        %v2932 = vpop.f32.mrb[0].mxu0
        %v2933 = vadd.f32 %v2004, %v2932
        %v2934 = vpop.f32.mrb[0].mxu0
        %2935 = vmatprep.mubr.bf16.mxu0 %v2402
        %2936 = vmatmul.mubr.bf16.gmra.mrb[0].mxu0 %v2401
        %v2937 = vpop.f32.mrb[0].mxu0
        %v2938 = vadd.f32 %v2009, %v2937
        %v2939 = vpop.f32.mrb[0].mxu0
        %v2940 = vpop.f32.mrb[0].mxu0
        %v2941 = vadd.f32 %v2012, %v2940
        %v2942 = vpop.f32.mrb[0].mxu0
        %2943 = vmatprep.mubr.bf16.mxu0 %v2408
        %2944 = vmatmul.mubr.bf16.gmra.mrb[0].mxu0 %v2407
        %v2945 = vpop.f32.mrb[0].mxu0
        %v2946 = vadd.f32 %v2017, %v2945
        %v2947 = vpop.f32.mrb[0].mxu0
        %v2948 = vpop.f32.mrb[0].mxu0
        %v2949 = vadd.f32 %v2020, %v2948
        %v2950 = vpop.f32.mrb[0].mxu0
        %2951 = vmatprep.mubr.bf16.mxu0 %v2414
        %2952 = vmatmul.mubr.bf16.gmra.mrb[0].mxu0 %v2413
        %v2953 = vpop.f32.mrb[0].mxu0
        %v2954 = vadd.f32 %v2025, %v2953
        %v2955 = vpop.f32.mrb[0].mxu0
        %v2956 = vpop.f32.mrb[0].mxu0
        %v2957 = vadd.f32 %v2028, %v2956
        %v2958 = vpop.f32.mrb[0].mxu0
        %2959 = vmatprep.mubr.bf16.mxu0 %v2420
        %2960 = vmatmul.mubr.bf16.gmra.mrb[0].mxu0 %v2419
        %v2961 = vpop.f32.mrb[0].mxu0
        %v2962 = vadd.f32 %v2033, %v2961
        %v2963 = vpop.f32.mrb[0].mxu0
        %v2964 = vpop.f32.mrb[0].mxu0
        %v2965 = vadd.f32 %v2036, %v2964
        %v2966 = vpop.f32.mrb[0].mxu0
        %2967 = vmatprep.mubr.bf16.mxu0 %v2426
        %2968 = vmatmul.mubr.bf16.gmra.mrb[0].mxu0 %v2425
        %v2969 = vpop.f32.mrb[0].mxu0
        %v2970 = vadd.f32 %v2041, %v2969
        %v2971 = vpop.f32.mrb[0].mxu0
        %v2972 = vpop.f32.mrb[0].mxu0
        %v2973 = vadd.f32 %v2044, %v2972
        %v2974 = vpop.f32.mrb[0].mxu0
        %2975 = vdwg.mxu0
        %2976 = vmatprep.subr.bf16.mxu0 0
        %2977 = vmatpush1.bf16.msra.mxu0 %v2735
        %2978 = vmatprep.subr.bf16.mxu0 0
        %2979 = vmatpush1.bf16.msra.mxu0 %v2736
        %2980 = vmatprep.subr.bf16.mxu0 0
        %2981 = vmatpush1.bf16.msra.mxu0 %v2737
        %2982 = vmatprep.subr.bf16.mxu0 0
        %2983 = vmatpush1.bf16.msra.mxu0 %v2738
        %2984 = vmatprep.subr.bf16.mxu0 0
        %2985 = vmatpush1.bf16.msra.mxu0 %v2739
        %2986 = vmatprep.subr.bf16.mxu0 0
        %2987 = vmatpush1.bf16.msra.mxu0 %v2740
        %2988 = vmatprep.subr.bf16.mxu0 0
        %2989 = vmatpush1.bf16.msra.mxu0 %v2741
        %2990 = vmatprep.subr.bf16.mxu0 0
        %2991 = vmatpush1.bf16.msra.mxu0 %v2742
        %2992 = vmatprep.subr.bf16.mxu0 0
        %2993 = vmatpush1.bf16.msra.mxu0 %v2743
        %2994 = vmatprep.subr.bf16.mxu0 0
        %2995 = vmatpush1.bf16.msra.mxu0 %v2744
        %2996 = vmatprep.subr.bf16.mxu0 0
        %2997 = vmatpush1.bf16.msra.mxu0 %v2745
        %2998 = vmatprep.subr.bf16.mxu0 0
        %2999 = vmatpush1.bf16.msra.mxu0 %v2746
        %3000 = vmatprep.subr.bf16.mxu0 0
        %3001 = vmatpush1.bf16.msra.mxu0 %v2747
        %3002 = vmatprep.subr.bf16.mxu0 0
        %3003 = vmatpush1.bf16.msra.mxu0 %v2748
        %3004 = vmatprep.subr.bf16.mxu0 0
        %3005 = vmatpush1.bf16.msra.mxu0 %v2749
        %3006 = vmatprep.subr.bf16.mxu0 0
        %3007 = vmatpush1.bf16.msra.mxu0 %v2750
        %3008 = vmatprep.mubr.bf16.mxu0 %v2338
        %3009 = vmatmul.mubr.bf16.gmra.mrb[0].mxu0 %v2337
        %v3010 = vpop.f32.mrb[0].mxu0
        %v3011 = vadd.f32 %v2850, %v3010
        %v3012 = vpop.f32.mrb[0].mxu0
        %v3013 = vpop.f32.mrb[0].mxu0
        %v3014 = vadd.f32 %v2853, %v3013
        %v3015 = vpop.f32.mrb[0].mxu0
        %3016 = vmatprep.mubr.bf16.mxu0 %v2344
        %3017 = vmatmul.mubr.bf16.gmra.mrb[0].mxu0 %v2343
        %v3018 = vpop.f32.mrb[0].mxu0
        %v3019 = vadd.f32 %v2858, %v3018
        %v3020 = vpop.f32.mrb[0].mxu0
        %v3021 = vpop.f32.mrb[0].mxu0
        %v3022 = vadd.f32 %v2861, %v3021
        %v3023 = vpop.f32.mrb[0].mxu0
        %3024 = vmatprep.mubr.bf16.mxu0 %v2350
        %3025 = vmatmul.mubr.bf16.gmra.mrb[0].mxu0 %v2349
        %v3026 = vpop.f32.mrb[0].mxu0
        %v3027 = vadd.f32 %v2866, %v3026
        %v3028 = vpop.f32.mrb[0].mxu0
        %v3029 = vpop.f32.mrb[0].mxu0
        %v3030 = vadd.f32 %v2869, %v3029
        %v3031 = vpop.f32.mrb[0].mxu0
        %3032 = vmatprep.mubr.bf16.mxu0 %v2356
        %3033 = vmatmul.mubr.bf16.gmra.mrb[0].mxu0 %v2355
        %v3034 = vpop.f32.mrb[0].mxu0
        %v3035 = vadd.f32 %v2874, %v3034
        %v3036 = vpop.f32.mrb[0].mxu0
        %v3037 = vpop.f32.mrb[0].mxu0
        %v3038 = vadd.f32 %v2877, %v3037
        %v3039 = vpop.f32.mrb[0].mxu0
        %3040 = vmatprep.mubr.bf16.mxu0 %v2362
        %3041 = vmatmul.mubr.bf16.gmra.mrb[0].mxu0 %v2361
        %v3042 = vpop.f32.mrb[0].mxu0
        %v3043 = vadd.f32 %v2882, %v3042
        %v3044 = vpop.f32.mrb[0].mxu0
        %v3045 = vpop.f32.mrb[0].mxu0
        %v3046 = vadd.f32 %v2885, %v3045
        %v3047 = vpop.f32.mrb[0].mxu0
        %3048 = vmatprep.mubr.bf16.mxu0 %v2368
        %3049 = vmatmul.mubr.bf16.gmra.mrb[0].mxu0 %v2367
        %v3050 = vpop.f32.mrb[0].mxu0
        %v3051 = vadd.f32 %v2890, %v3050
        %v3052 = vpop.f32.mrb[0].mxu0
        %v3053 = vpop.f32.mrb[0].mxu0
        %v3054 = vadd.f32 %v2893, %v3053
        %v3055 = vpop.f32.mrb[0].mxu0
        %3056 = vmatprep.mubr.bf16.mxu0 %v2374
        %3057 = vmatmul.mubr.bf16.gmra.mrb[0].mxu0 %v2373
        %v3058 = vpop.f32.mrb[0].mxu0
        %v3059 = vadd.f32 %v2898, %v3058
        %v3060 = vpop.f32.mrb[0].mxu0
        %v3061 = vpop.f32.mrb[0].mxu0
        %v3062 = vadd.f32 %v2901, %v3061
        %v3063 = vpop.f32.mrb[0].mxu0
        %3064 = vmatprep.mubr.bf16.mxu0 %v2380
        %3065 = vmatmul.mubr.bf16.gmra.mrb[0].mxu0 %v2379
        %v3066 = vpop.f32.mrb[0].mxu0
        %v3067 = vadd.f32 %v2906, %v3066
        %v3068 = vpop.f32.mrb[0].mxu0
        %v3069 = vpop.f32.mrb[0].mxu0
        %v3070 = vadd.f32 %v2909, %v3069
        %v3071 = vpop.f32.mrb[0].mxu0
        %3072 = vmatprep.mubr.bf16.mxu0 %v2386
        %3073 = vmatmul.mubr.bf16.gmra.mrb[0].mxu0 %v2385
        %v3074 = vpop.f32.mrb[0].mxu0
        %v3075 = vadd.f32 %v2914, %v3074
        %v3076 = vpop.f32.mrb[0].mxu0
        %v3077 = vpop.f32.mrb[0].mxu0
        %v3078 = vadd.f32 %v2917, %v3077
        %v3079 = vpop.f32.mrb[0].mxu0
        %3080 = vmatprep.mubr.bf16.mxu0 %v2392
        %3081 = vmatmul.mubr.bf16.gmra.mrb[0].mxu0 %v2391
        %v3082 = vpop.f32.mrb[0].mxu0
        %v3083 = vadd.f32 %v2922, %v3082
        %v3084 = vpop.f32.mrb[0].mxu0
        %v3085 = vpop.f32.mrb[0].mxu0
        %v3086 = vadd.f32 %v2925, %v3085
        %v3087 = vpop.f32.mrb[0].mxu0
        %3088 = vmatprep.mubr.bf16.mxu0 %v2398
        %3089 = vmatmul.mubr.bf16.gmra.mrb[0].mxu0 %v2397
        %v3090 = vpop.f32.mrb[0].mxu0
        %v3091 = vadd.f32 %v2930, %v3090
        %v3092 = vpop.f32.mrb[0].mxu0
        %v3093 = vpop.f32.mrb[0].mxu0
        %v3094 = vadd.f32 %v2933, %v3093
        %v3095 = vpop.f32.mrb[0].mxu0
        %3096 = vmatprep.mubr.bf16.mxu0 %v2404
        %3097 = vmatmul.mubr.bf16.gmra.mrb[0].mxu0 %v2403
        %v3098 = vpop.f32.mrb[0].mxu0
        %v3099 = vadd.f32 %v2938, %v3098
        %v3100 = vpop.f32.mrb[0].mxu0
        %v3101 = vpop.f32.mrb[0].mxu0
        %v3102 = vadd.f32 %v2941, %v3101
        %v3103 = vpop.f32.mrb[0].mxu0
        %3104 = vmatprep.mubr.bf16.mxu0 %v2410
        %3105 = vmatmul.mubr.bf16.gmra.mrb[0].mxu0 %v2409
        %v3106 = vpop.f32.mrb[0].mxu0
        %v3107 = vadd.f32 %v2946, %v3106
        %v3108 = vpop.f32.mrb[0].mxu0
        %v3109 = vpop.f32.mrb[0].mxu0
        %v3110 = vadd.f32 %v2949, %v3109
        %v3111 = vpop.f32.mrb[0].mxu0
        %3112 = vmatprep.mubr.bf16.mxu0 %v2416
        %3113 = vmatmul.mubr.bf16.gmra.mrb[0].mxu0 %v2415
        %v3114 = vpop.f32.mrb[0].mxu0
        %v3115 = vadd.f32 %v2954, %v3114
        %v3116 = vpop.f32.mrb[0].mxu0
        %v3117 = vpop.f32.mrb[0].mxu0
        %v3118 = vadd.f32 %v2957, %v3117
        %v3119 = vpop.f32.mrb[0].mxu0
        %3120 = vmatprep.mubr.bf16.mxu0 %v2422
        %3121 = vmatmul.mubr.bf16.gmra.mrb[0].mxu0 %v2421
        %v3122 = vpop.f32.mrb[0].mxu0
        %v3123 = vadd.f32 %v2962, %v3122
        %v3124 = vpop.f32.mrb[0].mxu0
        %v3125 = vpop.f32.mrb[0].mxu0
        %v3126 = vadd.f32 %v2965, %v3125
        %v3127 = vpop.f32.mrb[0].mxu0
        %3128 = vmatprep.mubr.bf16.mxu0 %v2428
        %3129 = vmatmul.mubr.bf16.gmra.mrb[0].mxu0 %v2427
        %v3130 = vpop.f32.mrb[0].mxu0
        %v3131 = vadd.f32 %v2970, %v3130
        %v3132 = vpop.f32.mrb[0].mxu0
        %v3133 = vpop.f32.mrb[0].mxu0
        %v3134 = vadd.f32 %v2973, %v3133
        %v3135 = vpop.f32.mrb[0].mxu0
        %3136 = vdwg.mxu0
        %3137 = vmatprep.subr.bf16.mxu0 0
        %3138 = vmatpush1.bf16.msra.mxu0 %v2751
        %3139 = vmatprep.subr.bf16.mxu0 0
        %3140 = vmatpush1.bf16.msra.mxu0 %v2752
        %3141 = vmatprep.subr.bf16.mxu0 0
        %3142 = vmatpush1.bf16.msra.mxu0 %v2753
        %3143 = vmatprep.subr.bf16.mxu0 0
        %3144 = vmatpush1.bf16.msra.mxu0 %v2754
        %3145 = vmatprep.subr.bf16.mxu0 0
        %3146 = vmatpush1.bf16.msra.mxu0 %v2755
        %3147 = vmatprep.subr.bf16.mxu0 0
        %3148 = vmatpush1.bf16.msra.mxu0 %v2756
        %3149 = vmatprep.subr.bf16.mxu0 0
        %3150 = vmatpush1.bf16.msra.mxu0 %v2757
        %3151 = vmatprep.subr.bf16.mxu0 0
        %3152 = vmatpush1.bf16.msra.mxu0 %v2758
        %3153 = vmatprep.subr.bf16.mxu0 0
        %3154 = vmatpush1.bf16.msra.mxu0 %v2759
        %3155 = vmatprep.subr.bf16.mxu0 0
        %3156 = vmatpush1.bf16.msra.mxu0 %v2760
        %3157 = vmatprep.subr.bf16.mxu0 0
        %3158 = vmatpush1.bf16.msra.mxu0 %v2761
        %3159 = vmatprep.subr.bf16.mxu0 0
        %3160 = vmatpush1.bf16.msra.mxu0 %v2762
        %3161 = vmatprep.subr.bf16.mxu0 0
        %3162 = vmatpush1.bf16.msra.mxu0 %v2763
        %3163 = vmatprep.subr.bf16.mxu0 0
        %3164 = vmatpush1.bf16.msra.mxu0 %v2764
        %3165 = vmatprep.subr.bf16.mxu0 0
        %3166 = vmatpush1.bf16.msra.mxu0 %v2765
        %3167 = vmatprep.subr.bf16.mxu0 0
        %3168 = vmatpush1.bf16.msra.mxu0 %v2766
        %3169 = vmatprep.mubr.bf16.mxu0 %v2340
        %3170 = vmatmul.mubr.bf16.gmra.mrb[0].mxu0 %v2339
        %v3171 = vpop.f32.mrb[0].mxu0
        %v3172 = vadd.f32 %v3011, %v3171
        %v3173 = vpop.f32.mrb[0].mxu0
        %v3174 = vpop.f32.mrb[0].mxu0
        %v3175 = vadd.f32 %v3014, %v3174
        %v3176 = vpop.f32.mrb[0].mxu0
        %3177 = vmatprep.mubr.bf16.mxu0 %v2346
        %3178 = vmatmul.mubr.bf16.gmra.mrb[0].mxu0 %v2345
        %v3179 = vpop.f32.mrb[0].mxu0
        %v3180 = vadd.f32 %v3019, %v3179
        %v3181 = vpop.f32.mrb[0].mxu0
        %v3182 = vpop.f32.mrb[0].mxu0
        %v3183 = vadd.f32 %v3022, %v3182
        %v3184 = vpop.f32.mrb[0].mxu0
        %3185 = vmatprep.mubr.bf16.mxu0 %v2352
        %3186 = vmatmul.mubr.bf16.gmra.mrb[0].mxu0 %v2351
        %v3187 = vpop.f32.mrb[0].mxu0
        %v3188 = vadd.f32 %v3027, %v3187
        %v3189 = vpop.f32.mrb[0].mxu0
        %v3190 = vpop.f32.mrb[0].mxu0
        %v3191 = vadd.f32 %v3030, %v3190
        %v3192 = vpop.f32.mrb[0].mxu0
        %3193 = vmatprep.mubr.bf16.mxu0 %v2358
        %3194 = vmatmul.mubr.bf16.gmra.mrb[0].mxu0 %v2357
        %v3195 = vpop.f32.mrb[0].mxu0
        %v3196 = vadd.f32 %v3035, %v3195
        %v3197 = vpop.f32.mrb[0].mxu0
        %v3198 = vpop.f32.mrb[0].mxu0
        %v3199 = vadd.f32 %v3038, %v3198
        %v3200 = vpop.f32.mrb[0].mxu0
        %3201 = vmatprep.mubr.bf16.mxu0 %v2364
        %3202 = vmatmul.mubr.bf16.gmra.mrb[0].mxu0 %v2363
        %v3203 = vpop.f32.mrb[0].mxu0
        %v3204 = vadd.f32 %v3043, %v3203
        %v3205 = vpop.f32.mrb[0].mxu0
        %v3206 = vpop.f32.mrb[0].mxu0
        %v3207 = vadd.f32 %v3046, %v3206
        %v3208 = vpop.f32.mrb[0].mxu0
        %3209 = vmatprep.mubr.bf16.mxu0 %v2370
        %3210 = vmatmul.mubr.bf16.gmra.mrb[0].mxu0 %v2369
        %v3211 = vpop.f32.mrb[0].mxu0
        %v3212 = vadd.f32 %v3051, %v3211
        %v3213 = vpop.f32.mrb[0].mxu0
        %v3214 = vpop.f32.mrb[0].mxu0
        %v3215 = vadd.f32 %v3054, %v3214
        %v3216 = vpop.f32.mrb[0].mxu0
        %3217 = vmatprep.mubr.bf16.mxu0 %v2376
        %3218 = vmatmul.mubr.bf16.gmra.mrb[0].mxu0 %v2375
        %v3219 = vpop.f32.mrb[0].mxu0
        %v3220 = vadd.f32 %v3059, %v3219
        %v3221 = vpop.f32.mrb[0].mxu0
        %v3222 = vpop.f32.mrb[0].mxu0
        %v3223 = vadd.f32 %v3062, %v3222
        %v3224 = vpop.f32.mrb[0].mxu0
        %3225 = vmatprep.mubr.bf16.mxu0 %v2382
        %3226 = vmatmul.mubr.bf16.gmra.mrb[0].mxu0 %v2381
        %v3227 = vpop.f32.mrb[0].mxu0
        %v3228 = vadd.f32 %v3067, %v3227
        %v3229 = vpop.f32.mrb[0].mxu0
        %v3230 = vpop.f32.mrb[0].mxu0
        %v3231 = vadd.f32 %v3070, %v3230
        %v3232 = vpop.f32.mrb[0].mxu0
        %3233 = vmatprep.mubr.bf16.mxu0 %v2388
        %3234 = vmatmul.mubr.bf16.gmra.mrb[0].mxu0 %v2387
        %v3235 = vpop.f32.mrb[0].mxu0
        %v3236 = vadd.f32 %v3075, %v3235
        %v3237 = vpop.f32.mrb[0].mxu0
        %v3238 = vpop.f32.mrb[0].mxu0
        %v3239 = vadd.f32 %v3078, %v3238
        %v3240 = vpop.f32.mrb[0].mxu0
        %3241 = vmatprep.mubr.bf16.mxu0 %v2394
        %3242 = vmatmul.mubr.bf16.gmra.mrb[0].mxu0 %v2393
        %v3243 = vpop.f32.mrb[0].mxu0
        %v3244 = vadd.f32 %v3083, %v3243
        %v3245 = vpop.f32.mrb[0].mxu0
        %v3246 = vpop.f32.mrb[0].mxu0
        %v3247 = vadd.f32 %v3086, %v3246
        %v3248 = vpop.f32.mrb[0].mxu0
        %3249 = vmatprep.mubr.bf16.mxu0 %v2400
        %3250 = vmatmul.mubr.bf16.gmra.mrb[0].mxu0 %v2399
        %v3251 = vpop.f32.mrb[0].mxu0
        %v3252 = vadd.f32 %v3091, %v3251
        %v3253 = vpop.f32.mrb[0].mxu0
        %v3254 = vpop.f32.mrb[0].mxu0
        %v3255 = vadd.f32 %v3094, %v3254
        %v3256 = vpop.f32.mrb[0].mxu0
        %3257 = vmatprep.mubr.bf16.mxu0 %v2406
        %3258 = vmatmul.mubr.bf16.gmra.mrb[0].mxu0 %v2405
        %v3259 = vpop.f32.mrb[0].mxu0
        %v3260 = vadd.f32 %v3099, %v3259
        %v3261 = vpop.f32.mrb[0].mxu0
        %v3262 = vpop.f32.mrb[0].mxu0
        %v3263 = vadd.f32 %v3102, %v3262
        %v3264 = vpop.f32.mrb[0].mxu0
        %3265 = vmatprep.mubr.bf16.mxu0 %v2412
        %3266 = vmatmul.mubr.bf16.gmra.mrb[0].mxu0 %v2411
        %v3267 = vpop.f32.mrb[0].mxu0
        %v3268 = vadd.f32 %v3107, %v3267
        %v3269 = vpop.f32.mrb[0].mxu0
        %v3270 = vpop.f32.mrb[0].mxu0
        %v3271 = vadd.f32 %v3110, %v3270
        %v3272 = vpop.f32.mrb[0].mxu0
        %3273 = vmatprep.mubr.bf16.mxu0 %v2418
        %3274 = vmatmul.mubr.bf16.gmra.mrb[0].mxu0 %v2417
        %v3275 = vpop.f32.mrb[0].mxu0
        %v3276 = vadd.f32 %v3115, %v3275
        %v3277 = vpop.f32.mrb[0].mxu0
        %v3278 = vpop.f32.mrb[0].mxu0
        %v3279 = vadd.f32 %v3118, %v3278
        %v3280 = vpop.f32.mrb[0].mxu0
        %3281 = vmatprep.mubr.bf16.mxu0 %v2424
        %3282 = vmatmul.mubr.bf16.gmra.mrb[0].mxu0 %v2423
        %v3283 = vpop.f32.mrb[0].mxu0
        %v3284 = vadd.f32 %v3123, %v3283
        %v3285 = vpop.f32.mrb[0].mxu0
        %v3286 = vpop.f32.mrb[0].mxu0
        %v3287 = vadd.f32 %v3126, %v3286
        %v3288 = vpop.f32.mrb[0].mxu0
        %3289 = vmatprep.mubr.bf16.mxu0 %v2430
        %3290 = vmatmul.mubr.bf16.gmra.mrb[0].mxu0 %v2429
        %v3291 = vpop.f32.mrb[0].mxu0
        %v3292 = vadd.f32 %v3131, %v3291
        %v3293 = vpop.f32.mrb[0].mxu0
        %v3294 = vpop.f32.mrb[0].mxu0
        %v3295 = vadd.f32 %v3134, %v3294
        %v3296 = vpop.f32.mrb[0].mxu0
        %3297 = vdwg.mxu0
        %v3298 = vld [vmem:[#allocation8] sm:$0xff]
        %v3299 = vld [vmem:[#allocation8 + $0x18] sm:$0xff]
        %v3300 = vld [vmem:[#allocation8 + $0x30] sm:$0xff]
        %v3301 = vld [vmem:[#allocation8 + $0x48] sm:$0xff]
        %v3302 = vld [vmem:[#allocation8 + $0x60] sm:$0xff]
        %v3303 = vld [vmem:[#allocation8 + $0x78] sm:$0xff]
        %v3304 = vld [vmem:[#allocation8 + $0x90] sm:$0xff]
        %v3305 = vld [vmem:[#allocation8 + $0xa8] sm:$0xff]
        %v3306 = vld [vmem:[#allocation8 + $0xc0] sm:$0xff]
        %v3307 = vld [vmem:[#allocation8 + $0xd8] sm:$0xff]
        %v3308 = vld [vmem:[#allocation8 + $0xf0] sm:$0xff]
        %v3309 = vld [vmem:[#allocation8 + $0x108] sm:$0xff]
        %v3310 = vld [vmem:[#allocation8 + $0x120] sm:$0xff]
        %v3311 = vld [vmem:[#allocation8 + $0x138] sm:$0xff]
        %v3312 = vld [vmem:[#allocation8 + $0x150] sm:$0xff]
        %v3313 = vld [vmem:[#allocation8 + $0x168] sm:$0xff]
        %v3314 = vld [vmem:[#allocation8 + $0x180] sm:$0xff]
        %v3315 = vld [vmem:[#allocation8 + $0x198] sm:$0xff]
        %v3316 = vld [vmem:[#allocation8 + $0x1b0] sm:$0xff]
        %v3317 = vld [vmem:[#allocation8 + $0x1c8] sm:$0xff]
        %v3318 = vld [vmem:[#allocation8 + $0x1e0] sm:$0xff]
        %v3319 = vld [vmem:[#allocation8 + $0x1f8] sm:$0xff]
        %v3320 = vld [vmem:[#allocation8 + $0x210] sm:$0xff]
        %v3321 = vld [vmem:[#allocation8 + $0x228] sm:$0xff]
        %v3322 = vld [vmem:[#allocation8 + $0x240] sm:$0xff]
        %v3323 = vld [vmem:[#allocation8 + $0x258] sm:$0xff]
        %v3324 = vld [vmem:[#allocation8 + $0x270] sm:$0xff]
        %v3325 = vld [vmem:[#allocation8 + $0x288] sm:$0xff]
        %v3326 = vld [vmem:[#allocation8 + $0x2a0] sm:$0xff]
        %v3327 = vld [vmem:[#allocation8 + $0x2b8] sm:$0xff]
        %v3328 = vld [vmem:[#allocation8 + $0x2d0] sm:$0xff]
        %v3329 = vld [vmem:[#allocation8 + $0x2e8] sm:$0xff]
        %v3330 = vld [vmem:[#allocation8 + $0x300] sm:$0xff]
        %v3331 = vld [vmem:[#allocation8 + $0x318] sm:$0xff]
        %v3332 = vld [vmem:[#allocation8 + $0x330] sm:$0xff]
        %v3333 = vld [vmem:[#allocation8 + $0x348] sm:$0xff]
        %v3334 = vld [vmem:[#allocation8 + $0x360] sm:$0xff]
        %v3335 = vld [vmem:[#allocation8 + $0x378] sm:$0xff]
        %v3336 = vld [vmem:[#allocation8 + $0x390] sm:$0xff]
        %v3337 = vld [vmem:[#allocation8 + $0x3a8] sm:$0xff]
        %v3338 = vld [vmem:[#allocation8 + $0x3c0] sm:$0xff]
        %v3339 = vld [vmem:[#allocation8 + $0x3d8] sm:$0xff]
        %v3340 = vld [vmem:[#allocation8 + $0x3f0] sm:$0xff]
        %v3341 = vld [vmem:[#allocation8 + $0x408] sm:$0xff]
        %v3342 = vld [vmem:[#allocation8 + $0x420] sm:$0xff]
        %v3343 = vld [vmem:[#allocation8 + $0x438] sm:$0xff]
        %v3344 = vld [vmem:[#allocation8 + $0x450] sm:$0xff]
        %v3345 = vld [vmem:[#allocation8 + $0x468] sm:$0xff]
        %v3346 = vld [vmem:[#allocation8 + $0x480] sm:$0xff]
        %v3347 = vld [vmem:[#allocation8 + $0x498] sm:$0xff]
        %v3348 = vld [vmem:[#allocation8 + $0x4b0] sm:$0xff]
        %v3349 = vld [vmem:[#allocation8 + $0x4c8] sm:$0xff]
        %v3350 = vld [vmem:[#allocation8 + $0x4e0] sm:$0xff]
        %v3351 = vld [vmem:[#allocation8 + $0x4f8] sm:$0xff]
        %v3352 = vld [vmem:[#allocation8 + $0x510] sm:$0xff]
        %v3353 = vld [vmem:[#allocation8 + $0x528] sm:$0xff]
        %v3354 = vld [vmem:[#allocation8 + $0x540] sm:$0xff]
        %v3355 = vld [vmem:[#allocation8 + $0x558] sm:$0xff]
        %v3356 = vld [vmem:[#allocation8 + $0x570] sm:$0xff]
        %v3357 = vld [vmem:[#allocation8 + $0x588] sm:$0xff]
        %v3358 = vld [vmem:[#allocation8 + $0x5a0] sm:$0xff]
        %v3359 = vld [vmem:[#allocation8 + $0x5b8] sm:$0xff]
        %v3360 = vld [vmem:[#allocation8 + $0x5d0] sm:$0xff]
        %v3361 = vld [vmem:[#allocation8 + $0x5e8] sm:$0xff]
        %v3362 = vld [vmem:[#allocation8 + $0x600] sm:$0xff]
        %v3363 = vld [vmem:[#allocation8 + $0x618] sm:$0xff]
        %v3364 = vld [vmem:[#allocation8 + $0x630] sm:$0xff]
        %v3365 = vld [vmem:[#allocation8 + $0x648] sm:$0xff]
        %v3366 = vld [vmem:[#allocation8 + $0x660] sm:$0xff]
        %v3367 = vld [vmem:[#allocation8 + $0x678] sm:$0xff]
        %v3368 = vld [vmem:[#allocation8 + $0x690] sm:$0xff]
        %v3369 = vld [vmem:[#allocation8 + $0x6a8] sm:$0xff]
        %v3370 = vld [vmem:[#allocation8 + $0x6c0] sm:$0xff]
        %v3371 = vld [vmem:[#allocation8 + $0x6d8] sm:$0xff]
        %v3372 = vld [vmem:[#allocation8 + $0x6f0] sm:$0xff]
        %v3373 = vld [vmem:[#allocation8 + $0x708] sm:$0xff]
        %v3374 = vld [vmem:[#allocation8 + $0x720] sm:$0xff]
        %v3375 = vld [vmem:[#allocation8 + $0x738] sm:$0xff]
        %v3376 = vld [vmem:[#allocation8 + $0x750] sm:$0xff]
        %v3377 = vld [vmem:[#allocation8 + $0x768] sm:$0xff]
        %v3378 = vld [vmem:[#allocation8 + $0x780] sm:$0xff]
        %v3379 = vld [vmem:[#allocation8 + $0x798] sm:$0xff]
        %v3380 = vld [vmem:[#allocation8 + $0x7b0] sm:$0xff]
        %v3381 = vld [vmem:[#allocation8 + $0x7c8] sm:$0xff]
        %v3382 = vld [vmem:[#allocation8 + $0x7e0] sm:$0xff]
        %v3383 = vld [vmem:[#allocation8 + $0x7f8] sm:$0xff]
        %v3384 = vld [vmem:[#allocation8 + $0x810] sm:$0xff]
        %v3385 = vld [vmem:[#allocation8 + $0x828] sm:$0xff]
        %v3386 = vld [vmem:[#allocation8 + $0x840] sm:$0xff]
        %v3387 = vld [vmem:[#allocation8 + $0x858] sm:$0xff]
        %v3388 = vld [vmem:[#allocation8 + $0x870] sm:$0xff]
        %v3389 = vld [vmem:[#allocation8 + $0x888] sm:$0xff]
        %v3390 = vld [vmem:[#allocation8 + $0x8a0] sm:$0xff]
        %v3391 = vld [vmem:[#allocation8 + $0x8b8] sm:$0xff]
        %v3392 = vld [vmem:[#allocation8 + $0x8d0] sm:$0xff]
        %v3393 = vld [vmem:[#allocation8 + $0x8e8] sm:$0xff]
        %v3490 = vunpack.c.l.b16 %v3298
        %v3491 = vunpack.c.h.b16 %v3298
        %v3492 = vunpack.c.l.b16 %v3299
        %v3493 = vunpack.c.h.b16 %v3299
        %v3494 = vunpack.c.l.b16 %v3300
        %v3495 = vunpack.c.h.b16 %v3300
        %v3496 = vunpack.c.l.b16 %v3301
        %v3497 = vunpack.c.h.b16 %v3301
        %v3498 = vunpack.c.l.b16 %v3302
        %v3499 = vunpack.c.h.b16 %v3302
        %v3500 = vunpack.c.l.b16 %v3303
        %v3501 = vunpack.c.h.b16 %v3303
        %v3502 = vunpack.c.l.b16 %v3304
        %v3503 = vunpack.c.h.b16 %v3304
        %v3504 = vunpack.c.l.b16 %v3305
        %v3505 = vunpack.c.h.b16 %v3305
        %v3506 = vunpack.c.l.b16 %v3306
        %v3507 = vunpack.c.h.b16 %v3306
        %v3508 = vunpack.c.l.b16 %v3307
        %v3509 = vunpack.c.h.b16 %v3307
        %v3510 = vunpack.c.l.b16 %v3308
        %v3511 = vunpack.c.h.b16 %v3308
        %v3512 = vunpack.c.l.b16 %v3309
        %v3513 = vunpack.c.h.b16 %v3309
        %v3514 = vunpack.c.l.b16 %v3310
        %v3515 = vunpack.c.h.b16 %v3310
        %v3516 = vunpack.c.l.b16 %v3311
        %v3517 = vunpack.c.h.b16 %v3311
        %v3518 = vunpack.c.l.b16 %v3312
        %v3519 = vunpack.c.h.b16 %v3312
        %v3520 = vunpack.c.l.b16 %v3313
        %v3521 = vunpack.c.h.b16 %v3313
        %v3522 = vunpack.c.l.b16 %v3314
        %v3523 = vunpack.c.h.b16 %v3314
        %v3524 = vunpack.c.l.b16 %v3315
        %v3525 = vunpack.c.h.b16 %v3315
        %v3526 = vunpack.c.l.b16 %v3316
        %v3527 = vunpack.c.h.b16 %v3316
        %v3528 = vunpack.c.l.b16 %v3317
        %v3529 = vunpack.c.h.b16 %v3317
        %v3530 = vunpack.c.l.b16 %v3318
        %v3531 = vunpack.c.h.b16 %v3318
        %v3532 = vunpack.c.l.b16 %v3319
        %v3533 = vunpack.c.h.b16 %v3319
        %v3534 = vunpack.c.l.b16 %v3320
        %v3535 = vunpack.c.h.b16 %v3320
        %v3536 = vunpack.c.l.b16 %v3321
        %v3537 = vunpack.c.h.b16 %v3321
        %v3538 = vunpack.c.l.b16 %v3322
        %v3539 = vunpack.c.h.b16 %v3322
        %v3540 = vunpack.c.l.b16 %v3323
        %v3541 = vunpack.c.h.b16 %v3323
        %v3542 = vunpack.c.l.b16 %v3324
        %v3543 = vunpack.c.h.b16 %v3324
        %v3544 = vunpack.c.l.b16 %v3325
        %v3545 = vunpack.c.h.b16 %v3325
        %v3546 = vunpack.c.l.b16 %v3326
        %v3547 = vunpack.c.h.b16 %v3326
        %v3548 = vunpack.c.l.b16 %v3327
        %v3549 = vunpack.c.h.b16 %v3327
        %v3550 = vunpack.c.l.b16 %v3328
        %v3551 = vunpack.c.h.b16 %v3328
        %v3552 = vunpack.c.l.b16 %v3329
        %v3553 = vunpack.c.h.b16 %v3329
        %v3554 = vunpack.c.l.b16 %v3330
        %v3555 = vunpack.c.h.b16 %v3330
        %v3556 = vunpack.c.l.b16 %v3331
        %v3557 = vunpack.c.h.b16 %v3331
        %v3558 = vunpack.c.l.b16 %v3332
        %v3559 = vunpack.c.h.b16 %v3332
        %v3560 = vunpack.c.l.b16 %v3333
        %v3561 = vunpack.c.h.b16 %v3333
        %v3562 = vunpack.c.l.b16 %v3334
        %v3563 = vunpack.c.h.b16 %v3334
        %v3564 = vunpack.c.l.b16 %v3335
        %v3565 = vunpack.c.h.b16 %v3335
        %v3566 = vunpack.c.l.b16 %v3336
        %v3567 = vunpack.c.h.b16 %v3336
        %v3568 = vunpack.c.l.b16 %v3337
        %v3569 = vunpack.c.h.b16 %v3337
        %v3570 = vunpack.c.l.b16 %v3338
        %v3571 = vunpack.c.h.b16 %v3338
        %v3572 = vunpack.c.l.b16 %v3339
        %v3573 = vunpack.c.h.b16 %v3339
        %v3574 = vunpack.c.l.b16 %v3340
        %v3575 = vunpack.c.h.b16 %v3340
        %v3576 = vunpack.c.l.b16 %v3341
        %v3577 = vunpack.c.h.b16 %v3341
        %v3578 = vunpack.c.l.b16 %v3342
        %v3579 = vunpack.c.h.b16 %v3342
        %v3580 = vunpack.c.l.b16 %v3343
        %v3581 = vunpack.c.h.b16 %v3343
        %v3582 = vunpack.c.l.b16 %v3344
        %v3583 = vunpack.c.h.b16 %v3344
        %v3584 = vunpack.c.l.b16 %v3345
        %v3585 = vunpack.c.h.b16 %v3345
        %v3586 = vunpack.c.l.b16 %v3346
        %v3587 = vunpack.c.h.b16 %v3346
        %v3588 = vunpack.c.l.b16 %v3347
        %v3589 = vunpack.c.h.b16 %v3347
        %v3590 = vunpack.c.l.b16 %v3348
        %v3591 = vunpack.c.h.b16 %v3348
        %v3592 = vunpack.c.l.b16 %v3349
        %v3593 = vunpack.c.h.b16 %v3349
        %v3594 = vunpack.c.l.b16 %v3350
        %v3595 = vunpack.c.h.b16 %v3350
        %v3596 = vunpack.c.l.b16 %v3351
        %v3597 = vunpack.c.h.b16 %v3351
        %v3598 = vunpack.c.l.b16 %v3352
        %v3599 = vunpack.c.h.b16 %v3352
        %v3600 = vunpack.c.l.b16 %v3353
        %v3601 = vunpack.c.h.b16 %v3353
        %v3602 = vunpack.c.l.b16 %v3354
        %v3603 = vunpack.c.h.b16 %v3354
        %v3604 = vunpack.c.l.b16 %v3355
        %v3605 = vunpack.c.h.b16 %v3355
        %v3606 = vunpack.c.l.b16 %v3356
        %v3607 = vunpack.c.h.b16 %v3356
        %v3608 = vunpack.c.l.b16 %v3357
        %v3609 = vunpack.c.h.b16 %v3357
        %v3610 = vunpack.c.l.b16 %v3358
        %v3611 = vunpack.c.h.b16 %v3358
        %v3612 = vunpack.c.l.b16 %v3359
        %v3613 = vunpack.c.h.b16 %v3359
        %v3614 = vunpack.c.l.b16 %v3360
        %v3615 = vunpack.c.h.b16 %v3360
        %v3616 = vunpack.c.l.b16 %v3361
        %v3617 = vunpack.c.h.b16 %v3361
        %v3618 = vunpack.c.l.b16 %v3362
        %v3619 = vunpack.c.h.b16 %v3362
        %v3620 = vunpack.c.l.b16 %v3363
        %v3621 = vunpack.c.h.b16 %v3363
        %v3622 = vunpack.c.l.b16 %v3364
        %v3623 = vunpack.c.h.b16 %v3364
        %v3624 = vunpack.c.l.b16 %v3365
        %v3625 = vunpack.c.h.b16 %v3365
        %v3626 = vunpack.c.l.b16 %v3366
        %v3627 = vunpack.c.h.b16 %v3366
        %v3628 = vunpack.c.l.b16 %v3367
        %v3629 = vunpack.c.h.b16 %v3367
        %v3630 = vunpack.c.l.b16 %v3368
        %v3631 = vunpack.c.h.b16 %v3368
        %v3632 = vunpack.c.l.b16 %v3369
        %v3633 = vunpack.c.h.b16 %v3369
        %v3634 = vunpack.c.l.b16 %v3370
        %v3635 = vunpack.c.h.b16 %v3370
        %v3636 = vunpack.c.l.b16 %v3371
        %v3637 = vunpack.c.h.b16 %v3371
        %v3638 = vunpack.c.l.b16 %v3372
        %v3639 = vunpack.c.h.b16 %v3372
        %v3640 = vunpack.c.l.b16 %v3373
        %v3641 = vunpack.c.h.b16 %v3373
        %v3642 = vunpack.c.l.b16 %v3374
        %v3643 = vunpack.c.h.b16 %v3374
        %v3644 = vunpack.c.l.b16 %v3375
        %v3645 = vunpack.c.h.b16 %v3375
        %v3646 = vunpack.c.l.b16 %v3376
        %v3647 = vunpack.c.h.b16 %v3376
        %v3648 = vunpack.c.l.b16 %v3377
        %v3649 = vunpack.c.h.b16 %v3377
        %v3650 = vunpack.c.l.b16 %v3378
        %v3651 = vunpack.c.h.b16 %v3378
        %v3652 = vunpack.c.l.b16 %v3379
        %v3653 = vunpack.c.h.b16 %v3379
        %v3654 = vunpack.c.l.b16 %v3380
        %v3655 = vunpack.c.h.b16 %v3380
        %v3656 = vunpack.c.l.b16 %v3381
        %v3657 = vunpack.c.h.b16 %v3381
        %v3658 = vunpack.c.l.b16 %v3382
        %v3659 = vunpack.c.h.b16 %v3382
        %v3660 = vunpack.c.l.b16 %v3383
        %v3661 = vunpack.c.h.b16 %v3383
        %v3662 = vunpack.c.l.b16 %v3384
        %v3663 = vunpack.c.h.b16 %v3384
        %v3664 = vunpack.c.l.b16 %v3385
        %v3665 = vunpack.c.h.b16 %v3385
        %v3666 = vunpack.c.l.b16 %v3386
        %v3667 = vunpack.c.h.b16 %v3386
        %v3668 = vunpack.c.l.b16 %v3387
        %v3669 = vunpack.c.h.b16 %v3387
        %v3670 = vunpack.c.l.b16 %v3388
        %v3671 = vunpack.c.h.b16 %v3388
        %v3672 = vunpack.c.l.b16 %v3389
        %v3673 = vunpack.c.h.b16 %v3389
        %v3674 = vunpack.c.l.b16 %v3390
        %v3675 = vunpack.c.h.b16 %v3390
        %v3676 = vunpack.c.l.b16 %v3391
        %v3677 = vunpack.c.h.b16 %v3391
        %v3678 = vunpack.c.l.b16 %v3392
        %v3679 = vunpack.c.h.b16 %v3392
        %v3680 = vunpack.c.l.b16 %v3393
        %v3681 = vunpack.c.h.b16 %v3393
        %v3682 = vpack.c.b16 %v3492, %v3490
        %v3683 = vpack.c.b16 %v3493, %v3491
        %v3684 = vpack.c.b16 %v3496, %v3494
        %v3685 = vpack.c.b16 %v3497, %v3495
        %v3686 = vpack.c.b16 %v3500, %v3498
        %v3687 = vpack.c.b16 %v3501, %v3499
        %v3688 = vpack.c.b16 %v3504, %v3502
        %v3689 = vpack.c.b16 %v3505, %v3503
        %v3690 = vpack.c.b16 %v3508, %v3506
        %v3691 = vpack.c.b16 %v3509, %v3507
        %v3692 = vpack.c.b16 %v3512, %v3510
        %v3693 = vpack.c.b16 %v3513, %v3511
        %v3694 = vpack.c.b16 %v3516, %v3514
        %v3695 = vpack.c.b16 %v3517, %v3515
        %v3696 = vpack.c.b16 %v3520, %v3518
        %v3697 = vpack.c.b16 %v3521, %v3519
        %v3698 = vpack.c.b16 %v3524, %v3522
        %v3699 = vpack.c.b16 %v3525, %v3523
        %v3700 = vpack.c.b16 %v3528, %v3526
        %v3701 = vpack.c.b16 %v3529, %v3527
        %v3702 = vpack.c.b16 %v3532, %v3530
        %v3703 = vpack.c.b16 %v3533, %v3531
        %v3704 = vpack.c.b16 %v3536, %v3534
        %v3705 = vpack.c.b16 %v3537, %v3535
        %v3706 = vpack.c.b16 %v3540, %v3538
        %v3707 = vpack.c.b16 %v3541, %v3539
        %v3708 = vpack.c.b16 %v3544, %v3542
        %v3709 = vpack.c.b16 %v3545, %v3543
        %v3710 = vpack.c.b16 %v3548, %v3546
        %v3711 = vpack.c.b16 %v3549, %v3547
        %v3712 = vpack.c.b16 %v3552, %v3550
        %v3713 = vpack.c.b16 %v3553, %v3551
        %v3714 = vpack.c.b16 %v3556, %v3554
        %v3715 = vpack.c.b16 %v3557, %v3555
        %v3716 = vpack.c.b16 %v3560, %v3558
        %v3717 = vpack.c.b16 %v3561, %v3559
        %v3718 = vpack.c.b16 %v3564, %v3562
        %v3719 = vpack.c.b16 %v3565, %v3563
        %v3720 = vpack.c.b16 %v3568, %v3566
        %v3721 = vpack.c.b16 %v3569, %v3567
        %v3722 = vpack.c.b16 %v3572, %v3570
        %v3723 = vpack.c.b16 %v3573, %v3571
        %v3724 = vpack.c.b16 %v3576, %v3574
        %v3725 = vpack.c.b16 %v3577, %v3575
        %v3726 = vpack.c.b16 %v3580, %v3578
        %v3727 = vpack.c.b16 %v3581, %v3579
        %v3728 = vpack.c.b16 %v3584, %v3582
        %v3729 = vpack.c.b16 %v3585, %v3583
        %v3730 = vpack.c.b16 %v3588, %v3586
        %v3731 = vpack.c.b16 %v3589, %v3587
        %v3732 = vpack.c.b16 %v3592, %v3590
        %v3733 = vpack.c.b16 %v3593, %v3591
        %v3734 = vpack.c.b16 %v3596, %v3594
        %v3735 = vpack.c.b16 %v3597, %v3595
        %v3736 = vpack.c.b16 %v3600, %v3598
        %v3737 = vpack.c.b16 %v3601, %v3599
        %v3738 = vpack.c.b16 %v3604, %v3602
        %v3739 = vpack.c.b16 %v3605, %v3603
        %v3740 = vpack.c.b16 %v3608, %v3606
        %v3741 = vpack.c.b16 %v3609, %v3607
        %v3742 = vpack.c.b16 %v3612, %v3610
        %v3743 = vpack.c.b16 %v3613, %v3611
        %v3744 = vpack.c.b16 %v3616, %v3614
        %v3745 = vpack.c.b16 %v3617, %v3615
        %v3746 = vpack.c.b16 %v3620, %v3618
        %v3747 = vpack.c.b16 %v3621, %v3619
        %v3748 = vpack.c.b16 %v3624, %v3622
        %v3749 = vpack.c.b16 %v3625, %v3623
        %v3750 = vpack.c.b16 %v3628, %v3626
        %v3751 = vpack.c.b16 %v3629, %v3627
        %v3752 = vpack.c.b16 %v3632, %v3630
        %v3753 = vpack.c.b16 %v3633, %v3631
        %v3754 = vpack.c.b16 %v3636, %v3634
        %v3755 = vpack.c.b16 %v3637, %v3635
        %v3756 = vpack.c.b16 %v3640, %v3638
        %v3757 = vpack.c.b16 %v3641, %v3639
        %v3758 = vpack.c.b16 %v3644, %v3642
        %v3759 = vpack.c.b16 %v3645, %v3643
        %v3760 = vpack.c.b16 %v3648, %v3646
        %v3761 = vpack.c.b16 %v3649, %v3647
        %v3762 = vpack.c.b16 %v3652, %v3650
        %v3763 = vpack.c.b16 %v3653, %v3651
        %v3764 = vpack.c.b16 %v3656, %v3654
        %v3765 = vpack.c.b16 %v3657, %v3655
        %v3766 = vpack.c.b16 %v3660, %v3658
        %v3767 = vpack.c.b16 %v3661, %v3659
        %v3768 = vpack.c.b16 %v3664, %v3662
        %v3769 = vpack.c.b16 %v3665, %v3663
        %v3770 = vpack.c.b16 %v3668, %v3666
        %v3771 = vpack.c.b16 %v3669, %v3667
        %v3772 = vpack.c.b16 %v3672, %v3670
        %v3773 = vpack.c.b16 %v3673, %v3671
        %v3774 = vpack.c.b16 %v3676, %v3674
        %v3775 = vpack.c.b16 %v3677, %v3675
        %v3776 = vpack.c.b16 %v3680, %v3678
        %v3777 = vpack.c.b16 %v3681, %v3679
        %3874 = vmatprep.subr.bf16.mxu0 %v3683
        %3875 = vmatpush1.bf16.msra.mxu0 %v3682
        %3876 = vmatprep.subr.bf16.mxu0 %v3685
        %3877 = vmatpush1.bf16.msra.mxu0 %v3684
        %3878 = vmatprep.subr.bf16.mxu0 %v3687
        %3879 = vmatpush1.bf16.msra.mxu0 %v3686
        %3880 = vmatprep.subr.bf16.mxu0 %v3689
        %3881 = vmatpush1.bf16.msra.mxu0 %v3688
        %3882 = vmatprep.subr.bf16.mxu0 %v3691
        %3883 = vmatpush1.bf16.msra.mxu0 %v3690
        %3884 = vmatprep.subr.bf16.mxu0 %v3693
        %3885 = vmatpush1.bf16.msra.mxu0 %v3692
        %3886 = vmatprep.subr.bf16.mxu0 %v3695
        %3887 = vmatpush1.bf16.msra.mxu0 %v3694
        %3888 = vmatprep.subr.bf16.mxu0 %v3697
        %3889 = vmatpush1.bf16.msra.mxu0 %v3696
        %3890 = vmatprep.subr.bf16.mxu0 %v3699
        %3891 = vmatpush1.bf16.msra.mxu0 %v3698
        %3892 = vmatprep.subr.bf16.mxu0 %v3701
        %3893 = vmatpush1.bf16.msra.mxu0 %v3700
        %3894 = vmatprep.subr.bf16.mxu0 %v3703
        %3895 = vmatpush1.bf16.msra.mxu0 %v3702
        %3896 = vmatprep.subr.bf16.mxu0 %v3705
        %3897 = vmatpush1.bf16.msra.mxu0 %v3704
        %3898 = vmatprep.subr.bf16.mxu0 %v3707
        %3899 = vmatpush1.bf16.msra.mxu0 %v3706
        %3900 = vmatprep.subr.bf16.mxu0 %v3709
        %3901 = vmatpush1.bf16.msra.mxu0 %v3708
        %3902 = vmatprep.subr.bf16.mxu0 %v3711
        %3903 = vmatpush1.bf16.msra.mxu0 %v3710
        %3904 = vmatprep.subr.bf16.mxu0 %v3713
        %3905 = vmatpush1.bf16.msra.mxu0 %v3712
        %3906 = vmatprep.mubr.bf16.mxu0 %v2336
        %3907 = vmatmul.mubr.bf16.gmra.mrb[0].mxu0 %v2335
        %v3908 = vpop.f32.mrb[0].mxu0
        %v3909 = vadd.f32 0.0, %v3908
        %v3910 = vpop.f32.mrb[0].mxu0
        %v3911 = vadd.f32 0.0, %v3910
        %v3912 = vpop.f32.mrb[0].mxu0
        %v3913 = vadd.f32 0.0, %v3912
        %v3914 = vpop.f32.mrb[0].mxu0
        %v3915 = vadd.f32 0.0, %v3914
        %3916 = vmatprep.mubr.bf16.mxu0 %v2342
        %3917 = vmatmul.mubr.bf16.gmra.mrb[0].mxu0 %v2341
        %v3918 = vpop.f32.mrb[0].mxu0
        %v3919 = vadd.f32 0.0, %v3918
        %v3920 = vpop.f32.mrb[0].mxu0
        %v3921 = vadd.f32 0.0, %v3920
        %v3922 = vpop.f32.mrb[0].mxu0
        %v3923 = vadd.f32 0.0, %v3922
        %v3924 = vpop.f32.mrb[0].mxu0
        %v3925 = vadd.f32 0.0, %v3924
        %3926 = vmatprep.mubr.bf16.mxu0 %v2348
        %3927 = vmatmul.mubr.bf16.gmra.mrb[0].mxu0 %v2347
        %v3928 = vpop.f32.mrb[0].mxu0
        %v3929 = vadd.f32 0.0, %v3928
        %v3930 = vpop.f32.mrb[0].mxu0
        %v3931 = vadd.f32 0.0, %v3930
        %v3932 = vpop.f32.mrb[0].mxu0
        %v3933 = vadd.f32 0.0, %v3932
        %v3934 = vpop.f32.mrb[0].mxu0
        %v3935 = vadd.f32 0.0, %v3934
        %3936 = vmatprep.mubr.bf16.mxu0 %v2354
        %3937 = vmatmul.mubr.bf16.gmra.mrb[0].mxu0 %v2353
        %v3938 = vpop.f32.mrb[0].mxu0
        %v3939 = vadd.f32 0.0, %v3938
        %v3940 = vpop.f32.mrb[0].mxu0
        %v3941 = vadd.f32 0.0, %v3940
        %v3942 = vpop.f32.mrb[0].mxu0
        %v3943 = vadd.f32 0.0, %v3942
        %v3944 = vpop.f32.mrb[0].mxu0
        %v3945 = vadd.f32 0.0, %v3944
        %3946 = vmatprep.mubr.bf16.mxu0 %v2360
        %3947 = vmatmul.mubr.bf16.gmra.mrb[0].mxu0 %v2359
        %v3948 = vpop.f32.mrb[0].mxu0
        %v3949 = vadd.f32 0.0, %v3948
        %v3950 = vpop.f32.mrb[0].mxu0
        %v3951 = vadd.f32 0.0, %v3950
        %v3952 = vpop.f32.mrb[0].mxu0
        %v3953 = vadd.f32 0.0, %v3952
        %v3954 = vpop.f32.mrb[0].mxu0
        %v3955 = vadd.f32 0.0, %v3954
        %3956 = vmatprep.mubr.bf16.mxu0 %v2366
        %3957 = vmatmul.mubr.bf16.gmra.mrb[0].mxu0 %v2365
        %v3958 = vpop.f32.mrb[0].mxu0
        %v3959 = vadd.f32 0.0, %v3958
        %v3960 = vpop.f32.mrb[0].mxu0
        %v3961 = vadd.f32 0.0, %v3960
        %v3962 = vpop.f32.mrb[0].mxu0
        %v3963 = vadd.f32 0.0, %v3962
        %v3964 = vpop.f32.mrb[0].mxu0
        %v3965 = vadd.f32 0.0, %v3964
        %3966 = vmatprep.mubr.bf16.mxu0 %v2372
        %3967 = vmatmul.mubr.bf16.gmra.mrb[0].mxu0 %v2371
        %v3968 = vpop.f32.mrb[0].mxu0
        %v3969 = vadd.f32 0.0, %v3968
        %v3970 = vpop.f32.mrb[0].mxu0
        %v3971 = vadd.f32 0.0, %v3970
        %v3972 = vpop.f32.mrb[0].mxu0
        %v3973 = vadd.f32 0.0, %v3972
        %v3974 = vpop.f32.mrb[0].mxu0
        %v3975 = vadd.f32 0.0, %v3974
        %3976 = vmatprep.mubr.bf16.mxu0 %v2378
        %3977 = vmatmul.mubr.bf16.gmra.mrb[0].mxu0 %v2377
        %v3978 = vpop.f32.mrb[0].mxu0
        %v3979 = vadd.f32 0.0, %v3978
        %v3980 = vpop.f32.mrb[0].mxu0
        %v3981 = vadd.f32 0.0, %v3980
        %v3982 = vpop.f32.mrb[0].mxu0
        %v3983 = vadd.f32 0.0, %v3982
        %v3984 = vpop.f32.mrb[0].mxu0
        %v3985 = vadd.f32 0.0, %v3984
        %3986 = vmatprep.mubr.bf16.mxu0 %v2384
        %3987 = vmatmul.mubr.bf16.gmra.mrb[0].mxu0 %v2383
        %v3988 = vpop.f32.mrb[0].mxu0
        %v3989 = vadd.f32 0.0, %v3988
        %v3990 = vpop.f32.mrb[0].mxu0
        %v3991 = vadd.f32 0.0, %v3990
        %v3992 = vpop.f32.mrb[0].mxu0
        %v3993 = vadd.f32 0.0, %v3992
        %v3994 = vpop.f32.mrb[0].mxu0
        %v3995 = vadd.f32 0.0, %v3994
        %3996 = vmatprep.mubr.bf16.mxu0 %v2390
        %3997 = vmatmul.mubr.bf16.gmra.mrb[0].mxu0 %v2389
        %v3998 = vpop.f32.mrb[0].mxu0
        %v3999 = vadd.f32 0.0, %v3998
        %v4000 = vpop.f32.mrb[0].mxu0
        %v4001 = vadd.f32 0.0, %v4000
        %v4002 = vpop.f32.mrb[0].mxu0
        %v4003 = vadd.f32 0.0, %v4002
        %v4004 = vpop.f32.mrb[0].mxu0
        %v4005 = vadd.f32 0.0, %v4004
        %4006 = vmatprep.mubr.bf16.mxu0 %v2396
        %4007 = vmatmul.mubr.bf16.gmra.mrb[0].mxu0 %v2395
        %v4008 = vpop.f32.mrb[0].mxu0
        %v4009 = vadd.f32 0.0, %v4008
        %v4010 = vpop.f32.mrb[0].mxu0
        %v4011 = vadd.f32 0.0, %v4010
        %v4012 = vpop.f32.mrb[0].mxu0
        %v4013 = vadd.f32 0.0, %v4012
        %v4014 = vpop.f32.mrb[0].mxu0
        %v4015 = vadd.f32 0.0, %v4014
        %4016 = vmatprep.mubr.bf16.mxu0 %v2402
        %4017 = vmatmul.mubr.bf16.gmra.mrb[0].mxu0 %v2401
        %v4018 = vpop.f32.mrb[0].mxu0
        %v4019 = vadd.f32 0.0, %v4018
        %v4020 = vpop.f32.mrb[0].mxu0
        %v4021 = vadd.f32 0.0, %v4020
        %v4022 = vpop.f32.mrb[0].mxu0
        %v4023 = vadd.f32 0.0, %v4022
        %v4024 = vpop.f32.mrb[0].mxu0
        %v4025 = vadd.f32 0.0, %v4024
        %4026 = vmatprep.mubr.bf16.mxu0 %v2408
        %4027 = vmatmul.mubr.bf16.gmra.mrb[0].mxu0 %v2407
        %v4028 = vpop.f32.mrb[0].mxu0
        %v4029 = vadd.f32 0.0, %v4028
        %v4030 = vpop.f32.mrb[0].mxu0
        %v4031 = vadd.f32 0.0, %v4030
        %v4032 = vpop.f32.mrb[0].mxu0
        %v4033 = vadd.f32 0.0, %v4032
        %v4034 = vpop.f32.mrb[0].mxu0
        %v4035 = vadd.f32 0.0, %v4034
        %4036 = vmatprep.mubr.bf16.mxu0 %v2414
        %4037 = vmatmul.mubr.bf16.gmra.mrb[0].mxu0 %v2413
        %v4038 = vpop.f32.mrb[0].mxu0
        %v4039 = vadd.f32 0.0, %v4038
        %v4040 = vpop.f32.mrb[0].mxu0
        %v4041 = vadd.f32 0.0, %v4040
        %v4042 = vpop.f32.mrb[0].mxu0
        %v4043 = vadd.f32 0.0, %v4042
        %v4044 = vpop.f32.mrb[0].mxu0
        %v4045 = vadd.f32 0.0, %v4044
        %4046 = vmatprep.mubr.bf16.mxu0 %v2420
        %4047 = vmatmul.mubr.bf16.gmra.mrb[0].mxu0 %v2419
        %v4048 = vpop.f32.mrb[0].mxu0
        %v4049 = vadd.f32 0.0, %v4048
        %v4050 = vpop.f32.mrb[0].mxu0
        %v4051 = vadd.f32 0.0, %v4050
        %v4052 = vpop.f32.mrb[0].mxu0
        %v4053 = vadd.f32 0.0, %v4052
        %v4054 = vpop.f32.mrb[0].mxu0
        %v4055 = vadd.f32 0.0, %v4054
        %4056 = vmatprep.mubr.bf16.mxu0 %v2426
        %4057 = vmatmul.mubr.bf16.gmra.mrb[0].mxu0 %v2425
        %v4058 = vpop.f32.mrb[0].mxu0
        %v4059 = vadd.f32 0.0, %v4058
        %v4060 = vpop.f32.mrb[0].mxu0
        %v4061 = vadd.f32 0.0, %v4060
        %v4062 = vpop.f32.mrb[0].mxu0
        %v4063 = vadd.f32 0.0, %v4062
        %v4064 = vpop.f32.mrb[0].mxu0
        %v4065 = vadd.f32 0.0, %v4064
        %4066 = vdwg.mxu0
        %4067 = vmatprep.subr.bf16.mxu0 %v3715
        %4068 = vmatpush1.bf16.msra.mxu0 %v3714
        %4069 = vmatprep.subr.bf16.mxu0 %v3717
        %4070 = vmatpush1.bf16.msra.mxu0 %v3716
        %4071 = vmatprep.subr.bf16.mxu0 %v3719
        %4072 = vmatpush1.bf16.msra.mxu0 %v3718
        %4073 = vmatprep.subr.bf16.mxu0 %v3721
        %4074 = vmatpush1.bf16.msra.mxu0 %v3720
        %4075 = vmatprep.subr.bf16.mxu0 %v3723
        %4076 = vmatpush1.bf16.msra.mxu0 %v3722
        %4077 = vmatprep.subr.bf16.mxu0 %v3725
        %4078 = vmatpush1.bf16.msra.mxu0 %v3724
        %4079 = vmatprep.subr.bf16.mxu0 %v3727
        %4080 = vmatpush1.bf16.msra.mxu0 %v3726
        %4081 = vmatprep.subr.bf16.mxu0 %v3729
        %4082 = vmatpush1.bf16.msra.mxu0 %v3728
        %4083 = vmatprep.subr.bf16.mxu0 %v3731
        %4084 = vmatpush1.bf16.msra.mxu0 %v3730
        %4085 = vmatprep.subr.bf16.mxu0 %v3733
        %4086 = vmatpush1.bf16.msra.mxu0 %v3732
        %4087 = vmatprep.subr.bf16.mxu0 %v3735
        %4088 = vmatpush1.bf16.msra.mxu0 %v3734
        %4089 = vmatprep.subr.bf16.mxu0 %v3737
        %4090 = vmatpush1.bf16.msra.mxu0 %v3736
        %4091 = vmatprep.subr.bf16.mxu0 %v3739
        %4092 = vmatpush1.bf16.msra.mxu0 %v3738
        %4093 = vmatprep.subr.bf16.mxu0 %v3741
        %4094 = vmatpush1.bf16.msra.mxu0 %v3740
        %4095 = vmatprep.subr.bf16.mxu0 %v3743
        %4096 = vmatpush1.bf16.msra.mxu0 %v3742
        %4097 = vmatprep.subr.bf16.mxu0 %v3745
        %4098 = vmatpush1.bf16.msra.mxu0 %v3744
        %4099 = vmatprep.mubr.bf16.mxu0 %v2338
        %4100 = vmatmul.mubr.bf16.gmra.mrb[0].mxu0 %v2337
        %v4101 = vpop.f32.mrb[0].mxu0
        %v4102 = vadd.f32 %v3909, %v4101
        %v4103 = vpop.f32.mrb[0].mxu0
        %v4104 = vadd.f32 %v3911, %v4103
        %v4105 = vpop.f32.mrb[0].mxu0
        %v4106 = vadd.f32 %v3913, %v4105
        %v4107 = vpop.f32.mrb[0].mxu0
        %v4108 = vadd.f32 %v3915, %v4107
        %4109 = vmatprep.mubr.bf16.mxu0 %v2344
        %4110 = vmatmul.mubr.bf16.gmra.mrb[0].mxu0 %v2343
        %v4111 = vpop.f32.mrb[0].mxu0
        %v4112 = vadd.f32 %v3919, %v4111
        %v4113 = vpop.f32.mrb[0].mxu0
        %v4114 = vadd.f32 %v3921, %v4113
        %v4115 = vpop.f32.mrb[0].mxu0
        %v4116 = vadd.f32 %v3923, %v4115
        %v4117 = vpop.f32.mrb[0].mxu0
        %v4118 = vadd.f32 %v3925, %v4117
        %4119 = vmatprep.mubr.bf16.mxu0 %v2350
        %4120 = vmatmul.mubr.bf16.gmra.mrb[0].mxu0 %v2349
        %v4121 = vpop.f32.mrb[0].mxu0
        %v4122 = vadd.f32 %v3929, %v4121
        %v4123 = vpop.f32.mrb[0].mxu0
        %v4124 = vadd.f32 %v3931, %v4123
        %v4125 = vpop.f32.mrb[0].mxu0
        %v4126 = vadd.f32 %v3933, %v4125
        %v4127 = vpop.f32.mrb[0].mxu0
        %v4128 = vadd.f32 %v3935, %v4127
        %4129 = vmatprep.mubr.bf16.mxu0 %v2356
        %4130 = vmatmul.mubr.bf16.gmra.mrb[0].mxu0 %v2355
        %v4131 = vpop.f32.mrb[0].mxu0
        %v4132 = vadd.f32 %v3939, %v4131
        %v4133 = vpop.f32.mrb[0].mxu0
        %v4134 = vadd.f32 %v3941, %v4133
        %v4135 = vpop.f32.mrb[0].mxu0
        %v4136 = vadd.f32 %v3943, %v4135
        %v4137 = vpop.f32.mrb[0].mxu0
        %v4138 = vadd.f32 %v3945, %v4137
        %4139 = vmatprep.mubr.bf16.mxu0 %v2362
        %4140 = vmatmul.mubr.bf16.gmra.mrb[0].mxu0 %v2361
        %v4141 = vpop.f32.mrb[0].mxu0
        %v4142 = vadd.f32 %v3949, %v4141
        %v4143 = vpop.f32.mrb[0].mxu0
        %v4144 = vadd.f32 %v3951, %v4143
        %v4145 = vpop.f32.mrb[0].mxu0
        %v4146 = vadd.f32 %v3953, %v4145
        %v4147 = vpop.f32.mrb[0].mxu0
        %v4148 = vadd.f32 %v3955, %v4147
        %4149 = vmatprep.mubr.bf16.mxu0 %v2368
        %4150 = vmatmul.mubr.bf16.gmra.mrb[0].mxu0 %v2367
        %v4151 = vpop.f32.mrb[0].mxu0
        %v4152 = vadd.f32 %v3959, %v4151
        %v4153 = vpop.f32.mrb[0].mxu0
        %v4154 = vadd.f32 %v3961, %v4153
        %v4155 = vpop.f32.mrb[0].mxu0
        %v4156 = vadd.f32 %v3963, %v4155
        %v4157 = vpop.f32.mrb[0].mxu0
        %v4158 = vadd.f32 %v3965, %v4157
        %4159 = vmatprep.mubr.bf16.mxu0 %v2374
        %4160 = vmatmul.mubr.bf16.gmra.mrb[0].mxu0 %v2373
        %v4161 = vpop.f32.mrb[0].mxu0
        %v4162 = vadd.f32 %v3969, %v4161
        %v4163 = vpop.f32.mrb[0].mxu0
        %v4164 = vadd.f32 %v3971, %v4163
        %v4165 = vpop.f32.mrb[0].mxu0
        %v4166 = vadd.f32 %v3973, %v4165
        %v4167 = vpop.f32.mrb[0].mxu0
        %v4168 = vadd.f32 %v3975, %v4167
        %4169 = vmatprep.mubr.bf16.mxu0 %v2380
        %4170 = vmatmul.mubr.bf16.gmra.mrb[0].mxu0 %v2379
        %v4171 = vpop.f32.mrb[0].mxu0
        %v4172 = vadd.f32 %v3979, %v4171
        %v4173 = vpop.f32.mrb[0].mxu0
        %v4174 = vadd.f32 %v3981, %v4173
        %v4175 = vpop.f32.mrb[0].mxu0
        %v4176 = vadd.f32 %v3983, %v4175
        %v4177 = vpop.f32.mrb[0].mxu0
        %v4178 = vadd.f32 %v3985, %v4177
        %4179 = vmatprep.mubr.bf16.mxu0 %v2386
        %4180 = vmatmul.mubr.bf16.gmra.mrb[0].mxu0 %v2385
        %v4181 = vpop.f32.mrb[0].mxu0
        %v4182 = vadd.f32 %v3989, %v4181
        %v4183 = vpop.f32.mrb[0].mxu0
        %v4184 = vadd.f32 %v3991, %v4183
        %v4185 = vpop.f32.mrb[0].mxu0
        %v4186 = vadd.f32 %v3993, %v4185
        %v4187 = vpop.f32.mrb[0].mxu0
        %v4188 = vadd.f32 %v3995, %v4187
        %4189 = vmatprep.mubr.bf16.mxu0 %v2392
        %4190 = vmatmul.mubr.bf16.gmra.mrb[0].mxu0 %v2391
        %v4191 = vpop.f32.mrb[0].mxu0
        %v4192 = vadd.f32 %v3999, %v4191
        %v4193 = vpop.f32.mrb[0].mxu0
        %v4194 = vadd.f32 %v4001, %v4193
        %v4195 = vpop.f32.mrb[0].mxu0
        %v4196 = vadd.f32 %v4003, %v4195
        %v4197 = vpop.f32.mrb[0].mxu0
        %v4198 = vadd.f32 %v4005, %v4197
        %4199 = vmatprep.mubr.bf16.mxu0 %v2398
        %4200 = vmatmul.mubr.bf16.gmra.mrb[0].mxu0 %v2397
        %v4201 = vpop.f32.mrb[0].mxu0
        %v4202 = vadd.f32 %v4009, %v4201
        %v4203 = vpop.f32.mrb[0].mxu0
        %v4204 = vadd.f32 %v4011, %v4203
        %v4205 = vpop.f32.mrb[0].mxu0
        %v4206 = vadd.f32 %v4013, %v4205
        %v4207 = vpop.f32.mrb[0].mxu0
        %v4208 = vadd.f32 %v4015, %v4207
        %4209 = vmatprep.mubr.bf16.mxu0 %v2404
        %4210 = vmatmul.mubr.bf16.gmra.mrb[0].mxu0 %v2403
        %v4211 = vpop.f32.mrb[0].mxu0
        %v4212 = vadd.f32 %v4019, %v4211
        %v4213 = vpop.f32.mrb[0].mxu0
        %v4214 = vadd.f32 %v4021, %v4213
        %v4215 = vpop.f32.mrb[0].mxu0
        %v4216 = vadd.f32 %v4023, %v4215
        %v4217 = vpop.f32.mrb[0].mxu0
        %v4218 = vadd.f32 %v4025, %v4217
        %4219 = vmatprep.mubr.bf16.mxu0 %v2410
        %4220 = vmatmul.mubr.bf16.gmra.mrb[0].mxu0 %v2409
        %v4221 = vpop.f32.mrb[0].mxu0
        %v4222 = vadd.f32 %v4029, %v4221
        %v4223 = vpop.f32.mrb[0].mxu0
        %v4224 = vadd.f32 %v4031, %v4223
        %v4225 = vpop.f32.mrb[0].mxu0
        %v4226 = vadd.f32 %v4033, %v4225
        %v4227 = vpop.f32.mrb[0].mxu0
        %v4228 = vadd.f32 %v4035, %v4227
        %4229 = vmatprep.mubr.bf16.mxu0 %v2416
        %4230 = vmatmul.mubr.bf16.gmra.mrb[0].mxu0 %v2415
        %v4231 = vpop.f32.mrb[0].mxu0
        %v4232 = vadd.f32 %v4039, %v4231
        %v4233 = vpop.f32.mrb[0].mxu0
        %v4234 = vadd.f32 %v4041, %v4233
        %v4235 = vpop.f32.mrb[0].mxu0
        %v4236 = vadd.f32 %v4043, %v4235
        %v4237 = vpop.f32.mrb[0].mxu0
        %v4238 = vadd.f32 %v4045, %v4237
        %4239 = vmatprep.mubr.bf16.mxu0 %v2422
        %4240 = vmatmul.mubr.bf16.gmra.mrb[0].mxu0 %v2421
        %v4241 = vpop.f32.mrb[0].mxu0
        %v4242 = vadd.f32 %v4049, %v4241
        %v4243 = vpop.f32.mrb[0].mxu0
        %v4244 = vadd.f32 %v4051, %v4243
        %v4245 = vpop.f32.mrb[0].mxu0
        %v4246 = vadd.f32 %v4053, %v4245
        %v4247 = vpop.f32.mrb[0].mxu0
        %v4248 = vadd.f32 %v4055, %v4247
        %4249 = vmatprep.mubr.bf16.mxu0 %v2428
        %4250 = vmatmul.mubr.bf16.gmra.mrb[0].mxu0 %v2427
        %v4251 = vpop.f32.mrb[0].mxu0
        %v4252 = vadd.f32 %v4059, %v4251
        %v4253 = vpop.f32.mrb[0].mxu0
        %v4254 = vadd.f32 %v4061, %v4253
        %v4255 = vpop.f32.mrb[0].mxu0
        %v4256 = vadd.f32 %v4063, %v4255
        %v4257 = vpop.f32.mrb[0].mxu0
        %v4258 = vadd.f32 %v4065, %v4257
        %4259 = vdwg.mxu0
        %4260 = vmatprep.subr.bf16.mxu0 %v3747
        %4261 = vmatpush1.bf16.msra.mxu0 %v3746
        %4262 = vmatprep.subr.bf16.mxu0 %v3749
        %4263 = vmatpush1.bf16.msra.mxu0 %v3748
        %4264 = vmatprep.subr.bf16.mxu0 %v3751
        %4265 = vmatpush1.bf16.msra.mxu0 %v3750
        %4266 = vmatprep.subr.bf16.mxu0 %v3753
        %4267 = vmatpush1.bf16.msra.mxu0 %v3752
        %4268 = vmatprep.subr.bf16.mxu0 %v3755
        %4269 = vmatpush1.bf16.msra.mxu0 %v3754
        %4270 = vmatprep.subr.bf16.mxu0 %v3757
        %4271 = vmatpush1.bf16.msra.mxu0 %v3756
        %4272 = vmatprep.subr.bf16.mxu0 %v3759
        %4273 = vmatpush1.bf16.msra.mxu0 %v3758
        %4274 = vmatprep.subr.bf16.mxu0 %v3761
        %4275 = vmatpush1.bf16.msra.mxu0 %v3760
        %4276 = vmatprep.subr.bf16.mxu0 %v3763
        %4277 = vmatpush1.bf16.msra.mxu0 %v3762
        %4278 = vmatprep.subr.bf16.mxu0 %v3765
        %4279 = vmatpush1.bf16.msra.mxu0 %v3764
        %4280 = vmatprep.subr.bf16.mxu0 %v3767
        %4281 = vmatpush1.bf16.msra.mxu0 %v3766
        %4282 = vmatprep.subr.bf16.mxu0 %v3769
        %4283 = vmatpush1.bf16.msra.mxu0 %v3768
        %4284 = vmatprep.subr.bf16.mxu0 %v3771
        %4285 = vmatpush1.bf16.msra.mxu0 %v3770
        %4286 = vmatprep.subr.bf16.mxu0 %v3773
        %4287 = vmatpush1.bf16.msra.mxu0 %v3772
        %4288 = vmatprep.subr.bf16.mxu0 %v3775
        %4289 = vmatpush1.bf16.msra.mxu0 %v3774
        %4290 = vmatprep.subr.bf16.mxu0 %v3777
        %4291 = vmatpush1.bf16.msra.mxu0 %v3776
        %4292 = vmatprep.mubr.bf16.mxu0 %v2340
        %4293 = vmatmul.mubr.bf16.gmra.mrb[0].mxu0 %v2339
        %v4294 = vpop.f32.mrb[0].mxu0
        %v4295 = vadd.f32 %v4102, %v4294
        %v4296 = vpop.f32.mrb[0].mxu0
        %v4297 = vadd.f32 %v4104, %v4296
        %v4298 = vpop.f32.mrb[0].mxu0
        %v4299 = vadd.f32 %v4106, %v4298
        %v4300 = vpop.f32.mrb[0].mxu0
        %v4301 = vadd.f32 %v4108, %v4300
        %4302 = vmatprep.mubr.bf16.mxu0 %v2346
        %4303 = vmatmul.mubr.bf16.gmra.mrb[0].mxu0 %v2345
        %v4304 = vpop.f32.mrb[0].mxu0
        %v4305 = vadd.f32 %v4112, %v4304
        %v4306 = vpop.f32.mrb[0].mxu0
        %v4307 = vadd.f32 %v4114, %v4306
        %v4308 = vpop.f32.mrb[0].mxu0
        %v4309 = vadd.f32 %v4116, %v4308
        %v4310 = vpop.f32.mrb[0].mxu0
        %v4311 = vadd.f32 %v4118, %v4310
        %4312 = vmatprep.mubr.bf16.mxu0 %v2352
        %4313 = vmatmul.mubr.bf16.gmra.mrb[0].mxu0 %v2351
        %v4314 = vpop.f32.mrb[0].mxu0
        %v4315 = vadd.f32 %v4122, %v4314
        %v4316 = vpop.f32.mrb[0].mxu0
        %v4317 = vadd.f32 %v4124, %v4316
        %v4318 = vpop.f32.mrb[0].mxu0
        %v4319 = vadd.f32 %v4126, %v4318
        %v4320 = vpop.f32.mrb[0].mxu0
        %v4321 = vadd.f32 %v4128, %v4320
        %4322 = vmatprep.mubr.bf16.mxu0 %v2358
        %4323 = vmatmul.mubr.bf16.gmra.mrb[0].mxu0 %v2357
        %v4324 = vpop.f32.mrb[0].mxu0
        %v4325 = vadd.f32 %v4132, %v4324
        %v4326 = vpop.f32.mrb[0].mxu0
        %v4327 = vadd.f32 %v4134, %v4326
        %v4328 = vpop.f32.mrb[0].mxu0
        %v4329 = vadd.f32 %v4136, %v4328
        %v4330 = vpop.f32.mrb[0].mxu0
        %v4331 = vadd.f32 %v4138, %v4330
        %4332 = vmatprep.mubr.bf16.mxu0 %v2364
        %4333 = vmatmul.mubr.bf16.gmra.mrb[0].mxu0 %v2363
        %v4334 = vpop.f32.mrb[0].mxu0
        %v4335 = vadd.f32 %v4142, %v4334
        %v4336 = vpop.f32.mrb[0].mxu0
        %v4337 = vadd.f32 %v4144, %v4336
        %v4338 = vpop.f32.mrb[0].mxu0
        %v4339 = vadd.f32 %v4146, %v4338
        %v4340 = vpop.f32.mrb[0].mxu0
        %v4341 = vadd.f32 %v4148, %v4340
        %4342 = vmatprep.mubr.bf16.mxu0 %v2370
        %4343 = vmatmul.mubr.bf16.gmra.mrb[0].mxu0 %v2369
        %v4344 = vpop.f32.mrb[0].mxu0
        %v4345 = vadd.f32 %v4152, %v4344
        %v4346 = vpop.f32.mrb[0].mxu0
        %v4347 = vadd.f32 %v4154, %v4346
        %v4348 = vpop.f32.mrb[0].mxu0
        %v4349 = vadd.f32 %v4156, %v4348
        %v4350 = vpop.f32.mrb[0].mxu0
        %v4351 = vadd.f32 %v4158, %v4350
        %4352 = vmatprep.mubr.bf16.mxu0 %v2376
        %4353 = vmatmul.mubr.bf16.gmra.mrb[0].mxu0 %v2375
        %v4354 = vpop.f32.mrb[0].mxu0
        %v4355 = vadd.f32 %v4162, %v4354
        %v4356 = vpop.f32.mrb[0].mxu0
        %v4357 = vadd.f32 %v4164, %v4356
        %v4358 = vpop.f32.mrb[0].mxu0
        %v4359 = vadd.f32 %v4166, %v4358
        %v4360 = vpop.f32.mrb[0].mxu0
        %v4361 = vadd.f32 %v4168, %v4360
        %4362 = vmatprep.mubr.bf16.mxu0 %v2382
        %4363 = vmatmul.mubr.bf16.gmra.mrb[0].mxu0 %v2381
        %v4364 = vpop.f32.mrb[0].mxu0
        %v4365 = vadd.f32 %v4172, %v4364
        %v4366 = vpop.f32.mrb[0].mxu0
        %v4367 = vadd.f32 %v4174, %v4366
        %v4368 = vpop.f32.mrb[0].mxu0
        %v4369 = vadd.f32 %v4176, %v4368
        %v4370 = vpop.f32.mrb[0].mxu0
        %v4371 = vadd.f32 %v4178, %v4370
        %4372 = vmatprep.mubr.bf16.mxu0 %v2388
        %4373 = vmatmul.mubr.bf16.gmra.mrb[0].mxu0 %v2387
        %v4374 = vpop.f32.mrb[0].mxu0
        %v4375 = vadd.f32 %v4182, %v4374
        %v4376 = vpop.f32.mrb[0].mxu0
        %v4377 = vadd.f32 %v4184, %v4376
        %v4378 = vpop.f32.mrb[0].mxu0
        %v4379 = vadd.f32 %v4186, %v4378
        %v4380 = vpop.f32.mrb[0].mxu0
        %v4381 = vadd.f32 %v4188, %v4380
        %4382 = vmatprep.mubr.bf16.mxu0 %v2394
        %4383 = vmatmul.mubr.bf16.gmra.mrb[0].mxu0 %v2393
        %v4384 = vpop.f32.mrb[0].mxu0
        %v4385 = vadd.f32 %v4192, %v4384
        %v4386 = vpop.f32.mrb[0].mxu0
        %v4387 = vadd.f32 %v4194, %v4386
        %v4388 = vpop.f32.mrb[0].mxu0
        %v4389 = vadd.f32 %v4196, %v4388
        %v4390 = vpop.f32.mrb[0].mxu0
        %v4391 = vadd.f32 %v4198, %v4390
        %4392 = vmatprep.mubr.bf16.mxu0 %v2400
        %4393 = vmatmul.mubr.bf16.gmra.mrb[0].mxu0 %v2399
        %v4394 = vpop.f32.mrb[0].mxu0
        %v4395 = vadd.f32 %v4202, %v4394
        %v4396 = vpop.f32.mrb[0].mxu0
        %v4397 = vadd.f32 %v4204, %v4396
        %v4398 = vpop.f32.mrb[0].mxu0
        %v4399 = vadd.f32 %v4206, %v4398
        %v4400 = vpop.f32.mrb[0].mxu0
        %v4401 = vadd.f32 %v4208, %v4400
        %4402 = vmatprep.mubr.bf16.mxu0 %v2406
        %4403 = vmatmul.mubr.bf16.gmra.mrb[0].mxu0 %v2405
        %v4404 = vpop.f32.mrb[0].mxu0
        %v4405 = vadd.f32 %v4212, %v4404
        %v4406 = vpop.f32.mrb[0].mxu0
        %v4407 = vadd.f32 %v4214, %v4406
        %v4408 = vpop.f32.mrb[0].mxu0
        %v4409 = vadd.f32 %v4216, %v4408
        %v4410 = vpop.f32.mrb[0].mxu0
        %v4411 = vadd.f32 %v4218, %v4410
        %4412 = vmatprep.mubr.bf16.mxu0 %v2412
        %4413 = vmatmul.mubr.bf16.gmra.mrb[0].mxu0 %v2411
        %v4414 = vpop.f32.mrb[0].mxu0
        %v4415 = vadd.f32 %v4222, %v4414
        %v4416 = vpop.f32.mrb[0].mxu0
        %v4417 = vadd.f32 %v4224, %v4416
        %v4418 = vpop.f32.mrb[0].mxu0
        %v4419 = vadd.f32 %v4226, %v4418
        %v4420 = vpop.f32.mrb[0].mxu0
        %v4421 = vadd.f32 %v4228, %v4420
        %4422 = vmatprep.mubr.bf16.mxu0 %v2418
        %4423 = vmatmul.mubr.bf16.gmra.mrb[0].mxu0 %v2417
        %v4424 = vpop.f32.mrb[0].mxu0
        %v4425 = vadd.f32 %v4232, %v4424
        %v4426 = vpop.f32.mrb[0].mxu0
        %v4427 = vadd.f32 %v4234, %v4426
        %v4428 = vpop.f32.mrb[0].mxu0
        %v4429 = vadd.f32 %v4236, %v4428
        %v4430 = vpop.f32.mrb[0].mxu0
        %v4431 = vadd.f32 %v4238, %v4430
        %4432 = vmatprep.mubr.bf16.mxu0 %v2424
        %4433 = vmatmul.mubr.bf16.gmra.mrb[0].mxu0 %v2423
        %v4434 = vpop.f32.mrb[0].mxu0
        %v4435 = vadd.f32 %v4242, %v4434
        %v4436 = vpop.f32.mrb[0].mxu0
        %v4437 = vadd.f32 %v4244, %v4436
        %v4438 = vpop.f32.mrb[0].mxu0
        %v4439 = vadd.f32 %v4246, %v4438
        %v4440 = vpop.f32.mrb[0].mxu0
        %v4441 = vadd.f32 %v4248, %v4440
        %4442 = vmatprep.mubr.bf16.mxu0 %v2430
        %4443 = vmatmul.mubr.bf16.gmra.mrb[0].mxu0 %v2429
        %v4444 = vpop.f32.mrb[0].mxu0
        %v4445 = vadd.f32 %v4252, %v4444
        %v4446 = vpop.f32.mrb[0].mxu0
        %v4447 = vadd.f32 %v4254, %v4446
        %v4448 = vpop.f32.mrb[0].mxu0
        %v4449 = vadd.f32 %v4256, %v4448
        %v4450 = vpop.f32.mrb[0].mxu0
        %v4451 = vadd.f32 %v4258, %v4450
        %4452 = vdwg.mxu0
        %v4453 = vunpack.c.l.bf16 %v412
        %v4454 = vunpack.c.h.bf16 %v412
        %v4455 = vunpack.c.l.bf16 %v415
        %v4456 = vunpack.c.h.bf16 %v415
        %v4457 = vunpack.c.l.bf16 %v418
        %v4458 = vunpack.c.h.bf16 %v418
        %v4459 = vunpack.c.l.bf16 %v421
        %v4460 = vunpack.c.h.bf16 %v421
        %v4461 = vunpack.c.l.bf16 %v424
        %v4462 = vunpack.c.h.bf16 %v424
        %v4463 = vunpack.c.l.bf16 %v427
        %v4464 = vunpack.c.h.bf16 %v427
        %v4465 = vunpack.c.l.bf16 %v430
        %v4466 = vunpack.c.h.bf16 %v430
        %v4467 = vunpack.c.l.bf16 %v433
        %v4468 = vunpack.c.h.bf16 %v433
        %v4469 = vunpack.c.l.bf16 %v436
        %v4470 = vunpack.c.h.bf16 %v436
        %v4471 = vunpack.c.l.bf16 %v439
        %v4472 = vunpack.c.h.bf16 %v439
        %v4473 = vunpack.c.l.bf16 %v442
        %v4474 = vunpack.c.h.bf16 %v442
        %v4475 = vunpack.c.l.bf16 %v445
        %v4476 = vunpack.c.h.bf16 %v445
        %v4477 = vunpack.c.l.bf16 %v448
        %v4478 = vunpack.c.h.bf16 %v448
        %v4479 = vunpack.c.l.bf16 %v451
        %v4480 = vunpack.c.h.bf16 %v451
        %v4481 = vunpack.c.l.bf16 %v454
        %v4482 = vunpack.c.h.bf16 %v454
        %v4483 = vunpack.c.l.bf16 %v457
        %v4484 = vunpack.c.h.bf16 %v457
        %v4485 = vunpack.c.l.bf16 %v460
        %v4486 = vunpack.c.h.bf16 %v460
        %v4487 = vunpack.c.l.bf16 %v463
        %v4488 = vunpack.c.h.bf16 %v463
        %v4489 = vunpack.c.l.bf16 %v466
        %v4490 = vunpack.c.h.bf16 %v466
        %v4491 = vunpack.c.l.bf16 %v469
        %v4492 = vunpack.c.h.bf16 %v469
        %v4493 = vunpack.c.l.bf16 %v472
        %v4494 = vunpack.c.h.bf16 %v472
        %v4495 = vunpack.c.l.bf16 %v475
        %v4496 = vunpack.c.h.bf16 %v475
        %v4497 = vunpack.c.l.bf16 %v478
        %v4498 = vunpack.c.h.bf16 %v478
        %v4499 = vunpack.c.l.bf16 %v481
        %v4500 = vunpack.c.h.bf16 %v481
        %v4501 = vunpack.c.l.bf16 %v484
        %v4502 = vunpack.c.h.bf16 %v484
        %v4503 = vunpack.c.l.bf16 %v487
        %v4504 = vunpack.c.h.bf16 %v487
        %v4505 = vunpack.c.l.bf16 %v490
        %v4506 = vunpack.c.h.bf16 %v490
        %v4507 = vunpack.c.l.bf16 %v493
        %v4508 = vunpack.c.h.bf16 %v493
        %v4509 = vunpack.c.l.bf16 %v496
        %v4510 = vunpack.c.h.bf16 %v496
        %v4511 = vunpack.c.l.bf16 %v499
        %v4512 = vunpack.c.h.bf16 %v499
        %v4513 = vunpack.c.l.bf16 %v502
        %v4514 = vunpack.c.h.bf16 %v502
        %v4515 = vunpack.c.l.bf16 %v505
        %v4516 = vunpack.c.h.bf16 %v505
        %v4517 = vunpack.c.l.bf16 %v508
        %v4518 = vunpack.c.h.bf16 %v508
        %v4519 = vunpack.c.l.bf16 %v511
        %v4520 = vunpack.c.h.bf16 %v511
        %v4521 = vunpack.c.l.bf16 %v514
        %v4522 = vunpack.c.h.bf16 %v514
        %v4523 = vunpack.c.l.bf16 %v517
        %v4524 = vunpack.c.h.bf16 %v517
        %v4525 = vunpack.c.l.bf16 %v520
        %v4526 = vunpack.c.h.bf16 %v520
        %v4527 = vunpack.c.l.bf16 %v523
        %v4528 = vunpack.c.h.bf16 %v523
        %v4529 = vunpack.c.l.bf16 %v526
        %v4530 = vunpack.c.h.bf16 %v526
        %v4531 = vunpack.c.l.bf16 %v529
        %v4532 = vunpack.c.h.bf16 %v529
        %v4533 = vunpack.c.l.bf16 %v532
        %v4534 = vunpack.c.h.bf16 %v532
        %v4535 = vunpack.c.l.bf16 %v535
        %v4536 = vunpack.c.h.bf16 %v535
        %v4537 = vunpack.c.l.bf16 %v538
        %v4538 = vunpack.c.h.bf16 %v538
        %v4539 = vunpack.c.l.bf16 %v541
        %v4540 = vunpack.c.h.bf16 %v541
        %v4541 = vunpack.c.l.bf16 %v544
        %v4542 = vunpack.c.h.bf16 %v544
        %v4543 = vunpack.c.l.bf16 %v547
        %v4544 = vunpack.c.h.bf16 %v547
        %v4545 = vunpack.c.l.bf16 %v550
        %v4546 = vunpack.c.h.bf16 %v550
        %v4547 = vunpack.c.l.bf16 %v553
        %v4548 = vunpack.c.h.bf16 %v553
        %v4549 = vunpack.c.l.bf16 %v556
        %v4550 = vunpack.c.h.bf16 %v556
        %v4551 = vunpack.c.l.bf16 %v559
        %v4552 = vunpack.c.h.bf16 %v559
        %v4553 = vunpack.c.l.bf16 %v562
        %v4554 = vunpack.c.h.bf16 %v562
        %v4555 = vunpack.c.l.bf16 %v565
        %v4556 = vunpack.c.h.bf16 %v565
        %v4557 = vunpack.c.l.bf16 %v568
        %v4558 = vunpack.c.h.bf16 %v568
        %v4559 = vunpack.c.l.bf16 %v571
        %v4560 = vunpack.c.h.bf16 %v571
        %v4561 = vunpack.c.l.bf16 %v574
        %v4562 = vunpack.c.h.bf16 %v574
        %v4563 = vunpack.c.l.bf16 %v577
        %v4564 = vunpack.c.h.bf16 %v577
        %v4565 = vunpack.c.l.bf16 %v580
        %v4566 = vunpack.c.h.bf16 %v580
        %v4567 = vunpack.c.l.bf16 %v583
        %v4568 = vunpack.c.h.bf16 %v583
        %v4569 = vunpack.c.l.bf16 %v586
        %v4570 = vunpack.c.h.bf16 %v586
        %v4571 = vunpack.c.l.bf16 %v589
        %v4572 = vunpack.c.h.bf16 %v589
        %v4573 = vunpack.c.l.bf16 %v592
        %v4574 = vunpack.c.h.bf16 %v592
        %v4575 = vunpack.c.l.bf16 %v595
        %v4576 = vunpack.c.h.bf16 %v595
        %v4577 = vunpack.c.l.bf16 %v598
        %v4578 = vunpack.c.h.bf16 %v598
        %v4579 = vunpack.c.l.bf16 %v601
        %v4580 = vunpack.c.h.bf16 %v601
        %v4581 = vmul.f32 %v4295, %v4517
        %v4582 = vmul.f32 %v4297, %v4518
        %v4583 = vmul.f32 %v4299, %v4519
        %v4584 = vmul.f32 %v4301, %v4520
        %v4585 = vmul.f32 %v4305, %v4521
        %v4586 = vmul.f32 %v4307, %v4522
        %v4587 = vmul.f32 %v4309, %v4523
        %v4588 = vmul.f32 %v4311, %v4524
        %v4589 = vmul.f32 %v4315, %v4525
        %v4590 = vmul.f32 %v4317, %v4526
        %v4591 = vmul.f32 %v4319, %v4527
        %v4592 = vmul.f32 %v4321, %v4528
        %v4593 = vmul.f32 %v4325, %v4529
        %v4594 = vmul.f32 %v4327, %v4530
        %v4595 = vmul.f32 %v4329, %v4531
        %v4596 = vmul.f32 %v4331, %v4532
        %v4597 = vmul.f32 %v4335, %v4533
        %v4598 = vmul.f32 %v4337, %v4534
        %v4599 = vmul.f32 %v4339, %v4535
        %v4600 = vmul.f32 %v4341, %v4536
        %v4601 = vmul.f32 %v4345, %v4537
        %v4602 = vmul.f32 %v4347, %v4538
        %v4603 = vmul.f32 %v4349, %v4539
        %v4604 = vmul.f32 %v4351, %v4540
        %v4605 = vmul.f32 %v4355, %v4541
        %v4606 = vmul.f32 %v4357, %v4542
        %v4607 = vmul.f32 %v4359, %v4543
        %v4608 = vmul.f32 %v4361, %v4544
        %v4609 = vmul.f32 %v4365, %v4545
        %v4610 = vmul.f32 %v4367, %v4546
        %v4611 = vmul.f32 %v4369, %v4547
        %v4612 = vmul.f32 %v4371, %v4548
        %v4613 = vmul.f32 %v4375, %v4549
        %v4614 = vmul.f32 %v4377, %v4550
        %v4615 = vmul.f32 %v4379, %v4551
        %v4616 = vmul.f32 %v4381, %v4552
        %v4617 = vmul.f32 %v4385, %v4553
        %v4618 = vmul.f32 %v4387, %v4554
        %v4619 = vmul.f32 %v4389, %v4555
        %v4620 = vmul.f32 %v4391, %v4556
        %v4621 = vmul.f32 %v4395, %v4557
        %v4622 = vmul.f32 %v4397, %v4558
        %v4623 = vmul.f32 %v4399, %v4559
        %v4624 = vmul.f32 %v4401, %v4560
        %v4625 = vmul.f32 %v4405, %v4561
        %v4626 = vmul.f32 %v4407, %v4562
        %v4627 = vmul.f32 %v4409, %v4563
        %v4628 = vmul.f32 %v4411, %v4564
        %v4629 = vmul.f32 %v4415, %v4565
        %v4630 = vmul.f32 %v4417, %v4566
        %v4631 = vmul.f32 %v4419, %v4567
        %v4632 = vmul.f32 %v4421, %v4568
        %v4633 = vmul.f32 %v4425, %v4569
        %v4634 = vmul.f32 %v4427, %v4570
        %v4635 = vmul.f32 %v4429, %v4571
        %v4636 = vmul.f32 %v4431, %v4572
        %v4637 = vmul.f32 %v4435, %v4573
        %v4638 = vmul.f32 %v4437, %v4574
        %v4639 = vmul.f32 %v4439, %v4575
        %v4640 = vmul.f32 %v4441, %v4576
        %v4641 = vmul.f32 %v4445, %v4577
        %v4642 = vmul.f32 %v4447, %v4578
        %v4643 = vmul.f32 %v4449, %v4579
        %v4644 = vmul.f32 %v4451, %v4580
        %v4645 = vadd.f32 %v4581, %v4582
        %4646 = vadd.xlane.f32.xlu0 %v4645
        %v4647 = vpop.xlane.xlu0 %4646
        %v4648 = vadd.f32 %v4583, %v4584
        %4649 = vadd.xlane.f32.xlu0 %v4648
        %v4650 = vpop.xlane.xlu0 %4649
        %v4651 = vadd.f32 %v4585, %v4586
        %4652 = vadd.xlane.f32.xlu0 %v4651
        %v4653 = vpop.xlane.xlu0 %4652
        %v4654 = vadd.f32 %v4587, %v4588
        %4655 = vadd.xlane.f32.xlu0 %v4654
        %v4656 = vpop.xlane.xlu0 %4655
        %v4657 = vadd.f32 %v4589, %v4590
        %4658 = vadd.xlane.f32.xlu0 %v4657
        %v4659 = vpop.xlane.xlu0 %4658
        %v4660 = vadd.f32 %v4591, %v4592
        %4661 = vadd.xlane.f32.xlu0 %v4660
        %v4662 = vpop.xlane.xlu0 %4661
        %v4663 = vadd.f32 %v4593, %v4594
        %4664 = vadd.xlane.f32.xlu0 %v4663
        %v4665 = vpop.xlane.xlu0 %4664
        %v4666 = vadd.f32 %v4595, %v4596
        %4667 = vadd.xlane.f32.xlu0 %v4666
        %v4668 = vpop.xlane.xlu0 %4667
        %v4669 = vadd.f32 %v4597, %v4598
        %4670 = vadd.xlane.f32.xlu0 %v4669
        %v4671 = vpop.xlane.xlu0 %4670
        %v4672 = vadd.f32 %v4599, %v4600
        %4673 = vadd.xlane.f32.xlu0 %v4672
        %v4674 = vpop.xlane.xlu0 %4673
        %v4675 = vadd.f32 %v4601, %v4602
        %4676 = vadd.xlane.f32.xlu0 %v4675
        %v4677 = vpop.xlane.xlu0 %4676
        %v4678 = vadd.f32 %v4603, %v4604
        %4679 = vadd.xlane.f32.xlu0 %v4678
        %v4680 = vpop.xlane.xlu0 %4679
        %v4681 = vadd.f32 %v4605, %v4606
        %4682 = vadd.xlane.f32.xlu0 %v4681
        %v4683 = vpop.xlane.xlu0 %4682
        %v4684 = vadd.f32 %v4607, %v4608
        %4685 = vadd.xlane.f32.xlu0 %v4684
        %v4686 = vpop.xlane.xlu0 %4685
        %v4687 = vadd.f32 %v4609, %v4610
        %4688 = vadd.xlane.f32.xlu0 %v4687
        %v4689 = vpop.xlane.xlu0 %4688
        %v4690 = vadd.f32 %v4611, %v4612
        %4691 = vadd.xlane.f32.xlu0 %v4690
        %v4692 = vpop.xlane.xlu0 %4691
        %v4693 = vadd.f32 %v4613, %v4614
        %4694 = vadd.xlane.f32.xlu0 %v4693
        %v4695 = vpop.xlane.xlu0 %4694
        %v4696 = vadd.f32 %v4615, %v4616
        %4697 = vadd.xlane.f32.xlu0 %v4696
        %v4698 = vpop.xlane.xlu0 %4697
        %v4699 = vadd.f32 %v4617, %v4618
        %4700 = vadd.xlane.f32.xlu0 %v4699
        %v4701 = vpop.xlane.xlu0 %4700
        %v4702 = vadd.f32 %v4619, %v4620
        %4703 = vadd.xlane.f32.xlu0 %v4702
        %v4704 = vpop.xlane.xlu0 %4703
        %v4705 = vadd.f32 %v4621, %v4622
        %4706 = vadd.xlane.f32.xlu0 %v4705
        %v4707 = vpop.xlane.xlu0 %4706
        %v4708 = vadd.f32 %v4623, %v4624
        %4709 = vadd.xlane.f32.xlu0 %v4708
        %v4710 = vpop.xlane.xlu0 %4709
        %v4711 = vadd.f32 %v4625, %v4626
        %4712 = vadd.xlane.f32.xlu0 %v4711
        %v4713 = vpop.xlane.xlu0 %4712
        %v4714 = vadd.f32 %v4627, %v4628
        %4715 = vadd.xlane.f32.xlu0 %v4714
        %v4716 = vpop.xlane.xlu0 %4715
        %v4717 = vadd.f32 %v4629, %v4630
        %4718 = vadd.xlane.f32.xlu0 %v4717
        %v4719 = vpop.xlane.xlu0 %4718
        %v4720 = vadd.f32 %v4631, %v4632
        %4721 = vadd.xlane.f32.xlu0 %v4720
        %v4722 = vpop.xlane.xlu0 %4721
        %v4723 = vadd.f32 %v4633, %v4634
        %4724 = vadd.xlane.f32.xlu0 %v4723
        %v4725 = vpop.xlane.xlu0 %4724
        %v4726 = vadd.f32 %v4635, %v4636
        %4727 = vadd.xlane.f32.xlu0 %v4726
        %v4728 = vpop.xlane.xlu0 %4727
        %v4729 = vadd.f32 %v4637, %v4638
        %4730 = vadd.xlane.f32.xlu0 %v4729
        %v4731 = vpop.xlane.xlu0 %4730
        %v4732 = vadd.f32 %v4639, %v4640
        %4733 = vadd.xlane.f32.xlu0 %v4732
        %v4734 = vpop.xlane.xlu0 %4733
        %v4735 = vadd.f32 %v4641, %v4642
        %4736 = vadd.xlane.f32.xlu0 %v4735
        %v4737 = vpop.xlane.xlu0 %4736
        %v4738 = vadd.f32 %v4643, %v4644
        %4739 = vadd.xlane.f32.xlu0 %v4738
        %v4740 = vpop.xlane.xlu0 %4739
        %v4741 = vadd.f32 %v4647, 0.0
        %v4742 = vadd.f32 %v4650, 0.0
        %v4743 = vadd.f32 %v4653, 0.0
        %v4744 = vadd.f32 %v4656, 0.0
        %v4745 = vadd.f32 %v4659, 0.0
        %v4746 = vadd.f32 %v4662, 0.0
        %v4747 = vadd.f32 %v4665, 0.0
        %v4748 = vadd.f32 %v4668, 0.0
        %v4749 = vadd.f32 %v4671, 0.0
        %v4750 = vadd.f32 %v4674, 0.0
        %v4751 = vadd.f32 %v4677, 0.0
        %v4752 = vadd.f32 %v4680, 0.0
        %v4753 = vadd.f32 %v4683, 0.0
        %v4754 = vadd.f32 %v4686, 0.0
        %v4755 = vadd.f32 %v4689, 0.0
        %v4756 = vadd.f32 %v4692, 0.0
        %v4757 = vadd.f32 %v4695, 0.0
        %v4758 = vadd.f32 %v4698, 0.0
        %v4759 = vadd.f32 %v4701, 0.0
        %v4760 = vadd.f32 %v4704, 0.0
        %v4761 = vadd.f32 %v4707, 0.0
        %v4762 = vadd.f32 %v4710, 0.0
        %v4763 = vadd.f32 %v4713, 0.0
        %v4764 = vadd.f32 %v4716, 0.0
        %v4765 = vadd.f32 %v4719, 0.0
        %v4766 = vadd.f32 %v4722, 0.0
        %v4767 = vadd.f32 %v4725, 0.0
        %v4768 = vadd.f32 %v4728, 0.0
        %v4769 = vadd.f32 %v4731, 0.0
        %v4770 = vadd.f32 %v4734, 0.0
        %v4771 = vadd.f32 %v4737, 0.0
        %v4772 = vadd.f32 %v4740, 0.0
        %v4773 = vmul.f32 %v4453, %v4453
        %v4774 = vmul.f32 %v4454, %v4454
        %v4775 = vmul.f32 %v4455, %v4455
        %v4776 = vmul.f32 %v4456, %v4456
        %v4777 = vmul.f32 %v4457, %v4457
        %v4778 = vmul.f32 %v4458, %v4458
        %v4779 = vmul.f32 %v4459, %v4459
        %v4780 = vmul.f32 %v4460, %v4460
        %v4781 = vmul.f32 %v4461, %v4461
        %v4782 = vmul.f32 %v4462, %v4462
        %v4783 = vmul.f32 %v4463, %v4463
        %v4784 = vmul.f32 %v4464, %v4464
        %v4785 = vmul.f32 %v4465, %v4465
        %v4786 = vmul.f32 %v4466, %v4466
        %v4787 = vmul.f32 %v4467, %v4467
        %v4788 = vmul.f32 %v4468, %v4468
        %v4789 = vmul.f32 %v4469, %v4469
        %v4790 = vmul.f32 %v4470, %v4470
        %v4791 = vmul.f32 %v4471, %v4471
        %v4792 = vmul.f32 %v4472, %v4472
        %v4793 = vmul.f32 %v4473, %v4473
        %v4794 = vmul.f32 %v4474, %v4474
        %v4795 = vmul.f32 %v4475, %v4475
        %v4796 = vmul.f32 %v4476, %v4476
        %v4797 = vmul.f32 %v4477, %v4477
        %v4798 = vmul.f32 %v4478, %v4478
        %v4799 = vmul.f32 %v4479, %v4479
        %v4800 = vmul.f32 %v4480, %v4480
        %v4801 = vmul.f32 %v4481, %v4481
        %v4802 = vmul.f32 %v4482, %v4482
        %v4803 = vmul.f32 %v4483, %v4483
        %v4804 = vmul.f32 %v4484, %v4484
        %v4805 = vmul.f32 %v4485, %v4485
        %v4806 = vmul.f32 %v4486, %v4486
        %v4807 = vmul.f32 %v4487, %v4487
        %v4808 = vmul.f32 %v4488, %v4488
        %v4809 = vmul.f32 %v4489, %v4489
        %v4810 = vmul.f32 %v4490, %v4490
        %v4811 = vmul.f32 %v4491, %v4491
        %v4812 = vmul.f32 %v4492, %v4492
        %v4813 = vmul.f32 %v4493, %v4493
        %v4814 = vmul.f32 %v4494, %v4494
        %v4815 = vmul.f32 %v4495, %v4495
        %v4816 = vmul.f32 %v4496, %v4496
        %v4817 = vmul.f32 %v4497, %v4497
        %v4818 = vmul.f32 %v4498, %v4498
        %v4819 = vmul.f32 %v4499, %v4499
        %v4820 = vmul.f32 %v4500, %v4500
        %v4821 = vmul.f32 %v4501, %v4501
        %v4822 = vmul.f32 %v4502, %v4502
        %v4823 = vmul.f32 %v4503, %v4503
        %v4824 = vmul.f32 %v4504, %v4504
        %v4825 = vmul.f32 %v4505, %v4505
        %v4826 = vmul.f32 %v4506, %v4506
        %v4827 = vmul.f32 %v4507, %v4507
        %v4828 = vmul.f32 %v4508, %v4508
        %v4829 = vmul.f32 %v4509, %v4509
        %v4830 = vmul.f32 %v4510, %v4510
        %v4831 = vmul.f32 %v4511, %v4511
        %v4832 = vmul.f32 %v4512, %v4512
        %v4833 = vmul.f32 %v4513, %v4513
        %v4834 = vmul.f32 %v4514, %v4514
        %v4835 = vmul.f32 %v4515, %v4515
        %v4836 = vmul.f32 %v4516, %v4516
        %v4837 = vld [vmem:[#allocation9] ss:$2 sm:$0x3]
        %v4839 = vlaneseq
        %v4840 = vshrl.u32 %v4839, 7
        %v4841 = vsub.s32 0, %v4840
        %v4842 = vrot.slane %v4837, %v4841
        %v4843 = vlaneseq
        %v4844 = vshrl.u32 %v4843, 7
        %v4845 = vsub.s32 1, %v4844
        %v4846 = vrot.slane %v4837, %v4845
        %v4849 = vmul.f32 %v4773, %v4842
        %v4850 = vmul.f32 %v4774, %v4846
        %v4851 = vmul.f32 %v4775, %v4842
        %v4852 = vmul.f32 %v4776, %v4846
        %v4853 = vmul.f32 %v4777, %v4842
        %v4854 = vmul.f32 %v4778, %v4846
        %v4855 = vmul.f32 %v4779, %v4842
        %v4856 = vmul.f32 %v4780, %v4846
        %v4857 = vmul.f32 %v4781, %v4842
        %v4858 = vmul.f32 %v4782, %v4846
        %v4859 = vmul.f32 %v4783, %v4842
        %v4860 = vmul.f32 %v4784, %v4846
        %v4861 = vmul.f32 %v4785, %v4842
        %v4862 = vmul.f32 %v4786, %v4846
        %v4863 = vmul.f32 %v4787, %v4842
        %v4864 = vmul.f32 %v4788, %v4846
        %v4865 = vmul.f32 %v4789, %v4842
        %v4866 = vmul.f32 %v4790, %v4846
        %v4867 = vmul.f32 %v4791, %v4842
        %v4868 = vmul.f32 %v4792, %v4846
        %v4869 = vmul.f32 %v4793, %v4842
        %v4870 = vmul.f32 %v4794, %v4846
        %v4871 = vmul.f32 %v4795, %v4842
        %v4872 = vmul.f32 %v4796, %v4846
        %v4873 = vmul.f32 %v4797, %v4842
        %v4874 = vmul.f32 %v4798, %v4846
        %v4875 = vmul.f32 %v4799, %v4842
        %v4876 = vmul.f32 %v4800, %v4846
        %v4877 = vmul.f32 %v4801, %v4842
        %v4878 = vmul.f32 %v4802, %v4846
        %v4879 = vmul.f32 %v4803, %v4842
        %v4880 = vmul.f32 %v4804, %v4846
        %v4881 = vmul.f32 %v4805, %v4842
        %v4882 = vmul.f32 %v4806, %v4846
        %v4883 = vmul.f32 %v4807, %v4842
        %v4884 = vmul.f32 %v4808, %v4846
        %v4885 = vmul.f32 %v4809, %v4842
        %v4886 = vmul.f32 %v4810, %v4846
        %v4887 = vmul.f32 %v4811, %v4842
        %v4888 = vmul.f32 %v4812, %v4846
        %v4889 = vmul.f32 %v4813, %v4842
        %v4890 = vmul.f32 %v4814, %v4846
        %v4891 = vmul.f32 %v4815, %v4842
        %v4892 = vmul.f32 %v4816, %v4846
        %v4893 = vmul.f32 %v4817, %v4842
        %v4894 = vmul.f32 %v4818, %v4846
        %v4895 = vmul.f32 %v4819, %v4842
        %v4896 = vmul.f32 %v4820, %v4846
        %v4897 = vmul.f32 %v4821, %v4842
        %v4898 = vmul.f32 %v4822, %v4846
        %v4899 = vmul.f32 %v4823, %v4842
        %v4900 = vmul.f32 %v4824, %v4846
        %v4901 = vmul.f32 %v4825, %v4842
        %v4902 = vmul.f32 %v4826, %v4846
        %v4903 = vmul.f32 %v4827, %v4842
        %v4904 = vmul.f32 %v4828, %v4846
        %v4905 = vmul.f32 %v4829, %v4842
        %v4906 = vmul.f32 %v4830, %v4846
        %v4907 = vmul.f32 %v4831, %v4842
        %v4908 = vmul.f32 %v4832, %v4846
        %v4909 = vmul.f32 %v4833, %v4842
        %v4910 = vmul.f32 %v4834, %v4846
        %v4911 = vmul.f32 %v4835, %v4842
        %v4912 = vmul.f32 %v4836, %v4846
        %v4913 = vmul.f32 %v4517, %v4517
        %v4914 = vmul.f32 %v4518, %v4518
        %v4915 = vmul.f32 %v4519, %v4519
        %v4916 = vmul.f32 %v4520, %v4520
        %v4917 = vmul.f32 %v4521, %v4521
        %v4918 = vmul.f32 %v4522, %v4522
        %v4919 = vmul.f32 %v4523, %v4523
        %v4920 = vmul.f32 %v4524, %v4524
        %v4921 = vmul.f32 %v4525, %v4525
        %v4922 = vmul.f32 %v4526, %v4526
        %v4923 = vmul.f32 %v4527, %v4527
        %v4924 = vmul.f32 %v4528, %v4528
        %v4925 = vmul.f32 %v4529, %v4529
        %v4926 = vmul.f32 %v4530, %v4530
        %v4927 = vmul.f32 %v4531, %v4531
        %v4928 = vmul.f32 %v4532, %v4532
        %v4929 = vmul.f32 %v4533, %v4533
        %v4930 = vmul.f32 %v4534, %v4534
        %v4931 = vmul.f32 %v4535, %v4535
        %v4932 = vmul.f32 %v4536, %v4536
        %v4933 = vmul.f32 %v4537, %v4537
        %v4934 = vmul.f32 %v4538, %v4538
        %v4935 = vmul.f32 %v4539, %v4539
        %v4936 = vmul.f32 %v4540, %v4540
        %v4937 = vmul.f32 %v4541, %v4541
        %v4938 = vmul.f32 %v4542, %v4542
        %v4939 = vmul.f32 %v4543, %v4543
        %v4940 = vmul.f32 %v4544, %v4544
        %v4941 = vmul.f32 %v4545, %v4545
        %v4942 = vmul.f32 %v4546, %v4546
        %v4943 = vmul.f32 %v4547, %v4547
        %v4944 = vmul.f32 %v4548, %v4548
        %v4945 = vmul.f32 %v4549, %v4549
        %v4946 = vmul.f32 %v4550, %v4550
        %v4947 = vmul.f32 %v4551, %v4551
        %v4948 = vmul.f32 %v4552, %v4552
        %v4949 = vmul.f32 %v4553, %v4553
        %v4950 = vmul.f32 %v4554, %v4554
        %v4951 = vmul.f32 %v4555, %v4555
        %v4952 = vmul.f32 %v4556, %v4556
        %v4953 = vmul.f32 %v4557, %v4557
        %v4954 = vmul.f32 %v4558, %v4558
        %v4955 = vmul.f32 %v4559, %v4559
        %v4956 = vmul.f32 %v4560, %v4560
        %v4957 = vmul.f32 %v4561, %v4561
        %v4958 = vmul.f32 %v4562, %v4562
        %v4959 = vmul.f32 %v4563, %v4563
        %v4960 = vmul.f32 %v4564, %v4564
        %v4961 = vmul.f32 %v4565, %v4565
        %v4962 = vmul.f32 %v4566, %v4566
        %v4963 = vmul.f32 %v4567, %v4567
        %v4964 = vmul.f32 %v4568, %v4568
        %v4965 = vmul.f32 %v4569, %v4569
        %v4966 = vmul.f32 %v4570, %v4570
        %v4967 = vmul.f32 %v4571, %v4571
        %v4968 = vmul.f32 %v4572, %v4572
        %v4969 = vmul.f32 %v4573, %v4573
        %v4970 = vmul.f32 %v4574, %v4574
        %v4971 = vmul.f32 %v4575, %v4575
        %v4972 = vmul.f32 %v4576, %v4576
        %v4973 = vmul.f32 %v4577, %v4577
        %v4974 = vmul.f32 %v4578, %v4578
        %v4975 = vmul.f32 %v4579, %v4579
        %v4976 = vmul.f32 %v4580, %v4580
        %s4977 = scalar_lea.vmem [#allocation9], 1
        %v4978 = vld [vmem:[%s4977] ss:$2 sm:$0x3]
        %v4980 = vlaneseq
        %v4981 = vshrl.u32 %v4980, 7
        %v4982 = vsub.s32 0, %v4981
        %v4983 = vrot.slane %v4978, %v4982
        %v4984 = vlaneseq
        %v4985 = vshrl.u32 %v4984, 7
        %v4986 = vsub.s32 1, %v4985
        %v4987 = vrot.slane %v4978, %v4986
        %v4990 = vmul.f32 %v4913, %v4983
        %v4991 = vmul.f32 %v4914, %v4987
        %v4992 = vmul.f32 %v4915, %v4983
        %v4993 = vmul.f32 %v4916, %v4987
        %v4994 = vmul.f32 %v4917, %v4983
        %v4995 = vmul.f32 %v4918, %v4987
        %v4996 = vmul.f32 %v4919, %v4983
        %v4997 = vmul.f32 %v4920, %v4987
        %v4998 = vmul.f32 %v4921, %v4983
        %v4999 = vmul.f32 %v4922, %v4987
        %v5000 = vmul.f32 %v4923, %v4983
        %v5001 = vmul.f32 %v4924, %v4987
        %v5002 = vmul.f32 %v4925, %v4983
        %v5003 = vmul.f32 %v4926, %v4987
        %v5004 = vmul.f32 %v4927, %v4983
        %v5005 = vmul.f32 %v4928, %v4987
        %v5006 = vmul.f32 %v4929, %v4983
        %v5007 = vmul.f32 %v4930, %v4987
        %v5008 = vmul.f32 %v4931, %v4983
        %v5009 = vmul.f32 %v4932, %v4987
        %v5010 = vmul.f32 %v4933, %v4983
        %v5011 = vmul.f32 %v4934, %v4987
        %v5012 = vmul.f32 %v4935, %v4983
        %v5013 = vmul.f32 %v4936, %v4987
        %v5014 = vmul.f32 %v4937, %v4983
        %v5015 = vmul.f32 %v4938, %v4987
        %v5016 = vmul.f32 %v4939, %v4983
        %v5017 = vmul.f32 %v4940, %v4987
        %v5018 = vmul.f32 %v4941, %v4983
        %v5019 = vmul.f32 %v4942, %v4987
        %v5020 = vmul.f32 %v4943, %v4983
        %v5021 = vmul.f32 %v4944, %v4987
        %v5022 = vmul.f32 %v4945, %v4983
        %v5023 = vmul.f32 %v4946, %v4987
        %v5024 = vmul.f32 %v4947, %v4983
        %v5025 = vmul.f32 %v4948, %v4987
        %v5026 = vmul.f32 %v4949, %v4983
        %v5027 = vmul.f32 %v4950, %v4987
        %v5028 = vmul.f32 %v4951, %v4983
        %v5029 = vmul.f32 %v4952, %v4987
        %v5030 = vmul.f32 %v4953, %v4983
        %v5031 = vmul.f32 %v4954, %v4987
        %v5032 = vmul.f32 %v4955, %v4983
        %v5033 = vmul.f32 %v4956, %v4987
        %v5034 = vmul.f32 %v4957, %v4983
        %v5035 = vmul.f32 %v4958, %v4987
        %v5036 = vmul.f32 %v4959, %v4983
        %v5037 = vmul.f32 %v4960, %v4987
        %v5038 = vmul.f32 %v4961, %v4983
        %v5039 = vmul.f32 %v4962, %v4987
        %v5040 = vmul.f32 %v4963, %v4983
        %v5041 = vmul.f32 %v4964, %v4987
        %v5042 = vmul.f32 %v4965, %v4983
        %v5043 = vmul.f32 %v4966, %v4987
        %v5044 = vmul.f32 %v4967, %v4983
        %v5045 = vmul.f32 %v4968, %v4987
        %v5046 = vmul.f32 %v4969, %v4983
        %v5047 = vmul.f32 %v4970, %v4987
        %v5048 = vmul.f32 %v4971, %v4983
        %v5049 = vmul.f32 %v4972, %v4987
        %v5050 = vmul.f32 %v4973, %v4983
        %v5051 = vmul.f32 %v4974, %v4987
        %v5052 = vmul.f32 %v4975, %v4983
        %v5053 = vmul.f32 %v4976, %v4987
        %v5054 = vadd.f32 %v4849, %v4990
        %v5055 = vadd.f32 %v4850, %v4991
        %v5056 = vadd.f32 %v4851, %v4992
        %v5057 = vadd.f32 %v4852, %v4993
        %v5058 = vadd.f32 %v4853, %v4994
        %v5059 = vadd.f32 %v4854, %v4995
        %v5060 = vadd.f32 %v4855, %v4996
        %v5061 = vadd.f32 %v4856, %v4997
        %v5062 = vadd.f32 %v4857, %v4998
        %v5063 = vadd.f32 %v4858, %v4999
        %v5064 = vadd.f32 %v4859, %v5000
        %v5065 = vadd.f32 %v4860, %v5001
        %v5066 = vadd.f32 %v4861, %v5002
        %v5067 = vadd.f32 %v4862, %v5003
        %v5068 = vadd.f32 %v4863, %v5004
        %v5069 = vadd.f32 %v4864, %v5005
        %v5070 = vadd.f32 %v4865, %v5006
        %v5071 = vadd.f32 %v4866, %v5007
        %v5072 = vadd.f32 %v4867, %v5008
        %v5073 = vadd.f32 %v4868, %v5009
        %v5074 = vadd.f32 %v4869, %v5010
        %v5075 = vadd.f32 %v4870, %v5011
        %v5076 = vadd.f32 %v4871, %v5012
        %v5077 = vadd.f32 %v4872, %v5013
        %v5078 = vadd.f32 %v4873, %v5014
        %v5079 = vadd.f32 %v4874, %v5015
        %v5080 = vadd.f32 %v4875, %v5016
        %v5081 = vadd.f32 %v4876, %v5017
        %v5082 = vadd.f32 %v4877, %v5018
        %v5083 = vadd.f32 %v4878, %v5019
        %v5084 = vadd.f32 %v4879, %v5020
        %v5085 = vadd.f32 %v4880, %v5021
        %v5086 = vadd.f32 %v4881, %v5022
        %v5087 = vadd.f32 %v4882, %v5023
        %v5088 = vadd.f32 %v4883, %v5024
        %v5089 = vadd.f32 %v4884, %v5025
        %v5090 = vadd.f32 %v4885, %v5026
        %v5091 = vadd.f32 %v4886, %v5027
        %v5092 = vadd.f32 %v4887, %v5028
        %v5093 = vadd.f32 %v4888, %v5029
        %v5094 = vadd.f32 %v4889, %v5030
        %v5095 = vadd.f32 %v4890, %v5031
        %v5096 = vadd.f32 %v4891, %v5032
        %v5097 = vadd.f32 %v4892, %v5033
        %v5098 = vadd.f32 %v4893, %v5034
        %v5099 = vadd.f32 %v4894, %v5035
        %v5100 = vadd.f32 %v4895, %v5036
        %v5101 = vadd.f32 %v4896, %v5037
        %v5102 = vadd.f32 %v4897, %v5038
        %v5103 = vadd.f32 %v4898, %v5039
        %v5104 = vadd.f32 %v4899, %v5040
        %v5105 = vadd.f32 %v4900, %v5041
        %v5106 = vadd.f32 %v4901, %v5042
        %v5107 = vadd.f32 %v4902, %v5043
        %v5108 = vadd.f32 %v4903, %v5044
        %v5109 = vadd.f32 %v4904, %v5045
        %v5110 = vadd.f32 %v4905, %v5046
        %v5111 = vadd.f32 %v4906, %v5047
        %v5112 = vadd.f32 %v4907, %v5048
        %v5113 = vadd.f32 %v4908, %v5049
        %v5114 = vadd.f32 %v4909, %v5050
        %v5115 = vadd.f32 %v4910, %v5051
        %v5116 = vadd.f32 %v4911, %v5052
        %v5117 = vadd.f32 %v4912, %v5053
        %v5118 = vadd.f32 %v5054, %v5055
        %5119 = vadd.xlane.f32.xlu0 %v5118
        %v5120 = vpop.xlane.xlu0 %5119
        %v5121 = vadd.f32 %v5056, %v5057
        %5122 = vadd.xlane.f32.xlu0 %v5121
        %v5123 = vpop.xlane.xlu0 %5122
        %v5124 = vadd.f32 %v5058, %v5059
        %5125 = vadd.xlane.f32.xlu0 %v5124
        %v5126 = vpop.xlane.xlu0 %5125
        %v5127 = vadd.f32 %v5060, %v5061
        %5128 = vadd.xlane.f32.xlu0 %v5127
        %v5129 = vpop.xlane.xlu0 %5128
        %v5130 = vadd.f32 %v5062, %v5063
        %5131 = vadd.xlane.f32.xlu0 %v5130
        %v5132 = vpop.xlane.xlu0 %5131
        %v5133 = vadd.f32 %v5064, %v5065
        %5134 = vadd.xlane.f32.xlu0 %v5133
        %v5135 = vpop.xlane.xlu0 %5134
        %v5136 = vadd.f32 %v5066, %v5067
        %5137 = vadd.xlane.f32.xlu0 %v5136
        %v5138 = vpop.xlane.xlu0 %5137
        %v5139 = vadd.f32 %v5068, %v5069
        %5140 = vadd.xlane.f32.xlu0 %v5139
        %v5141 = vpop.xlane.xlu0 %5140
        %v5142 = vadd.f32 %v5070, %v5071
        %5143 = vadd.xlane.f32.xlu0 %v5142
        %v5144 = vpop.xlane.xlu0 %5143
        %v5145 = vadd.f32 %v5072, %v5073
        %5146 = vadd.xlane.f32.xlu0 %v5145
        %v5147 = vpop.xlane.xlu0 %5146
        %v5148 = vadd.f32 %v5074, %v5075
        %5149 = vadd.xlane.f32.xlu0 %v5148
        %v5150 = vpop.xlane.xlu0 %5149
        %v5151 = vadd.f32 %v5076, %v5077
        %5152 = vadd.xlane.f32.xlu0 %v5151
        %v5153 = vpop.xlane.xlu0 %5152
        %v5154 = vadd.f32 %v5078, %v5079
        %5155 = vadd.xlane.f32.xlu0 %v5154
        %v5156 = vpop.xlane.xlu0 %5155
        %v5157 = vadd.f32 %v5080, %v5081
        %5158 = vadd.xlane.f32.xlu0 %v5157
        %v5159 = vpop.xlane.xlu0 %5158
        %v5160 = vadd.f32 %v5082, %v5083
        %5161 = vadd.xlane.f32.xlu0 %v5160
        %v5162 = vpop.xlane.xlu0 %5161
        %v5163 = vadd.f32 %v5084, %v5085
        %5164 = vadd.xlane.f32.xlu0 %v5163
        %v5165 = vpop.xlane.xlu0 %5164
        %v5166 = vadd.f32 %v5086, %v5087
        %5167 = vadd.xlane.f32.xlu0 %v5166
        %v5168 = vpop.xlane.xlu0 %5167
        %v5169 = vadd.f32 %v5088, %v5089
        %5170 = vadd.xlane.f32.xlu0 %v5169
        %v5171 = vpop.xlane.xlu0 %5170
        %v5172 = vadd.f32 %v5090, %v5091
        %5173 = vadd.xlane.f32.xlu0 %v5172
        %v5174 = vpop.xlane.xlu0 %5173
        %v5175 = vadd.f32 %v5092, %v5093
        %5176 = vadd.xlane.f32.xlu0 %v5175
        %v5177 = vpop.xlane.xlu0 %5176
        %v5178 = vadd.f32 %v5094, %v5095
        %5179 = vadd.xlane.f32.xlu0 %v5178
        %v5180 = vpop.xlane.xlu0 %5179
        %v5181 = vadd.f32 %v5096, %v5097
        %5182 = vadd.xlane.f32.xlu0 %v5181
        %v5183 = vpop.xlane.xlu0 %5182
        %v5184 = vadd.f32 %v5098, %v5099
        %5185 = vadd.xlane.f32.xlu0 %v5184
        %v5186 = vpop.xlane.xlu0 %5185
        %v5187 = vadd.f32 %v5100, %v5101
        %5188 = vadd.xlane.f32.xlu0 %v5187
        %v5189 = vpop.xlane.xlu0 %5188
        %v5190 = vadd.f32 %v5102, %v5103
        %5191 = vadd.xlane.f32.xlu0 %v5190
        %v5192 = vpop.xlane.xlu0 %5191
        %v5193 = vadd.f32 %v5104, %v5105
        %5194 = vadd.xlane.f32.xlu0 %v5193
        %v5195 = vpop.xlane.xlu0 %5194
        %v5196 = vadd.f32 %v5106, %v5107
        %5197 = vadd.xlane.f32.xlu0 %v5196
        %v5198 = vpop.xlane.xlu0 %5197
        %v5199 = vadd.f32 %v5108, %v5109
        %5200 = vadd.xlane.f32.xlu0 %v5199
        %v5201 = vpop.xlane.xlu0 %5200
        %v5202 = vadd.f32 %v5110, %v5111
        %5203 = vadd.xlane.f32.xlu0 %v5202
        %v5204 = vpop.xlane.xlu0 %5203
        %v5205 = vadd.f32 %v5112, %v5113
        %5206 = vadd.xlane.f32.xlu0 %v5205
        %v5207 = vpop.xlane.xlu0 %5206
        %v5208 = vadd.f32 %v5114, %v5115
        %5209 = vadd.xlane.f32.xlu0 %v5208
        %v5210 = vpop.xlane.xlu0 %5209
        %v5211 = vadd.f32 %v5116, %v5117
        %5212 = vadd.xlane.f32.xlu0 %v5211
        %v5213 = vpop.xlane.xlu0 %5212
        %v5214 = vadd.f32 %v5120, 0.0
        %v5215 = vadd.f32 %v5123, 0.0
        %v5216 = vadd.f32 %v5126, 0.0
        %v5217 = vadd.f32 %v5129, 0.0
        %v5218 = vadd.f32 %v5132, 0.0
        %v5219 = vadd.f32 %v5135, 0.0
        %v5220 = vadd.f32 %v5138, 0.0
        %v5221 = vadd.f32 %v5141, 0.0
        %v5222 = vadd.f32 %v5144, 0.0
        %v5223 = vadd.f32 %v5147, 0.0
        %v5224 = vadd.f32 %v5150, 0.0
        %v5225 = vadd.f32 %v5153, 0.0
        %v5226 = vadd.f32 %v5156, 0.0
        %v5227 = vadd.f32 %v5159, 0.0
        %v5228 = vadd.f32 %v5162, 0.0
        %v5229 = vadd.f32 %v5165, 0.0
        %v5230 = vadd.f32 %v5168, 0.0
        %v5231 = vadd.f32 %v5171, 0.0
        %v5232 = vadd.f32 %v5174, 0.0
        %v5233 = vadd.f32 %v5177, 0.0
        %v5234 = vadd.f32 %v5180, 0.0
        %v5235 = vadd.f32 %v5183, 0.0
        %v5236 = vadd.f32 %v5186, 0.0
        %v5237 = vadd.f32 %v5189, 0.0
        %v5238 = vadd.f32 %v5192, 0.0
        %v5239 = vadd.f32 %v5195, 0.0
        %v5240 = vadd.f32 %v5198, 0.0
        %v5241 = vadd.f32 %v5201, 0.0
        %v5242 = vadd.f32 %v5204, 0.0
        %v5243 = vadd.f32 %v5207, 0.0
        %v5244 = vadd.f32 %v5210, 0.0
        %v5245 = vadd.f32 %v5213, 0.0
        %v5246 = vld [vmem:[#allocation8 + $0x8] sm:$0xff]
        %v5247 = vld [vmem:[#allocation8 + $0x20] sm:$0xff]
        %v5248 = vld [vmem:[#allocation8 + $0x38] sm:$0xff]
        %v5249 = vld [vmem:[#allocation8 + $0x50] sm:$0xff]
        %v5250 = vld [vmem:[#allocation8 + $0x68] sm:$0xff]
        %v5251 = vld [vmem:[#allocation8 + $0x80] sm:$0xff]
        %v5252 = vld [vmem:[#allocation8 + $0x98] sm:$0xff]
        %v5253 = vld [vmem:[#allocation8 + $0xb0] sm:$0xff]
        %v5254 = vld [vmem:[#allocation8 + $0xc8] sm:$0xff]
        %v5255 = vld [vmem:[#allocation8 + $0xe0] sm:$0xff]
        %v5256 = vld [vmem:[#allocation8 + $0xf8] sm:$0xff]
        %v5257 = vld [vmem:[#allocation8 + $0x110] sm:$0xff]
        %v5258 = vld [vmem:[#allocation8 + $0x128] sm:$0xff]
        %v5259 = vld [vmem:[#allocation8 + $0x140] sm:$0xff]
        %v5260 = vld [vmem:[#allocation8 + $0x158] sm:$0xff]
        %v5261 = vld [vmem:[#allocation8 + $0x170] sm:$0xff]
        %v5262 = vld [vmem:[#allocation8 + $0x188] sm:$0xff]
        %v5263 = vld [vmem:[#allocation8 + $0x1a0] sm:$0xff]
        %v5264 = vld [vmem:[#allocation8 + $0x1b8] sm:$0xff]
        %v5265 = vld [vmem:[#allocation8 + $0x1d0] sm:$0xff]
        %v5266 = vld [vmem:[#allocation8 + $0x1e8] sm:$0xff]
        %v5267 = vld [vmem:[#allocation8 + $0x200] sm:$0xff]
        %v5268 = vld [vmem:[#allocation8 + $0x218] sm:$0xff]
        %v5269 = vld [vmem:[#allocation8 + $0x230] sm:$0xff]
        %v5270 = vld [vmem:[#allocation8 + $0x248] sm:$0xff]
        %v5271 = vld [vmem:[#allocation8 + $0x260] sm:$0xff]
        %v5272 = vld [vmem:[#allocation8 + $0x278] sm:$0xff]
        %v5273 = vld [vmem:[#allocation8 + $0x290] sm:$0xff]
        %v5274 = vld [vmem:[#allocation8 + $0x2a8] sm:$0xff]
        %v5275 = vld [vmem:[#allocation8 + $0x2c0] sm:$0xff]
        %v5276 = vld [vmem:[#allocation8 + $0x2d8] sm:$0xff]
        %v5277 = vld [vmem:[#allocation8 + $0x2f0] sm:$0xff]
        %v5278 = vld [vmem:[#allocation8 + $0x308] sm:$0xff]
        %v5279 = vld [vmem:[#allocation8 + $0x320] sm:$0xff]
        %v5280 = vld [vmem:[#allocation8 + $0x338] sm:$0xff]
        %v5281 = vld [vmem:[#allocation8 + $0x350] sm:$0xff]
        %v5282 = vld [vmem:[#allocation8 + $0x368] sm:$0xff]
        %v5283 = vld [vmem:[#allocation8 + $0x380] sm:$0xff]
        %v5284 = vld [vmem:[#allocation8 + $0x398] sm:$0xff]
        %v5285 = vld [vmem:[#allocation8 + $0x3b0] sm:$0xff]
        %v5286 = vld [vmem:[#allocation8 + $0x3c8] sm:$0xff]
        %v5287 = vld [vmem:[#allocation8 + $0x3e0] sm:$0xff]
        %v5288 = vld [vmem:[#allocation8 + $0x3f8] sm:$0xff]
        %v5289 = vld [vmem:[#allocation8 + $0x410] sm:$0xff]
        %v5290 = vld [vmem:[#allocation8 + $0x428] sm:$0xff]
        %v5291 = vld [vmem:[#allocation8 + $0x440] sm:$0xff]
        %v5292 = vld [vmem:[#allocation8 + $0x458] sm:$0xff]
        %v5293 = vld [vmem:[#allocation8 + $0x470] sm:$0xff]
        %v5294 = vld [vmem:[#allocation8 + $0x488] sm:$0xff]
        %v5295 = vld [vmem:[#allocation8 + $0x4a0] sm:$0xff]
        %v5296 = vld [vmem:[#allocation8 + $0x4b8] sm:$0xff]
        %v5297 = vld [vmem:[#allocation8 + $0x4d0] sm:$0xff]
        %v5298 = vld [vmem:[#allocation8 + $0x4e8] sm:$0xff]
        %v5299 = vld [vmem:[#allocation8 + $0x500] sm:$0xff]
        %v5300 = vld [vmem:[#allocation8 + $0x518] sm:$0xff]
        %v5301 = vld [vmem:[#allocation8 + $0x530] sm:$0xff]
        %v5302 = vld [vmem:[#allocation8 + $0x548] sm:$0xff]
        %v5303 = vld [vmem:[#allocation8 + $0x560] sm:$0xff]
        %v5304 = vld [vmem:[#allocation8 + $0x578] sm:$0xff]
        %v5305 = vld [vmem:[#allocation8 + $0x590] sm:$0xff]
        %v5306 = vld [vmem:[#allocation8 + $0x5a8] sm:$0xff]
        %v5307 = vld [vmem:[#allocation8 + $0x5c0] sm:$0xff]
        %v5308 = vld [vmem:[#allocation8 + $0x5d8] sm:$0xff]
        %v5309 = vld [vmem:[#allocation8 + $0x5f0] sm:$0xff]
        %v5310 = vld [vmem:[#allocation8 + $0x608] sm:$0xff]
        %v5311 = vld [vmem:[#allocation8 + $0x620] sm:$0xff]
        %v5312 = vld [vmem:[#allocation8 + $0x638] sm:$0xff]
        %v5313 = vld [vmem:[#allocation8 + $0x650] sm:$0xff]
        %v5314 = vld [vmem:[#allocation8 + $0x668] sm:$0xff]
        %v5315 = vld [vmem:[#allocation8 + $0x680] sm:$0xff]
        %v5316 = vld [vmem:[#allocation8 + $0x698] sm:$0xff]
        %v5317 = vld [vmem:[#allocation8 + $0x6b0] sm:$0xff]
        %v5318 = vld [vmem:[#allocation8 + $0x6c8] sm:$0xff]
        %v5319 = vld [vmem:[#allocation8 + $0x6e0] sm:$0xff]
        %v5320 = vld [vmem:[#allocation8 + $0x6f8] sm:$0xff]
        %v5321 = vld [vmem:[#allocation8 + $0x710] sm:$0xff]
        %v5322 = vld [vmem:[#allocation8 + $0x728] sm:$0xff]
        %v5323 = vld [vmem:[#allocation8 + $0x740] sm:$0xff]
        %v5324 = vld [vmem:[#allocation8 + $0x758] sm:$0xff]
        %v5325 = vld [vmem:[#allocation8 + $0x770] sm:$0xff]
        %v5326 = vld [vmem:[#allocation8 + $0x788] sm:$0xff]
        %v5327 = vld [vmem:[#allocation8 + $0x7a0] sm:$0xff]
        %v5328 = vld [vmem:[#allocation8 + $0x7b8] sm:$0xff]
        %v5329 = vld [vmem:[#allocation8 + $0x7d0] sm:$0xff]
        %v5330 = vld [vmem:[#allocation8 + $0x7e8] sm:$0xff]
        %v5331 = vld [vmem:[#allocation8 + $0x800] sm:$0xff]
        %v5332 = vld [vmem:[#allocation8 + $0x818] sm:$0xff]
        %v5333 = vld [vmem:[#allocation8 + $0x830] sm:$0xff]
        %v5334 = vld [vmem:[#allocation8 + $0x848] sm:$0xff]
        %v5335 = vld [vmem:[#allocation8 + $0x860] sm:$0xff]
        %v5336 = vld [vmem:[#allocation8 + $0x878] sm:$0xff]
        %v5337 = vld [vmem:[#allocation8 + $0x890] sm:$0xff]
        %v5338 = vld [vmem:[#allocation8 + $0x8a8] sm:$0xff]
        %v5339 = vld [vmem:[#allocation8 + $0x8c0] sm:$0xff]
        %v5340 = vld [vmem:[#allocation8 + $0x8d8] sm:$0xff]
        %v5341 = vld [vmem:[#allocation8 + $0x8f0] sm:$0xff]
        %v5438 = vunpack.c.l.b16 %v5246
        %v5439 = vunpack.c.h.b16 %v5246
        %v5440 = vunpack.c.l.b16 %v5247
        %v5441 = vunpack.c.h.b16 %v5247
        %v5442 = vunpack.c.l.b16 %v5248
        %v5443 = vunpack.c.h.b16 %v5248
        %v5444 = vunpack.c.l.b16 %v5249
        %v5445 = vunpack.c.h.b16 %v5249
        %v5446 = vunpack.c.l.b16 %v5250
        %v5447 = vunpack.c.h.b16 %v5250
        %v5448 = vunpack.c.l.b16 %v5251
        %v5449 = vunpack.c.h.b16 %v5251
        %v5450 = vunpack.c.l.b16 %v5252
        %v5451 = vunpack.c.h.b16 %v5252
        %v5452 = vunpack.c.l.b16 %v5253
        %v5453 = vunpack.c.h.b16 %v5253
        %v5454 = vunpack.c.l.b16 %v5254
        %v5455 = vunpack.c.h.b16 %v5254
        %v5456 = vunpack.c.l.b16 %v5255
        %v5457 = vunpack.c.h.b16 %v5255
        %v5458 = vunpack.c.l.b16 %v5256
        %v5459 = vunpack.c.h.b16 %v5256
        %v5460 = vunpack.c.l.b16 %v5257
        %v5461 = vunpack.c.h.b16 %v5257
        %v5462 = vunpack.c.l.b16 %v5258
        %v5463 = vunpack.c.h.b16 %v5258
        %v5464 = vunpack.c.l.b16 %v5259
        %v5465 = vunpack.c.h.b16 %v5259
        %v5466 = vunpack.c.l.b16 %v5260
        %v5467 = vunpack.c.h.b16 %v5260
        %v5468 = vunpack.c.l.b16 %v5261
        %v5469 = vunpack.c.h.b16 %v5261
        %v5470 = vunpack.c.l.b16 %v5262
        %v5471 = vunpack.c.h.b16 %v5262
        %v5472 = vunpack.c.l.b16 %v5263
        %v5473 = vunpack.c.h.b16 %v5263
        %v5474 = vunpack.c.l.b16 %v5264
        %v5475 = vunpack.c.h.b16 %v5264
        %v5476 = vunpack.c.l.b16 %v5265
        %v5477 = vunpack.c.h.b16 %v5265
        %v5478 = vunpack.c.l.b16 %v5266
        %v5479 = vunpack.c.h.b16 %v5266
        %v5480 = vunpack.c.l.b16 %v5267
        %v5481 = vunpack.c.h.b16 %v5267
        %v5482 = vunpack.c.l.b16 %v5268
        %v5483 = vunpack.c.h.b16 %v5268
        %v5484 = vunpack.c.l.b16 %v5269
        %v5485 = vunpack.c.h.b16 %v5269
        %v5486 = vunpack.c.l.b16 %v5270
        %v5487 = vunpack.c.h.b16 %v5270
        %v5488 = vunpack.c.l.b16 %v5271
        %v5489 = vunpack.c.h.b16 %v5271
        %v5490 = vunpack.c.l.b16 %v5272
        %v5491 = vunpack.c.h.b16 %v5272
        %v5492 = vunpack.c.l.b16 %v5273
        %v5493 = vunpack.c.h.b16 %v5273
        %v5494 = vunpack.c.l.b16 %v5274
        %v5495 = vunpack.c.h.b16 %v5274
        %v5496 = vunpack.c.l.b16 %v5275
        %v5497 = vunpack.c.h.b16 %v5275
        %v5498 = vunpack.c.l.b16 %v5276
        %v5499 = vunpack.c.h.b16 %v5276
        %v5500 = vunpack.c.l.b16 %v5277
        %v5501 = vunpack.c.h.b16 %v5277
        %v5502 = vunpack.c.l.b16 %v5278
        %v5503 = vunpack.c.h.b16 %v5278
        %v5504 = vunpack.c.l.b16 %v5279
        %v5505 = vunpack.c.h.b16 %v5279
        %v5506 = vunpack.c.l.b16 %v5280
        %v5507 = vunpack.c.h.b16 %v5280
        %v5508 = vunpack.c.l.b16 %v5281
        %v5509 = vunpack.c.h.b16 %v5281
        %v5510 = vunpack.c.l.b16 %v5282
        %v5511 = vunpack.c.h.b16 %v5282
        %v5512 = vunpack.c.l.b16 %v5283
        %v5513 = vunpack.c.h.b16 %v5283
        %v5514 = vunpack.c.l.b16 %v5284
        %v5515 = vunpack.c.h.b16 %v5284
        %v5516 = vunpack.c.l.b16 %v5285
        %v5517 = vunpack.c.h.b16 %v5285
        %v5518 = vunpack.c.l.b16 %v5286
        %v5519 = vunpack.c.h.b16 %v5286
        %v5520 = vunpack.c.l.b16 %v5287
        %v5521 = vunpack.c.h.b16 %v5287
        %v5522 = vunpack.c.l.b16 %v5288
        %v5523 = vunpack.c.h.b16 %v5288
        %v5524 = vunpack.c.l.b16 %v5289
        %v5525 = vunpack.c.h.b16 %v5289
        %v5526 = vunpack.c.l.b16 %v5290
        %v5527 = vunpack.c.h.b16 %v5290
        %v5528 = vunpack.c.l.b16 %v5291
        %v5529 = vunpack.c.h.b16 %v5291
        %v5530 = vunpack.c.l.b16 %v5292
        %v5531 = vunpack.c.h.b16 %v5292
        %v5532 = vunpack.c.l.b16 %v5293
        %v5533 = vunpack.c.h.b16 %v5293
        %v5534 = vunpack.c.l.b16 %v5294
        %v5535 = vunpack.c.h.b16 %v5294
        %v5536 = vunpack.c.l.b16 %v5295
        %v5537 = vunpack.c.h.b16 %v5295
        %v5538 = vunpack.c.l.b16 %v5296
        %v5539 = vunpack.c.h.b16 %v5296
        %v5540 = vunpack.c.l.b16 %v5297
        %v5541 = vunpack.c.h.b16 %v5297
        %v5542 = vunpack.c.l.b16 %v5298
        %v5543 = vunpack.c.h.b16 %v5298
        %v5544 = vunpack.c.l.b16 %v5299
        %v5545 = vunpack.c.h.b16 %v5299
        %v5546 = vunpack.c.l.b16 %v5300
        %v5547 = vunpack.c.h.b16 %v5300
        %v5548 = vunpack.c.l.b16 %v5301
        %v5549 = vunpack.c.h.b16 %v5301
        %v5550 = vunpack.c.l.b16 %v5302
        %v5551 = vunpack.c.h.b16 %v5302
        %v5552 = vunpack.c.l.b16 %v5303
        %v5553 = vunpack.c.h.b16 %v5303
        %v5554 = vunpack.c.l.b16 %v5304
        %v5555 = vunpack.c.h.b16 %v5304
        %v5556 = vunpack.c.l.b16 %v5305
        %v5557 = vunpack.c.h.b16 %v5305
        %v5558 = vunpack.c.l.b16 %v5306
        %v5559 = vunpack.c.h.b16 %v5306
        %v5560 = vunpack.c.l.b16 %v5307
        %v5561 = vunpack.c.h.b16 %v5307
        %v5562 = vunpack.c.l.b16 %v5308
        %v5563 = vunpack.c.h.b16 %v5308
        %v5564 = vunpack.c.l.b16 %v5309
        %v5565 = vunpack.c.h.b16 %v5309
        %v5566 = vunpack.c.l.b16 %v5310
        %v5567 = vunpack.c.h.b16 %v5310
        %v5568 = vunpack.c.l.b16 %v5311
        %v5569 = vunpack.c.h.b16 %v5311
        %v5570 = vunpack.c.l.b16 %v5312
        %v5571 = vunpack.c.h.b16 %v5312
        %v5572 = vunpack.c.l.b16 %v5313
        %v5573 = vunpack.c.h.b16 %v5313
        %v5574 = vunpack.c.l.b16 %v5314
        %v5575 = vunpack.c.h.b16 %v5314
        %v5576 = vunpack.c.l.b16 %v5315
        %v5577 = vunpack.c.h.b16 %v5315
        %v5578 = vunpack.c.l.b16 %v5316
        %v5579 = vunpack.c.h.b16 %v5316
        %v5580 = vunpack.c.l.b16 %v5317
        %v5581 = vunpack.c.h.b16 %v5317
        %v5582 = vunpack.c.l.b16 %v5318
        %v5583 = vunpack.c.h.b16 %v5318
        %v5584 = vunpack.c.l.b16 %v5319
        %v5585 = vunpack.c.h.b16 %v5319
        %v5586 = vunpack.c.l.b16 %v5320
        %v5587 = vunpack.c.h.b16 %v5320
        %v5588 = vunpack.c.l.b16 %v5321
        %v5589 = vunpack.c.h.b16 %v5321
        %v5590 = vunpack.c.l.b16 %v5322
        %v5591 = vunpack.c.h.b16 %v5322
        %v5592 = vunpack.c.l.b16 %v5323
        %v5593 = vunpack.c.h.b16 %v5323
        %v5594 = vunpack.c.l.b16 %v5324
        %v5595 = vunpack.c.h.b16 %v5324
        %v5596 = vunpack.c.l.b16 %v5325
        %v5597 = vunpack.c.h.b16 %v5325
        %v5598 = vunpack.c.l.b16 %v5326
        %v5599 = vunpack.c.h.b16 %v5326
        %v5600 = vunpack.c.l.b16 %v5327
        %v5601 = vunpack.c.h.b16 %v5327
        %v5602 = vunpack.c.l.b16 %v5328
        %v5603 = vunpack.c.h.b16 %v5328
        %v5604 = vunpack.c.l.b16 %v5329
        %v5605 = vunpack.c.h.b16 %v5329
        %v5606 = vunpack.c.l.b16 %v5330
        %v5607 = vunpack.c.h.b16 %v5330
        %v5608 = vunpack.c.l.b16 %v5331
        %v5609 = vunpack.c.h.b16 %v5331
        %v5610 = vunpack.c.l.b16 %v5332
        %v5611 = vunpack.c.h.b16 %v5332
        %v5612 = vunpack.c.l.b16 %v5333
        %v5613 = vunpack.c.h.b16 %v5333
        %v5614 = vunpack.c.l.b16 %v5334
        %v5615 = vunpack.c.h.b16 %v5334
        %v5616 = vunpack.c.l.b16 %v5335
        %v5617 = vunpack.c.h.b16 %v5335
        %v5618 = vunpack.c.l.b16 %v5336
        %v5619 = vunpack.c.h.b16 %v5336
        %v5620 = vunpack.c.l.b16 %v5337
        %v5621 = vunpack.c.h.b16 %v5337
        %v5622 = vunpack.c.l.b16 %v5338
        %v5623 = vunpack.c.h.b16 %v5338
        %v5624 = vunpack.c.l.b16 %v5339
        %v5625 = vunpack.c.h.b16 %v5339
        %v5626 = vunpack.c.l.b16 %v5340
        %v5627 = vunpack.c.h.b16 %v5340
        %v5628 = vunpack.c.l.b16 %v5341
        %v5629 = vunpack.c.h.b16 %v5341
        %v5630 = vpack.c.b16 %v5440, %v5438
        %v5631 = vpack.c.b16 %v5441, %v5439
        %v5632 = vpack.c.b16 %v5444, %v5442
        %v5633 = vpack.c.b16 %v5445, %v5443
        %v5634 = vpack.c.b16 %v5448, %v5446
        %v5635 = vpack.c.b16 %v5449, %v5447
        %v5636 = vpack.c.b16 %v5452, %v5450
        %v5637 = vpack.c.b16 %v5453, %v5451
        %v5638 = vpack.c.b16 %v5456, %v5454
        %v5639 = vpack.c.b16 %v5457, %v5455
        %v5640 = vpack.c.b16 %v5460, %v5458
        %v5641 = vpack.c.b16 %v5461, %v5459
        %v5642 = vpack.c.b16 %v5464, %v5462
        %v5643 = vpack.c.b16 %v5465, %v5463
        %v5644 = vpack.c.b16 %v5468, %v5466
        %v5645 = vpack.c.b16 %v5469, %v5467
        %v5646 = vpack.c.b16 %v5472, %v5470
        %v5647 = vpack.c.b16 %v5473, %v5471
        %v5648 = vpack.c.b16 %v5476, %v5474
        %v5649 = vpack.c.b16 %v5477, %v5475
        %v5650 = vpack.c.b16 %v5480, %v5478
        %v5651 = vpack.c.b16 %v5481, %v5479
        %v5652 = vpack.c.b16 %v5484, %v5482
        %v5653 = vpack.c.b16 %v5485, %v5483
        %v5654 = vpack.c.b16 %v5488, %v5486
        %v5655 = vpack.c.b16 %v5489, %v5487
        %v5656 = vpack.c.b16 %v5492, %v5490
        %v5657 = vpack.c.b16 %v5493, %v5491
        %v5658 = vpack.c.b16 %v5496, %v5494
        %v5659 = vpack.c.b16 %v5497, %v5495
        %v5660 = vpack.c.b16 %v5500, %v5498
        %v5661 = vpack.c.b16 %v5501, %v5499
        %v5662 = vpack.c.b16 %v5504, %v5502
        %v5663 = vpack.c.b16 %v5505, %v5503
        %v5664 = vpack.c.b16 %v5508, %v5506
        %v5665 = vpack.c.b16 %v5509, %v5507
        %v5666 = vpack.c.b16 %v5512, %v5510
        %v5667 = vpack.c.b16 %v5513, %v5511
        %v5668 = vpack.c.b16 %v5516, %v5514
        %v5669 = vpack.c.b16 %v5517, %v5515
        %v5670 = vpack.c.b16 %v5520, %v5518
        %v5671 = vpack.c.b16 %v5521, %v5519
        %v5672 = vpack.c.b16 %v5524, %v5522
        %v5673 = vpack.c.b16 %v5525, %v5523
        %v5674 = vpack.c.b16 %v5528, %v5526
        %v5675 = vpack.c.b16 %v5529, %v5527
        %v5676 = vpack.c.b16 %v5532, %v5530
        %v5677 = vpack.c.b16 %v5533, %v5531
        %v5678 = vpack.c.b16 %v5536, %v5534
        %v5679 = vpack.c.b16 %v5537, %v5535
        %v5680 = vpack.c.b16 %v5540, %v5538
        %v5681 = vpack.c.b16 %v5541, %v5539
        %v5682 = vpack.c.b16 %v5544, %v5542
        %v5683 = vpack.c.b16 %v5545, %v5543
        %v5684 = vpack.c.b16 %v5548, %v5546
        %v5685 = vpack.c.b16 %v5549, %v5547
        %v5686 = vpack.c.b16 %v5552, %v5550
        %v5687 = vpack.c.b16 %v5553, %v5551
        %v5688 = vpack.c.b16 %v5556, %v5554
        %v5689 = vpack.c.b16 %v5557, %v5555
        %v5690 = vpack.c.b16 %v5560, %v5558
        %v5691 = vpack.c.b16 %v5561, %v5559
        %v5692 = vpack.c.b16 %v5564, %v5562
        %v5693 = vpack.c.b16 %v5565, %v5563
        %v5694 = vpack.c.b16 %v5568, %v5566
        %v5695 = vpack.c.b16 %v5569, %v5567
        %v5696 = vpack.c.b16 %v5572, %v5570
        %v5697 = vpack.c.b16 %v5573, %v5571
        %v5698 = vpack.c.b16 %v5576, %v5574
        %v5699 = vpack.c.b16 %v5577, %v5575
        %v5700 = vpack.c.b16 %v5580, %v5578
        %v5701 = vpack.c.b16 %v5581, %v5579
        %v5702 = vpack.c.b16 %v5584, %v5582
        %v5703 = vpack.c.b16 %v5585, %v5583
        %v5704 = vpack.c.b16 %v5588, %v5586
        %v5705 = vpack.c.b16 %v5589, %v5587
        %v5706 = vpack.c.b16 %v5592, %v5590
        %v5707 = vpack.c.b16 %v5593, %v5591
        %v5708 = vpack.c.b16 %v5596, %v5594
        %v5709 = vpack.c.b16 %v5597, %v5595
        %v5710 = vpack.c.b16 %v5600, %v5598
        %v5711 = vpack.c.b16 %v5601, %v5599
        %v5712 = vpack.c.b16 %v5604, %v5602
        %v5713 = vpack.c.b16 %v5605, %v5603
        %v5714 = vpack.c.b16 %v5608, %v5606
        %v5715 = vpack.c.b16 %v5609, %v5607
        %v5716 = vpack.c.b16 %v5612, %v5610
        %v5717 = vpack.c.b16 %v5613, %v5611
        %v5718 = vpack.c.b16 %v5616, %v5614
        %v5719 = vpack.c.b16 %v5617, %v5615
        %v5720 = vpack.c.b16 %v5620, %v5618
        %v5721 = vpack.c.b16 %v5621, %v5619
        %v5722 = vpack.c.b16 %v5624, %v5622
        %v5723 = vpack.c.b16 %v5625, %v5623
        %v5724 = vpack.c.b16 %v5628, %v5626
        %v5725 = vpack.c.b16 %v5629, %v5627
        %5822 = vmatprep.subr.bf16.mxu0 %v5631
        %5823 = vmatpush1.bf16.msra.mxu0 %v5630
        %5824 = vmatprep.subr.bf16.mxu0 %v5633
        %5825 = vmatpush1.bf16.msra.mxu0 %v5632
        %5826 = vmatprep.subr.bf16.mxu0 %v5635
        %5827 = vmatpush1.bf16.msra.mxu0 %v5634
        %5828 = vmatprep.subr.bf16.mxu0 %v5637
        %5829 = vmatpush1.bf16.msra.mxu0 %v5636
        %5830 = vmatprep.subr.bf16.mxu0 %v5639
        %5831 = vmatpush1.bf16.msra.mxu0 %v5638
        %5832 = vmatprep.subr.bf16.mxu0 %v5641
        %5833 = vmatpush1.bf16.msra.mxu0 %v5640
        %5834 = vmatprep.subr.bf16.mxu0 %v5643
        %5835 = vmatpush1.bf16.msra.mxu0 %v5642
        %5836 = vmatprep.subr.bf16.mxu0 %v5645
        %5837 = vmatpush1.bf16.msra.mxu0 %v5644
        %5838 = vmatprep.subr.bf16.mxu0 %v5647
        %5839 = vmatpush1.bf16.msra.mxu0 %v5646
        %5840 = vmatprep.subr.bf16.mxu0 %v5649
        %5841 = vmatpush1.bf16.msra.mxu0 %v5648
        %5842 = vmatprep.subr.bf16.mxu0 %v5651
        %5843 = vmatpush1.bf16.msra.mxu0 %v5650
        %5844 = vmatprep.subr.bf16.mxu0 %v5653
        %5845 = vmatpush1.bf16.msra.mxu0 %v5652
        %5846 = vmatprep.subr.bf16.mxu0 %v5655
        %5847 = vmatpush1.bf16.msra.mxu0 %v5654
        %5848 = vmatprep.subr.bf16.mxu0 %v5657
        %5849 = vmatpush1.bf16.msra.mxu0 %v5656
        %5850 = vmatprep.subr.bf16.mxu0 %v5659
        %5851 = vmatpush1.bf16.msra.mxu0 %v5658
        %5852 = vmatprep.subr.bf16.mxu0 %v5661
        %5853 = vmatpush1.bf16.msra.mxu0 %v5660
        %5854 = vmatprep.mubr.bf16.mxu0 %v2336
        %5855 = vmatmul.mubr.bf16.gmra.mrb[0].mxu0 %v2335
        %v5856 = vpop.f32.mrb[0].mxu0
        %v5857 = vadd.f32 0.0, %v5856
        %v5858 = vpop.f32.mrb[0].mxu0
        %v5859 = vadd.f32 0.0, %v5858
        %v5860 = vpop.f32.mrb[0].mxu0
        %v5861 = vadd.f32 0.0, %v5860
        %v5862 = vpop.f32.mrb[0].mxu0
        %v5863 = vadd.f32 0.0, %v5862
        %5864 = vmatprep.mubr.bf16.mxu0 %v2342
        %5865 = vmatmul.mubr.bf16.gmra.mrb[0].mxu0 %v2341
        %v5866 = vpop.f32.mrb[0].mxu0
        %v5867 = vadd.f32 0.0, %v5866
        %v5868 = vpop.f32.mrb[0].mxu0
        %v5869 = vadd.f32 0.0, %v5868
        %v5870 = vpop.f32.mrb[0].mxu0
        %v5871 = vadd.f32 0.0, %v5870
        %v5872 = vpop.f32.mrb[0].mxu0
        %v5873 = vadd.f32 0.0, %v5872
        %5874 = vmatprep.mubr.bf16.mxu0 %v2348
        %5875 = vmatmul.mubr.bf16.gmra.mrb[0].mxu0 %v2347
        %v5876 = vpop.f32.mrb[0].mxu0
        %v5877 = vadd.f32 0.0, %v5876
        %v5878 = vpop.f32.mrb[0].mxu0
        %v5879 = vadd.f32 0.0, %v5878
        %v5880 = vpop.f32.mrb[0].mxu0
        %v5881 = vadd.f32 0.0, %v5880
        %v5882 = vpop.f32.mrb[0].mxu0
        %v5883 = vadd.f32 0.0, %v5882
        %5884 = vmatprep.mubr.bf16.mxu0 %v2354
        %5885 = vmatmul.mubr.bf16.gmra.mrb[0].mxu0 %v2353
        %v5886 = vpop.f32.mrb[0].mxu0
        %v5887 = vadd.f32 0.0, %v5886
        %v5888 = vpop.f32.mrb[0].mxu0
        %v5889 = vadd.f32 0.0, %v5888
        %v5890 = vpop.f32.mrb[0].mxu0
        %v5891 = vadd.f32 0.0, %v5890
        %v5892 = vpop.f32.mrb[0].mxu0
        %v5893 = vadd.f32 0.0, %v5892
        %5894 = vmatprep.mubr.bf16.mxu0 %v2360
        %5895 = vmatmul.mubr.bf16.gmra.mrb[0].mxu0 %v2359
        %v5896 = vpop.f32.mrb[0].mxu0
        %v5897 = vadd.f32 0.0, %v5896
        %v5898 = vpop.f32.mrb[0].mxu0
        %v5899 = vadd.f32 0.0, %v5898
        %v5900 = vpop.f32.mrb[0].mxu0
        %v5901 = vadd.f32 0.0, %v5900
        %v5902 = vpop.f32.mrb[0].mxu0
        %v5903 = vadd.f32 0.0, %v5902
        %5904 = vmatprep.mubr.bf16.mxu0 %v2366
        %5905 = vmatmul.mubr.bf16.gmra.mrb[0].mxu0 %v2365
        %v5906 = vpop.f32.mrb[0].mxu0
        %v5907 = vadd.f32 0.0, %v5906
        %v5908 = vpop.f32.mrb[0].mxu0
        %v5909 = vadd.f32 0.0, %v5908
        %v5910 = vpop.f32.mrb[0].mxu0
        %v5911 = vadd.f32 0.0, %v5910
        %v5912 = vpop.f32.mrb[0].mxu0
        %v5913 = vadd.f32 0.0, %v5912
        %5914 = vmatprep.mubr.bf16.mxu0 %v2372
        %5915 = vmatmul.mubr.bf16.gmra.mrb[0].mxu0 %v2371
        %v5916 = vpop.f32.mrb[0].mxu0
        %v5917 = vadd.f32 0.0, %v5916
        %v5918 = vpop.f32.mrb[0].mxu0
        %v5919 = vadd.f32 0.0, %v5918
        %v5920 = vpop.f32.mrb[0].mxu0
        %v5921 = vadd.f32 0.0, %v5920
        %v5922 = vpop.f32.mrb[0].mxu0
        %v5923 = vadd.f32 0.0, %v5922
        %5924 = vmatprep.mubr.bf16.mxu0 %v2378
        %5925 = vmatmul.mubr.bf16.gmra.mrb[0].mxu0 %v2377
        %v5926 = vpop.f32.mrb[0].mxu0
        %v5927 = vadd.f32 0.0, %v5926
        %v5928 = vpop.f32.mrb[0].mxu0
        %v5929 = vadd.f32 0.0, %v5928
        %v5930 = vpop.f32.mrb[0].mxu0
        %v5931 = vadd.f32 0.0, %v5930
        %v5932 = vpop.f32.mrb[0].mxu0
        %v5933 = vadd.f32 0.0, %v5932
        %5934 = vmatprep.mubr.bf16.mxu0 %v2384
        %5935 = vmatmul.mubr.bf16.gmra.mrb[0].mxu0 %v2383
        %v5936 = vpop.f32.mrb[0].mxu0
        %v5937 = vadd.f32 0.0, %v5936
        %v5938 = vpop.f32.mrb[0].mxu0
        %v5939 = vadd.f32 0.0, %v5938
        %v5940 = vpop.f32.mrb[0].mxu0
        %v5941 = vadd.f32 0.0, %v5940
        %v5942 = vpop.f32.mrb[0].mxu0
        %v5943 = vadd.f32 0.0, %v5942
        %5944 = vmatprep.mubr.bf16.mxu0 %v2390
        %5945 = vmatmul.mubr.bf16.gmra.mrb[0].mxu0 %v2389
        %v5946 = vpop.f32.mrb[0].mxu0
        %v5947 = vadd.f32 0.0, %v5946
        %v5948 = vpop.f32.mrb[0].mxu0
        %v5949 = vadd.f32 0.0, %v5948
        %v5950 = vpop.f32.mrb[0].mxu0
        %v5951 = vadd.f32 0.0, %v5950
        %v5952 = vpop.f32.mrb[0].mxu0
        %v5953 = vadd.f32 0.0, %v5952
        %5954 = vmatprep.mubr.bf16.mxu0 %v2396
        %5955 = vmatmul.mubr.bf16.gmra.mrb[0].mxu0 %v2395
        %v5956 = vpop.f32.mrb[0].mxu0
        %v5957 = vadd.f32 0.0, %v5956
        %v5958 = vpop.f32.mrb[0].mxu0
        %v5959 = vadd.f32 0.0, %v5958
        %v5960 = vpop.f32.mrb[0].mxu0
        %v5961 = vadd.f32 0.0, %v5960
        %v5962 = vpop.f32.mrb[0].mxu0
        %v5963 = vadd.f32 0.0, %v5962
        %5964 = vmatprep.mubr.bf16.mxu0 %v2402
        %5965 = vmatmul.mubr.bf16.gmra.mrb[0].mxu0 %v2401
        %v5966 = vpop.f32.mrb[0].mxu0
        %v5967 = vadd.f32 0.0, %v5966
        %v5968 = vpop.f32.mrb[0].mxu0
        %v5969 = vadd.f32 0.0, %v5968
        %v5970 = vpop.f32.mrb[0].mxu0
        %v5971 = vadd.f32 0.0, %v5970
        %v5972 = vpop.f32.mrb[0].mxu0
        %v5973 = vadd.f32 0.0, %v5972
        %5974 = vmatprep.mubr.bf16.mxu0 %v2408
        %5975 = vmatmul.mubr.bf16.gmra.mrb[0].mxu0 %v2407
        %v5976 = vpop.f32.mrb[0].mxu0
        %v5977 = vadd.f32 0.0, %v5976
        %v5978 = vpop.f32.mrb[0].mxu0
        %v5979 = vadd.f32 0.0, %v5978
        %v5980 = vpop.f32.mrb[0].mxu0
        %v5981 = vadd.f32 0.0, %v5980
        %v5982 = vpop.f32.mrb[0].mxu0
        %v5983 = vadd.f32 0.0, %v5982
        %5984 = vmatprep.mubr.bf16.mxu0 %v2414
        %5985 = vmatmul.mubr.bf16.gmra.mrb[0].mxu0 %v2413
        %v5986 = vpop.f32.mrb[0].mxu0
        %v5987 = vadd.f32 0.0, %v5986
        %v5988 = vpop.f32.mrb[0].mxu0
        %v5989 = vadd.f32 0.0, %v5988
        %v5990 = vpop.f32.mrb[0].mxu0
        %v5991 = vadd.f32 0.0, %v5990
        %v5992 = vpop.f32.mrb[0].mxu0
        %v5993 = vadd.f32 0.0, %v5992
        %5994 = vmatprep.mubr.bf16.mxu0 %v2420
        %5995 = vmatmul.mubr.bf16.gmra.mrb[0].mxu0 %v2419
        %v5996 = vpop.f32.mrb[0].mxu0
        %v5997 = vadd.f32 0.0, %v5996
        %v5998 = vpop.f32.mrb[0].mxu0
        %v5999 = vadd.f32 0.0, %v5998
        %v6000 = vpop.f32.mrb[0].mxu0
        %v6001 = vadd.f32 0.0, %v6000
        %v6002 = vpop.f32.mrb[0].mxu0
        %v6003 = vadd.f32 0.0, %v6002
        %6004 = vmatprep.mubr.bf16.mxu0 %v2426
        %6005 = vmatmul.mubr.bf16.gmra.mrb[0].mxu0 %v2425
        %v6006 = vpop.f32.mrb[0].mxu0
        %v6007 = vadd.f32 0.0, %v6006
        %v6008 = vpop.f32.mrb[0].mxu0
        %v6009 = vadd.f32 0.0, %v6008
        %v6010 = vpop.f32.mrb[0].mxu0
        %v6011 = vadd.f32 0.0, %v6010
        %v6012 = vpop.f32.mrb[0].mxu0
        %v6013 = vadd.f32 0.0, %v6012
        %6014 = vdwg.mxu0
        %6015 = vmatprep.subr.bf16.mxu0 %v5663
        %6016 = vmatpush1.bf16.msra.mxu0 %v5662
        %6017 = vmatprep.subr.bf16.mxu0 %v5665
        %6018 = vmatpush1.bf16.msra.mxu0 %v5664
        %6019 = vmatprep.subr.bf16.mxu0 %v5667
        %6020 = vmatpush1.bf16.msra.mxu0 %v5666
        %6021 = vmatprep.subr.bf16.mxu0 %v5669
        %6022 = vmatpush1.bf16.msra.mxu0 %v5668
        %6023 = vmatprep.subr.bf16.mxu0 %v5671
        %6024 = vmatpush1.bf16.msra.mxu0 %v5670
        %6025 = vmatprep.subr.bf16.mxu0 %v5673
        %6026 = vmatpush1.bf16.msra.mxu0 %v5672
        %6027 = vmatprep.subr.bf16.mxu0 %v5675
        %6028 = vmatpush1.bf16.msra.mxu0 %v5674
        %6029 = vmatprep.subr.bf16.mxu0 %v5677
        %6030 = vmatpush1.bf16.msra.mxu0 %v5676
        %6031 = vmatprep.subr.bf16.mxu0 %v5679
        %6032 = vmatpush1.bf16.msra.mxu0 %v5678
        %6033 = vmatprep.subr.bf16.mxu0 %v5681
        %6034 = vmatpush1.bf16.msra.mxu0 %v5680
        %6035 = vmatprep.subr.bf16.mxu0 %v5683
        %6036 = vmatpush1.bf16.msra.mxu0 %v5682
        %6037 = vmatprep.subr.bf16.mxu0 %v5685
        %6038 = vmatpush1.bf16.msra.mxu0 %v5684
        %6039 = vmatprep.subr.bf16.mxu0 %v5687
        %6040 = vmatpush1.bf16.msra.mxu0 %v5686
        %6041 = vmatprep.subr.bf16.mxu0 %v5689
        %6042 = vmatpush1.bf16.msra.mxu0 %v5688
        %6043 = vmatprep.subr.bf16.mxu0 %v5691
        %6044 = vmatpush1.bf16.msra.mxu0 %v5690
        %6045 = vmatprep.subr.bf16.mxu0 %v5693
        %6046 = vmatpush1.bf16.msra.mxu0 %v5692
        %6047 = vmatprep.mubr.bf16.mxu0 %v2338
        %6048 = vmatmul.mubr.bf16.gmra.mrb[0].mxu0 %v2337
        %v6049 = vpop.f32.mrb[0].mxu0
        %v6050 = vadd.f32 %v5857, %v6049
        %v6051 = vpop.f32.mrb[0].mxu0
        %v6052 = vadd.f32 %v5859, %v6051
        %v6053 = vpop.f32.mrb[0].mxu0
        %v6054 = vadd.f32 %v5861, %v6053
        %v6055 = vpop.f32.mrb[0].mxu0
        %v6056 = vadd.f32 %v5863, %v6055
        %6057 = vmatprep.mubr.bf16.mxu0 %v2344
        %6058 = vmatmul.mubr.bf16.gmra.mrb[0].mxu0 %v2343
        %v6059 = vpop.f32.mrb[0].mxu0
        %v6060 = vadd.f32 %v5867, %v6059
        %v6061 = vpop.f32.mrb[0].mxu0
        %v6062 = vadd.f32 %v5869, %v6061
        %v6063 = vpop.f32.mrb[0].mxu0
        %v6064 = vadd.f32 %v5871, %v6063
        %v6065 = vpop.f32.mrb[0].mxu0
        %v6066 = vadd.f32 %v5873, %v6065
        %6067 = vmatprep.mubr.bf16.mxu0 %v2350
        %6068 = vmatmul.mubr.bf16.gmra.mrb[0].mxu0 %v2349
        %v6069 = vpop.f32.mrb[0].mxu0
        %v6070 = vadd.f32 %v5877, %v6069
        %v6071 = vpop.f32.mrb[0].mxu0
        %v6072 = vadd.f32 %v5879, %v6071
        %v6073 = vpop.f32.mrb[0].mxu0
        %v6074 = vadd.f32 %v5881, %v6073
        %v6075 = vpop.f32.mrb[0].mxu0
        %v6076 = vadd.f32 %v5883, %v6075
        %6077 = vmatprep.mubr.bf16.mxu0 %v2356
        %6078 = vmatmul.mubr.bf16.gmra.mrb[0].mxu0 %v2355
        %v6079 = vpop.f32.mrb[0].mxu0
        %v6080 = vadd.f32 %v5887, %v6079
        %v6081 = vpop.f32.mrb[0].mxu0
        %v6082 = vadd.f32 %v5889, %v6081
        %v6083 = vpop.f32.mrb[0].mxu0
        %v6084 = vadd.f32 %v5891, %v6083
        %v6085 = vpop.f32.mrb[0].mxu0
        %v6086 = vadd.f32 %v5893, %v6085
        %6087 = vmatprep.mubr.bf16.mxu0 %v2362
        %6088 = vmatmul.mubr.bf16.gmra.mrb[0].mxu0 %v2361
        %v6089 = vpop.f32.mrb[0].mxu0
        %v6090 = vadd.f32 %v5897, %v6089
        %v6091 = vpop.f32.mrb[0].mxu0
        %v6092 = vadd.f32 %v5899, %v6091
        %v6093 = vpop.f32.mrb[0].mxu0
        %v6094 = vadd.f32 %v5901, %v6093
        %v6095 = vpop.f32.mrb[0].mxu0
        %v6096 = vadd.f32 %v5903, %v6095
        %6097 = vmatprep.mubr.bf16.mxu0 %v2368
        %6098 = vmatmul.mubr.bf16.gmra.mrb[0].mxu0 %v2367
        %v6099 = vpop.f32.mrb[0].mxu0
        %v6100 = vadd.f32 %v5907, %v6099
        %v6101 = vpop.f32.mrb[0].mxu0
        %v6102 = vadd.f32 %v5909, %v6101
        %v6103 = vpop.f32.mrb[0].mxu0
        %v6104 = vadd.f32 %v5911, %v6103
        %v6105 = vpop.f32.mrb[0].mxu0
        %v6106 = vadd.f32 %v5913, %v6105
        %6107 = vmatprep.mubr.bf16.mxu0 %v2374
        %6108 = vmatmul.mubr.bf16.gmra.mrb[0].mxu0 %v2373
        %v6109 = vpop.f32.mrb[0].mxu0
        %v6110 = vadd.f32 %v5917, %v6109
        %v6111 = vpop.f32.mrb[0].mxu0
        %v6112 = vadd.f32 %v5919, %v6111
        %v6113 = vpop.f32.mrb[0].mxu0
        %v6114 = vadd.f32 %v5921, %v6113
        %v6115 = vpop.f32.mrb[0].mxu0
        %v6116 = vadd.f32 %v5923, %v6115
        %6117 = vmatprep.mubr.bf16.mxu0 %v2380
        %6118 = vmatmul.mubr.bf16.gmra.mrb[0].mxu0 %v2379
        %v6119 = vpop.f32.mrb[0].mxu0
        %v6120 = vadd.f32 %v5927, %v6119
        %v6121 = vpop.f32.mrb[0].mxu0
        %v6122 = vadd.f32 %v5929, %v6121
        %v6123 = vpop.f32.mrb[0].mxu0
        %v6124 = vadd.f32 %v5931, %v6123
        %v6125 = vpop.f32.mrb[0].mxu0
        %v6126 = vadd.f32 %v5933, %v6125
        %6127 = vmatprep.mubr.bf16.mxu0 %v2386
        %6128 = vmatmul.mubr.bf16.gmra.mrb[0].mxu0 %v2385
        %v6129 = vpop.f32.mrb[0].mxu0
        %v6130 = vadd.f32 %v5937, %v6129
        %v6131 = vpop.f32.mrb[0].mxu0
        %v6132 = vadd.f32 %v5939, %v6131
        %v6133 = vpop.f32.mrb[0].mxu0
        %v6134 = vadd.f32 %v5941, %v6133
        %v6135 = vpop.f32.mrb[0].mxu0
        %v6136 = vadd.f32 %v5943, %v6135
        %6137 = vmatprep.mubr.bf16.mxu0 %v2392
        %6138 = vmatmul.mubr.bf16.gmra.mrb[0].mxu0 %v2391
        %v6139 = vpop.f32.mrb[0].mxu0
        %v6140 = vadd.f32 %v5947, %v6139
        %v6141 = vpop.f32.mrb[0].mxu0
        %v6142 = vadd.f32 %v5949, %v6141
        %v6143 = vpop.f32.mrb[0].mxu0
        %v6144 = vadd.f32 %v5951, %v6143
        %v6145 = vpop.f32.mrb[0].mxu0
        %v6146 = vadd.f32 %v5953, %v6145
        %6147 = vmatprep.mubr.bf16.mxu0 %v2398
        %6148 = vmatmul.mubr.bf16.gmra.mrb[0].mxu0 %v2397
        %v6149 = vpop.f32.mrb[0].mxu0
        %v6150 = vadd.f32 %v5957, %v6149
        %v6151 = vpop.f32.mrb[0].mxu0
        %v6152 = vadd.f32 %v5959, %v6151
        %v6153 = vpop.f32.mrb[0].mxu0
        %v6154 = vadd.f32 %v5961, %v6153
        %v6155 = vpop.f32.mrb[0].mxu0
        %v6156 = vadd.f32 %v5963, %v6155
        %6157 = vmatprep.mubr.bf16.mxu0 %v2404
        %6158 = vmatmul.mubr.bf16.gmra.mrb[0].mxu0 %v2403
        %v6159 = vpop.f32.mrb[0].mxu0
        %v6160 = vadd.f32 %v5967, %v6159
        %v6161 = vpop.f32.mrb[0].mxu0
        %v6162 = vadd.f32 %v5969, %v6161
        %v6163 = vpop.f32.mrb[0].mxu0
        %v6164 = vadd.f32 %v5971, %v6163
        %v6165 = vpop.f32.mrb[0].mxu0
        %v6166 = vadd.f32 %v5973, %v6165
        %6167 = vmatprep.mubr.bf16.mxu0 %v2410
        %6168 = vmatmul.mubr.bf16.gmra.mrb[0].mxu0 %v2409
        %v6169 = vpop.f32.mrb[0].mxu0
        %v6170 = vadd.f32 %v5977, %v6169
        %v6171 = vpop.f32.mrb[0].mxu0
        %v6172 = vadd.f32 %v5979, %v6171
        %v6173 = vpop.f32.mrb[0].mxu0
        %v6174 = vadd.f32 %v5981, %v6173
        %v6175 = vpop.f32.mrb[0].mxu0
        %v6176 = vadd.f32 %v5983, %v6175
        %6177 = vmatprep.mubr.bf16.mxu0 %v2416
        %6178 = vmatmul.mubr.bf16.gmra.mrb[0].mxu0 %v2415
        %v6179 = vpop.f32.mrb[0].mxu0
        %v6180 = vadd.f32 %v5987, %v6179
        %v6181 = vpop.f32.mrb[0].mxu0
        %v6182 = vadd.f32 %v5989, %v6181
        %v6183 = vpop.f32.mrb[0].mxu0
        %v6184 = vadd.f32 %v5991, %v6183
        %v6185 = vpop.f32.mrb[0].mxu0
        %v6186 = vadd.f32 %v5993, %v6185
        %6187 = vmatprep.mubr.bf16.mxu0 %v2422
        %6188 = vmatmul.mubr.bf16.gmra.mrb[0].mxu0 %v2421
        %v6189 = vpop.f32.mrb[0].mxu0
        %v6190 = vadd.f32 %v5997, %v6189
        %v6191 = vpop.f32.mrb[0].mxu0
        %v6192 = vadd.f32 %v5999, %v6191
        %v6193 = vpop.f32.mrb[0].mxu0
        %v6194 = vadd.f32 %v6001, %v6193
        %v6195 = vpop.f32.mrb[0].mxu0
        %v6196 = vadd.f32 %v6003, %v6195
        %6197 = vmatprep.mubr.bf16.mxu0 %v2428
        %6198 = vmatmul.mubr.bf16.gmra.mrb[0].mxu0 %v2427
        %v6199 = vpop.f32.mrb[0].mxu0
        %v6200 = vadd.f32 %v6007, %v6199
        %v6201 = vpop.f32.mrb[0].mxu0
        %v6202 = vadd.f32 %v6009, %v6201
        %v6203 = vpop.f32.mrb[0].mxu0
        %v6204 = vadd.f32 %v6011, %v6203
        %v6205 = vpop.f32.mrb[0].mxu0
        %v6206 = vadd.f32 %v6013, %v6205
        %6207 = vdwg.mxu0
        %6208 = vmatprep.subr.bf16.mxu0 %v5695
        %6209 = vmatpush1.bf16.msra.mxu0 %v5694
        %6210 = vmatprep.subr.bf16.mxu0 %v5697
        %6211 = vmatpush1.bf16.msra.mxu0 %v5696
        %6212 = vmatprep.subr.bf16.mxu0 %v5699
        %6213 = vmatpush1.bf16.msra.mxu0 %v5698
        %6214 = vmatprep.subr.bf16.mxu0 %v5701
        %6215 = vmatpush1.bf16.msra.mxu0 %v5700
        %6216 = vmatprep.subr.bf16.mxu0 %v5703
        %6217 = vmatpush1.bf16.msra.mxu0 %v5702
        %6218 = vmatprep.subr.bf16.mxu0 %v5705
        %6219 = vmatpush1.bf16.msra.mxu0 %v5704
        %6220 = vmatprep.subr.bf16.mxu0 %v5707
        %6221 = vmatpush1.bf16.msra.mxu0 %v5706
        %6222 = vmatprep.subr.bf16.mxu0 %v5709
        %6223 = vmatpush1.bf16.msra.mxu0 %v5708
        %6224 = vmatprep.subr.bf16.mxu0 %v5711
        %6225 = vmatpush1.bf16.msra.mxu0 %v5710
        %6226 = vmatprep.subr.bf16.mxu0 %v5713
        %6227 = vmatpush1.bf16.msra.mxu0 %v5712
        %6228 = vmatprep.subr.bf16.mxu0 %v5715
        %6229 = vmatpush1.bf16.msra.mxu0 %v5714
        %6230 = vmatprep.subr.bf16.mxu0 %v5717
        %6231 = vmatpush1.bf16.msra.mxu0 %v5716
        %6232 = vmatprep.subr.bf16.mxu0 %v5719
        %6233 = vmatpush1.bf16.msra.mxu0 %v5718
        %6234 = vmatprep.subr.bf16.mxu0 %v5721
        %6235 = vmatpush1.bf16.msra.mxu0 %v5720
        %6236 = vmatprep.subr.bf16.mxu0 %v5723
        %6237 = vmatpush1.bf16.msra.mxu0 %v5722
        %6238 = vmatprep.subr.bf16.mxu0 %v5725
        %6239 = vmatpush1.bf16.msra.mxu0 %v5724
        %6240 = vmatprep.mubr.bf16.mxu0 %v2340
        %6241 = vmatmul.mubr.bf16.gmra.mrb[0].mxu0 %v2339
        %v6242 = vpop.f32.mrb[0].mxu0
        %v6243 = vadd.f32 %v6050, %v6242
        %v6244 = vpop.f32.mrb[0].mxu0
        %v6245 = vadd.f32 %v6052, %v6244
        %v6246 = vpop.f32.mrb[0].mxu0
        %v6247 = vadd.f32 %v6054, %v6246
        %v6248 = vpop.f32.mrb[0].mxu0
        %v6249 = vadd.f32 %v6056, %v6248
        %6250 = vmatprep.mubr.bf16.mxu0 %v2346
        %6251 = vmatmul.mubr.bf16.gmra.mrb[0].mxu0 %v2345
        %v6252 = vpop.f32.mrb[0].mxu0
        %v6253 = vadd.f32 %v6060, %v6252
        %v6254 = vpop.f32.mrb[0].mxu0
        %v6255 = vadd.f32 %v6062, %v6254
        %v6256 = vpop.f32.mrb[0].mxu0
        %v6257 = vadd.f32 %v6064, %v6256
        %v6258 = vpop.f32.mrb[0].mxu0
        %v6259 = vadd.f32 %v6066, %v6258
        %6260 = vmatprep.mubr.bf16.mxu0 %v2352
        %6261 = vmatmul.mubr.bf16.gmra.mrb[0].mxu0 %v2351
        %v6262 = vpop.f32.mrb[0].mxu0
        %v6263 = vadd.f32 %v6070, %v6262
        %v6264 = vpop.f32.mrb[0].mxu0
        %v6265 = vadd.f32 %v6072, %v6264
        %v6266 = vpop.f32.mrb[0].mxu0
        %v6267 = vadd.f32 %v6074, %v6266
        %v6268 = vpop.f32.mrb[0].mxu0
        %v6269 = vadd.f32 %v6076, %v6268
        %6270 = vmatprep.mubr.bf16.mxu0 %v2358
        %6271 = vmatmul.mubr.bf16.gmra.mrb[0].mxu0 %v2357
        %v6272 = vpop.f32.mrb[0].mxu0
        %v6273 = vadd.f32 %v6080, %v6272
        %v6274 = vpop.f32.mrb[0].mxu0
        %v6275 = vadd.f32 %v6082, %v6274
        %v6276 = vpop.f32.mrb[0].mxu0
        %v6277 = vadd.f32 %v6084, %v6276
        %v6278 = vpop.f32.mrb[0].mxu0
        %v6279 = vadd.f32 %v6086, %v6278
        %6280 = vmatprep.mubr.bf16.mxu0 %v2364
        %6281 = vmatmul.mubr.bf16.gmra.mrb[0].mxu0 %v2363
        %v6282 = vpop.f32.mrb[0].mxu0
        %v6283 = vadd.f32 %v6090, %v6282
        %v6284 = vpop.f32.mrb[0].mxu0
        %v6285 = vadd.f32 %v6092, %v6284
        %v6286 = vpop.f32.mrb[0].mxu0
        %v6287 = vadd.f32 %v6094, %v6286
        %v6288 = vpop.f32.mrb[0].mxu0
        %v6289 = vadd.f32 %v6096, %v6288
        %6290 = vmatprep.mubr.bf16.mxu0 %v2370
        %6291 = vmatmul.mubr.bf16.gmra.mrb[0].mxu0 %v2369
        %v6292 = vpop.f32.mrb[0].mxu0
        %v6293 = vadd.f32 %v6100, %v6292
        %v6294 = vpop.f32.mrb[0].mxu0
        %v6295 = vadd.f32 %v6102, %v6294
        %v6296 = vpop.f32.mrb[0].mxu0
        %v6297 = vadd.f32 %v6104, %v6296
        %v6298 = vpop.f32.mrb[0].mxu0
        %v6299 = vadd.f32 %v6106, %v6298
        %6300 = vmatprep.mubr.bf16.mxu0 %v2376
        %6301 = vmatmul.mubr.bf16.gmra.mrb[0].mxu0 %v2375
        %v6302 = vpop.f32.mrb[0].mxu0
        %v6303 = vadd.f32 %v6110, %v6302
        %v6304 = vpop.f32.mrb[0].mxu0
        %v6305 = vadd.f32 %v6112, %v6304
        %v6306 = vpop.f32.mrb[0].mxu0
        %v6307 = vadd.f32 %v6114, %v6306
        %v6308 = vpop.f32.mrb[0].mxu0
        %v6309 = vadd.f32 %v6116, %v6308
        %6310 = vmatprep.mubr.bf16.mxu0 %v2382
        %6311 = vmatmul.mubr.bf16.gmra.mrb[0].mxu0 %v2381
        %v6312 = vpop.f32.mrb[0].mxu0
        %v6313 = vadd.f32 %v6120, %v6312
        %v6314 = vpop.f32.mrb[0].mxu0
        %v6315 = vadd.f32 %v6122, %v6314
        %v6316 = vpop.f32.mrb[0].mxu0
        %v6317 = vadd.f32 %v6124, %v6316
        %v6318 = vpop.f32.mrb[0].mxu0
        %v6319 = vadd.f32 %v6126, %v6318
        %6320 = vmatprep.mubr.bf16.mxu0 %v2388
        %6321 = vmatmul.mubr.bf16.gmra.mrb[0].mxu0 %v2387
        %v6322 = vpop.f32.mrb[0].mxu0
        %v6323 = vadd.f32 %v6130, %v6322
        %v6324 = vpop.f32.mrb[0].mxu0
        %v6325 = vadd.f32 %v6132, %v6324
        %v6326 = vpop.f32.mrb[0].mxu0
        %v6327 = vadd.f32 %v6134, %v6326
        %v6328 = vpop.f32.mrb[0].mxu0
        %v6329 = vadd.f32 %v6136, %v6328
        %6330 = vmatprep.mubr.bf16.mxu0 %v2394
        %6331 = vmatmul.mubr.bf16.gmra.mrb[0].mxu0 %v2393
        %v6332 = vpop.f32.mrb[0].mxu0
        %v6333 = vadd.f32 %v6140, %v6332
        %v6334 = vpop.f32.mrb[0].mxu0
        %v6335 = vadd.f32 %v6142, %v6334
        %v6336 = vpop.f32.mrb[0].mxu0
        %v6337 = vadd.f32 %v6144, %v6336
        %v6338 = vpop.f32.mrb[0].mxu0
        %v6339 = vadd.f32 %v6146, %v6338
        %6340 = vmatprep.mubr.bf16.mxu0 %v2400
        %6341 = vmatmul.mubr.bf16.gmra.mrb[0].mxu0 %v2399
        %v6342 = vpop.f32.mrb[0].mxu0
        %v6343 = vadd.f32 %v6150, %v6342
        %v6344 = vpop.f32.mrb[0].mxu0
        %v6345 = vadd.f32 %v6152, %v6344
        %v6346 = vpop.f32.mrb[0].mxu0
        %v6347 = vadd.f32 %v6154, %v6346
        %v6348 = vpop.f32.mrb[0].mxu0
        %v6349 = vadd.f32 %v6156, %v6348
        %6350 = vmatprep.mubr.bf16.mxu0 %v2406
        %6351 = vmatmul.mubr.bf16.gmra.mrb[0].mxu0 %v2405
        %v6352 = vpop.f32.mrb[0].mxu0
        %v6353 = vadd.f32 %v6160, %v6352
        %v6354 = vpop.f32.mrb[0].mxu0
        %v6355 = vadd.f32 %v6162, %v6354
        %v6356 = vpop.f32.mrb[0].mxu0
        %v6357 = vadd.f32 %v6164, %v6356
        %v6358 = vpop.f32.mrb[0].mxu0
        %v6359 = vadd.f32 %v6166, %v6358
        %6360 = vmatprep.mubr.bf16.mxu0 %v2412
        %6361 = vmatmul.mubr.bf16.gmra.mrb[0].mxu0 %v2411
        %v6362 = vpop.f32.mrb[0].mxu0
        %v6363 = vadd.f32 %v6170, %v6362
        %v6364 = vpop.f32.mrb[0].mxu0
        %v6365 = vadd.f32 %v6172, %v6364
        %v6366 = vpop.f32.mrb[0].mxu0
        %v6367 = vadd.f32 %v6174, %v6366
        %v6368 = vpop.f32.mrb[0].mxu0
        %v6369 = vadd.f32 %v6176, %v6368
        %6370 = vmatprep.mubr.bf16.mxu0 %v2418
        %6371 = vmatmul.mubr.bf16.gmra.mrb[0].mxu0 %v2417
        %v6372 = vpop.f32.mrb[0].mxu0
        %v6373 = vadd.f32 %v6180, %v6372
        %v6374 = vpop.f32.mrb[0].mxu0
        %v6375 = vadd.f32 %v6182, %v6374
        %v6376 = vpop.f32.mrb[0].mxu0
        %v6377 = vadd.f32 %v6184, %v6376
        %v6378 = vpop.f32.mrb[0].mxu0
        %v6379 = vadd.f32 %v6186, %v6378
        %6380 = vmatprep.mubr.bf16.mxu0 %v2424
        %6381 = vmatmul.mubr.bf16.gmra.mrb[0].mxu0 %v2423
        %v6382 = vpop.f32.mrb[0].mxu0
        %v6383 = vadd.f32 %v6190, %v6382
        %v6384 = vpop.f32.mrb[0].mxu0
        %v6385 = vadd.f32 %v6192, %v6384
        %v6386 = vpop.f32.mrb[0].mxu0
        %v6387 = vadd.f32 %v6194, %v6386
        %v6388 = vpop.f32.mrb[0].mxu0
        %v6389 = vadd.f32 %v6196, %v6388
        %6390 = vmatprep.mubr.bf16.mxu0 %v2430
        %6391 = vmatmul.mubr.bf16.gmra.mrb[0].mxu0 %v2429
        %v6392 = vpop.f32.mrb[0].mxu0
        %v6393 = vadd.f32 %v6200, %v6392
        %v6394 = vpop.f32.mrb[0].mxu0
        %v6395 = vadd.f32 %v6202, %v6394
        %v6396 = vpop.f32.mrb[0].mxu0
        %v6397 = vadd.f32 %v6204, %v6396
        %v6398 = vpop.f32.mrb[0].mxu0
        %v6399 = vadd.f32 %v6206, %v6398
        %6400 = vdwg.mxu0
        %v6401 = vunpack.c.l.bf16 %v413
        %v6402 = vunpack.c.h.bf16 %v413
        %v6403 = vunpack.c.l.bf16 %v416
        %v6404 = vunpack.c.h.bf16 %v416
        %v6405 = vunpack.c.l.bf16 %v419
        %v6406 = vunpack.c.h.bf16 %v419
        %v6407 = vunpack.c.l.bf16 %v422
        %v6408 = vunpack.c.h.bf16 %v422
        %v6409 = vunpack.c.l.bf16 %v425
        %v6410 = vunpack.c.h.bf16 %v425
        %v6411 = vunpack.c.l.bf16 %v428
        %v6412 = vunpack.c.h.bf16 %v428
        %v6413 = vunpack.c.l.bf16 %v431
        %v6414 = vunpack.c.h.bf16 %v431
        %v6415 = vunpack.c.l.bf16 %v434
        %v6416 = vunpack.c.h.bf16 %v434
        %v6417 = vunpack.c.l.bf16 %v437
        %v6418 = vunpack.c.h.bf16 %v437
        %v6419 = vunpack.c.l.bf16 %v440
        %v6420 = vunpack.c.h.bf16 %v440
        %v6421 = vunpack.c.l.bf16 %v443
        %v6422 = vunpack.c.h.bf16 %v443
        %v6423 = vunpack.c.l.bf16 %v446
        %v6424 = vunpack.c.h.bf16 %v446
        %v6425 = vunpack.c.l.bf16 %v449
        %v6426 = vunpack.c.h.bf16 %v449
        %v6427 = vunpack.c.l.bf16 %v452
        %v6428 = vunpack.c.h.bf16 %v452
        %v6429 = vunpack.c.l.bf16 %v455
        %v6430 = vunpack.c.h.bf16 %v455
        %v6431 = vunpack.c.l.bf16 %v458
        %v6432 = vunpack.c.h.bf16 %v458
        %v6433 = vunpack.c.l.bf16 %v461
        %v6434 = vunpack.c.h.bf16 %v461
        %v6435 = vunpack.c.l.bf16 %v464
        %v6436 = vunpack.c.h.bf16 %v464
        %v6437 = vunpack.c.l.bf16 %v467
        %v6438 = vunpack.c.h.bf16 %v467
        %v6439 = vunpack.c.l.bf16 %v470
        %v6440 = vunpack.c.h.bf16 %v470
        %v6441 = vunpack.c.l.bf16 %v473
        %v6442 = vunpack.c.h.bf16 %v473
        %v6443 = vunpack.c.l.bf16 %v476
        %v6444 = vunpack.c.h.bf16 %v476
        %v6445 = vunpack.c.l.bf16 %v479
        %v6446 = vunpack.c.h.bf16 %v479
        %v6447 = vunpack.c.l.bf16 %v482
        %v6448 = vunpack.c.h.bf16 %v482
        %v6449 = vunpack.c.l.bf16 %v485
        %v6450 = vunpack.c.h.bf16 %v485
        %v6451 = vunpack.c.l.bf16 %v488
        %v6452 = vunpack.c.h.bf16 %v488
        %v6453 = vunpack.c.l.bf16 %v491
        %v6454 = vunpack.c.h.bf16 %v491
        %v6455 = vunpack.c.l.bf16 %v494
        %v6456 = vunpack.c.h.bf16 %v494
        %v6457 = vunpack.c.l.bf16 %v497
        %v6458 = vunpack.c.h.bf16 %v497
        %v6459 = vunpack.c.l.bf16 %v500
        %v6460 = vunpack.c.h.bf16 %v500
        %v6461 = vunpack.c.l.bf16 %v503
        %v6462 = vunpack.c.h.bf16 %v503
        %v6463 = vunpack.c.l.bf16 %v506
        %v6464 = vunpack.c.h.bf16 %v506
        %v6465 = vunpack.c.l.bf16 %v509
        %v6466 = vunpack.c.h.bf16 %v509
        %v6467 = vunpack.c.l.bf16 %v512
        %v6468 = vunpack.c.h.bf16 %v512
        %v6469 = vunpack.c.l.bf16 %v515
        %v6470 = vunpack.c.h.bf16 %v515
        %v6471 = vunpack.c.l.bf16 %v518
        %v6472 = vunpack.c.h.bf16 %v518
        %v6473 = vunpack.c.l.bf16 %v521
        %v6474 = vunpack.c.h.bf16 %v521
        %v6475 = vunpack.c.l.bf16 %v524
        %v6476 = vunpack.c.h.bf16 %v524
        %v6477 = vunpack.c.l.bf16 %v527
        %v6478 = vunpack.c.h.bf16 %v527
        %v6479 = vunpack.c.l.bf16 %v530
        %v6480 = vunpack.c.h.bf16 %v530
        %v6481 = vunpack.c.l.bf16 %v533
        %v6482 = vunpack.c.h.bf16 %v533
        %v6483 = vunpack.c.l.bf16 %v536
        %v6484 = vunpack.c.h.bf16 %v536
        %v6485 = vunpack.c.l.bf16 %v539
        %v6486 = vunpack.c.h.bf16 %v539
        %v6487 = vunpack.c.l.bf16 %v542
        %v6488 = vunpack.c.h.bf16 %v542
        %v6489 = vunpack.c.l.bf16 %v545
        %v6490 = vunpack.c.h.bf16 %v545
        %v6491 = vunpack.c.l.bf16 %v548
        %v6492 = vunpack.c.h.bf16 %v548
        %v6493 = vunpack.c.l.bf16 %v551
        %v6494 = vunpack.c.h.bf16 %v551
        %v6495 = vunpack.c.l.bf16 %v554
        %v6496 = vunpack.c.h.bf16 %v554
        %v6497 = vunpack.c.l.bf16 %v557
        %v6498 = vunpack.c.h.bf16 %v557
        %v6499 = vunpack.c.l.bf16 %v560
        %v6500 = vunpack.c.h.bf16 %v560
        %v6501 = vunpack.c.l.bf16 %v563
        %v6502 = vunpack.c.h.bf16 %v563
        %v6503 = vunpack.c.l.bf16 %v566
        %v6504 = vunpack.c.h.bf16 %v566
        %v6505 = vunpack.c.l.bf16 %v569
        %v6506 = vunpack.c.h.bf16 %v569
        %v6507 = vunpack.c.l.bf16 %v572
        %v6508 = vunpack.c.h.bf16 %v572
        %v6509 = vunpack.c.l.bf16 %v575
        %v6510 = vunpack.c.h.bf16 %v575
        %v6511 = vunpack.c.l.bf16 %v578
        %v6512 = vunpack.c.h.bf16 %v578
        %v6513 = vunpack.c.l.bf16 %v581
        %v6514 = vunpack.c.h.bf16 %v581
        %v6515 = vunpack.c.l.bf16 %v584
        %v6516 = vunpack.c.h.bf16 %v584
        %v6517 = vunpack.c.l.bf16 %v587
        %v6518 = vunpack.c.h.bf16 %v587
        %v6519 = vunpack.c.l.bf16 %v590
        %v6520 = vunpack.c.h.bf16 %v590
        %v6521 = vunpack.c.l.bf16 %v593
        %v6522 = vunpack.c.h.bf16 %v593
        %v6523 = vunpack.c.l.bf16 %v596
        %v6524 = vunpack.c.h.bf16 %v596
        %v6525 = vunpack.c.l.bf16 %v599
        %v6526 = vunpack.c.h.bf16 %v599
        %v6527 = vunpack.c.l.bf16 %v602
        %v6528 = vunpack.c.h.bf16 %v602
        %v6529 = vmul.f32 %v6243, %v6465
        %v6530 = vmul.f32 %v6245, %v6466
        %v6531 = vmul.f32 %v6247, %v6467
        %v6532 = vmul.f32 %v6249, %v6468
        %v6533 = vmul.f32 %v6253, %v6469
        %v6534 = vmul.f32 %v6255, %v6470
        %v6535 = vmul.f32 %v6257, %v6471
        %v6536 = vmul.f32 %v6259, %v6472
        %v6537 = vmul.f32 %v6263, %v6473
        %v6538 = vmul.f32 %v6265, %v6474
        %v6539 = vmul.f32 %v6267, %v6475
        %v6540 = vmul.f32 %v6269, %v6476
        %v6541 = vmul.f32 %v6273, %v6477
        %v6542 = vmul.f32 %v6275, %v6478
        %v6543 = vmul.f32 %v6277, %v6479
        %v6544 = vmul.f32 %v6279, %v6480
        %v6545 = vmul.f32 %v6283, %v6481
        %v6546 = vmul.f32 %v6285, %v6482
        %v6547 = vmul.f32 %v6287, %v6483
        %v6548 = vmul.f32 %v6289, %v6484
        %v6549 = vmul.f32 %v6293, %v6485
        %v6550 = vmul.f32 %v6295, %v6486
        %v6551 = vmul.f32 %v6297, %v6487
        %v6552 = vmul.f32 %v6299, %v6488
        %v6553 = vmul.f32 %v6303, %v6489
        %v6554 = vmul.f32 %v6305, %v6490
        %v6555 = vmul.f32 %v6307, %v6491
        %v6556 = vmul.f32 %v6309, %v6492
        %v6557 = vmul.f32 %v6313, %v6493
        %v6558 = vmul.f32 %v6315, %v6494
        %v6559 = vmul.f32 %v6317, %v6495
        %v6560 = vmul.f32 %v6319, %v6496
        %v6561 = vmul.f32 %v6323, %v6497
        %v6562 = vmul.f32 %v6325, %v6498
        %v6563 = vmul.f32 %v6327, %v6499
        %v6564 = vmul.f32 %v6329, %v6500
        %v6565 = vmul.f32 %v6333, %v6501
        %v6566 = vmul.f32 %v6335, %v6502
        %v6567 = vmul.f32 %v6337, %v6503
        %v6568 = vmul.f32 %v6339, %v6504
        %v6569 = vmul.f32 %v6343, %v6505
        %v6570 = vmul.f32 %v6345, %v6506
        %v6571 = vmul.f32 %v6347, %v6507
        %v6572 = vmul.f32 %v6349, %v6508
        %v6573 = vmul.f32 %v6353, %v6509
        %v6574 = vmul.f32 %v6355, %v6510
        %v6575 = vmul.f32 %v6357, %v6511
        %v6576 = vmul.f32 %v6359, %v6512
        %v6577 = vmul.f32 %v6363, %v6513
        %v6578 = vmul.f32 %v6365, %v6514
        %v6579 = vmul.f32 %v6367, %v6515
        %v6580 = vmul.f32 %v6369, %v6516
        %v6581 = vmul.f32 %v6373, %v6517
        %v6582 = vmul.f32 %v6375, %v6518
        %v6583 = vmul.f32 %v6377, %v6519
        %v6584 = vmul.f32 %v6379, %v6520
        %v6585 = vmul.f32 %v6383, %v6521
        %v6586 = vmul.f32 %v6385, %v6522
        %v6587 = vmul.f32 %v6387, %v6523
        %v6588 = vmul.f32 %v6389, %v6524
        %v6589 = vmul.f32 %v6393, %v6525
        %v6590 = vmul.f32 %v6395, %v6526
        %v6591 = vmul.f32 %v6397, %v6527
        %v6592 = vmul.f32 %v6399, %v6528
        %v6593 = vadd.f32 %v6529, %v6530
        %6594 = vadd.xlane.f32.xlu0 %v6593
        %v6595 = vpop.xlane.xlu0 %6594
        %v6596 = vadd.f32 %v6531, %v6532
        %6597 = vadd.xlane.f32.xlu0 %v6596
        %v6598 = vpop.xlane.xlu0 %6597
        %v6599 = vadd.f32 %v6533, %v6534
        %6600 = vadd.xlane.f32.xlu0 %v6599
        %v6601 = vpop.xlane.xlu0 %6600
        %v6602 = vadd.f32 %v6535, %v6536
        %6603 = vadd.xlane.f32.xlu0 %v6602
        %v6604 = vpop.xlane.xlu0 %6603
        %v6605 = vadd.f32 %v6537, %v6538
        %6606 = vadd.xlane.f32.xlu0 %v6605
        %v6607 = vpop.xlane.xlu0 %6606
        %v6608 = vadd.f32 %v6539, %v6540
        %6609 = vadd.xlane.f32.xlu0 %v6608
        %v6610 = vpop.xlane.xlu0 %6609
        %v6611 = vadd.f32 %v6541, %v6542
        %6612 = vadd.xlane.f32.xlu0 %v6611
        %v6613 = vpop.xlane.xlu0 %6612
        %v6614 = vadd.f32 %v6543, %v6544
        %6615 = vadd.xlane.f32.xlu0 %v6614
        %v6616 = vpop.xlane.xlu0 %6615
        %v6617 = vadd.f32 %v6545, %v6546
        %6618 = vadd.xlane.f32.xlu0 %v6617
        %v6619 = vpop.xlane.xlu0 %6618
        %v6620 = vadd.f32 %v6547, %v6548
        %6621 = vadd.xlane.f32.xlu0 %v6620
        %v6622 = vpop.xlane.xlu0 %6621
        %v6623 = vadd.f32 %v6549, %v6550
        %6624 = vadd.xlane.f32.xlu0 %v6623
        %v6625 = vpop.xlane.xlu0 %6624
        %v6626 = vadd.f32 %v6551, %v6552
        %6627 = vadd.xlane.f32.xlu0 %v6626
        %v6628 = vpop.xlane.xlu0 %6627
        %v6629 = vadd.f32 %v6553, %v6554
        %6630 = vadd.xlane.f32.xlu0 %v6629
        %v6631 = vpop.xlane.xlu0 %6630
        %v6632 = vadd.f32 %v6555, %v6556
        %6633 = vadd.xlane.f32.xlu0 %v6632
        %v6634 = vpop.xlane.xlu0 %6633
        %v6635 = vadd.f32 %v6557, %v6558
        %6636 = vadd.xlane.f32.xlu0 %v6635
        %v6637 = vpop.xlane.xlu0 %6636
        %v6638 = vadd.f32 %v6559, %v6560
        %6639 = vadd.xlane.f32.xlu0 %v6638
        %v6640 = vpop.xlane.xlu0 %6639
        %v6641 = vadd.f32 %v6561, %v6562
        %6642 = vadd.xlane.f32.xlu0 %v6641
        %v6643 = vpop.xlane.xlu0 %6642
        %v6644 = vadd.f32 %v6563, %v6564
        %6645 = vadd.xlane.f32.xlu0 %v6644
        %v6646 = vpop.xlane.xlu0 %6645
        %v6647 = vadd.f32 %v6565, %v6566
        %6648 = vadd.xlane.f32.xlu0 %v6647
        %v6649 = vpop.xlane.xlu0 %6648
        %v6650 = vadd.f32 %v6567, %v6568
        %6651 = vadd.xlane.f32.xlu0 %v6650
        %v6652 = vpop.xlane.xlu0 %6651
        %v6653 = vadd.f32 %v6569, %v6570
        %6654 = vadd.xlane.f32.xlu0 %v6653
        %v6655 = vpop.xlane.xlu0 %6654
        %v6656 = vadd.f32 %v6571, %v6572
        %6657 = vadd.xlane.f32.xlu0 %v6656
        %v6658 = vpop.xlane.xlu0 %6657
        %v6659 = vadd.f32 %v6573, %v6574
        %6660 = vadd.xlane.f32.xlu0 %v6659
        %v6661 = vpop.xlane.xlu0 %6660
        %v6662 = vadd.f32 %v6575, %v6576
        %6663 = vadd.xlane.f32.xlu0 %v6662
        %v6664 = vpop.xlane.xlu0 %6663
        %v6665 = vadd.f32 %v6577, %v6578
        %6666 = vadd.xlane.f32.xlu0 %v6665
        %v6667 = vpop.xlane.xlu0 %6666
        %v6668 = vadd.f32 %v6579, %v6580
        %6669 = vadd.xlane.f32.xlu0 %v6668
        %v6670 = vpop.xlane.xlu0 %6669
        %v6671 = vadd.f32 %v6581, %v6582
        %6672 = vadd.xlane.f32.xlu0 %v6671
        %v6673 = vpop.xlane.xlu0 %6672
        %v6674 = vadd.f32 %v6583, %v6584
        %6675 = vadd.xlane.f32.xlu0 %v6674
        %v6676 = vpop.xlane.xlu0 %6675
        %v6677 = vadd.f32 %v6585, %v6586
        %6678 = vadd.xlane.f32.xlu0 %v6677
        %v6679 = vpop.xlane.xlu0 %6678
        %v6680 = vadd.f32 %v6587, %v6588
        %6681 = vadd.xlane.f32.xlu0 %v6680
        %v6682 = vpop.xlane.xlu0 %6681
        %v6683 = vadd.f32 %v6589, %v6590
        %6684 = vadd.xlane.f32.xlu0 %v6683
        %v6685 = vpop.xlane.xlu0 %6684
        %v6686 = vadd.f32 %v6591, %v6592
        %6687 = vadd.xlane.f32.xlu0 %v6686
        %v6688 = vpop.xlane.xlu0 %6687
        %v6689 = vadd.f32 %v4741, %v6595
        %v6690 = vadd.f32 %v4742, %v6598
        %v6691 = vadd.f32 %v4743, %v6601
        %v6692 = vadd.f32 %v4744, %v6604
        %v6693 = vadd.f32 %v4745, %v6607
        %v6694 = vadd.f32 %v4746, %v6610
        %v6695 = vadd.f32 %v4747, %v6613
        %v6696 = vadd.f32 %v4748, %v6616
        %v6697 = vadd.f32 %v4749, %v6619
        %v6698 = vadd.f32 %v4750, %v6622
        %v6699 = vadd.f32 %v4751, %v6625
        %v6700 = vadd.f32 %v4752, %v6628
        %v6701 = vadd.f32 %v4753, %v6631
        %v6702 = vadd.f32 %v4754, %v6634
        %v6703 = vadd.f32 %v4755, %v6637
        %v6704 = vadd.f32 %v4756, %v6640
        %v6705 = vadd.f32 %v4757, %v6643
        %v6706 = vadd.f32 %v4758, %v6646
        %v6707 = vadd.f32 %v4759, %v6649
        %v6708 = vadd.f32 %v4760, %v6652
        %v6709 = vadd.f32 %v4761, %v6655
        %v6710 = vadd.f32 %v4762, %v6658
        %v6711 = vadd.f32 %v4763, %v6661
        %v6712 = vadd.f32 %v4764, %v6664
        %v6713 = vadd.f32 %v4765, %v6667
        %v6714 = vadd.f32 %v4766, %v6670
        %v6715 = vadd.f32 %v4767, %v6673
        %v6716 = vadd.f32 %v4768, %v6676
        %v6717 = vadd.f32 %v4769, %v6679
        %v6718 = vadd.f32 %v4770, %v6682
        %v6719 = vadd.f32 %v4771, %v6685
        %v6720 = vadd.f32 %v4772, %v6688
        %v6721 = vmul.f32 %v6401, %v6401
        %v6722 = vmul.f32 %v6402, %v6402
        %v6723 = vmul.f32 %v6403, %v6403
        %v6724 = vmul.f32 %v6404, %v6404
        %v6725 = vmul.f32 %v6405, %v6405
        %v6726 = vmul.f32 %v6406, %v6406
        %v6727 = vmul.f32 %v6407, %v6407
        %v6728 = vmul.f32 %v6408, %v6408
        %v6729 = vmul.f32 %v6409, %v6409
        %v6730 = vmul.f32 %v6410, %v6410
        %v6731 = vmul.f32 %v6411, %v6411
        %v6732 = vmul.f32 %v6412, %v6412
        %v6733 = vmul.f32 %v6413, %v6413
        %v6734 = vmul.f32 %v6414, %v6414
        %v6735 = vmul.f32 %v6415, %v6415
        %v6736 = vmul.f32 %v6416, %v6416
        %v6737 = vmul.f32 %v6417, %v6417
        %v6738 = vmul.f32 %v6418, %v6418
        %v6739 = vmul.f32 %v6419, %v6419
        %v6740 = vmul.f32 %v6420, %v6420
        %v6741 = vmul.f32 %v6421, %v6421
        %v6742 = vmul.f32 %v6422, %v6422
        %v6743 = vmul.f32 %v6423, %v6423
        %v6744 = vmul.f32 %v6424, %v6424
        %v6745 = vmul.f32 %v6425, %v6425
        %v6746 = vmul.f32 %v6426, %v6426
        %v6747 = vmul.f32 %v6427, %v6427
        %v6748 = vmul.f32 %v6428, %v6428
        %v6749 = vmul.f32 %v6429, %v6429
        %v6750 = vmul.f32 %v6430, %v6430
        %v6751 = vmul.f32 %v6431, %v6431
        %v6752 = vmul.f32 %v6432, %v6432
        %v6753 = vmul.f32 %v6433, %v6433
        %v6754 = vmul.f32 %v6434, %v6434
        %v6755 = vmul.f32 %v6435, %v6435
        %v6756 = vmul.f32 %v6436, %v6436
        %v6757 = vmul.f32 %v6437, %v6437
        %v6758 = vmul.f32 %v6438, %v6438
        %v6759 = vmul.f32 %v6439, %v6439
        %v6760 = vmul.f32 %v6440, %v6440
        %v6761 = vmul.f32 %v6441, %v6441
        %v6762 = vmul.f32 %v6442, %v6442
        %v6763 = vmul.f32 %v6443, %v6443
        %v6764 = vmul.f32 %v6444, %v6444
        %v6765 = vmul.f32 %v6445, %v6445
        %v6766 = vmul.f32 %v6446, %v6446
        %v6767 = vmul.f32 %v6447, %v6447
        %v6768 = vmul.f32 %v6448, %v6448
        %v6769 = vmul.f32 %v6449, %v6449
        %v6770 = vmul.f32 %v6450, %v6450
        %v6771 = vmul.f32 %v6451, %v6451
        %v6772 = vmul.f32 %v6452, %v6452
        %v6773 = vmul.f32 %v6453, %v6453
        %v6774 = vmul.f32 %v6454, %v6454
        %v6775 = vmul.f32 %v6455, %v6455
        %v6776 = vmul.f32 %v6456, %v6456
        %v6777 = vmul.f32 %v6457, %v6457
        %v6778 = vmul.f32 %v6458, %v6458
        %v6779 = vmul.f32 %v6459, %v6459
        %v6780 = vmul.f32 %v6460, %v6460
        %v6781 = vmul.f32 %v6461, %v6461
        %v6782 = vmul.f32 %v6462, %v6462
        %v6783 = vmul.f32 %v6463, %v6463
        %v6784 = vmul.f32 %v6464, %v6464
        %s6785 = scalar_lea.vmem [#allocation9], 4
        %v6786 = vld [vmem:[%s6785] ss:$2 sm:$0x3]
        %v6788 = vlaneseq
        %v6789 = vshrl.u32 %v6788, 7
        %v6790 = vsub.s32 0, %v6789
        %v6791 = vrot.slane %v6786, %v6790
        %v6792 = vlaneseq
        %v6793 = vshrl.u32 %v6792, 7
        %v6794 = vsub.s32 1, %v6793
        %v6795 = vrot.slane %v6786, %v6794
        %v6798 = vmul.f32 %v6721, %v6791
        %v6799 = vmul.f32 %v6722, %v6795
        %v6800 = vmul.f32 %v6723, %v6791
        %v6801 = vmul.f32 %v6724, %v6795
        %v6802 = vmul.f32 %v6725, %v6791
        %v6803 = vmul.f32 %v6726, %v6795
        %v6804 = vmul.f32 %v6727, %v6791
        %v6805 = vmul.f32 %v6728, %v6795
        %v6806 = vmul.f32 %v6729, %v6791
        %v6807 = vmul.f32 %v6730, %v6795
        %v6808 = vmul.f32 %v6731, %v6791
        %v6809 = vmul.f32 %v6732, %v6795
        %v6810 = vmul.f32 %v6733, %v6791
        %v6811 = vmul.f32 %v6734, %v6795
        %v6812 = vmul.f32 %v6735, %v6791
        %v6813 = vmul.f32 %v6736, %v6795
        %v6814 = vmul.f32 %v6737, %v6791
        %v6815 = vmul.f32 %v6738, %v6795
        %v6816 = vmul.f32 %v6739, %v6791
        %v6817 = vmul.f32 %v6740, %v6795
        %v6818 = vmul.f32 %v6741, %v6791
        %v6819 = vmul.f32 %v6742, %v6795
        %v6820 = vmul.f32 %v6743, %v6791
        %v6821 = vmul.f32 %v6744, %v6795
        %v6822 = vmul.f32 %v6745, %v6791
        %v6823 = vmul.f32 %v6746, %v6795
        %v6824 = vmul.f32 %v6747, %v6791
        %v6825 = vmul.f32 %v6748, %v6795
        %v6826 = vmul.f32 %v6749, %v6791
        %v6827 = vmul.f32 %v6750, %v6795
        %v6828 = vmul.f32 %v6751, %v6791
        %v6829 = vmul.f32 %v6752, %v6795
        %v6830 = vmul.f32 %v6753, %v6791
        %v6831 = vmul.f32 %v6754, %v6795
        %v6832 = vmul.f32 %v6755, %v6791
        %v6833 = vmul.f32 %v6756, %v6795
        %v6834 = vmul.f32 %v6757, %v6791
        %v6835 = vmul.f32 %v6758, %v6795
        %v6836 = vmul.f32 %v6759, %v6791
        %v6837 = vmul.f32 %v6760, %v6795
        %v6838 = vmul.f32 %v6761, %v6791
        %v6839 = vmul.f32 %v6762, %v6795
        %v6840 = vmul.f32 %v6763, %v6791
        %v6841 = vmul.f32 %v6764, %v6795
        %v6842 = vmul.f32 %v6765, %v6791
        %v6843 = vmul.f32 %v6766, %v6795
        %v6844 = vmul.f32 %v6767, %v6791
        %v6845 = vmul.f32 %v6768, %v6795
        %v6846 = vmul.f32 %v6769, %v6791
        %v6847 = vmul.f32 %v6770, %v6795
        %v6848 = vmul.f32 %v6771, %v6791
        %v6849 = vmul.f32 %v6772, %v6795
        %v6850 = vmul.f32 %v6773, %v6791
        %v6851 = vmul.f32 %v6774, %v6795
        %v6852 = vmul.f32 %v6775, %v6791
        %v6853 = vmul.f32 %v6776, %v6795
        %v6854 = vmul.f32 %v6777, %v6791
        %v6855 = vmul.f32 %v6778, %v6795
        %v6856 = vmul.f32 %v6779, %v6791
        %v6857 = vmul.f32 %v6780, %v6795
        %v6858 = vmul.f32 %v6781, %v6791
        %v6859 = vmul.f32 %v6782, %v6795
        %v6860 = vmul.f32 %v6783, %v6791
        %v6861 = vmul.f32 %v6784, %v6795
        %v6862 = vmul.f32 %v6465, %v6465
        %v6863 = vmul.f32 %v6466, %v6466
        %v6864 = vmul.f32 %v6467, %v6467
        %v6865 = vmul.f32 %v6468, %v6468
        %v6866 = vmul.f32 %v6469, %v6469
        %v6867 = vmul.f32 %v6470, %v6470
        %v6868 = vmul.f32 %v6471, %v6471
        %v6869 = vmul.f32 %v6472, %v6472
        %v6870 = vmul.f32 %v6473, %v6473
        %v6871 = vmul.f32 %v6474, %v6474
        %v6872 = vmul.f32 %v6475, %v6475
        %v6873 = vmul.f32 %v6476, %v6476
        %v6874 = vmul.f32 %v6477, %v6477
        %v6875 = vmul.f32 %v6478, %v6478
        %v6876 = vmul.f32 %v6479, %v6479
        %v6877 = vmul.f32 %v6480, %v6480
        %v6878 = vmul.f32 %v6481, %v6481
        %v6879 = vmul.f32 %v6482, %v6482
        %v6880 = vmul.f32 %v6483, %v6483
        %v6881 = vmul.f32 %v6484, %v6484
        %v6882 = vmul.f32 %v6485, %v6485
        %v6883 = vmul.f32 %v6486, %v6486
        %v6884 = vmul.f32 %v6487, %v6487
        %v6885 = vmul.f32 %v6488, %v6488
        %v6886 = vmul.f32 %v6489, %v6489
        %v6887 = vmul.f32 %v6490, %v6490
        %v6888 = vmul.f32 %v6491, %v6491
        %v6889 = vmul.f32 %v6492, %v6492
        %v6890 = vmul.f32 %v6493, %v6493
        %v6891 = vmul.f32 %v6494, %v6494
        %v6892 = vmul.f32 %v6495, %v6495
        %v6893 = vmul.f32 %v6496, %v6496
        %v6894 = vmul.f32 %v6497, %v6497
        %v6895 = vmul.f32 %v6498, %v6498
        %v6896 = vmul.f32 %v6499, %v6499
        %v6897 = vmul.f32 %v6500, %v6500
        %v6898 = vmul.f32 %v6501, %v6501
        %v6899 = vmul.f32 %v6502, %v6502
        %v6900 = vmul.f32 %v6503, %v6503
        %v6901 = vmul.f32 %v6504, %v6504
        %v6902 = vmul.f32 %v6505, %v6505
        %v6903 = vmul.f32 %v6506, %v6506
        %v6904 = vmul.f32 %v6507, %v6507
        %v6905 = vmul.f32 %v6508, %v6508
        %v6906 = vmul.f32 %v6509, %v6509
        %v6907 = vmul.f32 %v6510, %v6510
        %v6908 = vmul.f32 %v6511, %v6511
        %v6909 = vmul.f32 %v6512, %v6512
        %v6910 = vmul.f32 %v6513, %v6513
        %v6911 = vmul.f32 %v6514, %v6514
        %v6912 = vmul.f32 %v6515, %v6515
        %v6913 = vmul.f32 %v6516, %v6516
        %v6914 = vmul.f32 %v6517, %v6517
        %v6915 = vmul.f32 %v6518, %v6518
        %v6916 = vmul.f32 %v6519, %v6519
        %v6917 = vmul.f32 %v6520, %v6520
        %v6918 = vmul.f32 %v6521, %v6521
        %v6919 = vmul.f32 %v6522, %v6522
        %v6920 = vmul.f32 %v6523, %v6523
        %v6921 = vmul.f32 %v6524, %v6524
        %v6922 = vmul.f32 %v6525, %v6525
        %v6923 = vmul.f32 %v6526, %v6526
        %v6924 = vmul.f32 %v6527, %v6527
        %v6925 = vmul.f32 %v6528, %v6528
        %s6926 = scalar_lea.vmem [#allocation9], 5
        %v6927 = vld [vmem:[%s6926] ss:$2 sm:$0x3]
        %v6929 = vlaneseq
        %v6930 = vshrl.u32 %v6929, 7
        %v6931 = vsub.s32 0, %v6930
        %v6932 = vrot.slane %v6927, %v6931
        %v6933 = vlaneseq
        %v6934 = vshrl.u32 %v6933, 7
        %v6935 = vsub.s32 1, %v6934
        %v6936 = vrot.slane %v6927, %v6935
        %v6939 = vmul.f32 %v6862, %v6932
        %v6940 = vmul.f32 %v6863, %v6936
        %v6941 = vmul.f32 %v6864, %v6932
        %v6942 = vmul.f32 %v6865, %v6936
        %v6943 = vmul.f32 %v6866, %v6932
        %v6944 = vmul.f32 %v6867, %v6936
        %v6945 = vmul.f32 %v6868, %v6932
        %v6946 = vmul.f32 %v6869, %v6936
        %v6947 = vmul.f32 %v6870, %v6932
        %v6948 = vmul.f32 %v6871, %v6936
        %v6949 = vmul.f32 %v6872, %v6932
        %v6950 = vmul.f32 %v6873, %v6936
        %v6951 = vmul.f32 %v6874, %v6932
        %v6952 = vmul.f32 %v6875, %v6936
        %v6953 = vmul.f32 %v6876, %v6932
        %v6954 = vmul.f32 %v6877, %v6936
        %v6955 = vmul.f32 %v6878, %v6932
        %v6956 = vmul.f32 %v6879, %v6936
        %v6957 = vmul.f32 %v6880, %v6932
        %v6958 = vmul.f32 %v6881, %v6936
        %v6959 = vmul.f32 %v6882, %v6932
        %v6960 = vmul.f32 %v6883, %v6936
        %v6961 = vmul.f32 %v6884, %v6932
        %v6962 = vmul.f32 %v6885, %v6936
        %v6963 = vmul.f32 %v6886, %v6932
        %v6964 = vmul.f32 %v6887, %v6936
        %v6965 = vmul.f32 %v6888, %v6932
        %v6966 = vmul.f32 %v6889, %v6936
        %v6967 = vmul.f32 %v6890, %v6932
        %v6968 = vmul.f32 %v6891, %v6936
        %v6969 = vmul.f32 %v6892, %v6932
        %v6970 = vmul.f32 %v6893, %v6936
        %v6971 = vmul.f32 %v6894, %v6932
        %v6972 = vmul.f32 %v6895, %v6936
        %v6973 = vmul.f32 %v6896, %v6932
        %v6974 = vmul.f32 %v6897, %v6936
        %v6975 = vmul.f32 %v6898, %v6932
        %v6976 = vmul.f32 %v6899, %v6936
        %v6977 = vmul.f32 %v6900, %v6932
        %v6978 = vmul.f32 %v6901, %v6936
        %v6979 = vmul.f32 %v6902, %v6932
        %v6980 = vmul.f32 %v6903, %v6936
        %v6981 = vmul.f32 %v6904, %v6932
        %v6982 = vmul.f32 %v6905, %v6936
        %v6983 = vmul.f32 %v6906, %v6932
        %v6984 = vmul.f32 %v6907, %v6936
        %v6985 = vmul.f32 %v6908, %v6932
        %v6986 = vmul.f32 %v6909, %v6936
        %v6987 = vmul.f32 %v6910, %v6932
        %v6988 = vmul.f32 %v6911, %v6936
        %v6989 = vmul.f32 %v6912, %v6932
        %v6990 = vmul.f32 %v6913, %v6936
        %v6991 = vmul.f32 %v6914, %v6932
        %v6992 = vmul.f32 %v6915, %v6936
        %v6993 = vmul.f32 %v6916, %v6932
        %v6994 = vmul.f32 %v6917, %v6936
        %v6995 = vmul.f32 %v6918, %v6932
        %v6996 = vmul.f32 %v6919, %v6936
        %v6997 = vmul.f32 %v6920, %v6932
        %v6998 = vmul.f32 %v6921, %v6936
        %v6999 = vmul.f32 %v6922, %v6932
        %v7000 = vmul.f32 %v6923, %v6936
        %v7001 = vmul.f32 %v6924, %v6932
        %v7002 = vmul.f32 %v6925, %v6936
        %v7003 = vadd.f32 %v6798, %v6939
        %v7004 = vadd.f32 %v6799, %v6940
        %v7005 = vadd.f32 %v6800, %v6941
        %v7006 = vadd.f32 %v6801, %v6942
        %v7007 = vadd.f32 %v6802, %v6943
        %v7008 = vadd.f32 %v6803, %v6944
        %v7009 = vadd.f32 %v6804, %v6945
        %v7010 = vadd.f32 %v6805, %v6946
        %v7011 = vadd.f32 %v6806, %v6947
        %v7012 = vadd.f32 %v6807, %v6948
        %v7013 = vadd.f32 %v6808, %v6949
        %v7014 = vadd.f32 %v6809, %v6950
        %v7015 = vadd.f32 %v6810, %v6951
        %v7016 = vadd.f32 %v6811, %v6952
        %v7017 = vadd.f32 %v6812, %v6953
        %v7018 = vadd.f32 %v6813, %v6954
        %v7019 = vadd.f32 %v6814, %v6955
        %v7020 = vadd.f32 %v6815, %v6956
        %v7021 = vadd.f32 %v6816, %v6957
        %v7022 = vadd.f32 %v6817, %v6958
        %v7023 = vadd.f32 %v6818, %v6959
        %v7024 = vadd.f32 %v6819, %v6960
        %v7025 = vadd.f32 %v6820, %v6961
        %v7026 = vadd.f32 %v6821, %v6962
        %v7027 = vadd.f32 %v6822, %v6963
        %v7028 = vadd.f32 %v6823, %v6964
        %v7029 = vadd.f32 %v6824, %v6965
        %v7030 = vadd.f32 %v6825, %v6966
        %v7031 = vadd.f32 %v6826, %v6967
        %v7032 = vadd.f32 %v6827, %v6968
        %v7033 = vadd.f32 %v6828, %v6969
        %v7034 = vadd.f32 %v6829, %v6970
        %v7035 = vadd.f32 %v6830, %v6971
        %v7036 = vadd.f32 %v6831, %v6972
        %v7037 = vadd.f32 %v6832, %v6973
        %v7038 = vadd.f32 %v6833, %v6974
        %v7039 = vadd.f32 %v6834, %v6975
        %v7040 = vadd.f32 %v6835, %v6976
        %v7041 = vadd.f32 %v6836, %v6977
        %v7042 = vadd.f32 %v6837, %v6978
        %v7043 = vadd.f32 %v6838, %v6979
        %v7044 = vadd.f32 %v6839, %v6980
        %v7045 = vadd.f32 %v6840, %v6981
        %v7046 = vadd.f32 %v6841, %v6982
        %v7047 = vadd.f32 %v6842, %v6983
        %v7048 = vadd.f32 %v6843, %v6984
        %v7049 = vadd.f32 %v6844, %v6985
        %v7050 = vadd.f32 %v6845, %v6986
        %v7051 = vadd.f32 %v6846, %v6987
        %v7052 = vadd.f32 %v6847, %v6988
        %v7053 = vadd.f32 %v6848, %v6989
        %v7054 = vadd.f32 %v6849, %v6990
        %v7055 = vadd.f32 %v6850, %v6991
        %v7056 = vadd.f32 %v6851, %v6992
        %v7057 = vadd.f32 %v6852, %v6993
        %v7058 = vadd.f32 %v6853, %v6994
        %v7059 = vadd.f32 %v6854, %v6995
        %v7060 = vadd.f32 %v6855, %v6996
        %v7061 = vadd.f32 %v6856, %v6997
        %v7062 = vadd.f32 %v6857, %v6998
        %v7063 = vadd.f32 %v6858, %v6999
        %v7064 = vadd.f32 %v6859, %v7000
        %v7065 = vadd.f32 %v6860, %v7001
        %v7066 = vadd.f32 %v6861, %v7002
        %v7067 = vadd.f32 %v7003, %v7004
        %7068 = vadd.xlane.f32.xlu0 %v7067
        %v7069 = vpop.xlane.xlu0 %7068
        %v7070 = vadd.f32 %v7005, %v7006
        %7071 = vadd.xlane.f32.xlu0 %v7070
        %v7072 = vpop.xlane.xlu0 %7071
        %v7073 = vadd.f32 %v7007, %v7008
        %7074 = vadd.xlane.f32.xlu0 %v7073
        %v7075 = vpop.xlane.xlu0 %7074
        %v7076 = vadd.f32 %v7009, %v7010
        %7077 = vadd.xlane.f32.xlu0 %v7076
        %v7078 = vpop.xlane.xlu0 %7077
        %v7079 = vadd.f32 %v7011, %v7012
        %7080 = vadd.xlane.f32.xlu0 %v7079
        %v7081 = vpop.xlane.xlu0 %7080
        %v7082 = vadd.f32 %v7013, %v7014
        %7083 = vadd.xlane.f32.xlu0 %v7082
        %v7084 = vpop.xlane.xlu0 %7083
        %v7085 = vadd.f32 %v7015, %v7016
        %7086 = vadd.xlane.f32.xlu0 %v7085
        %v7087 = vpop.xlane.xlu0 %7086
        %v7088 = vadd.f32 %v7017, %v7018
        %7089 = vadd.xlane.f32.xlu0 %v7088
        %v7090 = vpop.xlane.xlu0 %7089
        %v7091 = vadd.f32 %v7019, %v7020
        %7092 = vadd.xlane.f32.xlu0 %v7091
        %v7093 = vpop.xlane.xlu0 %7092
        %v7094 = vadd.f32 %v7021, %v7022
        %7095 = vadd.xlane.f32.xlu0 %v7094
        %v7096 = vpop.xlane.xlu0 %7095
        %v7097 = vadd.f32 %v7023, %v7024
        %7098 = vadd.xlane.f32.xlu0 %v7097
        %v7099 = vpop.xlane.xlu0 %7098
        %v7100 = vadd.f32 %v7025, %v7026
        %7101 = vadd.xlane.f32.xlu0 %v7100
        %v7102 = vpop.xlane.xlu0 %7101
        %v7103 = vadd.f32 %v7027, %v7028
        %7104 = vadd.xlane.f32.xlu0 %v7103
        %v7105 = vpop.xlane.xlu0 %7104
        %v7106 = vadd.f32 %v7029, %v7030
        %7107 = vadd.xlane.f32.xlu0 %v7106
        %v7108 = vpop.xlane.xlu0 %7107
        %v7109 = vadd.f32 %v7031, %v7032
        %7110 = vadd.xlane.f32.xlu0 %v7109
        %v7111 = vpop.xlane.xlu0 %7110
        %v7112 = vadd.f32 %v7033, %v7034
        %7113 = vadd.xlane.f32.xlu0 %v7112
        %v7114 = vpop.xlane.xlu0 %7113
        %v7115 = vadd.f32 %v7035, %v7036
        %7116 = vadd.xlane.f32.xlu0 %v7115
        %v7117 = vpop.xlane.xlu0 %7116
        %v7118 = vadd.f32 %v7037, %v7038
        %7119 = vadd.xlane.f32.xlu0 %v7118
        %v7120 = vpop.xlane.xlu0 %7119
        %v7121 = vadd.f32 %v7039, %v7040
        %7122 = vadd.xlane.f32.xlu0 %v7121
        %v7123 = vpop.xlane.xlu0 %7122
        %v7124 = vadd.f32 %v7041, %v7042
        %7125 = vadd.xlane.f32.xlu0 %v7124
        %v7126 = vpop.xlane.xlu0 %7125
        %v7127 = vadd.f32 %v7043, %v7044
        %7128 = vadd.xlane.f32.xlu0 %v7127
        %v7129 = vpop.xlane.xlu0 %7128
        %v7130 = vadd.f32 %v7045, %v7046
        %7131 = vadd.xlane.f32.xlu0 %v7130
        %v7132 = vpop.xlane.xlu0 %7131
        %v7133 = vadd.f32 %v7047, %v7048
        %7134 = vadd.xlane.f32.xlu0 %v7133
        %v7135 = vpop.xlane.xlu0 %7134
        %v7136 = vadd.f32 %v7049, %v7050
        %7137 = vadd.xlane.f32.xlu0 %v7136
        %v7138 = vpop.xlane.xlu0 %7137
        %v7139 = vadd.f32 %v7051, %v7052
        %7140 = vadd.xlane.f32.xlu0 %v7139
        %v7141 = vpop.xlane.xlu0 %7140
        %v7142 = vadd.f32 %v7053, %v7054
        %7143 = vadd.xlane.f32.xlu0 %v7142
        %v7144 = vpop.xlane.xlu0 %7143
        %v7145 = vadd.f32 %v7055, %v7056
        %7146 = vadd.xlane.f32.xlu0 %v7145
        %v7147 = vpop.xlane.xlu0 %7146
        %v7148 = vadd.f32 %v7057, %v7058
        %7149 = vadd.xlane.f32.xlu0 %v7148
        %v7150 = vpop.xlane.xlu0 %7149
        %v7151 = vadd.f32 %v7059, %v7060
        %7152 = vadd.xlane.f32.xlu0 %v7151
        %v7153 = vpop.xlane.xlu0 %7152
        %v7154 = vadd.f32 %v7061, %v7062
        %7155 = vadd.xlane.f32.xlu0 %v7154
        %v7156 = vpop.xlane.xlu0 %7155
        %v7157 = vadd.f32 %v7063, %v7064
        %7158 = vadd.xlane.f32.xlu0 %v7157
        %v7159 = vpop.xlane.xlu0 %7158
        %v7160 = vadd.f32 %v7065, %v7066
        %7161 = vadd.xlane.f32.xlu0 %v7160
        %v7162 = vpop.xlane.xlu0 %7161
        %v7163 = vadd.f32 %v5214, %v7069
        %v7164 = vadd.f32 %v5215, %v7072
        %v7165 = vadd.f32 %v5216, %v7075
        %v7166 = vadd.f32 %v5217, %v7078
        %v7167 = vadd.f32 %v5218, %v7081
        %v7168 = vadd.f32 %v5219, %v7084
        %v7169 = vadd.f32 %v5220, %v7087
        %v7170 = vadd.f32 %v5221, %v7090
        %v7171 = vadd.f32 %v5222, %v7093
        %v7172 = vadd.f32 %v5223, %v7096
        %v7173 = vadd.f32 %v5224, %v7099
        %v7174 = vadd.f32 %v5225, %v7102
        %v7175 = vadd.f32 %v5226, %v7105
        %v7176 = vadd.f32 %v5227, %v7108
        %v7177 = vadd.f32 %v5228, %v7111
        %v7178 = vadd.f32 %v5229, %v7114
        %v7179 = vadd.f32 %v5230, %v7117
        %v7180 = vadd.f32 %v5231, %v7120
        %v7181 = vadd.f32 %v5232, %v7123
        %v7182 = vadd.f32 %v5233, %v7126
        %v7183 = vadd.f32 %v5234, %v7129
        %v7184 = vadd.f32 %v5235, %v7132
        %v7185 = vadd.f32 %v5236, %v7135
        %v7186 = vadd.f32 %v5237, %v7138
        %v7187 = vadd.f32 %v5238, %v7141
        %v7188 = vadd.f32 %v5239, %v7144
        %v7189 = vadd.f32 %v5240, %v7147
        %v7190 = vadd.f32 %v5241, %v7150
        %v7191 = vadd.f32 %v5242, %v7153
        %v7192 = vadd.f32 %v5243, %v7156
        %v7193 = vadd.f32 %v5244, %v7159
        %v7194 = vadd.f32 %v5245, %v7162
        %v7195 = vld [vmem:[#allocation8 + $0x10] sm:$0xff]
        %v7196 = vld [vmem:[#allocation8 + $0x28] sm:$0xff]
        %v7197 = vld [vmem:[#allocation8 + $0x40] sm:$0xff]
        %v7198 = vld [vmem:[#allocation8 + $0x58] sm:$0xff]
        %v7199 = vld [vmem:[#allocation8 + $0x70] sm:$0xff]
        %v7200 = vld [vmem:[#allocation8 + $0x88] sm:$0xff]
        %v7201 = vld [vmem:[#allocation8 + $0xa0] sm:$0xff]
        %v7202 = vld [vmem:[#allocation8 + $0xb8] sm:$0xff]
        %v7203 = vld [vmem:[#allocation8 + $0xd0] sm:$0xff]
        %v7204 = vld [vmem:[#allocation8 + $0xe8] sm:$0xff]
        %v7205 = vld [vmem:[#allocation8 + $0x100] sm:$0xff]
        %v7206 = vld [vmem:[#allocation8 + $0x118] sm:$0xff]
        %v7207 = vld [vmem:[#allocation8 + $0x130] sm:$0xff]
        %v7208 = vld [vmem:[#allocation8 + $0x148] sm:$0xff]
        %v7209 = vld [vmem:[#allocation8 + $0x160] sm:$0xff]
        %v7210 = vld [vmem:[#allocation8 + $0x178] sm:$0xff]
        %v7211 = vld [vmem:[#allocation8 + $0x190] sm:$0xff]
        %v7212 = vld [vmem:[#allocation8 + $0x1a8] sm:$0xff]
        %v7213 = vld [vmem:[#allocation8 + $0x1c0] sm:$0xff]
        %v7214 = vld [vmem:[#allocation8 + $0x1d8] sm:$0xff]
        %v7215 = vld [vmem:[#allocation8 + $0x1f0] sm:$0xff]
        %v7216 = vld [vmem:[#allocation8 + $0x208] sm:$0xff]
        %v7217 = vld [vmem:[#allocation8 + $0x220] sm:$0xff]
        %v7218 = vld [vmem:[#allocation8 + $0x238] sm:$0xff]
        %v7219 = vld [vmem:[#allocation8 + $0x250] sm:$0xff]
        %v7220 = vld [vmem:[#allocation8 + $0x268] sm:$0xff]
        %v7221 = vld [vmem:[#allocation8 + $0x280] sm:$0xff]
        %v7222 = vld [vmem:[#allocation8 + $0x298] sm:$0xff]
        %v7223 = vld [vmem:[#allocation8 + $0x2b0] sm:$0xff]
        %v7224 = vld [vmem:[#allocation8 + $0x2c8] sm:$0xff]
        %v7225 = vld [vmem:[#allocation8 + $0x2e0] sm:$0xff]
        %v7226 = vld [vmem:[#allocation8 + $0x2f8] sm:$0xff]
        %v7227 = vld [vmem:[#allocation8 + $0x310] sm:$0xff]
        %v7228 = vld [vmem:[#allocation8 + $0x328] sm:$0xff]
        %v7229 = vld [vmem:[#allocation8 + $0x340] sm:$0xff]
        %v7230 = vld [vmem:[#allocation8 + $0x358] sm:$0xff]
        %v7231 = vld [vmem:[#allocation8 + $0x370] sm:$0xff]
        %v7232 = vld [vmem:[#allocation8 + $0x388] sm:$0xff]
        %v7233 = vld [vmem:[#allocation8 + $0x3a0] sm:$0xff]
        %v7234 = vld [vmem:[#allocation8 + $0x3b8] sm:$0xff]
        %v7235 = vld [vmem:[#allocation8 + $0x3d0] sm:$0xff]
        %v7236 = vld [vmem:[#allocation8 + $0x3e8] sm:$0xff]
        %v7237 = vld [vmem:[#allocation8 + $0x400] sm:$0xff]
        %v7238 = vld [vmem:[#allocation8 + $0x418] sm:$0xff]
        %v7239 = vld [vmem:[#allocation8 + $0x430] sm:$0xff]
        %v7240 = vld [vmem:[#allocation8 + $0x448] sm:$0xff]
        %v7241 = vld [vmem:[#allocation8 + $0x460] sm:$0xff]
        %v7242 = vld [vmem:[#allocation8 + $0x478] sm:$0xff]
        %v7243 = vld [vmem:[#allocation8 + $0x490] sm:$0xff]
        %v7244 = vld [vmem:[#allocation8 + $0x4a8] sm:$0xff]
        %v7245 = vld [vmem:[#allocation8 + $0x4c0] sm:$0xff]
        %v7246 = vld [vmem:[#allocation8 + $0x4d8] sm:$0xff]
        %v7247 = vld [vmem:[#allocation8 + $0x4f0] sm:$0xff]
        %v7248 = vld [vmem:[#allocation8 + $0x508] sm:$0xff]
        %v7249 = vld [vmem:[#allocation8 + $0x520] sm:$0xff]
        %v7250 = vld [vmem:[#allocation8 + $0x538] sm:$0xff]
        %v7251 = vld [vmem:[#allocation8 + $0x550] sm:$0xff]
        %v7252 = vld [vmem:[#allocation8 + $0x568] sm:$0xff]
        %v7253 = vld [vmem:[#allocation8 + $0x580] sm:$0xff]
        %v7254 = vld [vmem:[#allocation8 + $0x598] sm:$0xff]
        %v7255 = vld [vmem:[#allocation8 + $0x5b0] sm:$0xff]
        %v7256 = vld [vmem:[#allocation8 + $0x5c8] sm:$0xff]
        %v7257 = vld [vmem:[#allocation8 + $0x5e0] sm:$0xff]
        %v7258 = vld [vmem:[#allocation8 + $0x5f8] sm:$0xff]
        %v7259 = vld [vmem:[#allocation8 + $0x610] sm:$0xff]
        %v7260 = vld [vmem:[#allocation8 + $0x628] sm:$0xff]
        %v7261 = vld [vmem:[#allocation8 + $0x640] sm:$0xff]
        %v7262 = vld [vmem:[#allocation8 + $0x658] sm:$0xff]
        %v7263 = vld [vmem:[#allocation8 + $0x670] sm:$0xff]
        %v7264 = vld [vmem:[#allocation8 + $0x688] sm:$0xff]
        %v7265 = vld [vmem:[#allocation8 + $0x6a0] sm:$0xff]
        %v7266 = vld [vmem:[#allocation8 + $0x6b8] sm:$0xff]
        %v7267 = vld [vmem:[#allocation8 + $0x6d0] sm:$0xff]
        %v7268 = vld [vmem:[#allocation8 + $0x6e8] sm:$0xff]
        %v7269 = vld [vmem:[#allocation8 + $0x700] sm:$0xff]
        %v7270 = vld [vmem:[#allocation8 + $0x718] sm:$0xff]
        %v7271 = vld [vmem:[#allocation8 + $0x730] sm:$0xff]
        %v7272 = vld [vmem:[#allocation8 + $0x748] sm:$0xff]
        %v7273 = vld [vmem:[#allocation8 + $0x760] sm:$0xff]
        %v7274 = vld [vmem:[#allocation8 + $0x778] sm:$0xff]
        %v7275 = vld [vmem:[#allocation8 + $0x790] sm:$0xff]
        %v7276 = vld [vmem:[#allocation8 + $0x7a8] sm:$0xff]
        %v7277 = vld [vmem:[#allocation8 + $0x7c0] sm:$0xff]
        %v7278 = vld [vmem:[#allocation8 + $0x7d8] sm:$0xff]
        %v7279 = vld [vmem:[#allocation8 + $0x7f0] sm:$0xff]
        %v7280 = vld [vmem:[#allocation8 + $0x808] sm:$0xff]
        %v7281 = vld [vmem:[#allocation8 + $0x820] sm:$0xff]
        %v7282 = vld [vmem:[#allocation8 + $0x838] sm:$0xff]
        %v7283 = vld [vmem:[#allocation8 + $0x850] sm:$0xff]
        %v7284 = vld [vmem:[#allocation8 + $0x868] sm:$0xff]
        %v7285 = vld [vmem:[#allocation8 + $0x880] sm:$0xff]
        %v7286 = vld [vmem:[#allocation8 + $0x898] sm:$0xff]
        %v7287 = vld [vmem:[#allocation8 + $0x8b0] sm:$0xff]
        %v7288 = vld [vmem:[#allocation8 + $0x8c8] sm:$0xff]
        %v7289 = vld [vmem:[#allocation8 + $0x8e0] sm:$0xff]
        %v7290 = vld [vmem:[#allocation8 + $0x8f8] sm:$0xff]
        %v7387 = vunpack.c.l.b16 %v7195
        %v7388 = vunpack.c.h.b16 %v7195
        %v7389 = vunpack.c.l.b16 %v7196
        %v7390 = vunpack.c.h.b16 %v7196
        %v7391 = vunpack.c.l.b16 %v7197
        %v7392 = vunpack.c.h.b16 %v7197
        %v7393 = vunpack.c.l.b16 %v7198
        %v7394 = vunpack.c.h.b16 %v7198
        %v7395 = vunpack.c.l.b16 %v7199
        %v7396 = vunpack.c.h.b16 %v7199
        %v7397 = vunpack.c.l.b16 %v7200
        %v7398 = vunpack.c.h.b16 %v7200
        %v7399 = vunpack.c.l.b16 %v7201
        %v7400 = vunpack.c.h.b16 %v7201
        %v7401 = vunpack.c.l.b16 %v7202
        %v7402 = vunpack.c.h.b16 %v7202
        %v7403 = vunpack.c.l.b16 %v7203
        %v7404 = vunpack.c.h.b16 %v7203
        %v7405 = vunpack.c.l.b16 %v7204
        %v7406 = vunpack.c.h.b16 %v7204
        %v7407 = vunpack.c.l.b16 %v7205
        %v7408 = vunpack.c.h.b16 %v7205
        %v7409 = vunpack.c.l.b16 %v7206
        %v7410 = vunpack.c.h.b16 %v7206
        %v7411 = vunpack.c.l.b16 %v7207
        %v7412 = vunpack.c.h.b16 %v7207
        %v7413 = vunpack.c.l.b16 %v7208
        %v7414 = vunpack.c.h.b16 %v7208
        %v7415 = vunpack.c.l.b16 %v7209
        %v7416 = vunpack.c.h.b16 %v7209
        %v7417 = vunpack.c.l.b16 %v7210
        %v7418 = vunpack.c.h.b16 %v7210
        %v7419 = vunpack.c.l.b16 %v7211
        %v7420 = vunpack.c.h.b16 %v7211
        %v7421 = vunpack.c.l.b16 %v7212
        %v7422 = vunpack.c.h.b16 %v7212
        %v7423 = vunpack.c.l.b16 %v7213
        %v7424 = vunpack.c.h.b16 %v7213
        %v7425 = vunpack.c.l.b16 %v7214
        %v7426 = vunpack.c.h.b16 %v7214
        %v7427 = vunpack.c.l.b16 %v7215
        %v7428 = vunpack.c.h.b16 %v7215
        %v7429 = vunpack.c.l.b16 %v7216
        %v7430 = vunpack.c.h.b16 %v7216
        %v7431 = vunpack.c.l.b16 %v7217
        %v7432 = vunpack.c.h.b16 %v7217
        %v7433 = vunpack.c.l.b16 %v7218
        %v7434 = vunpack.c.h.b16 %v7218
        %v7435 = vunpack.c.l.b16 %v7219
        %v7436 = vunpack.c.h.b16 %v7219
        %v7437 = vunpack.c.l.b16 %v7220
        %v7438 = vunpack.c.h.b16 %v7220
        %v7439 = vunpack.c.l.b16 %v7221
        %v7440 = vunpack.c.h.b16 %v7221
        %v7441 = vunpack.c.l.b16 %v7222
        %v7442 = vunpack.c.h.b16 %v7222
        %v7443 = vunpack.c.l.b16 %v7223
        %v7444 = vunpack.c.h.b16 %v7223
        %v7445 = vunpack.c.l.b16 %v7224
        %v7446 = vunpack.c.h.b16 %v7224
        %v7447 = vunpack.c.l.b16 %v7225
        %v7448 = vunpack.c.h.b16 %v7225
        %v7449 = vunpack.c.l.b16 %v7226
        %v7450 = vunpack.c.h.b16 %v7226
        %v7451 = vunpack.c.l.b16 %v7227
        %v7452 = vunpack.c.h.b16 %v7227
        %v7453 = vunpack.c.l.b16 %v7228
        %v7454 = vunpack.c.h.b16 %v7228
        %v7455 = vunpack.c.l.b16 %v7229
        %v7456 = vunpack.c.h.b16 %v7229
        %v7457 = vunpack.c.l.b16 %v7230
        %v7458 = vunpack.c.h.b16 %v7230
        %v7459 = vunpack.c.l.b16 %v7231
        %v7460 = vunpack.c.h.b16 %v7231
        %v7461 = vunpack.c.l.b16 %v7232
        %v7462 = vunpack.c.h.b16 %v7232
        %v7463 = vunpack.c.l.b16 %v7233
        %v7464 = vunpack.c.h.b16 %v7233
        %v7465 = vunpack.c.l.b16 %v7234
        %v7466 = vunpack.c.h.b16 %v7234
        %v7467 = vunpack.c.l.b16 %v7235
        %v7468 = vunpack.c.h.b16 %v7235
        %v7469 = vunpack.c.l.b16 %v7236
        %v7470 = vunpack.c.h.b16 %v7236
        %v7471 = vunpack.c.l.b16 %v7237
        %v7472 = vunpack.c.h.b16 %v7237
        %v7473 = vunpack.c.l.b16 %v7238
        %v7474 = vunpack.c.h.b16 %v7238
        %v7475 = vunpack.c.l.b16 %v7239
        %v7476 = vunpack.c.h.b16 %v7239
        %v7477 = vunpack.c.l.b16 %v7240
        %v7478 = vunpack.c.h.b16 %v7240
        %v7479 = vunpack.c.l.b16 %v7241
        %v7480 = vunpack.c.h.b16 %v7241
        %v7481 = vunpack.c.l.b16 %v7242
        %v7482 = vunpack.c.h.b16 %v7242
        %v7483 = vunpack.c.l.b16 %v7243
        %v7484 = vunpack.c.h.b16 %v7243
        %v7485 = vunpack.c.l.b16 %v7244
        %v7486 = vunpack.c.h.b16 %v7244
        %v7487 = vunpack.c.l.b16 %v7245
        %v7488 = vunpack.c.h.b16 %v7245
        %v7489 = vunpack.c.l.b16 %v7246
        %v7490 = vunpack.c.h.b16 %v7246
        %v7491 = vunpack.c.l.b16 %v7247
        %v7492 = vunpack.c.h.b16 %v7247
        %v7493 = vunpack.c.l.b16 %v7248
        %v7494 = vunpack.c.h.b16 %v7248
        %v7495 = vunpack.c.l.b16 %v7249
        %v7496 = vunpack.c.h.b16 %v7249
        %v7497 = vunpack.c.l.b16 %v7250
        %v7498 = vunpack.c.h.b16 %v7250
        %v7499 = vunpack.c.l.b16 %v7251
        %v7500 = vunpack.c.h.b16 %v7251
        %v7501 = vunpack.c.l.b16 %v7252
        %v7502 = vunpack.c.h.b16 %v7252
        %v7503 = vunpack.c.l.b16 %v7253
        %v7504 = vunpack.c.h.b16 %v7253
        %v7505 = vunpack.c.l.b16 %v7254
        %v7506 = vunpack.c.h.b16 %v7254
        %v7507 = vunpack.c.l.b16 %v7255
        %v7508 = vunpack.c.h.b16 %v7255
        %v7509 = vunpack.c.l.b16 %v7256
        %v7510 = vunpack.c.h.b16 %v7256
        %v7511 = vunpack.c.l.b16 %v7257
        %v7512 = vunpack.c.h.b16 %v7257
        %v7513 = vunpack.c.l.b16 %v7258
        %v7514 = vunpack.c.h.b16 %v7258
        %v7515 = vunpack.c.l.b16 %v7259
        %v7516 = vunpack.c.h.b16 %v7259
        %v7517 = vunpack.c.l.b16 %v7260
        %v7518 = vunpack.c.h.b16 %v7260
        %v7519 = vunpack.c.l.b16 %v7261
        %v7520 = vunpack.c.h.b16 %v7261
        %v7521 = vunpack.c.l.b16 %v7262
        %v7522 = vunpack.c.h.b16 %v7262
        %v7523 = vunpack.c.l.b16 %v7263
        %v7524 = vunpack.c.h.b16 %v7263
        %v7525 = vunpack.c.l.b16 %v7264
        %v7526 = vunpack.c.h.b16 %v7264
        %v7527 = vunpack.c.l.b16 %v7265
        %v7528 = vunpack.c.h.b16 %v7265
        %v7529 = vunpack.c.l.b16 %v7266
        %v7530 = vunpack.c.h.b16 %v7266
        %v7531 = vunpack.c.l.b16 %v7267
        %v7532 = vunpack.c.h.b16 %v7267
        %v7533 = vunpack.c.l.b16 %v7268
        %v7534 = vunpack.c.h.b16 %v7268
        %v7535 = vunpack.c.l.b16 %v7269
        %v7536 = vunpack.c.h.b16 %v7269
        %v7537 = vunpack.c.l.b16 %v7270
        %v7538 = vunpack.c.h.b16 %v7270
        %v7539 = vunpack.c.l.b16 %v7271
        %v7540 = vunpack.c.h.b16 %v7271
        %v7541 = vunpack.c.l.b16 %v7272
        %v7542 = vunpack.c.h.b16 %v7272
        %v7543 = vunpack.c.l.b16 %v7273
        %v7544 = vunpack.c.h.b16 %v7273
        %v7545 = vunpack.c.l.b16 %v7274
        %v7546 = vunpack.c.h.b16 %v7274
        %v7547 = vunpack.c.l.b16 %v7275
        %v7548 = vunpack.c.h.b16 %v7275
        %v7549 = vunpack.c.l.b16 %v7276
        %v7550 = vunpack.c.h.b16 %v7276
        %v7551 = vunpack.c.l.b16 %v7277
        %v7552 = vunpack.c.h.b16 %v7277
        %v7553 = vunpack.c.l.b16 %v7278
        %v7554 = vunpack.c.h.b16 %v7278
        %v7555 = vunpack.c.l.b16 %v7279
        %v7556 = vunpack.c.h.b16 %v7279
        %v7557 = vunpack.c.l.b16 %v7280
        %v7558 = vunpack.c.h.b16 %v7280
        %v7559 = vunpack.c.l.b16 %v7281
        %v7560 = vunpack.c.h.b16 %v7281
        %v7561 = vunpack.c.l.b16 %v7282
        %v7562 = vunpack.c.h.b16 %v7282
        %v7563 = vunpack.c.l.b16 %v7283
        %v7564 = vunpack.c.h.b16 %v7283
        %v7565 = vunpack.c.l.b16 %v7284
        %v7566 = vunpack.c.h.b16 %v7284
        %v7567 = vunpack.c.l.b16 %v7285
        %v7568 = vunpack.c.h.b16 %v7285
        %v7569 = vunpack.c.l.b16 %v7286
        %v7570 = vunpack.c.h.b16 %v7286
        %v7571 = vunpack.c.l.b16 %v7287
        %v7572 = vunpack.c.h.b16 %v7287
        %v7573 = vunpack.c.l.b16 %v7288
        %v7574 = vunpack.c.h.b16 %v7288
        %v7575 = vunpack.c.l.b16 %v7289
        %v7576 = vunpack.c.h.b16 %v7289
        %v7577 = vunpack.c.l.b16 %v7290
        %v7578 = vunpack.c.h.b16 %v7290
        %v7579 = vpack.c.b16 %v7389, %v7387
        %v7580 = vpack.c.b16 %v7390, %v7388
        %v7581 = vpack.c.b16 %v7393, %v7391
        %v7582 = vpack.c.b16 %v7394, %v7392
        %v7583 = vpack.c.b16 %v7397, %v7395
        %v7584 = vpack.c.b16 %v7398, %v7396
        %v7585 = vpack.c.b16 %v7401, %v7399
        %v7586 = vpack.c.b16 %v7402, %v7400
        %v7587 = vpack.c.b16 %v7405, %v7403
        %v7588 = vpack.c.b16 %v7406, %v7404
        %v7589 = vpack.c.b16 %v7409, %v7407
        %v7590 = vpack.c.b16 %v7410, %v7408
        %v7591 = vpack.c.b16 %v7413, %v7411
        %v7592 = vpack.c.b16 %v7414, %v7412
        %v7593 = vpack.c.b16 %v7417, %v7415
        %v7594 = vpack.c.b16 %v7418, %v7416
        %v7595 = vpack.c.b16 %v7421, %v7419
        %v7596 = vpack.c.b16 %v7422, %v7420
        %v7597 = vpack.c.b16 %v7425, %v7423
        %v7598 = vpack.c.b16 %v7426, %v7424
        %v7599 = vpack.c.b16 %v7429, %v7427
        %v7600 = vpack.c.b16 %v7430, %v7428
        %v7601 = vpack.c.b16 %v7433, %v7431
        %v7602 = vpack.c.b16 %v7434, %v7432
        %v7603 = vpack.c.b16 %v7437, %v7435
        %v7604 = vpack.c.b16 %v7438, %v7436
        %v7605 = vpack.c.b16 %v7441, %v7439
        %v7606 = vpack.c.b16 %v7442, %v7440
        %v7607 = vpack.c.b16 %v7445, %v7443
        %v7608 = vpack.c.b16 %v7446, %v7444
        %v7609 = vpack.c.b16 %v7449, %v7447
        %v7610 = vpack.c.b16 %v7450, %v7448
        %v7611 = vpack.c.b16 %v7453, %v7451
        %v7612 = vpack.c.b16 %v7454, %v7452
        %v7613 = vpack.c.b16 %v7457, %v7455
        %v7614 = vpack.c.b16 %v7458, %v7456
        %v7615 = vpack.c.b16 %v7461, %v7459
        %v7616 = vpack.c.b16 %v7462, %v7460
        %v7617 = vpack.c.b16 %v7465, %v7463
        %v7618 = vpack.c.b16 %v7466, %v7464
        %v7619 = vpack.c.b16 %v7469, %v7467
        %v7620 = vpack.c.b16 %v7470, %v7468
        %v7621 = vpack.c.b16 %v7473, %v7471
        %v7622 = vpack.c.b16 %v7474, %v7472
        %v7623 = vpack.c.b16 %v7477, %v7475
        %v7624 = vpack.c.b16 %v7478, %v7476
        %v7625 = vpack.c.b16 %v7481, %v7479
        %v7626 = vpack.c.b16 %v7482, %v7480
        %v7627 = vpack.c.b16 %v7485, %v7483
        %v7628 = vpack.c.b16 %v7486, %v7484
        %v7629 = vpack.c.b16 %v7489, %v7487
        %v7630 = vpack.c.b16 %v7490, %v7488
        %v7631 = vpack.c.b16 %v7493, %v7491
        %v7632 = vpack.c.b16 %v7494, %v7492
        %v7633 = vpack.c.b16 %v7497, %v7495
        %v7634 = vpack.c.b16 %v7498, %v7496
        %v7635 = vpack.c.b16 %v7501, %v7499
        %v7636 = vpack.c.b16 %v7502, %v7500
        %v7637 = vpack.c.b16 %v7505, %v7503
        %v7638 = vpack.c.b16 %v7506, %v7504
        %v7639 = vpack.c.b16 %v7509, %v7507
        %v7640 = vpack.c.b16 %v7510, %v7508
        %v7641 = vpack.c.b16 %v7513, %v7511
        %v7642 = vpack.c.b16 %v7514, %v7512
        %v7643 = vpack.c.b16 %v7517, %v7515
        %v7644 = vpack.c.b16 %v7518, %v7516
        %v7645 = vpack.c.b16 %v7521, %v7519
        %v7646 = vpack.c.b16 %v7522, %v7520
        %v7647 = vpack.c.b16 %v7525, %v7523
        %v7648 = vpack.c.b16 %v7526, %v7524
        %v7649 = vpack.c.b16 %v7529, %v7527
        %v7650 = vpack.c.b16 %v7530, %v7528
        %v7651 = vpack.c.b16 %v7533, %v7531
        %v7652 = vpack.c.b16 %v7534, %v7532
        %v7653 = vpack.c.b16 %v7537, %v7535
        %v7654 = vpack.c.b16 %v7538, %v7536
        %v7655 = vpack.c.b16 %v7541, %v7539
        %v7656 = vpack.c.b16 %v7542, %v7540
        %v7657 = vpack.c.b16 %v7545, %v7543
        %v7658 = vpack.c.b16 %v7546, %v7544
        %v7659 = vpack.c.b16 %v7549, %v7547
        %v7660 = vpack.c.b16 %v7550, %v7548
        %v7661 = vpack.c.b16 %v7553, %v7551
        %v7662 = vpack.c.b16 %v7554, %v7552
        %v7663 = vpack.c.b16 %v7557, %v7555
        %v7664 = vpack.c.b16 %v7558, %v7556
        %v7665 = vpack.c.b16 %v7561, %v7559
        %v7666 = vpack.c.b16 %v7562, %v7560
        %v7667 = vpack.c.b16 %v7565, %v7563
        %v7668 = vpack.c.b16 %v7566, %v7564
        %v7669 = vpack.c.b16 %v7569, %v7567
        %v7670 = vpack.c.b16 %v7570, %v7568
        %v7671 = vpack.c.b16 %v7573, %v7571
        %v7672 = vpack.c.b16 %v7574, %v7572
        %v7673 = vpack.c.b16 %v7577, %v7575
        %v7674 = vpack.c.b16 %v7578, %v7576
        %7771 = vmatprep.subr.bf16.mxu0 %v7580
        %7772 = vmatpush1.bf16.msra.mxu0 %v7579
        %7773 = vmatprep.subr.bf16.mxu0 %v7582
        %7774 = vmatpush1.bf16.msra.mxu0 %v7581
        %7775 = vmatprep.subr.bf16.mxu0 %v7584
        %7776 = vmatpush1.bf16.msra.mxu0 %v7583
        %7777 = vmatprep.subr.bf16.mxu0 %v7586
        %7778 = vmatpush1.bf16.msra.mxu0 %v7585
        %7779 = vmatprep.subr.bf16.mxu0 %v7588
        %7780 = vmatpush1.bf16.msra.mxu0 %v7587
        %7781 = vmatprep.subr.bf16.mxu0 %v7590
        %7782 = vmatpush1.bf16.msra.mxu0 %v7589
        %7783 = vmatprep.subr.bf16.mxu0 %v7592
        %7784 = vmatpush1.bf16.msra.mxu0 %v7591
        %7785 = vmatprep.subr.bf16.mxu0 %v7594
        %7786 = vmatpush1.bf16.msra.mxu0 %v7593
        %7787 = vmatprep.subr.bf16.mxu0 %v7596
        %7788 = vmatpush1.bf16.msra.mxu0 %v7595
        %7789 = vmatprep.subr.bf16.mxu0 %v7598
        %7790 = vmatpush1.bf16.msra.mxu0 %v7597
        %7791 = vmatprep.subr.bf16.mxu0 %v7600
        %7792 = vmatpush1.bf16.msra.mxu0 %v7599
        %7793 = vmatprep.subr.bf16.mxu0 %v7602
        %7794 = vmatpush1.bf16.msra.mxu0 %v7601
        %7795 = vmatprep.subr.bf16.mxu0 %v7604
        %7796 = vmatpush1.bf16.msra.mxu0 %v7603
        %7797 = vmatprep.subr.bf16.mxu0 %v7606
        %7798 = vmatpush1.bf16.msra.mxu0 %v7605
        %7799 = vmatprep.subr.bf16.mxu0 %v7608
        %7800 = vmatpush1.bf16.msra.mxu0 %v7607
        %7801 = vmatprep.subr.bf16.mxu0 %v7610
        %7802 = vmatpush1.bf16.msra.mxu0 %v7609
        %7803 = vmatprep.mubr.bf16.mxu0 %v2336
        %7804 = vmatmul.mubr.bf16.gmra.mrb[0].mxu0 %v2335
        %v7805 = vpop.f32.mrb[0].mxu0
        %v7806 = vadd.f32 0.0, %v7805
        %v7807 = vpop.f32.mrb[0].mxu0
        %v7808 = vadd.f32 0.0, %v7807
        %v7809 = vpop.f32.mrb[0].mxu0
        %v7810 = vadd.f32 0.0, %v7809
        %v7811 = vpop.f32.mrb[0].mxu0
        %v7812 = vadd.f32 0.0, %v7811
        %7813 = vmatprep.mubr.bf16.mxu0 %v2342
        %7814 = vmatmul.mubr.bf16.gmra.mrb[0].mxu0 %v2341
        %v7815 = vpop.f32.mrb[0].mxu0
        %v7816 = vadd.f32 0.0, %v7815
        %v7817 = vpop.f32.mrb[0].mxu0
        %v7818 = vadd.f32 0.0, %v7817
        %v7819 = vpop.f32.mrb[0].mxu0
        %v7820 = vadd.f32 0.0, %v7819
        %v7821 = vpop.f32.mrb[0].mxu0
        %v7822 = vadd.f32 0.0, %v7821
        %7823 = vmatprep.mubr.bf16.mxu0 %v2348
        %7824 = vmatmul.mubr.bf16.gmra.mrb[0].mxu0 %v2347
        %v7825 = vpop.f32.mrb[0].mxu0
        %v7826 = vadd.f32 0.0, %v7825
        %v7827 = vpop.f32.mrb[0].mxu0
        %v7828 = vadd.f32 0.0, %v7827
        %v7829 = vpop.f32.mrb[0].mxu0
        %v7830 = vadd.f32 0.0, %v7829
        %v7831 = vpop.f32.mrb[0].mxu0
        %v7832 = vadd.f32 0.0, %v7831
        %7833 = vmatprep.mubr.bf16.mxu0 %v2354
        %7834 = vmatmul.mubr.bf16.gmra.mrb[0].mxu0 %v2353
        %v7835 = vpop.f32.mrb[0].mxu0
        %v7836 = vadd.f32 0.0, %v7835
        %v7837 = vpop.f32.mrb[0].mxu0
        %v7838 = vadd.f32 0.0, %v7837
        %v7839 = vpop.f32.mrb[0].mxu0
        %v7840 = vadd.f32 0.0, %v7839
        %v7841 = vpop.f32.mrb[0].mxu0
        %v7842 = vadd.f32 0.0, %v7841
        %7843 = vmatprep.mubr.bf16.mxu0 %v2360
        %7844 = vmatmul.mubr.bf16.gmra.mrb[0].mxu0 %v2359
        %v7845 = vpop.f32.mrb[0].mxu0
        %v7846 = vadd.f32 0.0, %v7845
        %v7847 = vpop.f32.mrb[0].mxu0
        %v7848 = vadd.f32 0.0, %v7847
        %v7849 = vpop.f32.mrb[0].mxu0
        %v7850 = vadd.f32 0.0, %v7849
        %v7851 = vpop.f32.mrb[0].mxu0
        %v7852 = vadd.f32 0.0, %v7851
        %7853 = vmatprep.mubr.bf16.mxu0 %v2366
        %7854 = vmatmul.mubr.bf16.gmra.mrb[0].mxu0 %v2365
        %v7855 = vpop.f32.mrb[0].mxu0
        %v7856 = vadd.f32 0.0, %v7855
        %v7857 = vpop.f32.mrb[0].mxu0
        %v7858 = vadd.f32 0.0, %v7857
        %v7859 = vpop.f32.mrb[0].mxu0
        %v7860 = vadd.f32 0.0, %v7859
        %v7861 = vpop.f32.mrb[0].mxu0
        %v7862 = vadd.f32 0.0, %v7861
        %7863 = vmatprep.mubr.bf16.mxu0 %v2372
        %7864 = vmatmul.mubr.bf16.gmra.mrb[0].mxu0 %v2371
        %v7865 = vpop.f32.mrb[0].mxu0
        %v7866 = vadd.f32 0.0, %v7865
        %v7867 = vpop.f32.mrb[0].mxu0
        %v7868 = vadd.f32 0.0, %v7867
        %v7869 = vpop.f32.mrb[0].mxu0
        %v7870 = vadd.f32 0.0, %v7869
        %v7871 = vpop.f32.mrb[0].mxu0
        %v7872 = vadd.f32 0.0, %v7871
        %7873 = vmatprep.mubr.bf16.mxu0 %v2378
        %7874 = vmatmul.mubr.bf16.gmra.mrb[0].mxu0 %v2377
        %v7875 = vpop.f32.mrb[0].mxu0
        %v7876 = vadd.f32 0.0, %v7875
        %v7877 = vpop.f32.mrb[0].mxu0
        %v7878 = vadd.f32 0.0, %v7877
        %v7879 = vpop.f32.mrb[0].mxu0
        %v7880 = vadd.f32 0.0, %v7879
        %v7881 = vpop.f32.mrb[0].mxu0
        %v7882 = vadd.f32 0.0, %v7881
        %7883 = vmatprep.mubr.bf16.mxu0 %v2384
        %7884 = vmatmul.mubr.bf16.gmra.mrb[0].mxu0 %v2383
        %v7885 = vpop.f32.mrb[0].mxu0
        %v7886 = vadd.f32 0.0, %v7885
        %v7887 = vpop.f32.mrb[0].mxu0
        %v7888 = vadd.f32 0.0, %v7887
        %v7889 = vpop.f32.mrb[0].mxu0
        %v7890 = vadd.f32 0.0, %v7889
        %v7891 = vpop.f32.mrb[0].mxu0
        %v7892 = vadd.f32 0.0, %v7891
        %7893 = vmatprep.mubr.bf16.mxu0 %v2390
        %7894 = vmatmul.mubr.bf16.gmra.mrb[0].mxu0 %v2389
        %v7895 = vpop.f32.mrb[0].mxu0
        %v7896 = vadd.f32 0.0, %v7895
        %v7897 = vpop.f32.mrb[0].mxu0
        %v7898 = vadd.f32 0.0, %v7897
        %v7899 = vpop.f32.mrb[0].mxu0
        %v7900 = vadd.f32 0.0, %v7899
        %v7901 = vpop.f32.mrb[0].mxu0
        %v7902 = vadd.f32 0.0, %v7901
        %7903 = vmatprep.mubr.bf16.mxu0 %v2396
        %7904 = vmatmul.mubr.bf16.gmra.mrb[0].mxu0 %v2395
        %v7905 = vpop.f32.mrb[0].mxu0
        %v7906 = vadd.f32 0.0, %v7905
        %v7907 = vpop.f32.mrb[0].mxu0
        %v7908 = vadd.f32 0.0, %v7907
        %v7909 = vpop.f32.mrb[0].mxu0
        %v7910 = vadd.f32 0.0, %v7909
        %v7911 = vpop.f32.mrb[0].mxu0
        %v7912 = vadd.f32 0.0, %v7911
        %7913 = vmatprep.mubr.bf16.mxu0 %v2402
        %7914 = vmatmul.mubr.bf16.gmra.mrb[0].mxu0 %v2401
        %v7915 = vpop.f32.mrb[0].mxu0
        %v7916 = vadd.f32 0.0, %v7915
        %v7917 = vpop.f32.mrb[0].mxu0
        %v7918 = vadd.f32 0.0, %v7917
        %v7919 = vpop.f32.mrb[0].mxu0
        %v7920 = vadd.f32 0.0, %v7919
        %v7921 = vpop.f32.mrb[0].mxu0
        %v7922 = vadd.f32 0.0, %v7921
        %7923 = vmatprep.mubr.bf16.mxu0 %v2408
        %7924 = vmatmul.mubr.bf16.gmra.mrb[0].mxu0 %v2407
        %v7925 = vpop.f32.mrb[0].mxu0
        %v7926 = vadd.f32 0.0, %v7925
        %v7927 = vpop.f32.mrb[0].mxu0
        %v7928 = vadd.f32 0.0, %v7927
        %v7929 = vpop.f32.mrb[0].mxu0
        %v7930 = vadd.f32 0.0, %v7929
        %v7931 = vpop.f32.mrb[0].mxu0
        %v7932 = vadd.f32 0.0, %v7931
        %7933 = vmatprep.mubr.bf16.mxu0 %v2414
        %7934 = vmatmul.mubr.bf16.gmra.mrb[0].mxu0 %v2413
        %v7935 = vpop.f32.mrb[0].mxu0
        %v7936 = vadd.f32 0.0, %v7935
        %v7937 = vpop.f32.mrb[0].mxu0
        %v7938 = vadd.f32 0.0, %v7937
        %v7939 = vpop.f32.mrb[0].mxu0
        %v7940 = vadd.f32 0.0, %v7939
        %v7941 = vpop.f32.mrb[0].mxu0
        %v7942 = vadd.f32 0.0, %v7941
        %7943 = vmatprep.mubr.bf16.mxu0 %v2420
        %7944 = vmatmul.mubr.bf16.gmra.mrb[0].mxu0 %v2419
        %v7945 = vpop.f32.mrb[0].mxu0
        %v7946 = vadd.f32 0.0, %v7945
        %v7947 = vpop.f32.mrb[0].mxu0
        %v7948 = vadd.f32 0.0, %v7947
        %v7949 = vpop.f32.mrb[0].mxu0
        %v7950 = vadd.f32 0.0, %v7949
        %v7951 = vpop.f32.mrb[0].mxu0
        %v7952 = vadd.f32 0.0, %v7951
        %7953 = vmatprep.mubr.bf16.mxu0 %v2426
        %7954 = vmatmul.mubr.bf16.gmra.mrb[0].mxu0 %v2425
        %v7955 = vpop.f32.mrb[0].mxu0
        %v7956 = vadd.f32 0.0, %v7955
        %v7957 = vpop.f32.mrb[0].mxu0
        %v7958 = vadd.f32 0.0, %v7957
        %v7959 = vpop.f32.mrb[0].mxu0
        %v7960 = vadd.f32 0.0, %v7959
        %v7961 = vpop.f32.mrb[0].mxu0
        %v7962 = vadd.f32 0.0, %v7961
        %7963 = vdwg.mxu0
        %7964 = vmatprep.subr.bf16.mxu0 %v7612
        %7965 = vmatpush1.bf16.msra.mxu0 %v7611
        %7966 = vmatprep.subr.bf16.mxu0 %v7614
        %7967 = vmatpush1.bf16.msra.mxu0 %v7613
        %7968 = vmatprep.subr.bf16.mxu0 %v7616
        %7969 = vmatpush1.bf16.msra.mxu0 %v7615
        %7970 = vmatprep.subr.bf16.mxu0 %v7618
        %7971 = vmatpush1.bf16.msra.mxu0 %v7617
        %7972 = vmatprep.subr.bf16.mxu0 %v7620
        %7973 = vmatpush1.bf16.msra.mxu0 %v7619
        %7974 = vmatprep.subr.bf16.mxu0 %v7622
        %7975 = vmatpush1.bf16.msra.mxu0 %v7621
        %7976 = vmatprep.subr.bf16.mxu0 %v7624
        %7977 = vmatpush1.bf16.msra.mxu0 %v7623
        %7978 = vmatprep.subr.bf16.mxu0 %v7626
        %7979 = vmatpush1.bf16.msra.mxu0 %v7625
        %7980 = vmatprep.subr.bf16.mxu0 %v7628
        %7981 = vmatpush1.bf16.msra.mxu0 %v7627
        %7982 = vmatprep.subr.bf16.mxu0 %v7630
        %7983 = vmatpush1.bf16.msra.mxu0 %v7629
        %7984 = vmatprep.subr.bf16.mxu0 %v7632
        %7985 = vmatpush1.bf16.msra.mxu0 %v7631
        %7986 = vmatprep.subr.bf16.mxu0 %v7634
        %7987 = vmatpush1.bf16.msra.mxu0 %v7633
        %7988 = vmatprep.subr.bf16.mxu0 %v7636
        %7989 = vmatpush1.bf16.msra.mxu0 %v7635
        %7990 = vmatprep.subr.bf16.mxu0 %v7638
        %7991 = vmatpush1.bf16.msra.mxu0 %v7637
        %7992 = vmatprep.subr.bf16.mxu0 %v7640
        %7993 = vmatpush1.bf16.msra.mxu0 %v7639
        %7994 = vmatprep.subr.bf16.mxu0 %v7642
        %7995 = vmatpush1.bf16.msra.mxu0 %v7641
        %7996 = vmatprep.mubr.bf16.mxu0 %v2338
        %7997 = vmatmul.mubr.bf16.gmra.mrb[0].mxu0 %v2337
        %v7998 = vpop.f32.mrb[0].mxu0
        %v7999 = vadd.f32 %v7806, %v7998
        %v8000 = vpop.f32.mrb[0].mxu0
        %v8001 = vadd.f32 %v7808, %v8000
        %v8002 = vpop.f32.mrb[0].mxu0
        %v8003 = vadd.f32 %v7810, %v8002
        %v8004 = vpop.f32.mrb[0].mxu0
        %v8005 = vadd.f32 %v7812, %v8004
        %8006 = vmatprep.mubr.bf16.mxu0 %v2344
        %8007 = vmatmul.mubr.bf16.gmra.mrb[0].mxu0 %v2343
        %v8008 = vpop.f32.mrb[0].mxu0
        %v8009 = vadd.f32 %v7816, %v8008
        %v8010 = vpop.f32.mrb[0].mxu0
        %v8011 = vadd.f32 %v7818, %v8010
        %v8012 = vpop.f32.mrb[0].mxu0
        %v8013 = vadd.f32 %v7820, %v8012
        %v8014 = vpop.f32.mrb[0].mxu0
        %v8015 = vadd.f32 %v7822, %v8014
        %8016 = vmatprep.mubr.bf16.mxu0 %v2350
        %8017 = vmatmul.mubr.bf16.gmra.mrb[0].mxu0 %v2349
        %v8018 = vpop.f32.mrb[0].mxu0
        %v8019 = vadd.f32 %v7826, %v8018
        %v8020 = vpop.f32.mrb[0].mxu0
        %v8021 = vadd.f32 %v7828, %v8020
        %v8022 = vpop.f32.mrb[0].mxu0
        %v8023 = vadd.f32 %v7830, %v8022
        %v8024 = vpop.f32.mrb[0].mxu0
        %v8025 = vadd.f32 %v7832, %v8024
        %8026 = vmatprep.mubr.bf16.mxu0 %v2356
        %8027 = vmatmul.mubr.bf16.gmra.mrb[0].mxu0 %v2355
        %v8028 = vpop.f32.mrb[0].mxu0
        %v8029 = vadd.f32 %v7836, %v8028
        %v8030 = vpop.f32.mrb[0].mxu0
        %v8031 = vadd.f32 %v7838, %v8030
        %v8032 = vpop.f32.mrb[0].mxu0
        %v8033 = vadd.f32 %v7840, %v8032
        %v8034 = vpop.f32.mrb[0].mxu0
        %v8035 = vadd.f32 %v7842, %v8034
        %8036 = vmatprep.mubr.bf16.mxu0 %v2362
        %8037 = vmatmul.mubr.bf16.gmra.mrb[0].mxu0 %v2361
        %v8038 = vpop.f32.mrb[0].mxu0
        %v8039 = vadd.f32 %v7846, %v8038
        %v8040 = vpop.f32.mrb[0].mxu0
        %v8041 = vadd.f32 %v7848, %v8040
        %v8042 = vpop.f32.mrb[0].mxu0
        %v8043 = vadd.f32 %v7850, %v8042
        %v8044 = vpop.f32.mrb[0].mxu0
        %v8045 = vadd.f32 %v7852, %v8044
        %8046 = vmatprep.mubr.bf16.mxu0 %v2368
        %8047 = vmatmul.mubr.bf16.gmra.mrb[0].mxu0 %v2367
        %v8048 = vpop.f32.mrb[0].mxu0
        %v8049 = vadd.f32 %v7856, %v8048
        %v8050 = vpop.f32.mrb[0].mxu0
        %v8051 = vadd.f32 %v7858, %v8050
        %v8052 = vpop.f32.mrb[0].mxu0
        %v8053 = vadd.f32 %v7860, %v8052
        %v8054 = vpop.f32.mrb[0].mxu0
        %v8055 = vadd.f32 %v7862, %v8054
        %8056 = vmatprep.mubr.bf16.mxu0 %v2374
        %8057 = vmatmul.mubr.bf16.gmra.mrb[0].mxu0 %v2373
        %v8058 = vpop.f32.mrb[0].mxu0
        %v8059 = vadd.f32 %v7866, %v8058
        %v8060 = vpop.f32.mrb[0].mxu0
        %v8061 = vadd.f32 %v7868, %v8060
        %v8062 = vpop.f32.mrb[0].mxu0
        %v8063 = vadd.f32 %v7870, %v8062
        %v8064 = vpop.f32.mrb[0].mxu0
        %v8065 = vadd.f32 %v7872, %v8064
        %8066 = vmatprep.mubr.bf16.mxu0 %v2380
        %8067 = vmatmul.mubr.bf16.gmra.mrb[0].mxu0 %v2379
        %v8068 = vpop.f32.mrb[0].mxu0
        %v8069 = vadd.f32 %v7876, %v8068
        %v8070 = vpop.f32.mrb[0].mxu0
        %v8071 = vadd.f32 %v7878, %v8070
        %v8072 = vpop.f32.mrb[0].mxu0
        %v8073 = vadd.f32 %v7880, %v8072
        %v8074 = vpop.f32.mrb[0].mxu0
        %v8075 = vadd.f32 %v7882, %v8074
        %8076 = vmatprep.mubr.bf16.mxu0 %v2386
        %8077 = vmatmul.mubr.bf16.gmra.mrb[0].mxu0 %v2385
        %v8078 = vpop.f32.mrb[0].mxu0
        %v8079 = vadd.f32 %v7886, %v8078
        %v8080 = vpop.f32.mrb[0].mxu0
        %v8081 = vadd.f32 %v7888, %v8080
        %v8082 = vpop.f32.mrb[0].mxu0
        %v8083 = vadd.f32 %v7890, %v8082
        %v8084 = vpop.f32.mrb[0].mxu0
        %v8085 = vadd.f32 %v7892, %v8084
        %8086 = vmatprep.mubr.bf16.mxu0 %v2392
        %8087 = vmatmul.mubr.bf16.gmra.mrb[0].mxu0 %v2391
        %v8088 = vpop.f32.mrb[0].mxu0
        %v8089 = vadd.f32 %v7896, %v8088
        %v8090 = vpop.f32.mrb[0].mxu0
        %v8091 = vadd.f32 %v7898, %v8090
        %v8092 = vpop.f32.mrb[0].mxu0
        %v8093 = vadd.f32 %v7900, %v8092
        %v8094 = vpop.f32.mrb[0].mxu0
        %v8095 = vadd.f32 %v7902, %v8094
        %8096 = vmatprep.mubr.bf16.mxu0 %v2398
        %8097 = vmatmul.mubr.bf16.gmra.mrb[0].mxu0 %v2397
        %v8098 = vpop.f32.mrb[0].mxu0
        %v8099 = vadd.f32 %v7906, %v8098
        %v8100 = vpop.f32.mrb[0].mxu0
        %v8101 = vadd.f32 %v7908, %v8100
        %v8102 = vpop.f32.mrb[0].mxu0
        %v8103 = vadd.f32 %v7910, %v8102
        %v8104 = vpop.f32.mrb[0].mxu0
        %v8105 = vadd.f32 %v7912, %v8104
        %8106 = vmatprep.mubr.bf16.mxu0 %v2404
        %8107 = vmatmul.mubr.bf16.gmra.mrb[0].mxu0 %v2403
        %v8108 = vpop.f32.mrb[0].mxu0
        %v8109 = vadd.f32 %v7916, %v8108
        %v8110 = vpop.f32.mrb[0].mxu0
        %v8111 = vadd.f32 %v7918, %v8110
        %v8112 = vpop.f32.mrb[0].mxu0
        %v8113 = vadd.f32 %v7920, %v8112
        %v8114 = vpop.f32.mrb[0].mxu0
        %v8115 = vadd.f32 %v7922, %v8114
        %8116 = vmatprep.mubr.bf16.mxu0 %v2410
        %8117 = vmatmul.mubr.bf16.gmra.mrb[0].mxu0 %v2409
        %v8118 = vpop.f32.mrb[0].mxu0
        %v8119 = vadd.f32 %v7926, %v8118
        %v8120 = vpop.f32.mrb[0].mxu0
        %v8121 = vadd.f32 %v7928, %v8120
        %v8122 = vpop.f32.mrb[0].mxu0
        %v8123 = vadd.f32 %v7930, %v8122
        %v8124 = vpop.f32.mrb[0].mxu0
        %v8125 = vadd.f32 %v7932, %v8124
        %8126 = vmatprep.mubr.bf16.mxu0 %v2416
        %8127 = vmatmul.mubr.bf16.gmra.mrb[0].mxu0 %v2415
        %v8128 = vpop.f32.mrb[0].mxu0
        %v8129 = vadd.f32 %v7936, %v8128
        %v8130 = vpop.f32.mrb[0].mxu0
        %v8131 = vadd.f32 %v7938, %v8130
        %v8132 = vpop.f32.mrb[0].mxu0
        %v8133 = vadd.f32 %v7940, %v8132
        %v8134 = vpop.f32.mrb[0].mxu0
        %v8135 = vadd.f32 %v7942, %v8134
        %8136 = vmatprep.mubr.bf16.mxu0 %v2422
        %8137 = vmatmul.mubr.bf16.gmra.mrb[0].mxu0 %v2421
        %v8138 = vpop.f32.mrb[0].mxu0
        %v8139 = vadd.f32 %v7946, %v8138
        %v8140 = vpop.f32.mrb[0].mxu0
        %v8141 = vadd.f32 %v7948, %v8140
        %v8142 = vpop.f32.mrb[0].mxu0
        %v8143 = vadd.f32 %v7950, %v8142
        %v8144 = vpop.f32.mrb[0].mxu0
        %v8145 = vadd.f32 %v7952, %v8144
        %8146 = vmatprep.mubr.bf16.mxu0 %v2428
        %8147 = vmatmul.mubr.bf16.gmra.mrb[0].mxu0 %v2427
        %v8148 = vpop.f32.mrb[0].mxu0
        %v8149 = vadd.f32 %v7956, %v8148
        %v8150 = vpop.f32.mrb[0].mxu0
        %v8151 = vadd.f32 %v7958, %v8150
        %v8152 = vpop.f32.mrb[0].mxu0
        %v8153 = vadd.f32 %v7960, %v8152
        %v8154 = vpop.f32.mrb[0].mxu0
        %v8155 = vadd.f32 %v7962, %v8154
        %8156 = vdwg.mxu0
        %8157 = vmatprep.subr.bf16.mxu0 %v7644
        %8158 = vmatpush1.bf16.msra.mxu0 %v7643
        %8159 = vmatprep.subr.bf16.mxu0 %v7646
        %8160 = vmatpush1.bf16.msra.mxu0 %v7645
        %8161 = vmatprep.subr.bf16.mxu0 %v7648
        %8162 = vmatpush1.bf16.msra.mxu0 %v7647
        %8163 = vmatprep.subr.bf16.mxu0 %v7650
        %8164 = vmatpush1.bf16.msra.mxu0 %v7649
        %8165 = vmatprep.subr.bf16.mxu0 %v7652
        %8166 = vmatpush1.bf16.msra.mxu0 %v7651
        %8167 = vmatprep.subr.bf16.mxu0 %v7654
        %8168 = vmatpush1.bf16.msra.mxu0 %v7653
        %8169 = vmatprep.subr.bf16.mxu0 %v7656
        %8170 = vmatpush1.bf16.msra.mxu0 %v7655
        %8171 = vmatprep.subr.bf16.mxu0 %v7658
        %8172 = vmatpush1.bf16.msra.mxu0 %v7657
        %8173 = vmatprep.subr.bf16.mxu0 %v7660
        %8174 = vmatpush1.bf16.msra.mxu0 %v7659
        %8175 = vmatprep.subr.bf16.mxu0 %v7662
        %8176 = vmatpush1.bf16.msra.mxu0 %v7661
        %8177 = vmatprep.subr.bf16.mxu0 %v7664
        %8178 = vmatpush1.bf16.msra.mxu0 %v7663
        %8179 = vmatprep.subr.bf16.mxu0 %v7666
        %8180 = vmatpush1.bf16.msra.mxu0 %v7665
        %8181 = vmatprep.subr.bf16.mxu0 %v7668
        %8182 = vmatpush1.bf16.msra.mxu0 %v7667
        %8183 = vmatprep.subr.bf16.mxu0 %v7670
        %8184 = vmatpush1.bf16.msra.mxu0 %v7669
        %8185 = vmatprep.subr.bf16.mxu0 %v7672
        %8186 = vmatpush1.bf16.msra.mxu0 %v7671
        %8187 = vmatprep.subr.bf16.mxu0 %v7674
        %8188 = vmatpush1.bf16.msra.mxu0 %v7673
        %8189 = vmatprep.mubr.bf16.mxu0 %v2340
        %8190 = vmatmul.mubr.bf16.gmra.mrb[0].mxu0 %v2339
        %v8191 = vpop.f32.mrb[0].mxu0
        %v8192 = vadd.f32 %v7999, %v8191
        %v8193 = vpop.f32.mrb[0].mxu0
        %v8194 = vadd.f32 %v8001, %v8193
        %v8195 = vpop.f32.mrb[0].mxu0
        %v8196 = vadd.f32 %v8003, %v8195
        %v8197 = vpop.f32.mrb[0].mxu0
        %v8198 = vadd.f32 %v8005, %v8197
        %8199 = vmatprep.mubr.bf16.mxu0 %v2346
        %8200 = vmatmul.mubr.bf16.gmra.mrb[0].mxu0 %v2345
        %v8201 = vpop.f32.mrb[0].mxu0
        %v8202 = vadd.f32 %v8009, %v8201
        %v8203 = vpop.f32.mrb[0].mxu0
        %v8204 = vadd.f32 %v8011, %v8203
        %v8205 = vpop.f32.mrb[0].mxu0
        %v8206 = vadd.f32 %v8013, %v8205
        %v8207 = vpop.f32.mrb[0].mxu0
        %v8208 = vadd.f32 %v8015, %v8207
        %8209 = vmatprep.mubr.bf16.mxu0 %v2352
        %8210 = vmatmul.mubr.bf16.gmra.mrb[0].mxu0 %v2351
        %v8211 = vpop.f32.mrb[0].mxu0
        %v8212 = vadd.f32 %v8019, %v8211
        %v8213 = vpop.f32.mrb[0].mxu0
        %v8214 = vadd.f32 %v8021, %v8213
        %v8215 = vpop.f32.mrb[0].mxu0
        %v8216 = vadd.f32 %v8023, %v8215
        %v8217 = vpop.f32.mrb[0].mxu0
        %v8218 = vadd.f32 %v8025, %v8217
        %8219 = vmatprep.mubr.bf16.mxu0 %v2358
        %8220 = vmatmul.mubr.bf16.gmra.mrb[0].mxu0 %v2357
        %v8221 = vpop.f32.mrb[0].mxu0
        %v8222 = vadd.f32 %v8029, %v8221
        %v8223 = vpop.f32.mrb[0].mxu0
        %v8224 = vadd.f32 %v8031, %v8223
        %v8225 = vpop.f32.mrb[0].mxu0
        %v8226 = vadd.f32 %v8033, %v8225
        %v8227 = vpop.f32.mrb[0].mxu0
        %v8228 = vadd.f32 %v8035, %v8227
        %8229 = vmatprep.mubr.bf16.mxu0 %v2364
        %8230 = vmatmul.mubr.bf16.gmra.mrb[0].mxu0 %v2363
        %v8231 = vpop.f32.mrb[0].mxu0
        %v8232 = vadd.f32 %v8039, %v8231
        %v8233 = vpop.f32.mrb[0].mxu0
        %v8234 = vadd.f32 %v8041, %v8233
        %v8235 = vpop.f32.mrb[0].mxu0
        %v8236 = vadd.f32 %v8043, %v8235
        %v8237 = vpop.f32.mrb[0].mxu0
        %v8238 = vadd.f32 %v8045, %v8237
        %8239 = vmatprep.mubr.bf16.mxu0 %v2370
        %8240 = vmatmul.mubr.bf16.gmra.mrb[0].mxu0 %v2369
        %v8241 = vpop.f32.mrb[0].mxu0
        %v8242 = vadd.f32 %v8049, %v8241
        %v8243 = vpop.f32.mrb[0].mxu0
        %v8244 = vadd.f32 %v8051, %v8243
        %v8245 = vpop.f32.mrb[0].mxu0
        %v8246 = vadd.f32 %v8053, %v8245
        %v8247 = vpop.f32.mrb[0].mxu0
        %v8248 = vadd.f32 %v8055, %v8247
        %8249 = vmatprep.mubr.bf16.mxu0 %v2376
        %8250 = vmatmul.mubr.bf16.gmra.mrb[0].mxu0 %v2375
        %v8251 = vpop.f32.mrb[0].mxu0
        %v8252 = vadd.f32 %v8059, %v8251
        %v8253 = vpop.f32.mrb[0].mxu0
        %v8254 = vadd.f32 %v8061, %v8253
        %v8255 = vpop.f32.mrb[0].mxu0
        %v8256 = vadd.f32 %v8063, %v8255
        %v8257 = vpop.f32.mrb[0].mxu0
        %v8258 = vadd.f32 %v8065, %v8257
        %8259 = vmatprep.mubr.bf16.mxu0 %v2382
        %8260 = vmatmul.mubr.bf16.gmra.mrb[0].mxu0 %v2381
        %v8261 = vpop.f32.mrb[0].mxu0
        %v8262 = vadd.f32 %v8069, %v8261
        %v8263 = vpop.f32.mrb[0].mxu0
        %v8264 = vadd.f32 %v8071, %v8263
        %v8265 = vpop.f32.mrb[0].mxu0
        %v8266 = vadd.f32 %v8073, %v8265
        %v8267 = vpop.f32.mrb[0].mxu0
        %v8268 = vadd.f32 %v8075, %v8267
        %8269 = vmatprep.mubr.bf16.mxu0 %v2388
        %8270 = vmatmul.mubr.bf16.gmra.mrb[0].mxu0 %v2387
        %v8271 = vpop.f32.mrb[0].mxu0
        %v8272 = vadd.f32 %v8079, %v8271
        %v8273 = vpop.f32.mrb[0].mxu0
        %v8274 = vadd.f32 %v8081, %v8273
        %v8275 = vpop.f32.mrb[0].mxu0
        %v8276 = vadd.f32 %v8083, %v8275
        %v8277 = vpop.f32.mrb[0].mxu0
        %v8278 = vadd.f32 %v8085, %v8277
        %8279 = vmatprep.mubr.bf16.mxu0 %v2394
        %8280 = vmatmul.mubr.bf16.gmra.mrb[0].mxu0 %v2393
        %v8281 = vpop.f32.mrb[0].mxu0
        %v8282 = vadd.f32 %v8089, %v8281
        %v8283 = vpop.f32.mrb[0].mxu0
        %v8284 = vadd.f32 %v8091, %v8283
        %v8285 = vpop.f32.mrb[0].mxu0
        %v8286 = vadd.f32 %v8093, %v8285
        %v8287 = vpop.f32.mrb[0].mxu0
        %v8288 = vadd.f32 %v8095, %v8287
        %8289 = vmatprep.mubr.bf16.mxu0 %v2400
        %8290 = vmatmul.mubr.bf16.gmra.mrb[0].mxu0 %v2399
        %v8291 = vpop.f32.mrb[0].mxu0
        %v8292 = vadd.f32 %v8099, %v8291
        %v8293 = vpop.f32.mrb[0].mxu0
        %v8294 = vadd.f32 %v8101, %v8293
        %v8295 = vpop.f32.mrb[0].mxu0
        %v8296 = vadd.f32 %v8103, %v8295
        %v8297 = vpop.f32.mrb[0].mxu0
        %v8298 = vadd.f32 %v8105, %v8297
        %8299 = vmatprep.mubr.bf16.mxu0 %v2406
        %8300 = vmatmul.mubr.bf16.gmra.mrb[0].mxu0 %v2405
        %v8301 = vpop.f32.mrb[0].mxu0
        %v8302 = vadd.f32 %v8109, %v8301
        %v8303 = vpop.f32.mrb[0].mxu0
        %v8304 = vadd.f32 %v8111, %v8303
        %v8305 = vpop.f32.mrb[0].mxu0
        %v8306 = vadd.f32 %v8113, %v8305
        %v8307 = vpop.f32.mrb[0].mxu0
        %v8308 = vadd.f32 %v8115, %v8307
        %8309 = vmatprep.mubr.bf16.mxu0 %v2412
        %8310 = vmatmul.mubr.bf16.gmra.mrb[0].mxu0 %v2411
        %v8311 = vpop.f32.mrb[0].mxu0
        %v8312 = vadd.f32 %v8119, %v8311
        %v8313 = vpop.f32.mrb[0].mxu0
        %v8314 = vadd.f32 %v8121, %v8313
        %v8315 = vpop.f32.mrb[0].mxu0
        %v8316 = vadd.f32 %v8123, %v8315
        %v8317 = vpop.f32.mrb[0].mxu0
        %v8318 = vadd.f32 %v8125, %v8317
        %8319 = vmatprep.mubr.bf16.mxu0 %v2418
        %8320 = vmatmul.mubr.bf16.gmra.mrb[0].mxu0 %v2417
        %v8321 = vpop.f32.mrb[0].mxu0
        %v8322 = vadd.f32 %v8129, %v8321
        %v8323 = vpop.f32.mrb[0].mxu0
        %v8324 = vadd.f32 %v8131, %v8323
        %v8325 = vpop.f32.mrb[0].mxu0
        %v8326 = vadd.f32 %v8133, %v8325
        %v8327 = vpop.f32.mrb[0].mxu0
        %v8328 = vadd.f32 %v8135, %v8327
        %8329 = vmatprep.mubr.bf16.mxu0 %v2424
        %8330 = vmatmul.mubr.bf16.gmra.mrb[0].mxu0 %v2423
        %v8331 = vpop.f32.mrb[0].mxu0
        %v8332 = vadd.f32 %v8139, %v8331
        %v8333 = vpop.f32.mrb[0].mxu0
        %v8334 = vadd.f32 %v8141, %v8333
        %v8335 = vpop.f32.mrb[0].mxu0
        %v8336 = vadd.f32 %v8143, %v8335
        %v8337 = vpop.f32.mrb[0].mxu0
        %v8338 = vadd.f32 %v8145, %v8337
        %8339 = vmatprep.mubr.bf16.mxu0 %v2430
        %8340 = vmatmul.mubr.bf16.gmra.mrb[0].mxu0 %v2429
        %v8341 = vpop.f32.mrb[0].mxu0
        %v8342 = vadd.f32 %v8149, %v8341
        %v8343 = vpop.f32.mrb[0].mxu0
        %v8344 = vadd.f32 %v8151, %v8343
        %v8345 = vpop.f32.mrb[0].mxu0
        %v8346 = vadd.f32 %v8153, %v8345
        %v8347 = vpop.f32.mrb[0].mxu0
        %v8348 = vadd.f32 %v8155, %v8347
        %8349 = vdwg.mxu0
        %v8350 = vunpack.c.l.bf16 %v414
        %v8351 = vunpack.c.h.bf16 %v414
        %v8352 = vunpack.c.l.bf16 %v417
        %v8353 = vunpack.c.h.bf16 %v417
        %v8354 = vunpack.c.l.bf16 %v420
        %v8355 = vunpack.c.h.bf16 %v420
        %v8356 = vunpack.c.l.bf16 %v423
        %v8357 = vunpack.c.h.bf16 %v423
        %v8358 = vunpack.c.l.bf16 %v426
        %v8359 = vunpack.c.h.bf16 %v426
        %v8360 = vunpack.c.l.bf16 %v429
        %v8361 = vunpack.c.h.bf16 %v429
        %v8362 = vunpack.c.l.bf16 %v432
        %v8363 = vunpack.c.h.bf16 %v432
        %v8364 = vunpack.c.l.bf16 %v435
        %v8365 = vunpack.c.h.bf16 %v435
        %v8366 = vunpack.c.l.bf16 %v438
        %v8367 = vunpack.c.h.bf16 %v438
        %v8368 = vunpack.c.l.bf16 %v441
        %v8369 = vunpack.c.h.bf16 %v441
        %v8370 = vunpack.c.l.bf16 %v444
        %v8371 = vunpack.c.h.bf16 %v444
        %v8372 = vunpack.c.l.bf16 %v447
        %v8373 = vunpack.c.h.bf16 %v447
        %v8374 = vunpack.c.l.bf16 %v450
        %v8375 = vunpack.c.h.bf16 %v450
        %v8376 = vunpack.c.l.bf16 %v453
        %v8377 = vunpack.c.h.bf16 %v453
        %v8378 = vunpack.c.l.bf16 %v456
        %v8379 = vunpack.c.h.bf16 %v456
        %v8380 = vunpack.c.l.bf16 %v459
        %v8381 = vunpack.c.h.bf16 %v459
        %v8382 = vunpack.c.l.bf16 %v462
        %v8383 = vunpack.c.h.bf16 %v462
        %v8384 = vunpack.c.l.bf16 %v465
        %v8385 = vunpack.c.h.bf16 %v465
        %v8386 = vunpack.c.l.bf16 %v468
        %v8387 = vunpack.c.h.bf16 %v468
        %v8388 = vunpack.c.l.bf16 %v471
        %v8389 = vunpack.c.h.bf16 %v471
        %v8390 = vunpack.c.l.bf16 %v474
        %v8391 = vunpack.c.h.bf16 %v474
        %v8392 = vunpack.c.l.bf16 %v477
        %v8393 = vunpack.c.h.bf16 %v477
        %v8394 = vunpack.c.l.bf16 %v480
        %v8395 = vunpack.c.h.bf16 %v480
        %v8396 = vunpack.c.l.bf16 %v483
        %v8397 = vunpack.c.h.bf16 %v483
        %v8398 = vunpack.c.l.bf16 %v486
        %v8399 = vunpack.c.h.bf16 %v486
        %v8400 = vunpack.c.l.bf16 %v489
        %v8401 = vunpack.c.h.bf16 %v489
        %v8402 = vunpack.c.l.bf16 %v492
        %v8403 = vunpack.c.h.bf16 %v492
        %v8404 = vunpack.c.l.bf16 %v495
        %v8405 = vunpack.c.h.bf16 %v495
        %v8406 = vunpack.c.l.bf16 %v498
        %v8407 = vunpack.c.h.bf16 %v498
        %v8408 = vunpack.c.l.bf16 %v501
        %v8409 = vunpack.c.h.bf16 %v501
        %v8410 = vunpack.c.l.bf16 %v504
        %v8411 = vunpack.c.h.bf16 %v504
        %v8412 = vunpack.c.l.bf16 %v507
        %v8413 = vunpack.c.h.bf16 %v507
        %v8414 = vunpack.c.l.bf16 %v510
        %v8415 = vunpack.c.h.bf16 %v510
        %v8416 = vunpack.c.l.bf16 %v513
        %v8417 = vunpack.c.h.bf16 %v513
        %v8418 = vunpack.c.l.bf16 %v516
        %v8419 = vunpack.c.h.bf16 %v516
        %v8420 = vunpack.c.l.bf16 %v519
        %v8421 = vunpack.c.h.bf16 %v519
        %v8422 = vunpack.c.l.bf16 %v522
        %v8423 = vunpack.c.h.bf16 %v522
        %v8424 = vunpack.c.l.bf16 %v525
        %v8425 = vunpack.c.h.bf16 %v525
        %v8426 = vunpack.c.l.bf16 %v528
        %v8427 = vunpack.c.h.bf16 %v528
        %v8428 = vunpack.c.l.bf16 %v531
        %v8429 = vunpack.c.h.bf16 %v531
        %v8430 = vunpack.c.l.bf16 %v534
        %v8431 = vunpack.c.h.bf16 %v534
        %v8432 = vunpack.c.l.bf16 %v537
        %v8433 = vunpack.c.h.bf16 %v537
        %v8434 = vunpack.c.l.bf16 %v540
        %v8435 = vunpack.c.h.bf16 %v540
        %v8436 = vunpack.c.l.bf16 %v543
        %v8437 = vunpack.c.h.bf16 %v543
        %v8438 = vunpack.c.l.bf16 %v546
        %v8439 = vunpack.c.h.bf16 %v546
        %v8440 = vunpack.c.l.bf16 %v549
        %v8441 = vunpack.c.h.bf16 %v549
        %v8442 = vunpack.c.l.bf16 %v552
        %v8443 = vunpack.c.h.bf16 %v552
        %v8444 = vunpack.c.l.bf16 %v555
        %v8445 = vunpack.c.h.bf16 %v555
        %v8446 = vunpack.c.l.bf16 %v558
        %v8447 = vunpack.c.h.bf16 %v558
        %v8448 = vunpack.c.l.bf16 %v561
        %v8449 = vunpack.c.h.bf16 %v561
        %v8450 = vunpack.c.l.bf16 %v564
        %v8451 = vunpack.c.h.bf16 %v564
        %v8452 = vunpack.c.l.bf16 %v567
        %v8453 = vunpack.c.h.bf16 %v567
        %v8454 = vunpack.c.l.bf16 %v570
        %v8455 = vunpack.c.h.bf16 %v570
        %v8456 = vunpack.c.l.bf16 %v573
        %v8457 = vunpack.c.h.bf16 %v573
        %v8458 = vunpack.c.l.bf16 %v576
        %v8459 = vunpack.c.h.bf16 %v576
        %v8460 = vunpack.c.l.bf16 %v579
        %v8461 = vunpack.c.h.bf16 %v579
        %v8462 = vunpack.c.l.bf16 %v582
        %v8463 = vunpack.c.h.bf16 %v582
        %v8464 = vunpack.c.l.bf16 %v585
        %v8465 = vunpack.c.h.bf16 %v585
        %v8466 = vunpack.c.l.bf16 %v588
        %v8467 = vunpack.c.h.bf16 %v588
        %v8468 = vunpack.c.l.bf16 %v591
        %v8469 = vunpack.c.h.bf16 %v591
        %v8470 = vunpack.c.l.bf16 %v594
        %v8471 = vunpack.c.h.bf16 %v594
        %v8472 = vunpack.c.l.bf16 %v597
        %v8473 = vunpack.c.h.bf16 %v597
        %v8474 = vunpack.c.l.bf16 %v600
        %v8475 = vunpack.c.h.bf16 %v600
        %v8476 = vunpack.c.l.bf16 %v603
        %v8477 = vunpack.c.h.bf16 %v603
        %v8478 = vmul.f32 %v8192, %v8414
        %v8479 = vmul.f32 %v8194, %v8415
        %v8480 = vmul.f32 %v8196, %v8416
        %v8481 = vmul.f32 %v8198, %v8417
        %v8482 = vmul.f32 %v8202, %v8418
        %v8483 = vmul.f32 %v8204, %v8419
        %v8484 = vmul.f32 %v8206, %v8420
        %v8485 = vmul.f32 %v8208, %v8421
        %v8486 = vmul.f32 %v8212, %v8422
        %v8487 = vmul.f32 %v8214, %v8423
        %v8488 = vmul.f32 %v8216, %v8424
        %v8489 = vmul.f32 %v8218, %v8425
        %v8490 = vmul.f32 %v8222, %v8426
        %v8491 = vmul.f32 %v8224, %v8427
        %v8492 = vmul.f32 %v8226, %v8428
        %v8493 = vmul.f32 %v8228, %v8429
        %v8494 = vmul.f32 %v8232, %v8430
        %v8495 = vmul.f32 %v8234, %v8431
        %v8496 = vmul.f32 %v8236, %v8432
        %v8497 = vmul.f32 %v8238, %v8433
        %v8498 = vmul.f32 %v8242, %v8434
        %v8499 = vmul.f32 %v8244, %v8435
        %v8500 = vmul.f32 %v8246, %v8436
        %v8501 = vmul.f32 %v8248, %v8437
        %v8502 = vmul.f32 %v8252, %v8438
        %v8503 = vmul.f32 %v8254, %v8439
        %v8504 = vmul.f32 %v8256, %v8440
        %v8505 = vmul.f32 %v8258, %v8441
        %v8506 = vmul.f32 %v8262, %v8442
        %v8507 = vmul.f32 %v8264, %v8443
        %v8508 = vmul.f32 %v8266, %v8444
        %v8509 = vmul.f32 %v8268, %v8445
        %v8510 = vmul.f32 %v8272, %v8446
        %v8511 = vmul.f32 %v8274, %v8447
        %v8512 = vmul.f32 %v8276, %v8448
        %v8513 = vmul.f32 %v8278, %v8449
        %v8514 = vmul.f32 %v8282, %v8450
        %v8515 = vmul.f32 %v8284, %v8451
        %v8516 = vmul.f32 %v8286, %v8452
        %v8517 = vmul.f32 %v8288, %v8453
        %v8518 = vmul.f32 %v8292, %v8454
        %v8519 = vmul.f32 %v8294, %v8455
        %v8520 = vmul.f32 %v8296, %v8456
        %v8521 = vmul.f32 %v8298, %v8457
        %v8522 = vmul.f32 %v8302, %v8458
        %v8523 = vmul.f32 %v8304, %v8459
        %v8524 = vmul.f32 %v8306, %v8460
        %v8525 = vmul.f32 %v8308, %v8461
        %v8526 = vmul.f32 %v8312, %v8462
        %v8527 = vmul.f32 %v8314, %v8463
        %v8528 = vmul.f32 %v8316, %v8464
        %v8529 = vmul.f32 %v8318, %v8465
        %v8530 = vmul.f32 %v8322, %v8466
        %v8531 = vmul.f32 %v8324, %v8467
        %v8532 = vmul.f32 %v8326, %v8468
        %v8533 = vmul.f32 %v8328, %v8469
        %v8534 = vmul.f32 %v8332, %v8470
        %v8535 = vmul.f32 %v8334, %v8471
        %v8536 = vmul.f32 %v8336, %v8472
        %v8537 = vmul.f32 %v8338, %v8473
        %v8538 = vmul.f32 %v8342, %v8474
        %v8539 = vmul.f32 %v8344, %v8475
        %v8540 = vmul.f32 %v8346, %v8476
        %v8541 = vmul.f32 %v8348, %v8477
        %v8542 = vadd.f32 %v8478, %v8479
        %8543 = vadd.xlane.f32.xlu0 %v8542
        %v8544 = vpop.xlane.xlu0 %8543
        %v8545 = vadd.f32 %v8480, %v8481
        %8546 = vadd.xlane.f32.xlu0 %v8545
        %v8547 = vpop.xlane.xlu0 %8546
        %v8548 = vadd.f32 %v8482, %v8483
        %8549 = vadd.xlane.f32.xlu0 %v8548
        %v8550 = vpop.xlane.xlu0 %8549
        %v8551 = vadd.f32 %v8484, %v8485
        %8552 = vadd.xlane.f32.xlu0 %v8551
        %v8553 = vpop.xlane.xlu0 %8552
        %v8554 = vadd.f32 %v8486, %v8487
        %8555 = vadd.xlane.f32.xlu0 %v8554
        %v8556 = vpop.xlane.xlu0 %8555
        %v8557 = vadd.f32 %v8488, %v8489
        %8558 = vadd.xlane.f32.xlu0 %v8557
        %v8559 = vpop.xlane.xlu0 %8558
        %v8560 = vadd.f32 %v8490, %v8491
        %8561 = vadd.xlane.f32.xlu0 %v8560
        %v8562 = vpop.xlane.xlu0 %8561
        %v8563 = vadd.f32 %v8492, %v8493
        %8564 = vadd.xlane.f32.xlu0 %v8563
        %v8565 = vpop.xlane.xlu0 %8564
        %v8566 = vadd.f32 %v8494, %v8495
        %8567 = vadd.xlane.f32.xlu0 %v8566
        %v8568 = vpop.xlane.xlu0 %8567
        %v8569 = vadd.f32 %v8496, %v8497
        %8570 = vadd.xlane.f32.xlu0 %v8569
        %v8571 = vpop.xlane.xlu0 %8570
        %v8572 = vadd.f32 %v8498, %v8499
        %8573 = vadd.xlane.f32.xlu0 %v8572
        %v8574 = vpop.xlane.xlu0 %8573
        %v8575 = vadd.f32 %v8500, %v8501
        %8576 = vadd.xlane.f32.xlu0 %v8575
        %v8577 = vpop.xlane.xlu0 %8576
        %v8578 = vadd.f32 %v8502, %v8503
        %8579 = vadd.xlane.f32.xlu0 %v8578
        %v8580 = vpop.xlane.xlu0 %8579
        %v8581 = vadd.f32 %v8504, %v8505
        %8582 = vadd.xlane.f32.xlu0 %v8581
        %v8583 = vpop.xlane.xlu0 %8582
        %v8584 = vadd.f32 %v8506, %v8507
        %8585 = vadd.xlane.f32.xlu0 %v8584
        %v8586 = vpop.xlane.xlu0 %8585
        %v8587 = vadd.f32 %v8508, %v8509
        %8588 = vadd.xlane.f32.xlu0 %v8587
        %v8589 = vpop.xlane.xlu0 %8588
        %v8590 = vadd.f32 %v8510, %v8511
        %8591 = vadd.xlane.f32.xlu0 %v8590
        %v8592 = vpop.xlane.xlu0 %8591
        %v8593 = vadd.f32 %v8512, %v8513
        %8594 = vadd.xlane.f32.xlu0 %v8593
        %v8595 = vpop.xlane.xlu0 %8594
        %v8596 = vadd.f32 %v8514, %v8515
        %8597 = vadd.xlane.f32.xlu0 %v8596
        %v8598 = vpop.xlane.xlu0 %8597
        %v8599 = vadd.f32 %v8516, %v8517
        %8600 = vadd.xlane.f32.xlu0 %v8599
        %v8601 = vpop.xlane.xlu0 %8600
        %v8602 = vadd.f32 %v8518, %v8519
        %8603 = vadd.xlane.f32.xlu0 %v8602
        %v8604 = vpop.xlane.xlu0 %8603
        %v8605 = vadd.f32 %v8520, %v8521
        %8606 = vadd.xlane.f32.xlu0 %v8605
        %v8607 = vpop.xlane.xlu0 %8606
        %v8608 = vadd.f32 %v8522, %v8523
        %8609 = vadd.xlane.f32.xlu0 %v8608
        %v8610 = vpop.xlane.xlu0 %8609
        %v8611 = vadd.f32 %v8524, %v8525
        %8612 = vadd.xlane.f32.xlu0 %v8611
        %v8613 = vpop.xlane.xlu0 %8612
        %v8614 = vadd.f32 %v8526, %v8527
        %8615 = vadd.xlane.f32.xlu0 %v8614
        %v8616 = vpop.xlane.xlu0 %8615
        %v8617 = vadd.f32 %v8528, %v8529
        %8618 = vadd.xlane.f32.xlu0 %v8617
        %v8619 = vpop.xlane.xlu0 %8618
        %v8620 = vadd.f32 %v8530, %v8531
        %8621 = vadd.xlane.f32.xlu0 %v8620
        %v8622 = vpop.xlane.xlu0 %8621
        %v8623 = vadd.f32 %v8532, %v8533
        %8624 = vadd.xlane.f32.xlu0 %v8623
        %v8625 = vpop.xlane.xlu0 %8624
        %v8626 = vadd.f32 %v8534, %v8535
        %8627 = vadd.xlane.f32.xlu0 %v8626
        %v8628 = vpop.xlane.xlu0 %8627
        %v8629 = vadd.f32 %v8536, %v8537
        %8630 = vadd.xlane.f32.xlu0 %v8629
        %v8631 = vpop.xlane.xlu0 %8630
        %v8632 = vadd.f32 %v8538, %v8539
        %8633 = vadd.xlane.f32.xlu0 %v8632
        %v8634 = vpop.xlane.xlu0 %8633
        %v8635 = vadd.f32 %v8540, %v8541
        %8636 = vadd.xlane.f32.xlu0 %v8635
        %v8637 = vpop.xlane.xlu0 %8636
        %v8638 = vadd.f32 %v6689, %v8544
        %v8639 = vadd.f32 %v6690, %v8547
        %v8640 = vadd.f32 %v6691, %v8550
        %v8641 = vadd.f32 %v6692, %v8553
        %v8642 = vadd.f32 %v6693, %v8556
        %v8643 = vadd.f32 %v6694, %v8559
        %v8644 = vadd.f32 %v6695, %v8562
        %v8645 = vadd.f32 %v6696, %v8565
        %v8646 = vadd.f32 %v6697, %v8568
        %v8647 = vadd.f32 %v6698, %v8571
        %v8648 = vadd.f32 %v6699, %v8574
        %v8649 = vadd.f32 %v6700, %v8577
        %v8650 = vadd.f32 %v6701, %v8580
        %v8651 = vadd.f32 %v6702, %v8583
        %v8652 = vadd.f32 %v6703, %v8586
        %v8653 = vadd.f32 %v6704, %v8589
        %v8654 = vadd.f32 %v6705, %v8592
        %v8655 = vadd.f32 %v6706, %v8595
        %v8656 = vadd.f32 %v6707, %v8598
        %v8657 = vadd.f32 %v6708, %v8601
        %v8658 = vadd.f32 %v6709, %v8604
        %v8659 = vadd.f32 %v6710, %v8607
        %v8660 = vadd.f32 %v6711, %v8610
        %v8661 = vadd.f32 %v6712, %v8613
        %v8662 = vadd.f32 %v6713, %v8616
        %v8663 = vadd.f32 %v6714, %v8619
        %v8664 = vadd.f32 %v6715, %v8622
        %v8665 = vadd.f32 %v6716, %v8625
        %v8666 = vadd.f32 %v6717, %v8628
        %v8667 = vadd.f32 %v6718, %v8631
        %v8668 = vadd.f32 %v6719, %v8634
        %v8669 = vadd.f32 %v6720, %v8637
        %v8670 = vmul.f32 %v8350, %v8350
        %v8671 = vmul.f32 %v8351, %v8351
        %v8672 = vmul.f32 %v8352, %v8352
        %v8673 = vmul.f32 %v8353, %v8353
        %v8674 = vmul.f32 %v8354, %v8354
        %v8675 = vmul.f32 %v8355, %v8355
        %v8676 = vmul.f32 %v8356, %v8356
        %v8677 = vmul.f32 %v8357, %v8357
        %v8678 = vmul.f32 %v8358, %v8358
        %v8679 = vmul.f32 %v8359, %v8359
        %v8680 = vmul.f32 %v8360, %v8360
        %v8681 = vmul.f32 %v8361, %v8361
        %v8682 = vmul.f32 %v8362, %v8362
        %v8683 = vmul.f32 %v8363, %v8363
        %v8684 = vmul.f32 %v8364, %v8364
        %v8685 = vmul.f32 %v8365, %v8365
        %v8686 = vmul.f32 %v8366, %v8366
        %v8687 = vmul.f32 %v8367, %v8367
        %v8688 = vmul.f32 %v8368, %v8368
        %v8689 = vmul.f32 %v8369, %v8369
        %v8690 = vmul.f32 %v8370, %v8370
        %v8691 = vmul.f32 %v8371, %v8371
        %v8692 = vmul.f32 %v8372, %v8372
        %v8693 = vmul.f32 %v8373, %v8373
        %v8694 = vmul.f32 %v8374, %v8374
        %v8695 = vmul.f32 %v8375, %v8375
        %v8696 = vmul.f32 %v8376, %v8376
        %v8697 = vmul.f32 %v8377, %v8377
        %v8698 = vmul.f32 %v8378, %v8378
        %v8699 = vmul.f32 %v8379, %v8379
        %v8700 = vmul.f32 %v8380, %v8380
        %v8701 = vmul.f32 %v8381, %v8381
        %v8702 = vmul.f32 %v8382, %v8382
        %v8703 = vmul.f32 %v8383, %v8383
        %v8704 = vmul.f32 %v8384, %v8384
        %v8705 = vmul.f32 %v8385, %v8385
        %v8706 = vmul.f32 %v8386, %v8386
        %v8707 = vmul.f32 %v8387, %v8387
        %v8708 = vmul.f32 %v8388, %v8388
        %v8709 = vmul.f32 %v8389, %v8389
        %v8710 = vmul.f32 %v8390, %v8390
        %v8711 = vmul.f32 %v8391, %v8391
        %v8712 = vmul.f32 %v8392, %v8392
        %v8713 = vmul.f32 %v8393, %v8393
        %v8714 = vmul.f32 %v8394, %v8394
        %v8715 = vmul.f32 %v8395, %v8395
        %v8716 = vmul.f32 %v8396, %v8396
        %v8717 = vmul.f32 %v8397, %v8397
        %v8718 = vmul.f32 %v8398, %v8398
        %v8719 = vmul.f32 %v8399, %v8399
        %v8720 = vmul.f32 %v8400, %v8400
        %v8721 = vmul.f32 %v8401, %v8401
        %v8722 = vmul.f32 %v8402, %v8402
        %v8723 = vmul.f32 %v8403, %v8403
        %v8724 = vmul.f32 %v8404, %v8404
        %v8725 = vmul.f32 %v8405, %v8405
        %v8726 = vmul.f32 %v8406, %v8406
        %v8727 = vmul.f32 %v8407, %v8407
        %v8728 = vmul.f32 %v8408, %v8408
        %v8729 = vmul.f32 %v8409, %v8409
        %v8730 = vmul.f32 %v8410, %v8410
        %v8731 = vmul.f32 %v8411, %v8411
        %v8732 = vmul.f32 %v8412, %v8412
        %v8733 = vmul.f32 %v8413, %v8413
        %s8734 = scalar_lea.vmem [#allocation9], 8
        %v8735 = vld [vmem:[%s8734] ss:$2 sm:$0x3]
        %v8737 = vlaneseq
        %v8738 = vshrl.u32 %v8737, 7
        %v8739 = vsub.s32 0, %v8738
        %v8740 = vrot.slane %v8735, %v8739
        %v8741 = vlaneseq
        %v8742 = vshrl.u32 %v8741, 7
        %v8743 = vsub.s32 1, %v8742
        %v8744 = vrot.slane %v8735, %v8743
        %v8747 = vmul.f32 %v8670, %v8740
        %v8748 = vmul.f32 %v8671, %v8744
        %v8749 = vmul.f32 %v8672, %v8740
        %v8750 = vmul.f32 %v8673, %v8744
        %v8751 = vmul.f32 %v8674, %v8740
        %v8752 = vmul.f32 %v8675, %v8744
        %v8753 = vmul.f32 %v8676, %v8740
        %v8754 = vmul.f32 %v8677, %v8744
        %v8755 = vmul.f32 %v8678, %v8740
        %v8756 = vmul.f32 %v8679, %v8744
        %v8757 = vmul.f32 %v8680, %v8740
        %v8758 = vmul.f32 %v8681, %v8744
        %v8759 = vmul.f32 %v8682, %v8740
        %v8760 = vmul.f32 %v8683, %v8744
        %v8761 = vmul.f32 %v8684, %v8740
        %v8762 = vmul.f32 %v8685, %v8744
        %v8763 = vmul.f32 %v8686, %v8740
        %v8764 = vmul.f32 %v8687, %v8744
        %v8765 = vmul.f32 %v8688, %v8740
        %v8766 = vmul.f32 %v8689, %v8744
        %v8767 = vmul.f32 %v8690, %v8740
        %v8768 = vmul.f32 %v8691, %v8744
        %v8769 = vmul.f32 %v8692, %v8740
        %v8770 = vmul.f32 %v8693, %v8744
        %v8771 = vmul.f32 %v8694, %v8740
        %v8772 = vmul.f32 %v8695, %v8744
        %v8773 = vmul.f32 %v8696, %v8740
        %v8774 = vmul.f32 %v8697, %v8744
        %v8775 = vmul.f32 %v8698, %v8740
        %v8776 = vmul.f32 %v8699, %v8744
        %v8777 = vmul.f32 %v8700, %v8740
        %v8778 = vmul.f32 %v8701, %v8744
        %v8779 = vmul.f32 %v8702, %v8740
        %v8780 = vmul.f32 %v8703, %v8744
        %v8781 = vmul.f32 %v8704, %v8740
        %v8782 = vmul.f32 %v8705, %v8744
        %v8783 = vmul.f32 %v8706, %v8740
        %v8784 = vmul.f32 %v8707, %v8744
        %v8785 = vmul.f32 %v8708, %v8740
        %v8786 = vmul.f32 %v8709, %v8744
        %v8787 = vmul.f32 %v8710, %v8740
        %v8788 = vmul.f32 %v8711, %v8744
        %v8789 = vmul.f32 %v8712, %v8740
        %v8790 = vmul.f32 %v8713, %v8744
        %v8791 = vmul.f32 %v8714, %v8740
        %v8792 = vmul.f32 %v8715, %v8744
        %v8793 = vmul.f32 %v8716, %v8740
        %v8794 = vmul.f32 %v8717, %v8744
        %v8795 = vmul.f32 %v8718, %v8740
        %v8796 = vmul.f32 %v8719, %v8744
        %v8797 = vmul.f32 %v8720, %v8740
        %v8798 = vmul.f32 %v8721, %v8744
        %v8799 = vmul.f32 %v8722, %v8740
        %v8800 = vmul.f32 %v8723, %v8744
        %v8801 = vmul.f32 %v8724, %v8740
        %v8802 = vmul.f32 %v8725, %v8744
        %v8803 = vmul.f32 %v8726, %v8740
        %v8804 = vmul.f32 %v8727, %v8744
        %v8805 = vmul.f32 %v8728, %v8740
        %v8806 = vmul.f32 %v8729, %v8744
        %v8807 = vmul.f32 %v8730, %v8740
        %v8808 = vmul.f32 %v8731, %v8744
        %v8809 = vmul.f32 %v8732, %v8740
        %v8810 = vmul.f32 %v8733, %v8744
        %v8811 = vmul.f32 %v8414, %v8414
        %v8812 = vmul.f32 %v8415, %v8415
        %v8813 = vmul.f32 %v8416, %v8416
        %v8814 = vmul.f32 %v8417, %v8417
        %v8815 = vmul.f32 %v8418, %v8418
        %v8816 = vmul.f32 %v8419, %v8419
        %v8817 = vmul.f32 %v8420, %v8420
        %v8818 = vmul.f32 %v8421, %v8421
        %v8819 = vmul.f32 %v8422, %v8422
        %v8820 = vmul.f32 %v8423, %v8423
        %v8821 = vmul.f32 %v8424, %v8424
        %v8822 = vmul.f32 %v8425, %v8425
        %v8823 = vmul.f32 %v8426, %v8426
        %v8824 = vmul.f32 %v8427, %v8427
        %v8825 = vmul.f32 %v8428, %v8428
        %v8826 = vmul.f32 %v8429, %v8429
        %v8827 = vmul.f32 %v8430, %v8430
        %v8828 = vmul.f32 %v8431, %v8431
        %v8829 = vmul.f32 %v8432, %v8432
        %v8830 = vmul.f32 %v8433, %v8433
        %v8831 = vmul.f32 %v8434, %v8434
        %v8832 = vmul.f32 %v8435, %v8435
        %v8833 = vmul.f32 %v8436, %v8436
        %v8834 = vmul.f32 %v8437, %v8437
        %v8835 = vmul.f32 %v8438, %v8438
        %v8836 = vmul.f32 %v8439, %v8439
        %v8837 = vmul.f32 %v8440, %v8440
        %v8838 = vmul.f32 %v8441, %v8441
        %v8839 = vmul.f32 %v8442, %v8442
        %v8840 = vmul.f32 %v8443, %v8443
        %v8841 = vmul.f32 %v8444, %v8444
        %v8842 = vmul.f32 %v8445, %v8445
        %v8843 = vmul.f32 %v8446, %v8446
        %v8844 = vmul.f32 %v8447, %v8447
        %v8845 = vmul.f32 %v8448, %v8448
        %v8846 = vmul.f32 %v8449, %v8449
        %v8847 = vmul.f32 %v8450, %v8450
        %v8848 = vmul.f32 %v8451, %v8451
        %v8849 = vmul.f32 %v8452, %v8452
        %v8850 = vmul.f32 %v8453, %v8453
        %v8851 = vmul.f32 %v8454, %v8454
        %v8852 = vmul.f32 %v8455, %v8455
        %v8853 = vmul.f32 %v8456, %v8456
        %v8854 = vmul.f32 %v8457, %v8457
        %v8855 = vmul.f32 %v8458, %v8458
        %v8856 = vmul.f32 %v8459, %v8459
        %v8857 = vmul.f32 %v8460, %v8460
        %v8858 = vmul.f32 %v8461, %v8461
        %v8859 = vmul.f32 %v8462, %v8462
        %v8860 = vmul.f32 %v8463, %v8463
        %v8861 = vmul.f32 %v8464, %v8464
        %v8862 = vmul.f32 %v8465, %v8465
        %v8863 = vmul.f32 %v8466, %v8466
        %v8864 = vmul.f32 %v8467, %v8467
        %v8865 = vmul.f32 %v8468, %v8468
        %v8866 = vmul.f32 %v8469, %v8469
        %v8867 = vmul.f32 %v8470, %v8470
        %v8868 = vmul.f32 %v8471, %v8471
        %v8869 = vmul.f32 %v8472, %v8472
        %v8870 = vmul.f32 %v8473, %v8473
        %v8871 = vmul.f32 %v8474, %v8474
        %v8872 = vmul.f32 %v8475, %v8475
        %v8873 = vmul.f32 %v8476, %v8476
        %v8874 = vmul.f32 %v8477, %v8477
        %s8875 = scalar_lea.vmem [#allocation9], 9
        %v8876 = vld [vmem:[%s8875] ss:$2 sm:$0x3]
        %v8878 = vlaneseq
        %v8879 = vshrl.u32 %v8878, 7
        %v8880 = vsub.s32 0, %v8879
        %v8881 = vrot.slane %v8876, %v8880
        %v8882 = vlaneseq
        %v8883 = vshrl.u32 %v8882, 7
        %v8884 = vsub.s32 1, %v8883
        %v8885 = vrot.slane %v8876, %v8884
        %v8888 = vmul.f32 %v8811, %v8881
        %v8889 = vmul.f32 %v8812, %v8885
        %v8890 = vmul.f32 %v8813, %v8881
        %v8891 = vmul.f32 %v8814, %v8885
        %v8892 = vmul.f32 %v8815, %v8881
        %v8893 = vmul.f32 %v8816, %v8885
        %v8894 = vmul.f32 %v8817, %v8881
        %v8895 = vmul.f32 %v8818, %v8885
        %v8896 = vmul.f32 %v8819, %v8881
        %v8897 = vmul.f32 %v8820, %v8885
        %v8898 = vmul.f32 %v8821, %v8881
        %v8899 = vmul.f32 %v8822, %v8885
        %v8900 = vmul.f32 %v8823, %v8881
        %v8901 = vmul.f32 %v8824, %v8885
        %v8902 = vmul.f32 %v8825, %v8881
        %v8903 = vmul.f32 %v8826, %v8885
        %v8904 = vmul.f32 %v8827, %v8881
        %v8905 = vmul.f32 %v8828, %v8885
        %v8906 = vmul.f32 %v8829, %v8881
        %v8907 = vmul.f32 %v8830, %v8885
        %v8908 = vmul.f32 %v8831, %v8881
        %v8909 = vmul.f32 %v8832, %v8885
        %v8910 = vmul.f32 %v8833, %v8881
        %v8911 = vmul.f32 %v8834, %v8885
        %v8912 = vmul.f32 %v8835, %v8881
        %v8913 = vmul.f32 %v8836, %v8885
        %v8914 = vmul.f32 %v8837, %v8881
        %v8915 = vmul.f32 %v8838, %v8885
        %v8916 = vmul.f32 %v8839, %v8881
        %v8917 = vmul.f32 %v8840, %v8885
        %v8918 = vmul.f32 %v8841, %v8881
        %v8919 = vmul.f32 %v8842, %v8885
        %v8920 = vmul.f32 %v8843, %v8881
        %v8921 = vmul.f32 %v8844, %v8885
        %v8922 = vmul.f32 %v8845, %v8881
        %v8923 = vmul.f32 %v8846, %v8885
        %v8924 = vmul.f32 %v8847, %v8881
        %v8925 = vmul.f32 %v8848, %v8885
        %v8926 = vmul.f32 %v8849, %v8881
        %v8927 = vmul.f32 %v8850, %v8885
        %v8928 = vmul.f32 %v8851, %v8881
        %v8929 = vmul.f32 %v8852, %v8885
        %v8930 = vmul.f32 %v8853, %v8881
        %v8931 = vmul.f32 %v8854, %v8885
        %v8932 = vmul.f32 %v8855, %v8881
        %v8933 = vmul.f32 %v8856, %v8885
        %v8934 = vmul.f32 %v8857, %v8881
        %v8935 = vmul.f32 %v8858, %v8885
        %v8936 = vmul.f32 %v8859, %v8881
        %v8937 = vmul.f32 %v8860, %v8885
        %v8938 = vmul.f32 %v8861, %v8881
        %v8939 = vmul.f32 %v8862, %v8885
        %v8940 = vmul.f32 %v8863, %v8881
        %v8941 = vmul.f32 %v8864, %v8885
        %v8942 = vmul.f32 %v8865, %v8881
        %v8943 = vmul.f32 %v8866, %v8885
        %v8944 = vmul.f32 %v8867, %v8881
        %v8945 = vmul.f32 %v8868, %v8885
        %v8946 = vmul.f32 %v8869, %v8881
        %v8947 = vmul.f32 %v8870, %v8885
        %v8948 = vmul.f32 %v8871, %v8881
        %v8949 = vmul.f32 %v8872, %v8885
        %v8950 = vmul.f32 %v8873, %v8881
        %v8951 = vmul.f32 %v8874, %v8885
        %v8952 = vadd.f32 %v8747, %v8888
        %v8953 = vadd.f32 %v8748, %v8889
        %v8954 = vadd.f32 %v8749, %v8890
        %v8955 = vadd.f32 %v8750, %v8891
        %v8956 = vadd.f32 %v8751, %v8892
        %v8957 = vadd.f32 %v8752, %v8893
        %v8958 = vadd.f32 %v8753, %v8894
        %v8959 = vadd.f32 %v8754, %v8895
        %v8960 = vadd.f32 %v8755, %v8896
        %v8961 = vadd.f32 %v8756, %v8897
        %v8962 = vadd.f32 %v8757, %v8898
        %v8963 = vadd.f32 %v8758, %v8899
        %v8964 = vadd.f32 %v8759, %v8900
        %v8965 = vadd.f32 %v8760, %v8901
        %v8966 = vadd.f32 %v8761, %v8902
        %v8967 = vadd.f32 %v8762, %v8903
        %v8968 = vadd.f32 %v8763, %v8904
        %v8969 = vadd.f32 %v8764, %v8905
        %v8970 = vadd.f32 %v8765, %v8906
        %v8971 = vadd.f32 %v8766, %v8907
        %v8972 = vadd.f32 %v8767, %v8908
        %v8973 = vadd.f32 %v8768, %v8909
        %v8974 = vadd.f32 %v8769, %v8910
        %v8975 = vadd.f32 %v8770, %v8911
        %v8976 = vadd.f32 %v8771, %v8912
        %v8977 = vadd.f32 %v8772, %v8913
        %v8978 = vadd.f32 %v8773, %v8914
        %v8979 = vadd.f32 %v8774, %v8915
        %v8980 = vadd.f32 %v8775, %v8916
        %v8981 = vadd.f32 %v8776, %v8917
        %v8982 = vadd.f32 %v8777, %v8918
        %v8983 = vadd.f32 %v8778, %v8919
        %v8984 = vadd.f32 %v8779, %v8920
        %v8985 = vadd.f32 %v8780, %v8921
        %v8986 = vadd.f32 %v8781, %v8922
        %v8987 = vadd.f32 %v8782, %v8923
        %v8988 = vadd.f32 %v8783, %v8924
        %v8989 = vadd.f32 %v8784, %v8925
        %v8990 = vadd.f32 %v8785, %v8926
        %v8991 = vadd.f32 %v8786, %v8927
        %v8992 = vadd.f32 %v8787, %v8928
        %v8993 = vadd.f32 %v8788, %v8929
        %v8994 = vadd.f32 %v8789, %v8930
        %v8995 = vadd.f32 %v8790, %v8931
        %v8996 = vadd.f32 %v8791, %v8932
        %v8997 = vadd.f32 %v8792, %v8933
        %v8998 = vadd.f32 %v8793, %v8934
        %v8999 = vadd.f32 %v8794, %v8935
        %v9000 = vadd.f32 %v8795, %v8936
        %v9001 = vadd.f32 %v8796, %v8937
        %v9002 = vadd.f32 %v8797, %v8938
        %v9003 = vadd.f32 %v8798, %v8939
        %v9004 = vadd.f32 %v8799, %v8940
        %v9005 = vadd.f32 %v8800, %v8941
        %v9006 = vadd.f32 %v8801, %v8942
        %v9007 = vadd.f32 %v8802, %v8943
        %v9008 = vadd.f32 %v8803, %v8944
        %v9009 = vadd.f32 %v8804, %v8945
        %v9010 = vadd.f32 %v8805, %v8946
        %v9011 = vadd.f32 %v8806, %v8947
        %v9012 = vadd.f32 %v8807, %v8948
        %v9013 = vadd.f32 %v8808, %v8949
        %v9014 = vadd.f32 %v8809, %v8950
        %v9015 = vadd.f32 %v8810, %v8951
        %v9016 = vadd.f32 %v8952, %v8953
        %9017 = vadd.xlane.f32.xlu0 %v9016
        %v9018 = vpop.xlane.xlu0 %9017
        %v9019 = vadd.f32 %v8954, %v8955
        %9020 = vadd.xlane.f32.xlu0 %v9019
        %v9021 = vpop.xlane.xlu0 %9020
        %v9022 = vadd.f32 %v8956, %v8957
        %9023 = vadd.xlane.f32.xlu0 %v9022
        %v9024 = vpop.xlane.xlu0 %9023
        %v9025 = vadd.f32 %v8958, %v8959
        %9026 = vadd.xlane.f32.xlu0 %v9025
        %v9027 = vpop.xlane.xlu0 %9026
        %v9028 = vadd.f32 %v8960, %v8961
        %9029 = vadd.xlane.f32.xlu0 %v9028
        %v9030 = vpop.xlane.xlu0 %9029
        %v9031 = vadd.f32 %v8962, %v8963
        %9032 = vadd.xlane.f32.xlu0 %v9031
        %v9033 = vpop.xlane.xlu0 %9032
        %v9034 = vadd.f32 %v8964, %v8965
        %9035 = vadd.xlane.f32.xlu0 %v9034
        %v9036 = vpop.xlane.xlu0 %9035
        %v9037 = vadd.f32 %v8966, %v8967
        %9038 = vadd.xlane.f32.xlu0 %v9037
        %v9039 = vpop.xlane.xlu0 %9038
        %v9040 = vadd.f32 %v8968, %v8969
        %9041 = vadd.xlane.f32.xlu0 %v9040
        %v9042 = vpop.xlane.xlu0 %9041
        %v9043 = vadd.f32 %v8970, %v8971
        %9044 = vadd.xlane.f32.xlu0 %v9043
        %v9045 = vpop.xlane.xlu0 %9044
        %v9046 = vadd.f32 %v8972, %v8973
        %9047 = vadd.xlane.f32.xlu0 %v9046
        %v9048 = vpop.xlane.xlu0 %9047
        %v9049 = vadd.f32 %v8974, %v8975
        %9050 = vadd.xlane.f32.xlu0 %v9049
        %v9051 = vpop.xlane.xlu0 %9050
        %v9052 = vadd.f32 %v8976, %v8977
        %9053 = vadd.xlane.f32.xlu0 %v9052
        %v9054 = vpop.xlane.xlu0 %9053
        %v9055 = vadd.f32 %v8978, %v8979
        %9056 = vadd.xlane.f32.xlu0 %v9055
        %v9057 = vpop.xlane.xlu0 %9056
        %v9058 = vadd.f32 %v8980, %v8981
        %9059 = vadd.xlane.f32.xlu0 %v9058
        %v9060 = vpop.xlane.xlu0 %9059
        %v9061 = vadd.f32 %v8982, %v8983
        %9062 = vadd.xlane.f32.xlu0 %v9061
        %v9063 = vpop.xlane.xlu0 %9062
        %v9064 = vadd.f32 %v8984, %v8985
        %9065 = vadd.xlane.f32.xlu0 %v9064
        %v9066 = vpop.xlane.xlu0 %9065
        %v9067 = vadd.f32 %v8986, %v8987
        %9068 = vadd.xlane.f32.xlu0 %v9067
        %v9069 = vpop.xlane.xlu0 %9068
        %v9070 = vadd.f32 %v8988, %v8989
        %9071 = vadd.xlane.f32.xlu0 %v9070
        %v9072 = vpop.xlane.xlu0 %9071
        %v9073 = vadd.f32 %v8990, %v8991
        %9074 = vadd.xlane.f32.xlu0 %v9073
        %v9075 = vpop.xlane.xlu0 %9074
        %v9076 = vadd.f32 %v8992, %v8993
        %9077 = vadd.xlane.f32.xlu0 %v9076
        %v9078 = vpop.xlane.xlu0 %9077
        %v9079 = vadd.f32 %v8994, %v8995
        %9080 = vadd.xlane.f32.xlu0 %v9079
        %v9081 = vpop.xlane.xlu0 %9080
        %v9082 = vadd.f32 %v8996, %v8997
        %9083 = vadd.xlane.f32.xlu0 %v9082
        %v9084 = vpop.xlane.xlu0 %9083
        %v9085 = vadd.f32 %v8998, %v8999
        %9086 = vadd.xlane.f32.xlu0 %v9085
        %v9087 = vpop.xlane.xlu0 %9086
        %v9088 = vadd.f32 %v9000, %v9001
        %9089 = vadd.xlane.f32.xlu0 %v9088
        %v9090 = vpop.xlane.xlu0 %9089
        %v9091 = vadd.f32 %v9002, %v9003
        %9092 = vadd.xlane.f32.xlu0 %v9091
        %v9093 = vpop.xlane.xlu0 %9092
        %v9094 = vadd.f32 %v9004, %v9005
        %9095 = vadd.xlane.f32.xlu0 %v9094
        %v9096 = vpop.xlane.xlu0 %9095
        %v9097 = vadd.f32 %v9006, %v9007
        %9098 = vadd.xlane.f32.xlu0 %v9097
        %v9099 = vpop.xlane.xlu0 %9098
        %v9100 = vadd.f32 %v9008, %v9009
        %9101 = vadd.xlane.f32.xlu0 %v9100
        %v9102 = vpop.xlane.xlu0 %9101
        %v9103 = vadd.f32 %v9010, %v9011
        %9104 = vadd.xlane.f32.xlu0 %v9103
        %v9105 = vpop.xlane.xlu0 %9104
        %v9106 = vadd.f32 %v9012, %v9013
        %9107 = vadd.xlane.f32.xlu0 %v9106
        %v9108 = vpop.xlane.xlu0 %9107
        %v9109 = vadd.f32 %v9014, %v9015
        %9110 = vadd.xlane.f32.xlu0 %v9109
        %v9111 = vpop.xlane.xlu0 %9110
        %v9112 = vadd.f32 %v7163, %v9018
        %v9113 = vadd.f32 %v7164, %v9021
        %v9114 = vadd.f32 %v7165, %v9024
        %v9115 = vadd.f32 %v7166, %v9027
        %v9116 = vadd.f32 %v7167, %v9030
        %v9117 = vadd.f32 %v7168, %v9033
        %v9118 = vadd.f32 %v7169, %v9036
        %v9119 = vadd.f32 %v7170, %v9039
        %v9120 = vadd.f32 %v7171, %v9042
        %v9121 = vadd.f32 %v7172, %v9045
        %v9122 = vadd.f32 %v7173, %v9048
        %v9123 = vadd.f32 %v7174, %v9051
        %v9124 = vadd.f32 %v7175, %v9054
        %v9125 = vadd.f32 %v7176, %v9057
        %v9126 = vadd.f32 %v7177, %v9060
        %v9127 = vadd.f32 %v7178, %v9063
        %v9128 = vadd.f32 %v7179, %v9066
        %v9129 = vadd.f32 %v7180, %v9069
        %v9130 = vadd.f32 %v7181, %v9072
        %v9131 = vadd.f32 %v7182, %v9075
        %v9132 = vadd.f32 %v7183, %v9078
        %v9133 = vadd.f32 %v7184, %v9081
        %v9134 = vadd.f32 %v7185, %v9084
        %v9135 = vadd.f32 %v7186, %v9087
        %v9136 = vadd.f32 %v7187, %v9090
        %v9137 = vadd.f32 %v7188, %v9093
        %v9138 = vadd.f32 %v7189, %v9096
        %v9139 = vadd.f32 %v7190, %v9099
        %v9140 = vadd.f32 %v7191, %v9102
        %v9141 = vadd.f32 %v7192, %v9105
        %v9142 = vadd.f32 %v7193, %v9108
        %v9143 = vadd.f32 %v7194, %v9111
        %v9144 = vmul.f32 %v3172, %v3172
        %v9145 = vmul.f32 %v3175, %v3175
        %v9146 = vmul.f32 %v3180, %v3180
        %v9147 = vmul.f32 %v3183, %v3183
        %v9148 = vmul.f32 %v3188, %v3188
        %v9149 = vmul.f32 %v3191, %v3191
        %v9150 = vmul.f32 %v3196, %v3196
        %v9151 = vmul.f32 %v3199, %v3199
        %v9152 = vmul.f32 %v3204, %v3204
        %v9153 = vmul.f32 %v3207, %v3207
        %v9154 = vmul.f32 %v3212, %v3212
        %v9155 = vmul.f32 %v3215, %v3215
        %v9156 = vmul.f32 %v3220, %v3220
        %v9157 = vmul.f32 %v3223, %v3223
        %v9158 = vmul.f32 %v3228, %v3228
        %v9159 = vmul.f32 %v3231, %v3231
        %v9160 = vmul.f32 %v3236, %v3236
        %v9161 = vmul.f32 %v3239, %v3239
        %v9162 = vmul.f32 %v3244, %v3244
        %v9163 = vmul.f32 %v3247, %v3247
        %v9164 = vmul.f32 %v3252, %v3252
        %v9165 = vmul.f32 %v3255, %v3255
        %v9166 = vmul.f32 %v3260, %v3260
        %v9167 = vmul.f32 %v3263, %v3263
        %v9168 = vmul.f32 %v3268, %v3268
        %v9169 = vmul.f32 %v3271, %v3271
        %v9170 = vmul.f32 %v3276, %v3276
        %v9171 = vmul.f32 %v3279, %v3279
        %v9172 = vmul.f32 %v3284, %v3284
        %v9173 = vmul.f32 %v3287, %v3287
        %v9174 = vmul.f32 %v3292, %v3292
        %v9175 = vmul.f32 %v3295, %v3295
        %vm9176 = vcmask 80896
        %v9177 = vsel %vm9176, %v9144, 0.0
        %9178 = vadd.xlane.f32.xlu0 %v9177
        %v9179 = vpop.xlane.xlu0 %9178
        %v9180 = vsel %vm9176, %v9145, 0.0
        %9181 = vadd.xlane.f32.xlu0 %v9180
        %v9182 = vpop.xlane.xlu0 %9181
        %v9183 = vsel %vm9176, %v9146, 0.0
        %9184 = vadd.xlane.f32.xlu0 %v9183
        %v9185 = vpop.xlane.xlu0 %9184
        %v9186 = vsel %vm9176, %v9147, 0.0
        %9187 = vadd.xlane.f32.xlu0 %v9186
        %v9188 = vpop.xlane.xlu0 %9187
        %v9189 = vsel %vm9176, %v9148, 0.0
        %9190 = vadd.xlane.f32.xlu0 %v9189
        %v9191 = vpop.xlane.xlu0 %9190
        %v9192 = vsel %vm9176, %v9149, 0.0
        %9193 = vadd.xlane.f32.xlu0 %v9192
        %v9194 = vpop.xlane.xlu0 %9193
        %v9195 = vsel %vm9176, %v9150, 0.0
        %9196 = vadd.xlane.f32.xlu0 %v9195
        %v9197 = vpop.xlane.xlu0 %9196
        %v9198 = vsel %vm9176, %v9151, 0.0
        %9199 = vadd.xlane.f32.xlu0 %v9198
        %v9200 = vpop.xlane.xlu0 %9199
        %v9201 = vsel %vm9176, %v9152, 0.0
        %9202 = vadd.xlane.f32.xlu0 %v9201
        %v9203 = vpop.xlane.xlu0 %9202
        %v9204 = vsel %vm9176, %v9153, 0.0
        %9205 = vadd.xlane.f32.xlu0 %v9204
        %v9206 = vpop.xlane.xlu0 %9205
        %v9207 = vsel %vm9176, %v9154, 0.0
        %9208 = vadd.xlane.f32.xlu0 %v9207
        %v9209 = vpop.xlane.xlu0 %9208
        %v9210 = vsel %vm9176, %v9155, 0.0
        %9211 = vadd.xlane.f32.xlu0 %v9210
        %v9212 = vpop.xlane.xlu0 %9211
        %v9213 = vsel %vm9176, %v9156, 0.0
        %9214 = vadd.xlane.f32.xlu0 %v9213
        %v9215 = vpop.xlane.xlu0 %9214
        %v9216 = vsel %vm9176, %v9157, 0.0
        %9217 = vadd.xlane.f32.xlu0 %v9216
        %v9218 = vpop.xlane.xlu0 %9217
        %v9219 = vsel %vm9176, %v9158, 0.0
        %9220 = vadd.xlane.f32.xlu0 %v9219
        %v9221 = vpop.xlane.xlu0 %9220
        %v9222 = vsel %vm9176, %v9159, 0.0
        %9223 = vadd.xlane.f32.xlu0 %v9222
        %v9224 = vpop.xlane.xlu0 %9223
        %v9225 = vsel %vm9176, %v9160, 0.0
        %9226 = vadd.xlane.f32.xlu0 %v9225
        %v9227 = vpop.xlane.xlu0 %9226
        %v9228 = vsel %vm9176, %v9161, 0.0
        %9229 = vadd.xlane.f32.xlu0 %v9228
        %v9230 = vpop.xlane.xlu0 %9229
        %v9231 = vsel %vm9176, %v9162, 0.0
        %9232 = vadd.xlane.f32.xlu0 %v9231
        %v9233 = vpop.xlane.xlu0 %9232
        %v9234 = vsel %vm9176, %v9163, 0.0
        %9235 = vadd.xlane.f32.xlu0 %v9234
        %v9236 = vpop.xlane.xlu0 %9235
        %v9237 = vsel %vm9176, %v9164, 0.0
        %9238 = vadd.xlane.f32.xlu0 %v9237
        %v9239 = vpop.xlane.xlu0 %9238
        %v9240 = vsel %vm9176, %v9165, 0.0
        %9241 = vadd.xlane.f32.xlu0 %v9240
        %v9242 = vpop.xlane.xlu0 %9241
        %v9243 = vsel %vm9176, %v9166, 0.0
        %9244 = vadd.xlane.f32.xlu0 %v9243
        %v9245 = vpop.xlane.xlu0 %9244
        %v9246 = vsel %vm9176, %v9167, 0.0
        %9247 = vadd.xlane.f32.xlu0 %v9246
        %v9248 = vpop.xlane.xlu0 %9247
        %v9249 = vsel %vm9176, %v9168, 0.0
        %9250 = vadd.xlane.f32.xlu0 %v9249
        %v9251 = vpop.xlane.xlu0 %9250
        %v9252 = vsel %vm9176, %v9169, 0.0
        %9253 = vadd.xlane.f32.xlu0 %v9252
        %v9254 = vpop.xlane.xlu0 %9253
        %v9255 = vsel %vm9176, %v9170, 0.0
        %9256 = vadd.xlane.f32.xlu0 %v9255
        %v9257 = vpop.xlane.xlu0 %9256
        %v9258 = vsel %vm9176, %v9171, 0.0
        %9259 = vadd.xlane.f32.xlu0 %v9258
        %v9260 = vpop.xlane.xlu0 %9259
        %v9261 = vsel %vm9176, %v9172, 0.0
        %9262 = vadd.xlane.f32.xlu0 %v9261
        %v9263 = vpop.xlane.xlu0 %9262
        %v9264 = vsel %vm9176, %v9173, 0.0
        %9265 = vadd.xlane.f32.xlu0 %v9264
        %v9266 = vpop.xlane.xlu0 %9265
        %v9267 = vsel %vm9176, %v9174, 0.0
        %9268 = vadd.xlane.f32.xlu0 %v9267
        %v9269 = vpop.xlane.xlu0 %9268
        %v9270 = vsel %vm9176, %v9175, 0.0
        %9271 = vadd.xlane.f32.xlu0 %v9270
        %v9272 = vpop.xlane.xlu0 %9271
        %v9273 = vsub.f32 %v9179, %v9112
        %v9274 = vsub.f32 %v9182, %v9113
        %v9275 = vsub.f32 %v9185, %v9114
        %v9276 = vsub.f32 %v9188, %v9115
        %v9277 = vsub.f32 %v9191, %v9116
        %v9278 = vsub.f32 %v9194, %v9117
        %v9279 = vsub.f32 %v9197, %v9118
        %v9280 = vsub.f32 %v9200, %v9119
        %v9281 = vsub.f32 %v9203, %v9120
        %v9282 = vsub.f32 %v9206, %v9121
        %v9283 = vsub.f32 %v9209, %v9122
        %v9284 = vsub.f32 %v9212, %v9123
        %v9285 = vsub.f32 %v9215, %v9124
        %v9286 = vsub.f32 %v9218, %v9125
        %v9287 = vsub.f32 %v9221, %v9126
        %v9288 = vsub.f32 %v9224, %v9127
        %v9289 = vsub.f32 %v9227, %v9128
        %v9290 = vsub.f32 %v9230, %v9129
        %v9291 = vsub.f32 %v9233, %v9130
        %v9292 = vsub.f32 %v9236, %v9131
        %v9293 = vsub.f32 %v9239, %v9132
        %v9294 = vsub.f32 %v9242, %v9133
        %v9295 = vsub.f32 %v9245, %v9134
        %v9296 = vsub.f32 %v9248, %v9135
        %v9297 = vsub.f32 %v9251, %v9136
        %v9298 = vsub.f32 %v9254, %v9137
        %v9299 = vsub.f32 %v9257, %v9138
        %v9300 = vsub.f32 %v9260, %v9139
        %v9301 = vsub.f32 %v9263, %v9140
        %v9302 = vsub.f32 %v9266, %v9141
        %v9303 = vsub.f32 %v9269, %v9142
        %v9304 = vsub.f32 %v9272, %v9143
        %v9305 = vmul.f32 %v9273, 0.5
        %v9306 = vmul.f32 %v9274, 0.5
        %v9307 = vmul.f32 %v9275, 0.5
        %v9308 = vmul.f32 %v9276, 0.5
        %v9309 = vmul.f32 %v9277, 0.5
        %v9310 = vmul.f32 %v9278, 0.5
        %v9311 = vmul.f32 %v9279, 0.5
        %v9312 = vmul.f32 %v9280, 0.5
        %v9313 = vmul.f32 %v9281, 0.5
        %v9314 = vmul.f32 %v9282, 0.5
        %v9315 = vmul.f32 %v9283, 0.5
        %v9316 = vmul.f32 %v9284, 0.5
        %v9317 = vmul.f32 %v9285, 0.5
        %v9318 = vmul.f32 %v9286, 0.5
        %v9319 = vmul.f32 %v9287, 0.5
        %v9320 = vmul.f32 %v9288, 0.5
        %v9321 = vmul.f32 %v9289, 0.5
        %v9322 = vmul.f32 %v9290, 0.5
        %v9323 = vmul.f32 %v9291, 0.5
        %v9324 = vmul.f32 %v9292, 0.5
        %v9325 = vmul.f32 %v9293, 0.5
        %v9326 = vmul.f32 %v9294, 0.5
        %v9327 = vmul.f32 %v9295, 0.5
        %v9328 = vmul.f32 %v9296, 0.5
        %v9329 = vmul.f32 %v9297, 0.5
        %v9330 = vmul.f32 %v9298, 0.5
        %v9331 = vmul.f32 %v9299, 0.5
        %v9332 = vmul.f32 %v9300, 0.5
        %v9333 = vmul.f32 %v9301, 0.5
        %v9334 = vmul.f32 %v9302, 0.5
        %v9335 = vmul.f32 %v9303, 0.5
        %v9336 = vmul.f32 %v9304, 0.5
        %s9337 = sld [smem:[#allocation11]]
        %v9338 = vstv %s9337
        %v9339 = vmul.f32 %v8638, %v9338
        %v9340 = vmul.f32 %v8639, %v9338
        %v9341 = vmul.f32 %v8640, %v9338
        %v9342 = vmul.f32 %v8641, %v9338
        %v9343 = vmul.f32 %v8642, %v9338
        %v9344 = vmul.f32 %v8643, %v9338
        %v9345 = vmul.f32 %v8644, %v9338
        %v9346 = vmul.f32 %v8645, %v9338
        %v9347 = vmul.f32 %v8646, %v9338
        %v9348 = vmul.f32 %v8647, %v9338
        %v9349 = vmul.f32 %v8648, %v9338
        %v9350 = vmul.f32 %v8649, %v9338
        %v9351 = vmul.f32 %v8650, %v9338
        %v9352 = vmul.f32 %v8651, %v9338
        %v9353 = vmul.f32 %v8652, %v9338
        %v9354 = vmul.f32 %v8653, %v9338
        %v9355 = vmul.f32 %v8654, %v9338
        %v9356 = vmul.f32 %v8655, %v9338
        %v9357 = vmul.f32 %v8656, %v9338
        %v9358 = vmul.f32 %v8657, %v9338
        %v9359 = vmul.f32 %v8658, %v9338
        %v9360 = vmul.f32 %v8659, %v9338
        %v9361 = vmul.f32 %v8660, %v9338
        %v9362 = vmul.f32 %v8661, %v9338
        %v9363 = vmul.f32 %v8662, %v9338
        %v9364 = vmul.f32 %v8663, %v9338
        %v9365 = vmul.f32 %v8664, %v9338
        %v9366 = vmul.f32 %v8665, %v9338
        %v9367 = vmul.f32 %v8666, %v9338
        %v9368 = vmul.f32 %v8667, %v9338
        %v9369 = vmul.f32 %v8668, %v9338
        %v9370 = vmul.f32 %v8669, %v9338
        %s9371 = sld [smem:[#allocation11 + $0x1]]
        %v9372 = vstv %s9371
        %v9373 = vmul.f32 %v3172, %v9372
        %v9374 = vmul.f32 %v3175, %v9372
        %v9375 = vmul.f32 %v3180, %v9372
        %v9376 = vmul.f32 %v3183, %v9372
        %v9377 = vmul.f32 %v3188, %v9372
        %v9378 = vmul.f32 %v3191, %v9372
        %v9379 = vmul.f32 %v3196, %v9372
        %v9380 = vmul.f32 %v3199, %v9372
        %v9381 = vmul.f32 %v3204, %v9372
        %v9382 = vmul.f32 %v3207, %v9372
        %v9383 = vmul.f32 %v3212, %v9372
        %v9384 = vmul.f32 %v3215, %v9372
        %v9385 = vmul.f32 %v3220, %v9372
        %v9386 = vmul.f32 %v3223, %v9372
        %v9387 = vmul.f32 %v3228, %v9372
        %v9388 = vmul.f32 %v3231, %v9372
        %v9389 = vmul.f32 %v3236, %v9372
        %v9390 = vmul.f32 %v3239, %v9372
        %v9391 = vmul.f32 %v3244, %v9372
        %v9392 = vmul.f32 %v3247, %v9372
        %v9393 = vmul.f32 %v3252, %v9372
        %v9394 = vmul.f32 %v3255, %v9372
        %v9395 = vmul.f32 %v3260, %v9372
        %v9396 = vmul.f32 %v3263, %v9372
        %v9397 = vmul.f32 %v3268, %v9372
        %v9398 = vmul.f32 %v3271, %v9372
        %v9399 = vmul.f32 %v3276, %v9372
        %v9400 = vmul.f32 %v3279, %v9372
        %v9401 = vmul.f32 %v3284, %v9372
        %v9402 = vmul.f32 %v3287, %v9372
        %v9403 = vmul.f32 %v3292, %v9372
        %v9404 = vmul.f32 %v3295, %v9372
        %v9405 = vadd.f32 %v9339, %v9373
        %v9406 = vadd.f32 %v9340, %v9374
        %v9407 = vadd.f32 %v9341, %v9375
        %v9408 = vadd.f32 %v9342, %v9376
        %v9409 = vadd.f32 %v9343, %v9377
        %v9410 = vadd.f32 %v9344, %v9378
        %v9411 = vadd.f32 %v9345, %v9379
        %v9412 = vadd.f32 %v9346, %v9380
        %v9413 = vadd.f32 %v9347, %v9381
        %v9414 = vadd.f32 %v9348, %v9382
        %v9415 = vadd.f32 %v9349, %v9383
        %v9416 = vadd.f32 %v9350, %v9384
        %v9417 = vadd.f32 %v9351, %v9385
        %v9418 = vadd.f32 %v9352, %v9386
        %v9419 = vadd.f32 %v9353, %v9387
        %v9420 = vadd.f32 %v9354, %v9388
        %v9421 = vadd.f32 %v9355, %v9389
        %v9422 = vadd.f32 %v9356, %v9390
        %v9423 = vadd.f32 %v9357, %v9391
        %v9424 = vadd.f32 %v9358, %v9392
        %v9425 = vadd.f32 %v9359, %v9393
        %v9426 = vadd.f32 %v9360, %v9394
        %v9427 = vadd.f32 %v9361, %v9395
        %v9428 = vadd.f32 %v9362, %v9396
        %v9429 = vadd.f32 %v9363, %v9397
        %v9430 = vadd.f32 %v9364, %v9398
        %v9431 = vadd.f32 %v9365, %v9399
        %v9432 = vadd.f32 %v9366, %v9400
        %v9433 = vadd.f32 %v9367, %v9401
        %v9434 = vadd.f32 %v9368, %v9402
        %v9435 = vadd.f32 %v9369, %v9403
        %v9436 = vadd.f32 %v9370, %v9404
        %s9437 = sld [smem:[#allocation11 + $0x2]]
        %v9438 = vstv %s9437
        %v9439 = vmul.f32 %v9305, %v9438
        %v9440 = vmul.f32 %v9306, %v9438
        %v9441 = vmul.f32 %v9307, %v9438
        %v9442 = vmul.f32 %v9308, %v9438
        %v9443 = vmul.f32 %v9309, %v9438
        %v9444 = vmul.f32 %v9310, %v9438
        %v9445 = vmul.f32 %v9311, %v9438
        %v9446 = vmul.f32 %v9312, %v9438
        %v9447 = vmul.f32 %v9313, %v9438
        %v9448 = vmul.f32 %v9314, %v9438
        %v9449 = vmul.f32 %v9315, %v9438
        %v9450 = vmul.f32 %v9316, %v9438
        %v9451 = vmul.f32 %v9317, %v9438
        %v9452 = vmul.f32 %v9318, %v9438
        %v9453 = vmul.f32 %v9319, %v9438
        %v9454 = vmul.f32 %v9320, %v9438
        %v9455 = vmul.f32 %v9321, %v9438
        %v9456 = vmul.f32 %v9322, %v9438
        %v9457 = vmul.f32 %v9323, %v9438
        %v9458 = vmul.f32 %v9324, %v9438
        %v9459 = vmul.f32 %v9325, %v9438
        %v9460 = vmul.f32 %v9326, %v9438
        %v9461 = vmul.f32 %v9327, %v9438
        %v9462 = vmul.f32 %v9328, %v9438
        %v9463 = vmul.f32 %v9329, %v9438
        %v9464 = vmul.f32 %v9330, %v9438
        %v9465 = vmul.f32 %v9331, %v9438
        %v9466 = vmul.f32 %v9332, %v9438
        %v9467 = vmul.f32 %v9333, %v9438
        %v9468 = vmul.f32 %v9334, %v9438
        %v9469 = vmul.f32 %v9335, %v9438
        %v9470 = vmul.f32 %v9336, %v9438
        %v9471 = vadd.f32 %v9405, %v9439
        %v9472 = vadd.f32 %v9406, %v9440
        %v9473 = vadd.f32 %v9407, %v9441
        %v9474 = vadd.f32 %v9408, %v9442
        %v9475 = vadd.f32 %v9409, %v9443
        %v9476 = vadd.f32 %v9410, %v9444
        %v9477 = vadd.f32 %v9411, %v9445
        %v9478 = vadd.f32 %v9412, %v9446
        %v9479 = vadd.f32 %v9413, %v9447
        %v9480 = vadd.f32 %v9414, %v9448
        %v9481 = vadd.f32 %v9415, %v9449
        %v9482 = vadd.f32 %v9416, %v9450
        %v9483 = vadd.f32 %v9417, %v9451
        %v9484 = vadd.f32 %v9418, %v9452
        %v9485 = vadd.f32 %v9419, %v9453
        %v9486 = vadd.f32 %v9420, %v9454
        %v9487 = vadd.f32 %v9421, %v9455
        %v9488 = vadd.f32 %v9422, %v9456
        %v9489 = vadd.f32 %v9423, %v9457
        %v9490 = vadd.f32 %v9424, %v9458
        %v9491 = vadd.f32 %v9425, %v9459
        %v9492 = vadd.f32 %v9426, %v9460
        %v9493 = vadd.f32 %v9427, %v9461
        %v9494 = vadd.f32 %v9428, %v9462
        %v9495 = vadd.f32 %v9429, %v9463
        %v9496 = vadd.f32 %v9430, %v9464
        %v9497 = vadd.f32 %v9431, %v9465
        %v9498 = vadd.f32 %v9432, %v9466
        %v9499 = vadd.f32 %v9433, %v9467
        %v9500 = vadd.f32 %v9434, %v9468
        %v9501 = vadd.f32 %v9435, %v9469
        %v9502 = vadd.f32 %v9436, %v9470
        %s9503 = sld [smem:[#allocation2]]
        %v9504 = vstv %s9503
        %v9505 = vadd.f32 %v9471, %v9504
        %v9506 = vadd.f32 %v9472, %v9504
        %v9507 = vadd.f32 %v9473, %v9504
        %v9508 = vadd.f32 %v9474, %v9504
        %v9509 = vadd.f32 %v9475, %v9504
        %v9510 = vadd.f32 %v9476, %v9504
        %v9511 = vadd.f32 %v9477, %v9504
        %v9512 = vadd.f32 %v9478, %v9504
        %v9513 = vadd.f32 %v9479, %v9504
        %v9514 = vadd.f32 %v9480, %v9504
        %v9515 = vadd.f32 %v9481, %v9504
        %v9516 = vadd.f32 %v9482, %v9504
        %v9517 = vadd.f32 %v9483, %v9504
        %v9518 = vadd.f32 %v9484, %v9504
        %v9519 = vadd.f32 %v9485, %v9504
        %v9520 = vadd.f32 %v9486, %v9504
        %v9521 = vadd.f32 %v9487, %v9504
        %v9522 = vadd.f32 %v9488, %v9504
        %v9523 = vadd.f32 %v9489, %v9504
        %v9524 = vadd.f32 %v9490, %v9504
        %v9525 = vadd.f32 %v9491, %v9504
        %v9526 = vadd.f32 %v9492, %v9504
        %v9527 = vadd.f32 %v9493, %v9504
        %v9528 = vadd.f32 %v9494, %v9504
        %v9529 = vadd.f32 %v9495, %v9504
        %v9530 = vadd.f32 %v9496, %v9504
        %v9531 = vadd.f32 %v9497, %v9504
        %v9532 = vadd.f32 %v9498, %v9504
        %v9533 = vadd.f32 %v9499, %v9504
        %v9534 = vadd.f32 %v9500, %v9504
        %v9535 = vadd.f32 %v9501, %v9504
        %v9536 = vadd.f32 %v9502, %v9504
        %v9537 = vmax.f32 %v9505, 0.0
        %v9538 = vmax.f32 %v9506, 0.0
        %v9539 = vmax.f32 %v9507, 0.0
        %v9540 = vmax.f32 %v9508, 0.0
        %v9541 = vmax.f32 %v9509, 0.0
        %v9542 = vmax.f32 %v9510, 0.0
        %v9543 = vmax.f32 %v9511, 0.0
        %v9544 = vmax.f32 %v9512, 0.0
        %v9545 = vmax.f32 %v9513, 0.0
        %v9546 = vmax.f32 %v9514, 0.0
        %v9547 = vmax.f32 %v9515, 0.0
        %v9548 = vmax.f32 %v9516, 0.0
        %v9549 = vmax.f32 %v9517, 0.0
        %v9550 = vmax.f32 %v9518, 0.0
        %v9551 = vmax.f32 %v9519, 0.0
        %v9552 = vmax.f32 %v9520, 0.0
        %v9553 = vmax.f32 %v9521, 0.0
        %v9554 = vmax.f32 %v9522, 0.0
        %v9555 = vmax.f32 %v9523, 0.0
        %v9556 = vmax.f32 %v9524, 0.0
        %v9557 = vmax.f32 %v9525, 0.0
        %v9558 = vmax.f32 %v9526, 0.0
        %v9559 = vmax.f32 %v9527, 0.0
        %v9560 = vmax.f32 %v9528, 0.0
        %v9561 = vmax.f32 %v9529, 0.0
        %v9562 = vmax.f32 %v9530, 0.0
        %v9563 = vmax.f32 %v9531, 0.0
        %v9564 = vmax.f32 %v9532, 0.0
        %v9565 = vmax.f32 %v9533, 0.0
        %v9566 = vmax.f32 %v9534, 0.0
        %v9567 = vmax.f32 %v9535, 0.0
        %v9568 = vmax.f32 %v9536, 0.0
        %9601 = vrot.lane.b32.xlu0 %v9537, 118
        %v9602 = vpop.permute.xlu0 %9601
        %9603 = vrot.lane.b32.xlu0 %v9538, 118
        %v9604 = vpop.permute.xlu0 %9603
        %9605 = vrot.lane.b32.xlu0 %v9539, 118
        %v9606 = vpop.permute.xlu0 %9605
        %9607 = vrot.lane.b32.xlu0 %v9540, 118
        %v9608 = vpop.permute.xlu0 %9607
        %9609 = vrot.lane.b32.xlu0 %v9541, 118
        %v9610 = vpop.permute.xlu0 %9609
        %9611 = vrot.lane.b32.xlu0 %v9542, 118
        %v9612 = vpop.permute.xlu0 %9611
        %9613 = vrot.lane.b32.xlu0 %v9543, 118
        %v9614 = vpop.permute.xlu0 %9613
        %9615 = vrot.lane.b32.xlu0 %v9544, 118
        %v9616 = vpop.permute.xlu0 %9615
        %9617 = vrot.lane.b32.xlu0 %v9545, 118
        %v9618 = vpop.permute.xlu0 %9617
        %9619 = vrot.lane.b32.xlu0 %v9546, 118
        %v9620 = vpop.permute.xlu0 %9619
        %9621 = vrot.lane.b32.xlu0 %v9547, 118
        %v9622 = vpop.permute.xlu0 %9621
        %9623 = vrot.lane.b32.xlu0 %v9548, 118
        %v9624 = vpop.permute.xlu0 %9623
        %9625 = vrot.lane.b32.xlu0 %v9549, 118
        %v9626 = vpop.permute.xlu0 %9625
        %9627 = vrot.lane.b32.xlu0 %v9550, 118
        %v9628 = vpop.permute.xlu0 %9627
        %9629 = vrot.lane.b32.xlu0 %v9551, 118
        %v9630 = vpop.permute.xlu0 %9629
        %9631 = vrot.lane.b32.xlu0 %v9552, 118
        %v9632 = vpop.permute.xlu0 %9631
        %9633 = vrot.lane.b32.xlu0 %v9553, 118
        %v9634 = vpop.permute.xlu0 %9633
        %9635 = vrot.lane.b32.xlu0 %v9554, 118
        %v9636 = vpop.permute.xlu0 %9635
        %9637 = vrot.lane.b32.xlu0 %v9555, 118
        %v9638 = vpop.permute.xlu0 %9637
        %9639 = vrot.lane.b32.xlu0 %v9556, 118
        %v9640 = vpop.permute.xlu0 %9639
        %9641 = vrot.lane.b32.xlu0 %v9557, 118
        %v9642 = vpop.permute.xlu0 %9641
        %9643 = vrot.lane.b32.xlu0 %v9558, 118
        %v9644 = vpop.permute.xlu0 %9643
        %9645 = vrot.lane.b32.xlu0 %v9559, 118
        %v9646 = vpop.permute.xlu0 %9645
        %9647 = vrot.lane.b32.xlu0 %v9560, 118
        %v9648 = vpop.permute.xlu0 %9647
        %9649 = vrot.lane.b32.xlu0 %v9561, 118
        %v9650 = vpop.permute.xlu0 %9649
        %9651 = vrot.lane.b32.xlu0 %v9562, 118
        %v9652 = vpop.permute.xlu0 %9651
        %9653 = vrot.lane.b32.xlu0 %v9563, 118
        %v9654 = vpop.permute.xlu0 %9653
        %9655 = vrot.lane.b32.xlu0 %v9564, 118
        %v9656 = vpop.permute.xlu0 %9655
        %9657 = vrot.lane.b32.xlu0 %v9565, 118
        %v9658 = vpop.permute.xlu0 %9657
        %9659 = vrot.lane.b32.xlu0 %v9566, 118
        %v9660 = vpop.permute.xlu0 %9659
        %9661 = vrot.lane.b32.xlu0 %v9567, 118
        %v9662 = vpop.permute.xlu0 %9661
        %9663 = vrot.lane.b32.xlu0 %v9568, 118
        %v9664 = vpop.permute.xlu0 %9663
        %vm9697 = vcmask 7168
        %9698 = vst.msk [vmem:[%s409] sm:$0xff] %vm9697, %v9602
        %9699 = vst.msk [vmem:[%s409 + $0x8] sm:$0xff] %vm9697, %v9604
        %9700 = vst.msk [vmem:[%s409 + $0x10] sm:$0xff] %vm9697, %v9606
        %9701 = vst.msk [vmem:[%s409 + $0x18] sm:$0xff] %vm9697, %v9608
        %9702 = vst.msk [vmem:[%s409 + $0x20] sm:$0xff] %vm9697, %v9610
        %9703 = vst.msk [vmem:[%s409 + $0x28] sm:$0xff] %vm9697, %v9612
        %9704 = vst.msk [vmem:[%s409 + $0x30] sm:$0xff] %vm9697, %v9614
        %9705 = vst.msk [vmem:[%s409 + $0x38] sm:$0xff] %vm9697, %v9616
        %9706 = vst.msk [vmem:[%s409 + $0x40] sm:$0xff] %vm9697, %v9618
        %9707 = vst.msk [vmem:[%s409 + $0x48] sm:$0xff] %vm9697, %v9620
        %9708 = vst.msk [vmem:[%s409 + $0x50] sm:$0xff] %vm9697, %v9622
        %9709 = vst.msk [vmem:[%s409 + $0x58] sm:$0xff] %vm9697, %v9624
        %9710 = vst.msk [vmem:[%s409 + $0x60] sm:$0xff] %vm9697, %v9626
        %9711 = vst.msk [vmem:[%s409 + $0x68] sm:$0xff] %vm9697, %v9628
        %9712 = vst.msk [vmem:[%s409 + $0x70] sm:$0xff] %vm9697, %v9630
        %9713 = vst.msk [vmem:[%s409 + $0x78] sm:$0xff] %vm9697, %v9632
        %9714 = vst.msk [vmem:[%s409 + $0x80] sm:$0xff] %vm9697, %v9634
        %9715 = vst.msk [vmem:[%s409 + $0x88] sm:$0xff] %vm9697, %v9636
        %9716 = vst.msk [vmem:[%s409 + $0x90] sm:$0xff] %vm9697, %v9638
        %9717 = vst.msk [vmem:[%s409 + $0x98] sm:$0xff] %vm9697, %v9640
        %9718 = vst.msk [vmem:[%s409 + $0xa0] sm:$0xff] %vm9697, %v9642
        %9719 = vst.msk [vmem:[%s409 + $0xa8] sm:$0xff] %vm9697, %v9644
        %9720 = vst.msk [vmem:[%s409 + $0xb0] sm:$0xff] %vm9697, %v9646
        %9721 = vst.msk [vmem:[%s409 + $0xb8] sm:$0xff] %vm9697, %v9648
        %9722 = vst.msk [vmem:[%s409 + $0xc0] sm:$0xff] %vm9697, %v9650
        %9723 = vst.msk [vmem:[%s409 + $0xc8] sm:$0xff] %vm9697, %v9652
        %9724 = vst.msk [vmem:[%s409 + $0xd0] sm:$0xff] %vm9697, %v9654
        %9725 = vst.msk [vmem:[%s409 + $0xd8] sm:$0xff] %vm9697, %v9656
        %9726 = vst.msk [vmem:[%s409 + $0xe0] sm:$0xff] %vm9697, %v9658
        %9727 = vst.msk [vmem:[%s409 + $0xe8] sm:$0xff] %vm9697, %v9660
        %9728 = vst.msk [vmem:[%s409 + $0xf0] sm:$0xff] %vm9697, %v9662
        %9729 = vst.msk [vmem:[%s409 + $0xf8] sm:$0xff] %vm9697, %v9664
        %s9730 = smul.u32 32, %s28
        %p9731 = scmp.lt.s32.totalorder %s9730, 63
        %s9732 = scalar_select %p9731, %s9730, 63
        %s9733 = smul.addr %s9732, 8
        %s9734 = scalar_lea.vmem %s8, %s9733
        // Predicated region
        $region73: #{tpu_custom_call.1} parent=51 // pred_check
          %p9735 = pneg %p224
        $region74: #{tpu_custom_call.1} parent=51 // pred_check_branch
          %9737 = sbr.rel (%p9735) target = $region76
        $region75: #{tpu_custom_call.1} parent=51 // pred_region
          %s9738 = smul.u32 32, %s28
        $region76: #{tpu_custom_call.1} parent=51 // pred_fallthru
          _
      $region52: #{tpu_custom_call.1} parent=5 // pred_fallthru
        _
      %p9739 = scmp.le.s32.totalorder 2, %s23
      // Predicated region
      $region77: #{tpu_custom_call.1} parent=5 // pred_check
        %p9740 = pneg %p9739
      $region78: #{tpu_custom_call.1} parent=5 // pred_check_branch
        %9742 = sbr.rel (%p9740) target = $region80
      $region79: #{tpu_custom_call.1} parent=5 // pred_region
        %s9743 = ssub.s32 %s23, 2
        // Predicated region
        $region81: #{tpu_custom_call.1} parent=79 // pred_check
          %p9744 = pneg %p230
        $region82: #{tpu_custom_call.1} parent=79 // pred_check_branch
          %9746 = sbr.rel (%p9744) target = $region84
        $region83: #{tpu_custom_call.1} parent=79 // pred_region
          %s9747 = smul.u32 32, %s29
          %p9748 = scmp.lt.s32.totalorder %s9747, 63
          %s9749 = scalar_select %p9748, %s9747, 63
          %s9750 = smul.addr %s9749, 8
          %s9751 = scalar_lea.vmem %s8, %s9750
        $region84: #{tpu_custom_call.1} parent=79 // pred_fallthru
          _
      $region80: #{tpu_custom_call.1} parent=5 // pred_fallthru
        _
    $region6: #{tpu_custom_call.1} parent=1 // loop_footer
      %s27 = sadd.s32 1, %s23
    $region7: #{tpu_custom_call.1} parent=1 // loop_footer_branch
      %22 = sbr.rel target = $region3
    $region8: #{tpu_custom_call.1} parent=1 // loop_exit
      _
    %9752 = vsyncpa [#allocation4], 1
    %s9753 = scalar_lea.sflag [#allocation4], 1
    %9754 = vsyncpa %s9753, 1
    %9755 = vsyncpa [#allocation7], 1
    %s9756 = scalar_lea.sflag [#allocation7], 1
    %9757 = vsyncpa %s9756, 1
    %9758 = vsyncpa [#allocation10], 1
    %9759 = vsyncpa [#allocation5], 1
    %s9760 = scalar_lea.sflag [#allocation5], 1
    %9761 = vsyncpa %s9760, 1

</llo_original>
